<compile_context>
chip_gen: v7x
topology: tpu7x:2x2x1
jax: 0.10.0
libtpu: 0.0.40
codegen_flags: <defaults>
</compile_context>

<pallas_src>
import functools

import jax
import jax.numpy as jnp
from jax.experimental import pallas as pl
from jax.experimental.pallas import tpu as pltpu


# --------------------------------------------------------------------------------------
# in-kernel helpers
# --------------------------------------------------------------------------------------
def _layernorm(x, gamma, beta, eps=1e-5):
    # f32 elementwise path; rsqrt goes to the EUP (free slot next to the VPU work).
    mean = jnp.mean(x, axis=-1, keepdims=True)
    var = jnp.mean((x - mean) ** 2, axis=-1, keepdims=True)
    return (x - mean) * jax.lax.rsqrt(var + eps) * gamma + beta


def _mha(q_b16, kv_b16, wq_ref, wk_ref, wv_ref, woT_ref, bo_ref, *, heads, bt, sq, skv):
    """Multi-head attention matching the PyTorch SelfAttention forward (mask=None).

    q_b16  : [bt*sq,  E] bf16  (batch flattened into M, lane-dense)
    kv_b16 : [bt*skv, E] bf16  (keys == values tensor, as in the module)
    wq/wk/wv_ref : [E, E] bf16 block-diagonal per-head projections
                   (1/sqrt(d_key) already folded into wq host-side)
    woT_ref: [E, E] bf16 fc_out weight (transposed), bo_ref: [1, E] f32 bias
    returns: [bt*sq, E] f32
    """
    E = q_b16.shape[-1]
    D = E // heads

    # Fused projections: one lane-dense matmul each, M = bt*seq (contraction = E).
    qp = jnp.dot(q_b16, wq_ref[...], preferred_element_type=jnp.float32).astype(jnp.bfloat16)
    kp = jnp.dot(kv_b16, wk_ref[...], preferred_element_type=jnp.float32).astype(jnp.bfloat16)
    vp = jnp.dot(kv_b16, wv_ref[...], preferred_element_type=jnp.float32).astype(jnp.bfloat16)

    batch_outs = []
    for bi in range(bt):                       # static unroll; bt is small
        qb = qp[bi * sq:(bi + 1) * sq, :]
        kb = kp[bi * skv:(bi + 1) * skv, :]
        vb = vp[bi * skv:(bi + 1) * skv, :]
        head_outs = []
        for h in range(heads):                 # static unroll; heads is small
            qh = qb[:, h * D:(h + 1) * D]
            kh = kb[:, h * D:(h + 1) * D]
            vh = vb[:, h * D:(h + 1) * D]
            # contract on D of both operands -> no kh.T / XLU transpose
            e = jax.lax.dot_general(
                qh, kh, dimension_numbers=(((1,), (1,)), ((), ())),
                preferred_element_type=jnp.float32)                      # [sq, skv] f32
            e = e - jnp.max(e, axis=-1, keepdims=True)                   # stable softmax
            p = jnp.exp(e)
            p = p * pl.reciprocal(jnp.sum(p, axis=-1, keepdims=True), approx=True)  # EUP
            head_outs.append(jnp.dot(p.astype(jnp.bfloat16), vh,
                                     preferred_element_type=jnp.float32))
        # concatenate heads along the lane axis in registers (no VMEM scratch / vst.msk)
        batch_outs.append(jnp.concatenate(head_outs, axis=-1))
    att = jnp.concatenate(batch_outs, axis=0)                            # [bt*sq, E] f32

    # single fc_out matmul over the concatenated heads (contraction = E)
    return jnp.dot(att.astype(jnp.bfloat16), woT_ref[...],
                   preferred_element_type=jnp.float32) + bo_ref[...]


# --------------------------------------------------------------------------------------
# fully fused Decoder kernel: all layers + final fc_out, activation resident in VMEM
# --------------------------------------------------------------------------------------
def decoder_kernel(
    x_ref, enc_ref,
    # DecoderBlock self-attention (queries = keys = values = x) + DecoderBlock.norm
    wq1_ref, wk1_ref, wv1_ref, wo1T_ref, bo1_ref, gn_ref, bn_ref,
    # TransformerBlock cross-attention (keys = values = encoder_out) + norm1
    wq2_ref, wk2_ref, wv2_ref, wo2T_ref, bo2_ref, g1_ref, b1n_ref,
    # TransformerBlock feed-forward
    w1T_ref, fb1_ref, w2T_ref, fb2_ref,
    # final Decoder.fc_out
    woutT_ref, bout_ref,
    out_ref,
    act_ref,                         # VMEM scratch [bt*St, E] f32, resident across layers
    *, heads, bt, st, ss,
):
    layer = pl.program_id(1)
    n_layers = pl.num_programs(1)
    E = act_ref.shape[-1]

    # ---- layer 0: load the embedded input into the resident activation scratch ----
    @pl.when(layer == 0)
    def _():
        act_ref[...] = x_ref[...].reshape(bt * st, E)

    x = act_ref[...]                                     # [M, E] f32 residual path
    x_b16 = x.astype(jnp.bfloat16)
    enc_b16 = enc_ref[...].reshape(bt * ss, E).astype(jnp.bfloat16)

    # ---- DecoderBlock: self attention + residual + norm (dropout p=0 -> identity) ----
    att1 = _mha(x_b16, x_b16, wq1_ref, wk1_ref, wv1_ref, wo1T_ref, bo1_ref,
                heads=heads, bt=bt, sq=st, skv=st)
    q = _layernorm(att1 + x, gn_ref[...], bn_ref[...])

    # ---- TransformerBlock: cross attention + residual + norm1 ----
    att2 = _mha(q.astype(jnp.bfloat16), enc_b16, wq2_ref, wk2_ref, wv2_ref,
                wo2T_ref, bo2_ref, heads=heads, bt=bt, sq=st, skv=ss)
    h1 = _layernorm(att2 + q, g1_ref[...], b1n_ref[...])

    # ---- feed forward + residual + norm1 again (module reuses norm1, not norm2) ----
    hid = jnp.dot(h1.astype(jnp.bfloat16), w1T_ref[...],
                  preferred_element_type=jnp.float32) + fb1_ref[...]
    hid = jnp.maximum(hid, 0.0)
    ff = jnp.dot(hid.astype(jnp.bfloat16), w2T_ref[...],
                 preferred_element_type=jnp.float32) + fb2_ref[...]
    out_act = _layernorm(ff + h1, g1_ref[...], b1n_ref[...])

    act_ref[...] = out_act                               # carry to the next layer step

    # ---- last layer: final vocab projection, single lane-dense HBM write ----
    @pl.when(layer == n_layers - 1)
    def _():
        logits = jnp.dot(out_act.astype(jnp.bfloat16), woutT_ref[...],
                         preferred_element_type=jnp.float32) + bout_ref[...]
        out_ref[...] = logits.reshape(bt, st, -1).astype(out_ref.dtype)


def decoder_pallas(x_emb, enc, kp, *, heads, bt):
    """x_emb: [B, St, E] f32 embedded decoder input, enc: [B, Ss, E] f32 encoder output."""
    B, St, E = x_emb.shape
    Ss = enc.shape[1]
    L = kp["wq1"].shape[0]
    FE = kp["w1T"].shape[2]
    V = kp["w_outT"].shape[1]
    assert B % bt == 0

    kernel = functools.partial(decoder_kernel, heads=heads, bt=bt, st=St, ss=Ss)

    lsel = lambda b, l: (l, 0, 0)     # per-layer stacked weight: pick layer l
    csel = lambda b, l: (0, 0)        # constant (final fc_out) weight

    in_specs = [
        pl.BlockSpec((bt, St, E), lambda b, l: (b, 0, 0)),   # x (embedded), constant in l
        pl.BlockSpec((bt, Ss, E), lambda b, l: (b, 0, 0)),   # encoder_out, constant in l
        # self-attention + norm
        pl.BlockSpec((None, E, E), lsel), pl.BlockSpec((None, E, E), lsel),
        pl.BlockSpec((None, E, E), lsel), pl.BlockSpec((None, E, E), lsel),
        pl.BlockSpec((None, 1, E), lsel),
        pl.BlockSpec((None, 1, E), lsel), pl.BlockSpec((None, 1, E), lsel),
        # cross-attention + norm1
        pl.BlockSpec((None, E, E), lsel), pl.BlockSpec((None, E, E), lsel),
        pl.BlockSpec((None, E, E), lsel), pl.BlockSpec((None, E, E), lsel),
        pl.BlockSpec((None, 1, E), lsel),
        pl.BlockSpec((None, 1, E), lsel), pl.BlockSpec((None, 1, E), lsel),
        # feed-forward
        pl.BlockSpec((None, E, FE), lsel), pl.BlockSpec((None, 1, FE), lsel),
        pl.BlockSpec((None, FE, E), lsel), pl.BlockSpec((None, 1, E), lsel),
        # final fc_out (constant across all grid steps -> DMA'd once)
        pl.BlockSpec((E, V), csel), pl.BlockSpec((1, V), csel),
    ]

    return pl.pallas_call(
        kernel,
        out_shape=jax.ShapeDtypeStruct((B, St, V), jnp.float32),
        grid=(B // bt, L),
        in_specs=in_specs,
        # same output block across the layer axis -> written only at the last layer
        out_specs=pl.BlockSpec((bt, St, V), lambda b, l: (b, 0, 0)),
        scratch_shapes=[pltpu.VMEM((bt * St, E), jnp.float32)],
        compiler_params=pltpu.CompilerParams(
            dimension_semantics=("parallel", "arbitrary")),
    )(
        x_emb, enc,
        kp["wq1"], kp["wk1"], kp["wv1"], kp["wo1T"], kp["bo1"], kp["gn"], kp["bn"],
        kp["wq2"], kp["wk2"], kp["wv2"], kp["wo2T"], kp["bo2"], kp["g1"], kp["b1n"],
        kp["w1T"], kp["b1"], kp["w2T"], kp["b2"],
        kp["w_outT"], kp["b_out"],
    )


@functools.partial(jax.jit, static_argnames=("heads", "bt"))
def decoder_forward(tokens, encoder_out, kp, *, heads, bt):
    """Pallas-backed Decoder.forward (mask=None, dropout p=0), fully jitted."""
    # Embedding lookup stays in plain-JAX glue (data-dependent gather). Module quirk kept:
    # position_embedding is indexed with the TOKEN IDS (the computed positions are unused).
    x = kp["word_emb"][tokens] + kp["pos_emb"][tokens]
    return decoder_pallas(x, encoder_out, kp, heads=heads, bt=bt)


# --------------------------------------------------------------------------------------
# one-time host-side parameter preparation (hoisted out of the per-call path)
# --------------------------------------------------------------------------------------
def _block_diag(w_t, heads):
    # [D, D] -> block-diagonal [E, E]: one lane-dense [M,E] @ [E,E] applies the
    # per-head Linear(D, D) to every head chunk at once (no per-head tiny matmuls).
    return jnp.kron(jnp.eye(heads, dtype=w_t.dtype), w_t)


def prepare_decoder_params(params, *, heads, St, Ss):
    """Build kernel-ready params ONCE: stacked [L,...] bf16 MXU weights / f32 biases."""
    b16 = jnp.bfloat16
    layers = params["layers"]

    def stack(fn):
        return jnp.stack([fn(lp) for lp in layers])

    return dict(
        # 1/sqrt(d_key) folded into Wq (d_key = key *sequence length*, per the module)
        wq1=stack(lambda lp: _block_diag(lp["satt"]["wq"].T / (St ** 0.5), heads)).astype(b16),
        wk1=stack(lambda lp: _block_diag(lp["satt"]["wk"].T, heads)).astype(b16),
        wv1=stack(lambda lp: _block_diag(lp["satt"]["wv"].T, heads)).astype(b16),
        wo1T=stack(lambda lp: lp["satt"]["wo"].T).astype(b16),
        bo1=stack(lambda lp: lp["satt"]["bo"][None, :]),
        gn=stack(lambda lp: lp["gn"][None, :]),
        bn=stack(lambda lp: lp["bn"][None, :]),
        wq2=stack(lambda lp: _block_diag(lp["tatt"]["wq"].T / (Ss ** 0.5), heads)).astype(b16),
        wk2=stack(lambda lp: _block_diag(lp["tatt"]["wk"].T, heads)).astype(b16),
        wv2=stack(lambda lp: _block_diag(lp["tatt"]["wv"].T, heads)).astype(b16),
        wo2T=stack(lambda lp: lp["tatt"]["wo"].T).astype(b16),
        bo2=stack(lambda lp: lp["tatt"]["bo"][None, :]),
        g1=stack(lambda lp: lp["g1"][None, :]),
        b1n=stack(lambda lp: lp["b1n"][None, :]),
        w1T=stack(lambda lp: lp["w1"].T).astype(b16),
        b1=stack(lambda lp: lp["b1"][None, :]),
        w2T=stack(lambda lp: lp["w2"].T).astype(b16),
        b2=stack(lambda lp: lp["b2"][None, :]),
        w_outT=params["w_out"].T.astype(b16),
        b_out=params["b_out"][None, :],
        word_emb=params["word_emb"],
        pos_emb=params["pos_emb"],
    )


# --------------------------------------------------------------------------------------
# synthetic parameters (PyTorch-style shapes: Linear weight = [out, in]) and f32 reference
# --------------------------------------------------------------------------------------
def init_decoder_params(key, vocab, embed, heads, forward_expansion, num_layers, max_length):
    D = embed // heads
    FE = forward_expansion * embed

    def lin(k, fan_in, shape):
        bound = 1.0 / (fan_in ** 0.5)
        return jax.random.uniform(k, shape, jnp.float32, -bound, bound)

    def attention_params(k):
        ks = jax.random.split(k, 5)
        return dict(wq=lin(ks[0], D, (D, D)), wk=lin(ks[1], D, (D, D)),
                    wv=lin(ks[2], D, (D, D)),
                    wo=lin(ks[3], embed, (embed, embed)), bo=lin(ks[4], embed, (embed,)))

    def layer_params(k):
        ks = jax.random.split(k, 6)
        return dict(
            satt=attention_params(ks[0]),
            gn=jnp.ones((embed,), jnp.float32), bn=jnp.zeros((embed,), jnp.float32),
            tatt=attention_params(ks[1]),
            g1=jnp.ones((embed,), jnp.float32), b1n=jnp.zeros((embed,), jnp.float32),
            # note: TransformerBlock.norm2 exists in the module but is unused in forward
            w1=lin(ks[2], embed, (FE, embed)), b1=lin(ks[3], embed, (FE,)),
            w2=lin(ks[4], FE, (embed, FE)), b2=lin(ks[5], FE, (embed,)),
        )

    keys = jax.random.split(key, 4 + num_layers)
    return dict(
        word_emb=jax.random.normal(keys[0], (vocab, embed), jnp.float32),
        pos_emb=jax.random.normal(keys[1], (max_length, embed), jnp.float32),
        layers=[layer_params(keys[4 + i]) for i in range(num_layers)],
        w_out=lin(keys[2], embed, (vocab, embed)),
        b_out=lin(keys[3], embed, (vocab,)),
    )


def _ref_attention(q, k, v, p, heads):
    B, Sq, E = q.shape
    Sk = k.shape[1]
    D = E // heads
    qh = q.reshape(B, Sq, heads, D) @ p["wq"].T
    kh = k.reshape(B, Sk, heads, D) @ p["wk"].T
    vh = v.reshape(B, Sk, heads, D) @ p["wv"].T
    energy = jnp.einsum("nqhd,nkhd->nhqk", qh, kh)
    attn = jax.nn.softmax(energy / (Sk ** 0.5), axis=3)
    att = jnp.einsum("nhqk,nkhd->nqhd", attn, vh).reshape(B, Sq, E)
    return att @ p["wo"].T + p["bo"]


def _ref_ln(x, g, b, eps=1e-5):
    m = x.mean(-1, keepdims=True)
    var = ((x - m) ** 2).mean(-1, keepdims=True)
    return (x - m) / jnp.sqrt(var + eps) * g + b


def ref_decoder(tokens, enc, params, *, heads):
    """Plain-JAX f32 mirror of the PyTorch Decoder.forward (mask=None, dropout p=0)."""
    x = params["word_emb"][tokens] + params["pos_emb"][tokens]
    for lp in params["layers"]:
        att = _ref_attention(x, x, x, lp["satt"], heads)
        q = _ref_ln(att + x, lp["gn"], lp["bn"])
        att2 = _ref_attention(q, enc, enc, lp["tatt"], heads)
        h1 = _ref_ln(att2 + q, lp["g1"], lp["b1n"])
        ff = jnp.maximum(h1 @ lp["w1"].T + lp["b1"], 0.0) @ lp["w2"].T + lp["b2"]
        x = _ref_ln(ff + h1, lp["g1"], lp["b1n"])     # norm1 reused, matching the module
    return x @ params["w_out"].T + params["b_out"]


# --------------------------------------------------------------------------------------
if __name__ == "__main__":
    # embed_size = 128 keeps every activation / output tile lane-dense (last dim 128);
    # the module forces seq_len = embed_size // heads for every attention call.
    embed_size, heads, forward_expansion, num_layers = 128, 4, 4, 2
    trg_vocab_size, max_length = 128, 128
    B, BT = 4, 2                          # grid = (B//BT, L) = (2, 2): 2 parallel steps
    St = Ss = embed_size // heads         # 32; per-step matmul M = BT*St = 64

    key = jax.random.PRNGKey(0)
    kt, ke, kp_key = jax.random.split(key, 3)
    tokens = jax.random.randint(kt, (B, St), 0, min(trg_vocab_size, max_length))
    encoder_out = jax.random.normal(ke, (B, Ss, embed_size), jnp.float32)
    params = init_decoder_params(kp_key, trg_vocab_size, embed_size, heads,
                                 forward_expansion, num_layers, max_length)
    assert St * heads == embed_size and Ss * heads == embed_size, \
        "module requires d_key * heads == embed_size"

    # one-time weight prep (kron / transpose / bf16 cast) hoisted out of the call path
    kparams = prepare_decoder_params(params, heads=heads, St=St, Ss=Ss)

    out = decoder_forward(tokens, encoder_out, kparams, heads=heads, bt=BT)
    out = jax.block_until_ready(out)
    assert out.shape == (B, St, trg_vocab_size)

    ref = ref_decoder(tokens, encoder_out, params, heads=heads)
    err = float(jnp.max(jnp.abs(out - ref)))
    # bf16 MXU inputs (f32 accumulate) + approx reciprocal across 2 layers -> loose
    # tolerance vs the pure-f32 reference
    assert err < 2e-1, err
    print("KERNEL_OK")
</pallas_src>

<mosaic_0001>
module attributes {stable_mosaic.version = 11 : i64} {
  func.func @decoder_kernel(%arg0: i32, %arg1: i32, %arg2: memref<2x32x128xf32, #tpu.memory_space<vmem>>, %arg3: memref<2x32x128xf32, #tpu.memory_space<vmem>>, %arg4: memref<1x128x128xbf16, #tpu.memory_space<vmem>>, %arg5: memref<1x128x128xbf16, #tpu.memory_space<vmem>>, %arg6: memref<1x128x128xbf16, #tpu.memory_space<vmem>>, %arg7: memref<1x128x128xbf16, #tpu.memory_space<vmem>>, %arg8: memref<1x1x128xf32, #tpu.memory_space<vmem>>, %arg9: memref<1x1x128xf32, #tpu.memory_space<vmem>>, %arg10: memref<1x1x128xf32, #tpu.memory_space<vmem>>, %arg11: memref<1x128x128xbf16, #tpu.memory_space<vmem>>, %arg12: memref<1x128x128xbf16, #tpu.memory_space<vmem>>, %arg13: memref<1x128x128xbf16, #tpu.memory_space<vmem>>, %arg14: memref<1x128x128xbf16, #tpu.memory_space<vmem>>, %arg15: memref<1x1x128xf32, #tpu.memory_space<vmem>>, %arg16: memref<1x1x128xf32, #tpu.memory_space<vmem>>, %arg17: memref<1x1x128xf32, #tpu.memory_space<vmem>>, %arg18: memref<1x128x512xbf16, #tpu.memory_space<vmem>>, %arg19: memref<1x1x512xf32, #tpu.memory_space<vmem>>, %arg20: memref<1x512x128xbf16, #tpu.memory_space<vmem>>, %arg21: memref<1x1x128xf32, #tpu.memory_space<vmem>>, %arg22: memref<128x128xbf16, #tpu.memory_space<vmem>>, %arg23: memref<1x128xf32, #tpu.memory_space<vmem>>, %arg24: memref<2x32x128xf32, #tpu.memory_space<vmem>>, %arg25: memref<64x128xf32, #tpu.memory_space<vmem>>) attributes {dimension_semantics = [#tpu.dimension_semantics<parallel>, #tpu.dimension_semantics<arbitrary>], iteration_bounds = array<i64: 2, 2>, scalar_prefetch = 0 : i64, scratch_operands = 1 : i64, tpu.core_type = #tpu.core_type<tc>, window_params = [{transform_indices = @transform_0, window_bounds = array<i64: 2, 32, 128>}, {transform_indices = @transform_1, window_bounds = array<i64: 2, 32, 128>}, {transform_indices = @transform_2, window_bounds = array<i64: 1, 128, 128>}, {transform_indices = @transform_3, window_bounds = array<i64: 1, 128, 128>}, {transform_indices = @transform_4, window_bounds = array<i64: 1, 128, 128>}, {transform_indices = @transform_5, window_bounds = array<i64: 1, 128, 128>}, {transform_indices = @transform_6, window_bounds = array<i64: 1, 1, 128>}, {transform_indices = @transform_7, window_bounds = array<i64: 1, 1, 128>}, {transform_indices = @transform_8, window_bounds = array<i64: 1, 1, 128>}, {transform_indices = @transform_9, window_bounds = array<i64: 1, 128, 128>}, {transform_indices = @transform_10, window_bounds = array<i64: 1, 128, 128>}, {transform_indices = @transform_11, window_bounds = array<i64: 1, 128, 128>}, {transform_indices = @transform_12, window_bounds = array<i64: 1, 128, 128>}, {transform_indices = @transform_13, window_bounds = array<i64: 1, 1, 128>}, {transform_indices = @transform_14, window_bounds = array<i64: 1, 1, 128>}, {transform_indices = @transform_15, window_bounds = array<i64: 1, 1, 128>}, {transform_indices = @transform_16, window_bounds = array<i64: 1, 128, 512>}, {transform_indices = @transform_17, window_bounds = array<i64: 1, 1, 512>}, {transform_indices = @transform_18, window_bounds = array<i64: 1, 512, 128>}, {transform_indices = @transform_19, window_bounds = array<i64: 1, 1, 128>}, {pipeline_mode = #tpu.pipeline_mode<synchronous>, transform_indices = @transform_20, window_bounds = array<i64: 128, 128>}, {pipeline_mode = #tpu.pipeline_mode<synchronous>, transform_indices = @transform_21, window_bounds = array<i64: 1, 128>}, {transform_indices = @transform_22, window_bounds = array<i64: 2, 32, 128>}]} {
    %c0_i32 = arith.constant 0 : i32
    %0 = arith.cmpi eq, %arg1, %c0_i32 : i32
    %1 = arith.extui %0 : i1 to i32
    %c0_i32_0 = arith.constant 0 : i32
    %2 = arith.cmpi ne, %1, %c0_i32_0 : i32
    scf.if %2 {
      %c0_157 = arith.constant 0 : index
      %c0_158 = arith.constant 0 : index
      %c0_159 = arith.constant 0 : index
      %426 = vector.load %arg2[%c0_157, %c0_158, %c0_159] : memref<2x32x128xf32, #tpu.memory_space<vmem>>, vector<2x32x128xf32>
      %427 = vector.shape_cast %426 : vector<2x32x128xf32> to vector<64x128xf32>
      %c0_160 = arith.constant 0 : index
      %c0_161 = arith.constant 0 : index
      %428 = vector.load %arg25[%c0_160, %c0_161] : memref<64x128xf32, #tpu.memory_space<vmem>>, vector<64x128xf32>
      tpu.vector_store %arg25[%c0_160, %c0_161], %427 {strides = array<i32>} : memref<64x128xf32, #tpu.memory_space<vmem>>, vector<64x128xf32>,
    } else {
    }
    %c0 = arith.constant 0 : index
    %c0_1 = arith.constant 0 : index
    %3 = vector.load %arg25[%c0, %c0_1] : memref<64x128xf32, #tpu.memory_space<vmem>>, vector<64x128xf32>
    %4 = arith.truncf %3 : vector<64x128xf32> to vector<64x128xbf16>
    %c0_2 = arith.constant 0 : index
    %c0_3 = arith.constant 0 : index
    %c0_4 = arith.constant 0 : index
    %5 = vector.load %arg3[%c0_2, %c0_3, %c0_4] : memref<2x32x128xf32, #tpu.memory_space<vmem>>, vector<2x32x128xf32>
    %6 = vector.shape_cast %5 : vector<2x32x128xf32> to vector<64x128xf32>
    %7 = arith.truncf %6 : vector<64x128xf32> to vector<64x128xbf16>
    %c0_5 = arith.constant 0 : index
    %c0_6 = arith.constant 0 : index
    %c0_7 = arith.constant 0 : index
    %8 = vector.load %arg4[%c0_5, %c0_6, %c0_7] : memref<1x128x128xbf16, #tpu.memory_space<vmem>>, vector<1x128x128xbf16>
    %9 = vector.shape_cast %8 : vector<1x128x128xbf16> to vector<128x128xbf16>
    %cst = arith.constant dense<0.000000e+00> : vector<64x128xf32>
    %10 = tpu.matmul %4, %9, %cst {dimension_numbers = #tpu.dot_dimension_numbers<[1], [0], [0], [1], [0, 0, 1, 1], [], []>} : vector<64x128xbf16>, vector<128x128xbf16>, vector<64x128xf32> -> vector<64x128xf32>
    %11 = arith.truncf %10 : vector<64x128xf32> to vector<64x128xbf16>
    %c0_8 = arith.constant 0 : index
    %c0_9 = arith.constant 0 : index
    %c0_10 = arith.constant 0 : index
    %12 = vector.load %arg5[%c0_8, %c0_9, %c0_10] : memref<1x128x128xbf16, #tpu.memory_space<vmem>>, vector<1x128x128xbf16>
    %13 = vector.shape_cast %12 : vector<1x128x128xbf16> to vector<128x128xbf16>
    %cst_11 = arith.constant dense<0.000000e+00> : vector<64x128xf32>
    %14 = tpu.matmul %4, %13, %cst_11 {dimension_numbers = #tpu.dot_dimension_numbers<[1], [0], [0], [1], [0, 0, 1, 1], [], []>} : vector<64x128xbf16>, vector<128x128xbf16>, vector<64x128xf32> -> vector<64x128xf32>
    %15 = arith.truncf %14 : vector<64x128xf32> to vector<64x128xbf16>
    %c0_12 = arith.constant 0 : index
    %c0_13 = arith.constant 0 : index
    %c0_14 = arith.constant 0 : index
    %16 = vector.load %arg6[%c0_12, %c0_13, %c0_14] : memref<1x128x128xbf16, #tpu.memory_space<vmem>>, vector<1x128x128xbf16>
    %17 = vector.shape_cast %16 : vector<1x128x128xbf16> to vector<128x128xbf16>
    %cst_15 = arith.constant dense<0.000000e+00> : vector<64x128xf32>
    %18 = tpu.matmul %4, %17, %cst_15 {dimension_numbers = #tpu.dot_dimension_numbers<[1], [0], [0], [1], [0, 0, 1, 1], [], []>} : vector<64x128xbf16>, vector<128x128xbf16>, vector<64x128xf32> -> vector<64x128xf32>
    %19 = arith.truncf %18 : vector<64x128xf32> to vector<64x128xbf16>
    %20 = vector.extract_strided_slice %11 {offsets = [0, 0], sizes = [32, 128], strides = [1, 1]} : vector<64x128xbf16> to vector<32x128xbf16>
    %21 = vector.extract_strided_slice %15 {offsets = [0, 0], sizes = [32, 128], strides = [1, 1]} : vector<64x128xbf16> to vector<32x128xbf16>
    %22 = vector.extract_strided_slice %19 {offsets = [0, 0], sizes = [32, 128], strides = [1, 1]} : vector<64x128xbf16> to vector<32x128xbf16>
    %23 = vector.extract_strided_slice %20 {offsets = [0, 0], sizes = [32, 32], strides = [1, 1]} : vector<32x128xbf16> to vector<32x32xbf16>
    %24 = vector.extract_strided_slice %21 {offsets = [0, 0], sizes = [32, 32], strides = [1, 1]} : vector<32x128xbf16> to vector<32x32xbf16>
    %25 = vector.extract_strided_slice %22 {offsets = [0, 0], sizes = [32, 32], strides = [1, 1]} : vector<32x128xbf16> to vector<32x32xbf16>
    %cst_16 = arith.constant dense<0.000000e+00> : vector<32x32xf32>
    %26 = tpu.matmul %23, %24, %cst_16 {dimension_numbers = #tpu.dot_dimension_numbers<[1], [1], [0], [0], [0, 0, 1, 0], [], []>} : vector<32x32xbf16>, vector<32x32xbf16>, vector<32x32xf32> -> vector<32x32xf32>
    %cst_17 = arith.constant dense<0xFF800000> : vector<32xf32>
    %27 = vector.multi_reduction <maximumf>, %26, %cst_17 [1] : vector<32x32xf32> to vector<32xf32>
    %28 = vector.shape_cast %27 : vector<32xf32> to vector<32x1xf32>
    %29 = vector.broadcast %28 : vector<32x1xf32> to vector<32x32xf32>
    %30 = arith.subf %26, %29 : vector<32x32xf32>
    %31 = math.exp %30 : vector<32x32xf32>
    %cst_18 = arith.constant dense<0.000000e+00> : vector<32xf32>
    %32 = vector.multi_reduction <add>, %31, %cst_18 [1] : vector<32x32xf32> to vector<32xf32>
    %33 = vector.shape_cast %32 : vector<32xf32> to vector<32x1xf32>
    %34 = tpu.reciprocal %33 {approx = true} : vector<32x1xf32> -> vector<32x1xf32>
    %35 = vector.broadcast %34 : vector<32x1xf32> to vector<32x32xf32>
    %36 = arith.mulf %31, %35 : vector<32x32xf32>
    %37 = arith.truncf %36 : vector<32x32xf32> to vector<32x32xbf16>
    %cst_19 = arith.constant dense<0.000000e+00> : vector<32x32xf32>
    %38 = tpu.matmul %37, %25, %cst_19 {dimension_numbers = #tpu.dot_dimension_numbers<[1], [0], [0], [1], [0, 0, 1, 1], [], []>} : vector<32x32xbf16>, vector<32x32xbf16>, vector<32x32xf32> -> vector<32x32xf32>
    %39 = vector.extract_strided_slice %20 {offsets = [0, 32], sizes = [32, 32], strides = [1, 1]} : vector<32x128xbf16> to vector<32x32xbf16>
    %40 = vector.extract_strided_slice %21 {offsets = [0, 32], sizes = [32, 32], strides = [1, 1]} : vector<32x128xbf16> to vector<32x32xbf16>
    %41 = vector.extract_strided_slice %22 {offsets = [0, 32], sizes = [32, 32], strides = [1, 1]} : vector<32x128xbf16> to vector<32x32xbf16>
    %cst_20 = arith.constant dense<0.000000e+00> : vector<32x32xf32>
    %42 = tpu.matmul %39, %40, %cst_20 {dimension_numbers = #tpu.dot_dimension_numbers<[1], [1], [0], [0], [0, 0, 1, 0], [], []>} : vector<32x32xbf16>, vector<32x32xbf16>, vector<32x32xf32> -> vector<32x32xf32>
    %cst_21 = arith.constant dense<0xFF800000> : vector<32xf32>
    %43 = vector.multi_reduction <maximumf>, %42, %cst_21 [1] : vector<32x32xf32> to vector<32xf32>
    %44 = vector.shape_cast %43 : vector<32xf32> to vector<32x1xf32>
    %45 = vector.broadcast %44 : vector<32x1xf32> to vector<32x32xf32>
    %46 = arith.subf %42, %45 : vector<32x32xf32>
    %47 = math.exp %46 : vector<32x32xf32>
    %cst_22 = arith.constant dense<0.000000e+00> : vector<32xf32>
    %48 = vector.multi_reduction <add>, %47, %cst_22 [1] : vector<32x32xf32> to vector<32xf32>
    %49 = vector.shape_cast %48 : vector<32xf32> to vector<32x1xf32>
    %50 = tpu.reciprocal %49 {approx = true} : vector<32x1xf32> -> vector<32x1xf32>
    %51 = vector.broadcast %50 : vector<32x1xf32> to vector<32x32xf32>
    %52 = arith.mulf %47, %51 : vector<32x32xf32>
    %53 = arith.truncf %52 : vector<32x32xf32> to vector<32x32xbf16>
    %cst_23 = arith.constant dense<0.000000e+00> : vector<32x32xf32>
    %54 = tpu.matmul %53, %41, %cst_23 {dimension_numbers = #tpu.dot_dimension_numbers<[1], [0], [0], [1], [0, 0, 1, 1], [], []>} : vector<32x32xbf16>, vector<32x32xbf16>, vector<32x32xf32> -> vector<32x32xf32>
    %55 = vector.extract_strided_slice %20 {offsets = [0, 64], sizes = [32, 32], strides = [1, 1]} : vector<32x128xbf16> to vector<32x32xbf16>
    %56 = vector.extract_strided_slice %21 {offsets = [0, 64], sizes = [32, 32], strides = [1, 1]} : vector<32x128xbf16> to vector<32x32xbf16>
    %57 = vector.extract_strided_slice %22 {offsets = [0, 64], sizes = [32, 32], strides = [1, 1]} : vector<32x128xbf16> to vector<32x32xbf16>
    %cst_24 = arith.constant dense<0.000000e+00> : vector<32x32xf32>
    %58 = tpu.matmul %55, %56, %cst_24 {dimension_numbers = #tpu.dot_dimension_numbers<[1], [1], [0], [0], [0, 0, 1, 0], [], []>} : vector<32x32xbf16>, vector<32x32xbf16>, vector<32x32xf32> -> vector<32x32xf32>
    %cst_25 = arith.constant dense<0xFF800000> : vector<32xf32>
    %59 = vector.multi_reduction <maximumf>, %58, %cst_25 [1] : vector<32x32xf32> to vector<32xf32>
    %60 = vector.shape_cast %59 : vector<32xf32> to vector<32x1xf32>
    %61 = vector.broadcast %60 : vector<32x1xf32> to vector<32x32xf32>
    %62 = arith.subf %58, %61 : vector<32x32xf32>
    %63 = math.exp %62 : vector<32x32xf32>
    %cst_26 = arith.constant dense<0.000000e+00> : vector<32xf32>
    %64 = vector.multi_reduction <add>, %63, %cst_26 [1] : vector<32x32xf32> to vector<32xf32>
    %65 = vector.shape_cast %64 : vector<32xf32> to vector<32x1xf32>
    %66 = tpu.reciprocal %65 {approx = true} : vector<32x1xf32> -> vector<32x1xf32>
    %67 = vector.broadcast %66 : vector<32x1xf32> to vector<32x32xf32>
    %68 = arith.mulf %63, %67 : vector<32x32xf32>
    %69 = arith.truncf %68 : vector<32x32xf32> to vector<32x32xbf16>
    %cst_27 = arith.constant dense<0.000000e+00> : vector<32x32xf32>
    %70 = tpu.matmul %69, %57, %cst_27 {dimension_numbers = #tpu.dot_dimension_numbers<[1], [0], [0], [1], [0, 0, 1, 1], [], []>} : vector<32x32xbf16>, vector<32x32xbf16>, vector<32x32xf32> -> vector<32x32xf32>
    %71 = vector.extract_strided_slice %20 {offsets = [0, 96], sizes = [32, 32], strides = [1, 1]} : vector<32x128xbf16> to vector<32x32xbf16>
    %72 = vector.extract_strided_slice %21 {offsets = [0, 96], sizes = [32, 32], strides = [1, 1]} : vector<32x128xbf16> to vector<32x32xbf16>
    %73 = vector.extract_strided_slice %22 {offsets = [0, 96], sizes = [32, 32], strides = [1, 1]} : vector<32x128xbf16> to vector<32x32xbf16>
    %cst_28 = arith.constant dense<0.000000e+00> : vector<32x32xf32>
    %74 = tpu.matmul %71, %72, %cst_28 {dimension_numbers = #tpu.dot_dimension_numbers<[1], [1], [0], [0], [0, 0, 1, 0], [], []>} : vector<32x32xbf16>, vector<32x32xbf16>, vector<32x32xf32> -> vector<32x32xf32>
    %cst_29 = arith.constant dense<0xFF800000> : vector<32xf32>
    %75 = vector.multi_reduction <maximumf>, %74, %cst_29 [1] : vector<32x32xf32> to vector<32xf32>
    %76 = vector.shape_cast %75 : vector<32xf32> to vector<32x1xf32>
    %77 = vector.broadcast %76 : vector<32x1xf32> to vector<32x32xf32>
    %78 = arith.subf %74, %77 : vector<32x32xf32>
    %79 = math.exp %78 : vector<32x32xf32>
    %cst_30 = arith.constant dense<0.000000e+00> : vector<32xf32>
    %80 = vector.multi_reduction <add>, %79, %cst_30 [1] : vector<32x32xf32> to vector<32xf32>
    %81 = vector.shape_cast %80 : vector<32xf32> to vector<32x1xf32>
    %82 = tpu.reciprocal %81 {approx = true} : vector<32x1xf32> -> vector<32x1xf32>
    %83 = vector.broadcast %82 : vector<32x1xf32> to vector<32x32xf32>
    %84 = arith.mulf %79, %83 : vector<32x32xf32>
    %85 = arith.truncf %84 : vector<32x32xf32> to vector<32x32xbf16>
    %cst_31 = arith.constant dense<0.000000e+00> : vector<32x32xf32>
    %86 = tpu.matmul %85, %73, %cst_31 {dimension_numbers = #tpu.dot_dimension_numbers<[1], [0], [0], [1], [0, 0, 1, 1], [], []>} : vector<32x32xbf16>, vector<32x32xbf16>, vector<32x32xf32> -> vector<32x32xf32>
    %87 = tpu.concatenate %38, %54, %70, %86 in 1 : vector<32x32xf32>, vector<32x32xf32>, vector<32x32xf32>, vector<32x32xf32> -> vector<32x128xf32>
    %88 = vector.extract_strided_slice %11 {offsets = [32, 0], sizes = [32, 128], strides = [1, 1]} : vector<64x128xbf16> to vector<32x128xbf16>
    %89 = vector.extract_strided_slice %15 {offsets = [32, 0], sizes = [32, 128], strides = [1, 1]} : vector<64x128xbf16> to vector<32x128xbf16>
    %90 = vector.extract_strided_slice %19 {offsets = [32, 0], sizes = [32, 128], strides = [1, 1]} : vector<64x128xbf16> to vector<32x128xbf16>
    %91 = vector.extract_strided_slice %88 {offsets = [0, 0], sizes = [32, 32], strides = [1, 1]} : vector<32x128xbf16> to vector<32x32xbf16>
    %92 = vector.extract_strided_slice %89 {offsets = [0, 0], sizes = [32, 32], strides = [1, 1]} : vector<32x128xbf16> to vector<32x32xbf16>
    %93 = vector.extract_strided_slice %90 {offsets = [0, 0], sizes = [32, 32], strides = [1, 1]} : vector<32x128xbf16> to vector<32x32xbf16>
    %cst_32 = arith.constant dense<0.000000e+00> : vector<32x32xf32>
    %94 = tpu.matmul %91, %92, %cst_32 {dimension_numbers = #tpu.dot_dimension_numbers<[1], [1], [0], [0], [0, 0, 1, 0], [], []>} : vector<32x32xbf16>, vector<32x32xbf16>, vector<32x32xf32> -> vector<32x32xf32>
    %cst_33 = arith.constant dense<0xFF800000> : vector<32xf32>
    %95 = vector.multi_reduction <maximumf>, %94, %cst_33 [1] : vector<32x32xf32> to vector<32xf32>
    %96 = vector.shape_cast %95 : vector<32xf32> to vector<32x1xf32>
    %97 = vector.broadcast %96 : vector<32x1xf32> to vector<32x32xf32>
    %98 = arith.subf %94, %97 : vector<32x32xf32>
    %99 = math.exp %98 : vector<32x32xf32>
    %cst_34 = arith.constant dense<0.000000e+00> : vector<32xf32>
    %100 = vector.multi_reduction <add>, %99, %cst_34 [1] : vector<32x32xf32> to vector<32xf32>
    %101 = vector.shape_cast %100 : vector<32xf32> to vector<32x1xf32>
    %102 = tpu.reciprocal %101 {approx = true} : vector<32x1xf32> -> vector<32x1xf32>
    %103 = vector.broadcast %102 : vector<32x1xf32> to vector<32x32xf32>
    %104 = arith.mulf %99, %103 : vector<32x32xf32>
    %105 = arith.truncf %104 : vector<32x32xf32> to vector<32x32xbf16>
    %cst_35 = arith.constant dense<0.000000e+00> : vector<32x32xf32>
    %106 = tpu.matmul %105, %93, %cst_35 {dimension_numbers = #tpu.dot_dimension_numbers<[1], [0], [0], [1], [0, 0, 1, 1], [], []>} : vector<32x32xbf16>, vector<32x32xbf16>, vector<32x32xf32> -> vector<32x32xf32>
    %107 = vector.extract_strided_slice %88 {offsets = [0, 32], sizes = [32, 32], strides = [1, 1]} : vector<32x128xbf16> to vector<32x32xbf16>
    %108 = vector.extract_strided_slice %89 {offsets = [0, 32], sizes = [32, 32], strides = [1, 1]} : vector<32x128xbf16> to vector<32x32xbf16>
    %109 = vector.extract_strided_slice %90 {offsets = [0, 32], sizes = [32, 32], strides = [1, 1]} : vector<32x128xbf16> to vector<32x32xbf16>
    %cst_36 = arith.constant dense<0.000000e+00> : vector<32x32xf32>
    %110 = tpu.matmul %107, %108, %cst_36 {dimension_numbers = #tpu.dot_dimension_numbers<[1], [1], [0], [0], [0, 0, 1, 0], [], []>} : vector<32x32xbf16>, vector<32x32xbf16>, vector<32x32xf32> -> vector<32x32xf32>
    %cst_37 = arith.constant dense<0xFF800000> : vector<32xf32>
    %111 = vector.multi_reduction <maximumf>, %110, %cst_37 [1] : vector<32x32xf32> to vector<32xf32>
    %112 = vector.shape_cast %111 : vector<32xf32> to vector<32x1xf32>
    %113 = vector.broadcast %112 : vector<32x1xf32> to vector<32x32xf32>
    %114 = arith.subf %110, %113 : vector<32x32xf32>
    %115 = math.exp %114 : vector<32x32xf32>
    %cst_38 = arith.constant dense<0.000000e+00> : vector<32xf32>
    %116 = vector.multi_reduction <add>, %115, %cst_38 [1] : vector<32x32xf32> to vector<32xf32>
    %117 = vector.shape_cast %116 : vector<32xf32> to vector<32x1xf32>
    %118 = tpu.reciprocal %117 {approx = true} : vector<32x1xf32> -> vector<32x1xf32>
    %119 = vector.broadcast %118 : vector<32x1xf32> to vector<32x32xf32>
    %120 = arith.mulf %115, %119 : vector<32x32xf32>
    %121 = arith.truncf %120 : vector<32x32xf32> to vector<32x32xbf16>
    %cst_39 = arith.constant dense<0.000000e+00> : vector<32x32xf32>
    %122 = tpu.matmul %121, %109, %cst_39 {dimension_numbers = #tpu.dot_dimension_numbers<[1], [0], [0], [1], [0, 0, 1, 1], [], []>} : vector<32x32xbf16>, vector<32x32xbf16>, vector<32x32xf32> -> vector<32x32xf32>
    %123 = vector.extract_strided_slice %88 {offsets = [0, 64], sizes = [32, 32], strides = [1, 1]} : vector<32x128xbf16> to vector<32x32xbf16>
    %124 = vector.extract_strided_slice %89 {offsets = [0, 64], sizes = [32, 32], strides = [1, 1]} : vector<32x128xbf16> to vector<32x32xbf16>
    %125 = vector.extract_strided_slice %90 {offsets = [0, 64], sizes = [32, 32], strides = [1, 1]} : vector<32x128xbf16> to vector<32x32xbf16>
    %cst_40 = arith.constant dense<0.000000e+00> : vector<32x32xf32>
    %126 = tpu.matmul %123, %124, %cst_40 {dimension_numbers = #tpu.dot_dimension_numbers<[1], [1], [0], [0], [0, 0, 1, 0], [], []>} : vector<32x32xbf16>, vector<32x32xbf16>, vector<32x32xf32> -> vector<32x32xf32>
    %cst_41 = arith.constant dense<0xFF800000> : vector<32xf32>
    %127 = vector.multi_reduction <maximumf>, %126, %cst_41 [1] : vector<32x32xf32> to vector<32xf32>
    %128 = vector.shape_cast %127 : vector<32xf32> to vector<32x1xf32>
    %129 = vector.broadcast %128 : vector<32x1xf32> to vector<32x32xf32>
    %130 = arith.subf %126, %129 : vector<32x32xf32>
    %131 = math.exp %130 : vector<32x32xf32>
    %cst_42 = arith.constant dense<0.000000e+00> : vector<32xf32>
    %132 = vector.multi_reduction <add>, %131, %cst_42 [1] : vector<32x32xf32> to vector<32xf32>
    %133 = vector.shape_cast %132 : vector<32xf32> to vector<32x1xf32>
    %134 = tpu.reciprocal %133 {approx = true} : vector<32x1xf32> -> vector<32x1xf32>
    %135 = vector.broadcast %134 : vector<32x1xf32> to vector<32x32xf32>
    %136 = arith.mulf %131, %135 : vector<32x32xf32>
    %137 = arith.truncf %136 : vector<32x32xf32> to vector<32x32xbf16>
    %cst_43 = arith.constant dense<0.000000e+00> : vector<32x32xf32>
    %138 = tpu.matmul %137, %125, %cst_43 {dimension_numbers = #tpu.dot_dimension_numbers<[1], [0], [0], [1], [0, 0, 1, 1], [], []>} : vector<32x32xbf16>, vector<32x32xbf16>, vector<32x32xf32> -> vector<32x32xf32>
    %139 = vector.extract_strided_slice %88 {offsets = [0, 96], sizes = [32, 32], strides = [1, 1]} : vector<32x128xbf16> to vector<32x32xbf16>
    %140 = vector.extract_strided_slice %89 {offsets = [0, 96], sizes = [32, 32], strides = [1, 1]} : vector<32x128xbf16> to vector<32x32xbf16>
    %141 = vector.extract_strided_slice %90 {offsets = [0, 96], sizes = [32, 32], strides = [1, 1]} : vector<32x128xbf16> to vector<32x32xbf16>
    %cst_44 = arith.constant dense<0.000000e+00> : vector<32x32xf32>
    %142 = tpu.matmul %139, %140, %cst_44 {dimension_numbers = #tpu.dot_dimension_numbers<[1], [1], [0], [0], [0, 0, 1, 0], [], []>} : vector<32x32xbf16>, vector<32x32xbf16>, vector<32x32xf32> -> vector<32x32xf32>
    %cst_45 = arith.constant dense<0xFF800000> : vector<32xf32>
    %143 = vector.multi_reduction <maximumf>, %142, %cst_45 [1] : vector<32x32xf32> to vector<32xf32>
    %144 = vector.shape_cast %143 : vector<32xf32> to vector<32x1xf32>
    %145 = vector.broadcast %144 : vector<32x1xf32> to vector<32x32xf32>
    %146 = arith.subf %142, %145 : vector<32x32xf32>
    %147 = math.exp %146 : vector<32x32xf32>
    %cst_46 = arith.constant dense<0.000000e+00> : vector<32xf32>
    %148 = vector.multi_reduction <add>, %147, %cst_46 [1] : vector<32x32xf32> to vector<32xf32>
    %149 = vector.shape_cast %148 : vector<32xf32> to vector<32x1xf32>
    %150 = tpu.reciprocal %149 {approx = true} : vector<32x1xf32> -> vector<32x1xf32>
    %151 = vector.broadcast %150 : vector<32x1xf32> to vector<32x32xf32>
    %152 = arith.mulf %147, %151 : vector<32x32xf32>
    %153 = arith.truncf %152 : vector<32x32xf32> to vector<32x32xbf16>
    %cst_47 = arith.constant dense<0.000000e+00> : vector<32x32xf32>
    %154 = tpu.matmul %153, %141, %cst_47 {dimension_numbers = #tpu.dot_dimension_numbers<[1], [0], [0], [1], [0, 0, 1, 1], [], []>} : vector<32x32xbf16>, vector<32x32xbf16>, vector<32x32xf32> -> vector<32x32xf32>
    %155 = tpu.concatenate %106, %122, %138, %154 in 1 : vector<32x32xf32>, vector<32x32xf32>, vector<32x32xf32>, vector<32x32xf32> -> vector<32x128xf32>
    %156 = tpu.concatenate %87, %155 in 0 : vector<32x128xf32>, vector<32x128xf32> -> vector<64x128xf32>
    %157 = arith.truncf %156 : vector<64x128xf32> to vector<64x128xbf16>
    %c0_48 = arith.constant 0 : index
    %c0_49 = arith.constant 0 : index
    %c0_50 = arith.constant 0 : index
    %158 = vector.load %arg7[%c0_48, %c0_49, %c0_50] : memref<1x128x128xbf16, #tpu.memory_space<vmem>>, vector<1x128x128xbf16>
    %159 = vector.shape_cast %158 : vector<1x128x128xbf16> to vector<128x128xbf16>
    %cst_51 = arith.constant dense<0.000000e+00> : vector<64x128xf32>
    %160 = tpu.matmul %157, %159, %cst_51 {dimension_numbers = #tpu.dot_dimension_numbers<[1], [0], [0], [1], [0, 0, 1, 1], [], []>} : vector<64x128xbf16>, vector<128x128xbf16>, vector<64x128xf32> -> vector<64x128xf32>
    %c0_52 = arith.constant 0 : index
    %c0_53 = arith.constant 0 : index
    %c0_54 = arith.constant 0 : index
    %161 = vector.load %arg8[%c0_52, %c0_53, %c0_54] : memref<1x1x128xf32, #tpu.memory_space<vmem>>, vector<1x1x128xf32>
    %162 = vector.shape_cast %161 : vector<1x1x128xf32> to vector<1x128xf32>
    %163 = vector.broadcast %162 : vector<1x128xf32> to vector<64x128xf32>
    %164 = arith.addf %160, %163 : vector<64x128xf32>
    %165 = arith.addf %164, %3 : vector<64x128xf32>
    %c0_55 = arith.constant 0 : index
    %c0_56 = arith.constant 0 : index
    %c0_57 = arith.constant 0 : index
    %166 = vector.load %arg9[%c0_55, %c0_56, %c0_57] : memref<1x1x128xf32, #tpu.memory_space<vmem>>, vector<1x1x128xf32>
    %167 = vector.shape_cast %166 : vector<1x1x128xf32> to vector<1x128xf32>
    %c0_58 = arith.constant 0 : index
    %c0_59 = arith.constant 0 : index
    %c0_60 = arith.constant 0 : index
    %168 = vector.load %arg10[%c0_58, %c0_59, %c0_60] : memref<1x1x128xf32, #tpu.memory_space<vmem>>, vector<1x1x128xf32>
    %169 = vector.shape_cast %168 : vector<1x1x128xf32> to vector<1x128xf32>
    %cst_61 = arith.constant dense<0.000000e+00> : vector<64xf32>
    %170 = vector.multi_reduction <add>, %165, %cst_61 [1] : vector<64x128xf32> to vector<64xf32>
    %171 = vector.shape_cast %170 : vector<64xf32> to vector<64x1xf32>
    %cst_62 = arith.constant 1.280000e+02 : f32
    %172 = vector.broadcast %cst_62 : f32 to vector<64x1xf32>
    %173 = arith.divf %171, %172 : vector<64x1xf32>
    %174 = vector.broadcast %173 : vector<64x1xf32> to vector<64x128xf32>
    %175 = arith.subf %165, %174 : vector<64x128xf32>
    %176 = arith.mulf %175, %175 : vector<64x128xf32>
    %cst_63 = arith.constant dense<0.000000e+00> : vector<64xf32>
    %177 = vector.multi_reduction <add>, %176, %cst_63 [1] : vector<64x128xf32> to vector<64xf32>
    %178 = vector.shape_cast %177 : vector<64xf32> to vector<64x1xf32>
    %cst_64 = arith.constant 1.280000e+02 : f32
    %179 = vector.broadcast %cst_64 : f32 to vector<64x1xf32>
    %180 = arith.divf %178, %179 : vector<64x1xf32>
    %181 = vector.broadcast %173 : vector<64x1xf32> to vector<64x128xf32>
    %182 = arith.subf %165, %181 : vector<64x128xf32>
    %cst_65 = arith.constant 9.99999974E-6 : f32
    %183 = vector.broadcast %cst_65 : f32 to vector<64x1xf32>
    %184 = arith.addf %180, %183 : vector<64x1xf32>
    %185 = math.rsqrt %184 : vector<64x1xf32>
    %186 = vector.broadcast %185 : vector<64x1xf32> to vector<64x128xf32>
    %187 = arith.mulf %182, %186 : vector<64x128xf32>
    %188 = vector.broadcast %167 : vector<1x128xf32> to vector<64x128xf32>
    %189 = arith.mulf %187, %188 : vector<64x128xf32>
    %190 = vector.broadcast %169 : vector<1x128xf32> to vector<64x128xf32>
    %191 = arith.addf %189, %190 : vector<64x128xf32>
    %192 = arith.truncf %191 : vector<64x128xf32> to vector<64x128xbf16>
    %c0_66 = arith.constant 0 : index
    %c0_67 = arith.constant 0 : index
    %c0_68 = arith.constant 0 : index
    %193 = vector.load %arg11[%c0_66, %c0_67, %c0_68] : memref<1x128x128xbf16, #tpu.memory_space<vmem>>, vector<1x128x128xbf16>
    %194 = vector.shape_cast %193 : vector<1x128x128xbf16> to vector<128x128xbf16>
    %cst_69 = arith.constant dense<0.000000e+00> : vector<64x128xf32>
    %195 = tpu.matmul %192, %194, %cst_69 {dimension_numbers = #tpu.dot_dimension_numbers<[1], [0], [0], [1], [0, 0, 1, 1], [], []>} : vector<64x128xbf16>, vector<128x128xbf16>, vector<64x128xf32> -> vector<64x128xf32>
    %196 = arith.truncf %195 : vector<64x128xf32> to vector<64x128xbf16>
    %c0_70 = arith.constant 0 : index
    %c0_71 = arith.constant 0 : index
    %c0_72 = arith.constant 0 : index
    %197 = vector.load %arg12[%c0_70, %c0_71, %c0_72] : memref<1x128x128xbf16, #tpu.memory_space<vmem>>, vector<1x128x128xbf16>
    %198 = vector.shape_cast %197 : vector<1x128x128xbf16> to vector<128x128xbf16>
    %cst_73 = arith.constant dense<0.000000e+00> : vector<64x128xf32>
    %199 = tpu.matmul %7, %198, %cst_73 {dimension_numbers = #tpu.dot_dimension_numbers<[1], [0], [0], [1], [0, 0, 1, 1], [], []>} : vector<64x128xbf16>, vector<128x128xbf16>, vector<64x128xf32> -> vector<64x128xf32>
    %200 = arith.truncf %199 : vector<64x128xf32> to vector<64x128xbf16>
    %c0_74 = arith.constant 0 : index
    %c0_75 = arith.constant 0 : index
    %c0_76 = arith.constant 0 : index
    %201 = vector.load %arg13[%c0_74, %c0_75, %c0_76] : memref<1x128x128xbf16, #tpu.memory_space<vmem>>, vector<1x128x128xbf16>
    %202 = vector.shape_cast %201 : vector<1x128x128xbf16> to vector<128x128xbf16>
    %cst_77 = arith.constant dense<0.000000e+00> : vector<64x128xf32>
    %203 = tpu.matmul %7, %202, %cst_77 {dimension_numbers = #tpu.dot_dimension_numbers<[1], [0], [0], [1], [0, 0, 1, 1], [], []>} : vector<64x128xbf16>, vector<128x128xbf16>, vector<64x128xf32> -> vector<64x128xf32>
    %204 = arith.truncf %203 : vector<64x128xf32> to vector<64x128xbf16>
    %205 = vector.extract_strided_slice %196 {offsets = [0, 0], sizes = [32, 128], strides = [1, 1]} : vector<64x128xbf16> to vector<32x128xbf16>
    %206 = vector.extract_strided_slice %200 {offsets = [0, 0], sizes = [32, 128], strides = [1, 1]} : vector<64x128xbf16> to vector<32x128xbf16>
    %207 = vector.extract_strided_slice %204 {offsets = [0, 0], sizes = [32, 128], strides = [1, 1]} : vector<64x128xbf16> to vector<32x128xbf16>
    %208 = vector.extract_strided_slice %205 {offsets = [0, 0], sizes = [32, 32], strides = [1, 1]} : vector<32x128xbf16> to vector<32x32xbf16>
    %209 = vector.extract_strided_slice %206 {offsets = [0, 0], sizes = [32, 32], strides = [1, 1]} : vector<32x128xbf16> to vector<32x32xbf16>
    %210 = vector.extract_strided_slice %207 {offsets = [0, 0], sizes = [32, 32], strides = [1, 1]} : vector<32x128xbf16> to vector<32x32xbf16>
    %cst_78 = arith.constant dense<0.000000e+00> : vector<32x32xf32>
    %211 = tpu.matmul %208, %209, %cst_78 {dimension_numbers = #tpu.dot_dimension_numbers<[1], [1], [0], [0], [0, 0, 1, 0], [], []>} : vector<32x32xbf16>, vector<32x32xbf16>, vector<32x32xf32> -> vector<32x32xf32>
    %cst_79 = arith.constant dense<0xFF800000> : vector<32xf32>
    %212 = vector.multi_reduction <maximumf>, %211, %cst_79 [1] : vector<32x32xf32> to vector<32xf32>
    %213 = vector.shape_cast %212 : vector<32xf32> to vector<32x1xf32>
    %214 = vector.broadcast %213 : vector<32x1xf32> to vector<32x32xf32>
    %215 = arith.subf %211, %214 : vector<32x32xf32>
    %216 = math.exp %215 : vector<32x32xf32>
    %cst_80 = arith.constant dense<0.000000e+00> : vector<32xf32>
    %217 = vector.multi_reduction <add>, %216, %cst_80 [1] : vector<32x32xf32> to vector<32xf32>
    %218 = vector.shape_cast %217 : vector<32xf32> to vector<32x1xf32>
    %219 = tpu.reciprocal %218 {approx = true} : vector<32x1xf32> -> vector<32x1xf32>
    %220 = vector.broadcast %219 : vector<32x1xf32> to vector<32x32xf32>
    %221 = arith.mulf %216, %220 : vector<32x32xf32>
    %222 = arith.truncf %221 : vector<32x32xf32> to vector<32x32xbf16>
    %cst_81 = arith.constant dense<0.000000e+00> : vector<32x32xf32>
    %223 = tpu.matmul %222, %210, %cst_81 {dimension_numbers = #tpu.dot_dimension_numbers<[1], [0], [0], [1], [0, 0, 1, 1], [], []>} : vector<32x32xbf16>, vector<32x32xbf16>, vector<32x32xf32> -> vector<32x32xf32>
    %224 = vector.extract_strided_slice %205 {offsets = [0, 32], sizes = [32, 32], strides = [1, 1]} : vector<32x128xbf16> to vector<32x32xbf16>
    %225 = vector.extract_strided_slice %206 {offsets = [0, 32], sizes = [32, 32], strides = [1, 1]} : vector<32x128xbf16> to vector<32x32xbf16>
    %226 = vector.extract_strided_slice %207 {offsets = [0, 32], sizes = [32, 32], strides = [1, 1]} : vector<32x128xbf16> to vector<32x32xbf16>
    %cst_82 = arith.constant dense<0.000000e+00> : vector<32x32xf32>
    %227 = tpu.matmul %224, %225, %cst_82 {dimension_numbers = #tpu.dot_dimension_numbers<[1], [1], [0], [0], [0, 0, 1, 0], [], []>} : vector<32x32xbf16>, vector<32x32xbf16>, vector<32x32xf32> -> vector<32x32xf32>
    %cst_83 = arith.constant dense<0xFF800000> : vector<32xf32>
    %228 = vector.multi_reduction <maximumf>, %227, %cst_83 [1] : vector<32x32xf32> to vector<32xf32>
    %229 = vector.shape_cast %228 : vector<32xf32> to vector<32x1xf32>
    %230 = vector.broadcast %229 : vector<32x1xf32> to vector<32x32xf32>
    %231 = arith.subf %227, %230 : vector<32x32xf32>
    %232 = math.exp %231 : vector<32x32xf32>
    %cst_84 = arith.constant dense<0.000000e+00> : vector<32xf32>
    %233 = vector.multi_reduction <add>, %232, %cst_84 [1] : vector<32x32xf32> to vector<32xf32>
    %234 = vector.shape_cast %233 : vector<32xf32> to vector<32x1xf32>
    %235 = tpu.reciprocal %234 {approx = true} : vector<32x1xf32> -> vector<32x1xf32>
    %236 = vector.broadcast %235 : vector<32x1xf32> to vector<32x32xf32>
    %237 = arith.mulf %232, %236 : vector<32x32xf32>
    %238 = arith.truncf %237 : vector<32x32xf32> to vector<32x32xbf16>
    %cst_85 = arith.constant dense<0.000000e+00> : vector<32x32xf32>
    %239 = tpu.matmul %238, %226, %cst_85 {dimension_numbers = #tpu.dot_dimension_numbers<[1], [0], [0], [1], [0, 0, 1, 1], [], []>} : vector<32x32xbf16>, vector<32x32xbf16>, vector<32x32xf32> -> vector<32x32xf32>
    %240 = vector.extract_strided_slice %205 {offsets = [0, 64], sizes = [32, 32], strides = [1, 1]} : vector<32x128xbf16> to vector<32x32xbf16>
    %241 = vector.extract_strided_slice %206 {offsets = [0, 64], sizes = [32, 32], strides = [1, 1]} : vector<32x128xbf16> to vector<32x32xbf16>
    %242 = vector.extract_strided_slice %207 {offsets = [0, 64], sizes = [32, 32], strides = [1, 1]} : vector<32x128xbf16> to vector<32x32xbf16>
    %cst_86 = arith.constant dense<0.000000e+00> : vector<32x32xf32>
    %243 = tpu.matmul %240, %241, %cst_86 {dimension_numbers = #tpu.dot_dimension_numbers<[1], [1], [0], [0], [0, 0, 1, 0], [], []>} : vector<32x32xbf16>, vector<32x32xbf16>, vector<32x32xf32> -> vector<32x32xf32>
    %cst_87 = arith.constant dense<0xFF800000> : vector<32xf32>
    %244 = vector.multi_reduction <maximumf>, %243, %cst_87 [1] : vector<32x32xf32> to vector<32xf32>
    %245 = vector.shape_cast %244 : vector<32xf32> to vector<32x1xf32>
    %246 = vector.broadcast %245 : vector<32x1xf32> to vector<32x32xf32>
    %247 = arith.subf %243, %246 : vector<32x32xf32>
    %248 = math.exp %247 : vector<32x32xf32>
    %cst_88 = arith.constant dense<0.000000e+00> : vector<32xf32>
    %249 = vector.multi_reduction <add>, %248, %cst_88 [1] : vector<32x32xf32> to vector<32xf32>
    %250 = vector.shape_cast %249 : vector<32xf32> to vector<32x1xf32>
    %251 = tpu.reciprocal %250 {approx = true} : vector<32x1xf32> -> vector<32x1xf32>
    %252 = vector.broadcast %251 : vector<32x1xf32> to vector<32x32xf32>
    %253 = arith.mulf %248, %252 : vector<32x32xf32>
    %254 = arith.truncf %253 : vector<32x32xf32> to vector<32x32xbf16>
    %cst_89 = arith.constant dense<0.000000e+00> : vector<32x32xf32>
    %255 = tpu.matmul %254, %242, %cst_89 {dimension_numbers = #tpu.dot_dimension_numbers<[1], [0], [0], [1], [0, 0, 1, 1], [], []>} : vector<32x32xbf16>, vector<32x32xbf16>, vector<32x32xf32> -> vector<32x32xf32>
    %256 = vector.extract_strided_slice %205 {offsets = [0, 96], sizes = [32, 32], strides = [1, 1]} : vector<32x128xbf16> to vector<32x32xbf16>
    %257 = vector.extract_strided_slice %206 {offsets = [0, 96], sizes = [32, 32], strides = [1, 1]} : vector<32x128xbf16> to vector<32x32xbf16>
    %258 = vector.extract_strided_slice %207 {offsets = [0, 96], sizes = [32, 32], strides = [1, 1]} : vector<32x128xbf16> to vector<32x32xbf16>
    %cst_90 = arith.constant dense<0.000000e+00> : vector<32x32xf32>
    %259 = tpu.matmul %256, %257, %cst_90 {dimension_numbers = #tpu.dot_dimension_numbers<[1], [1], [0], [0], [0, 0, 1, 0], [], []>} : vector<32x32xbf16>, vector<32x32xbf16>, vector<32x32xf32> -> vector<32x32xf32>
    %cst_91 = arith.constant dense<0xFF800000> : vector<32xf32>
    %260 = vector.multi_reduction <maximumf>, %259, %cst_91 [1] : vector<32x32xf32> to vector<32xf32>
    %261 = vector.shape_cast %260 : vector<32xf32> to vector<32x1xf32>
    %262 = vector.broadcast %261 : vector<32x1xf32> to vector<32x32xf32>
    %263 = arith.subf %259, %262 : vector<32x32xf32>
    %264 = math.exp %263 : vector<32x32xf32>
    %cst_92 = arith.constant dense<0.000000e+00> : vector<32xf32>
    %265 = vector.multi_reduction <add>, %264, %cst_92 [1] : vector<32x32xf32> to vector<32xf32>
    %266 = vector.shape_cast %265 : vector<32xf32> to vector<32x1xf32>
    %267 = tpu.reciprocal %266 {approx = true} : vector<32x1xf32> -> vector<32x1xf32>
    %268 = vector.broadcast %267 : vector<32x1xf32> to vector<32x32xf32>
    %269 = arith.mulf %264, %268 : vector<32x32xf32>
    %270 = arith.truncf %269 : vector<32x32xf32> to vector<32x32xbf16>
    %cst_93 = arith.constant dense<0.000000e+00> : vector<32x32xf32>
    %271 = tpu.matmul %270, %258, %cst_93 {dimension_numbers = #tpu.dot_dimension_numbers<[1], [0], [0], [1], [0, 0, 1, 1], [], []>} : vector<32x32xbf16>, vector<32x32xbf16>, vector<32x32xf32> -> vector<32x32xf32>
    %272 = tpu.concatenate %223, %239, %255, %271 in 1 : vector<32x32xf32>, vector<32x32xf32>, vector<32x32xf32>, vector<32x32xf32> -> vector<32x128xf32>
    %273 = vector.extract_strided_slice %196 {offsets = [32, 0], sizes = [32, 128], strides = [1, 1]} : vector<64x128xbf16> to vector<32x128xbf16>
    %274 = vector.extract_strided_slice %200 {offsets = [32, 0], sizes = [32, 128], strides = [1, 1]} : vector<64x128xbf16> to vector<32x128xbf16>
    %275 = vector.extract_strided_slice %204 {offsets = [32, 0], sizes = [32, 128], strides = [1, 1]} : vector<64x128xbf16> to vector<32x128xbf16>
    %276 = vector.extract_strided_slice %273 {offsets = [0, 0], sizes = [32, 32], strides = [1, 1]} : vector<32x128xbf16> to vector<32x32xbf16>
    %277 = vector.extract_strided_slice %274 {offsets = [0, 0], sizes = [32, 32], strides = [1, 1]} : vector<32x128xbf16> to vector<32x32xbf16>
    %278 = vector.extract_strided_slice %275 {offsets = [0, 0], sizes = [32, 32], strides = [1, 1]} : vector<32x128xbf16> to vector<32x32xbf16>
    %cst_94 = arith.constant dense<0.000000e+00> : vector<32x32xf32>
    %279 = tpu.matmul %276, %277, %cst_94 {dimension_numbers = #tpu.dot_dimension_numbers<[1], [1], [0], [0], [0, 0, 1, 0], [], []>} : vector<32x32xbf16>, vector<32x32xbf16>, vector<32x32xf32> -> vector<32x32xf32>
    %cst_95 = arith.constant dense<0xFF800000> : vector<32xf32>
    %280 = vector.multi_reduction <maximumf>, %279, %cst_95 [1] : vector<32x32xf32> to vector<32xf32>
    %281 = vector.shape_cast %280 : vector<32xf32> to vector<32x1xf32>
    %282 = vector.broadcast %281 : vector<32x1xf32> to vector<32x32xf32>
    %283 = arith.subf %279, %282 : vector<32x32xf32>
    %284 = math.exp %283 : vector<32x32xf32>
    %cst_96 = arith.constant dense<0.000000e+00> : vector<32xf32>
    %285 = vector.multi_reduction <add>, %284, %cst_96 [1] : vector<32x32xf32> to vector<32xf32>
    %286 = vector.shape_cast %285 : vector<32xf32> to vector<32x1xf32>
    %287 = tpu.reciprocal %286 {approx = true} : vector<32x1xf32> -> vector<32x1xf32>
    %288 = vector.broadcast %287 : vector<32x1xf32> to vector<32x32xf32>
    %289 = arith.mulf %284, %288 : vector<32x32xf32>
    %290 = arith.truncf %289 : vector<32x32xf32> to vector<32x32xbf16>
    %cst_97 = arith.constant dense<0.000000e+00> : vector<32x32xf32>
    %291 = tpu.matmul %290, %278, %cst_97 {dimension_numbers = #tpu.dot_dimension_numbers<[1], [0], [0], [1], [0, 0, 1, 1], [], []>} : vector<32x32xbf16>, vector<32x32xbf16>, vector<32x32xf32> -> vector<32x32xf32>
    %292 = vector.extract_strided_slice %273 {offsets = [0, 32], sizes = [32, 32], strides = [1, 1]} : vector<32x128xbf16> to vector<32x32xbf16>
    %293 = vector.extract_strided_slice %274 {offsets = [0, 32], sizes = [32, 32], strides = [1, 1]} : vector<32x128xbf16> to vector<32x32xbf16>
    %294 = vector.extract_strided_slice %275 {offsets = [0, 32], sizes = [32, 32], strides = [1, 1]} : vector<32x128xbf16> to vector<32x32xbf16>
    %cst_98 = arith.constant dense<0.000000e+00> : vector<32x32xf32>
    %295 = tpu.matmul %292, %293, %cst_98 {dimension_numbers = #tpu.dot_dimension_numbers<[1], [1], [0], [0], [0, 0, 1, 0], [], []>} : vector<32x32xbf16>, vector<32x32xbf16>, vector<32x32xf32> -> vector<32x32xf32>
    %cst_99 = arith.constant dense<0xFF800000> : vector<32xf32>
    %296 = vector.multi_reduction <maximumf>, %295, %cst_99 [1] : vector<32x32xf32> to vector<32xf32>
    %297 = vector.shape_cast %296 : vector<32xf32> to vector<32x1xf32>
    %298 = vector.broadcast %297 : vector<32x1xf32> to vector<32x32xf32>
    %299 = arith.subf %295, %298 : vector<32x32xf32>
    %300 = math.exp %299 : vector<32x32xf32>
    %cst_100 = arith.constant dense<0.000000e+00> : vector<32xf32>
    %301 = vector.multi_reduction <add>, %300, %cst_100 [1] : vector<32x32xf32> to vector<32xf32>
    %302 = vector.shape_cast %301 : vector<32xf32> to vector<32x1xf32>
    %303 = tpu.reciprocal %302 {approx = true} : vector<32x1xf32> -> vector<32x1xf32>
    %304 = vector.broadcast %303 : vector<32x1xf32> to vector<32x32xf32>
    %305 = arith.mulf %300, %304 : vector<32x32xf32>
    %306 = arith.truncf %305 : vector<32x32xf32> to vector<32x32xbf16>
    %cst_101 = arith.constant dense<0.000000e+00> : vector<32x32xf32>
    %307 = tpu.matmul %306, %294, %cst_101 {dimension_numbers = #tpu.dot_dimension_numbers<[1], [0], [0], [1], [0, 0, 1, 1], [], []>} : vector<32x32xbf16>, vector<32x32xbf16>, vector<32x32xf32> -> vector<32x32xf32>
    %308 = vector.extract_strided_slice %273 {offsets = [0, 64], sizes = [32, 32], strides = [1, 1]} : vector<32x128xbf16> to vector<32x32xbf16>
    %309 = vector.extract_strided_slice %274 {offsets = [0, 64], sizes = [32, 32], strides = [1, 1]} : vector<32x128xbf16> to vector<32x32xbf16>
    %310 = vector.extract_strided_slice %275 {offsets = [0, 64], sizes = [32, 32], strides = [1, 1]} : vector<32x128xbf16> to vector<32x32xbf16>
    %cst_102 = arith.constant dense<0.000000e+00> : vector<32x32xf32>
    %311 = tpu.matmul %308, %309, %cst_102 {dimension_numbers = #tpu.dot_dimension_numbers<[1], [1], [0], [0], [0, 0, 1, 0], [], []>} : vector<32x32xbf16>, vector<32x32xbf16>, vector<32x32xf32> -> vector<32x32xf32>
    %cst_103 = arith.constant dense<0xFF800000> : vector<32xf32>
    %312 = vector.multi_reduction <maximumf>, %311, %cst_103 [1] : vector<32x32xf32> to vector<32xf32>
    %313 = vector.shape_cast %312 : vector<32xf32> to vector<32x1xf32>
    %314 = vector.broadcast %313 : vector<32x1xf32> to vector<32x32xf32>
    %315 = arith.subf %311, %314 : vector<32x32xf32>
    %316 = math.exp %315 : vector<32x32xf32>
    %cst_104 = arith.constant dense<0.000000e+00> : vector<32xf32>
    %317 = vector.multi_reduction <add>, %316, %cst_104 [1] : vector<32x32xf32> to vector<32xf32>
    %318 = vector.shape_cast %317 : vector<32xf32> to vector<32x1xf32>
    %319 = tpu.reciprocal %318 {approx = true} : vector<32x1xf32> -> vector<32x1xf32>
    %320 = vector.broadcast %319 : vector<32x1xf32> to vector<32x32xf32>
    %321 = arith.mulf %316, %320 : vector<32x32xf32>
    %322 = arith.truncf %321 : vector<32x32xf32> to vector<32x32xbf16>
    %cst_105 = arith.constant dense<0.000000e+00> : vector<32x32xf32>
    %323 = tpu.matmul %322, %310, %cst_105 {dimension_numbers = #tpu.dot_dimension_numbers<[1], [0], [0], [1], [0, 0, 1, 1], [], []>} : vector<32x32xbf16>, vector<32x32xbf16>, vector<32x32xf32> -> vector<32x32xf32>
    %324 = vector.extract_strided_slice %273 {offsets = [0, 96], sizes = [32, 32], strides = [1, 1]} : vector<32x128xbf16> to vector<32x32xbf16>
    %325 = vector.extract_strided_slice %274 {offsets = [0, 96], sizes = [32, 32], strides = [1, 1]} : vector<32x128xbf16> to vector<32x32xbf16>
    %326 = vector.extract_strided_slice %275 {offsets = [0, 96], sizes = [32, 32], strides = [1, 1]} : vector<32x128xbf16> to vector<32x32xbf16>
    %cst_106 = arith.constant dense<0.000000e+00> : vector<32x32xf32>
    %327 = tpu.matmul %324, %325, %cst_106 {dimension_numbers = #tpu.dot_dimension_numbers<[1], [1], [0], [0], [0, 0, 1, 0], [], []>} : vector<32x32xbf16>, vector<32x32xbf16>, vector<32x32xf32> -> vector<32x32xf32>
    %cst_107 = arith.constant dense<0xFF800000> : vector<32xf32>
    %328 = vector.multi_reduction <maximumf>, %327, %cst_107 [1] : vector<32x32xf32> to vector<32xf32>
    %329 = vector.shape_cast %328 : vector<32xf32> to vector<32x1xf32>
    %330 = vector.broadcast %329 : vector<32x1xf32> to vector<32x32xf32>
    %331 = arith.subf %327, %330 : vector<32x32xf32>
    %332 = math.exp %331 : vector<32x32xf32>
    %cst_108 = arith.constant dense<0.000000e+00> : vector<32xf32>
    %333 = vector.multi_reduction <add>, %332, %cst_108 [1] : vector<32x32xf32> to vector<32xf32>
    %334 = vector.shape_cast %333 : vector<32xf32> to vector<32x1xf32>
    %335 = tpu.reciprocal %334 {approx = true} : vector<32x1xf32> -> vector<32x1xf32>
    %336 = vector.broadcast %335 : vector<32x1xf32> to vector<32x32xf32>
    %337 = arith.mulf %332, %336 : vector<32x32xf32>
    %338 = arith.truncf %337 : vector<32x32xf32> to vector<32x32xbf16>
    %cst_109 = arith.constant dense<0.000000e+00> : vector<32x32xf32>
    %339 = tpu.matmul %338, %326, %cst_109 {dimension_numbers = #tpu.dot_dimension_numbers<[1], [0], [0], [1], [0, 0, 1, 1], [], []>} : vector<32x32xbf16>, vector<32x32xbf16>, vector<32x32xf32> -> vector<32x32xf32>
    %340 = tpu.concatenate %291, %307, %323, %339 in 1 : vector<32x32xf32>, vector<32x32xf32>, vector<32x32xf32>, vector<32x32xf32> -> vector<32x128xf32>
    %341 = tpu.concatenate %272, %340 in 0 : vector<32x128xf32>, vector<32x128xf32> -> vector<64x128xf32>
    %342 = arith.truncf %341 : vector<64x128xf32> to vector<64x128xbf16>
    %c0_110 = arith.constant 0 : index
    %c0_111 = arith.constant 0 : index
    %c0_112 = arith.constant 0 : index
    %343 = vector.load %arg14[%c0_110, %c0_111, %c0_112] : memref<1x128x128xbf16, #tpu.memory_space<vmem>>, vector<1x128x128xbf16>
    %344 = vector.shape_cast %343 : vector<1x128x128xbf16> to vector<128x128xbf16>
    %cst_113 = arith.constant dense<0.000000e+00> : vector<64x128xf32>
    %345 = tpu.matmul %342, %344, %cst_113 {dimension_numbers = #tpu.dot_dimension_numbers<[1], [0], [0], [1], [0, 0, 1, 1], [], []>} : vector<64x128xbf16>, vector<128x128xbf16>, vector<64x128xf32> -> vector<64x128xf32>
    %c0_114 = arith.constant 0 : index
    %c0_115 = arith.constant 0 : index
    %c0_116 = arith.constant 0 : index
    %346 = vector.load %arg15[%c0_114, %c0_115, %c0_116] : memref<1x1x128xf32, #tpu.memory_space<vmem>>, vector<1x1x128xf32>
    %347 = vector.shape_cast %346 : vector<1x1x128xf32> to vector<1x128xf32>
    %348 = vector.broadcast %347 : vector<1x128xf32> to vector<64x128xf32>
    %349 = arith.addf %345, %348 : vector<64x128xf32>
    %350 = arith.addf %349, %191 : vector<64x128xf32>
    %c0_117 = arith.constant 0 : index
    %c0_118 = arith.constant 0 : index
    %c0_119 = arith.constant 0 : index
    %351 = vector.load %arg16[%c0_117, %c0_118, %c0_119] : memref<1x1x128xf32, #tpu.memory_space<vmem>>, vector<1x1x128xf32>
    %352 = vector.shape_cast %351 : vector<1x1x128xf32> to vector<1x128xf32>
    %c0_120 = arith.constant 0 : index
    %c0_121 = arith.constant 0 : index
    %c0_122 = arith.constant 0 : index
    %353 = vector.load %arg17[%c0_120, %c0_121, %c0_122] : memref<1x1x128xf32, #tpu.memory_space<vmem>>, vector<1x1x128xf32>
    %354 = vector.shape_cast %353 : vector<1x1x128xf32> to vector<1x128xf32>
    %cst_123 = arith.constant dense<0.000000e+00> : vector<64xf32>
    %355 = vector.multi_reduction <add>, %350, %cst_123 [1] : vector<64x128xf32> to vector<64xf32>
    %356 = vector.shape_cast %355 : vector<64xf32> to vector<64x1xf32>
    %cst_124 = arith.constant 1.280000e+02 : f32
    %357 = vector.broadcast %cst_124 : f32 to vector<64x1xf32>
    %358 = arith.divf %356, %357 : vector<64x1xf32>
    %359 = vector.broadcast %358 : vector<64x1xf32> to vector<64x128xf32>
    %360 = arith.subf %350, %359 : vector<64x128xf32>
    %361 = arith.mulf %360, %360 : vector<64x128xf32>
    %cst_125 = arith.constant dense<0.000000e+00> : vector<64xf32>
    %362 = vector.multi_reduction <add>, %361, %cst_125 [1] : vector<64x128xf32> to vector<64xf32>
    %363 = vector.shape_cast %362 : vector<64xf32> to vector<64x1xf32>
    %cst_126 = arith.constant 1.280000e+02 : f32
    %364 = vector.broadcast %cst_126 : f32 to vector<64x1xf32>
    %365 = arith.divf %363, %364 : vector<64x1xf32>
    %366 = vector.broadcast %358 : vector<64x1xf32> to vector<64x128xf32>
    %367 = arith.subf %350, %366 : vector<64x128xf32>
    %cst_127 = arith.constant 9.99999974E-6 : f32
    %368 = vector.broadcast %cst_127 : f32 to vector<64x1xf32>
    %369 = arith.addf %365, %368 : vector<64x1xf32>
    %370 = math.rsqrt %369 : vector<64x1xf32>
    %371 = vector.broadcast %370 : vector<64x1xf32> to vector<64x128xf32>
    %372 = arith.mulf %367, %371 : vector<64x128xf32>
    %373 = vector.broadcast %352 : vector<1x128xf32> to vector<64x128xf32>
    %374 = arith.mulf %372, %373 : vector<64x128xf32>
    %375 = vector.broadcast %354 : vector<1x128xf32> to vector<64x128xf32>
    %376 = arith.addf %374, %375 : vector<64x128xf32>
    %377 = arith.truncf %376 : vector<64x128xf32> to vector<64x128xbf16>
    %c0_128 = arith.constant 0 : index
    %c0_129 = arith.constant 0 : index
    %c0_130 = arith.constant 0 : index
    %378 = vector.load %arg18[%c0_128, %c0_129, %c0_130] : memref<1x128x512xbf16, #tpu.memory_space<vmem>>, vector<1x128x512xbf16>
    %379 = vector.shape_cast %378 : vector<1x128x512xbf16> to vector<128x512xbf16>
    %cst_131 = arith.constant dense<0.000000e+00> : vector<64x512xf32>
    %380 = tpu.matmul %377, %379, %cst_131 {dimension_numbers = #tpu.dot_dimension_numbers<[1], [0], [0], [1], [0, 0, 1, 1], [], []>} : vector<64x128xbf16>, vector<128x512xbf16>, vector<64x512xf32> -> vector<64x512xf32>
    %c0_132 = arith.constant 0 : index
    %c0_133 = arith.constant 0 : index
    %c0_134 = arith.constant 0 : index
    %381 = vector.load %arg19[%c0_132, %c0_133, %c0_134] : memref<1x1x512xf32, #tpu.memory_space<vmem>>, vector<1x1x512xf32>
    %382 = vector.shape_cast %381 : vector<1x1x512xf32> to vector<1x512xf32>
    %383 = vector.broadcast %382 : vector<1x512xf32> to vector<64x512xf32>
    %384 = arith.addf %380, %383 : vector<64x512xf32>
    %cst_135 = arith.constant 0.000000e+00 : f32
    %385 = vector.broadcast %cst_135 : f32 to vector<64x512xf32>
    %386 = arith.maximumf %384, %385 : vector<64x512xf32>
    %387 = arith.truncf %386 : vector<64x512xf32> to vector<64x512xbf16>
    %c0_136 = arith.constant 0 : index
    %c0_137 = arith.constant 0 : index
    %c0_138 = arith.constant 0 : index
    %388 = vector.load %arg20[%c0_136, %c0_137, %c0_138] : memref<1x512x128xbf16, #tpu.memory_space<vmem>>, vector<1x512x128xbf16>
    %389 = vector.shape_cast %388 : vector<1x512x128xbf16> to vector<512x128xbf16>
    %cst_139 = arith.constant dense<0.000000e+00> : vector<64x128xf32>
    %390 = tpu.matmul %387, %389, %cst_139 {dimension_numbers = #tpu.dot_dimension_numbers<[1], [0], [0], [1], [0, 0, 1, 1], [], []>} : vector<64x512xbf16>, vector<512x128xbf16>, vector<64x128xf32> -> vector<64x128xf32>
    %c0_140 = arith.constant 0 : index
    %c0_141 = arith.constant 0 : index
    %c0_142 = arith.constant 0 : index
    %391 = vector.load %arg21[%c0_140, %c0_141, %c0_142] : memref<1x1x128xf32, #tpu.memory_space<vmem>>, vector<1x1x128xf32>
    %392 = vector.shape_cast %391 : vector<1x1x128xf32> to vector<1x128xf32>
    %393 = vector.broadcast %392 : vector<1x128xf32> to vector<64x128xf32>
    %394 = arith.addf %390, %393 : vector<64x128xf32>
    %395 = arith.addf %394, %376 : vector<64x128xf32>
    %c0_143 = arith.constant 0 : index
    %c0_144 = arith.constant 0 : index
    %c0_145 = arith.constant 0 : index
    %396 = vector.load %arg16[%c0_143, %c0_144, %c0_145] : memref<1x1x128xf32, #tpu.memory_space<vmem>>, vector<1x1x128xf32>
    %397 = vector.shape_cast %396 : vector<1x1x128xf32> to vector<1x128xf32>
    %c0_146 = arith.constant 0 : index
    %c0_147 = arith.constant 0 : index
    %c0_148 = arith.constant 0 : index
    %398 = vector.load %arg17[%c0_146, %c0_147, %c0_148] : memref<1x1x128xf32, #tpu.memory_space<vmem>>, vector<1x1x128xf32>
    %399 = vector.shape_cast %398 : vector<1x1x128xf32> to vector<1x128xf32>
    %cst_149 = arith.constant dense<0.000000e+00> : vector<64xf32>
    %400 = vector.multi_reduction <add>, %395, %cst_149 [1] : vector<64x128xf32> to vector<64xf32>
    %401 = vector.shape_cast %400 : vector<64xf32> to vector<64x1xf32>
    %cst_150 = arith.constant 1.280000e+02 : f32
    %402 = vector.broadcast %cst_150 : f32 to vector<64x1xf32>
    %403 = arith.divf %401, %402 : vector<64x1xf32>
    %404 = vector.broadcast %403 : vector<64x1xf32> to vector<64x128xf32>
    %405 = arith.subf %395, %404 : vector<64x128xf32>
    %406 = arith.mulf %405, %405 : vector<64x128xf32>
    %cst_151 = arith.constant dense<0.000000e+00> : vector<64xf32>
    %407 = vector.multi_reduction <add>, %406, %cst_151 [1] : vector<64x128xf32> to vector<64xf32>
    %408 = vector.shape_cast %407 : vector<64xf32> to vector<64x1xf32>
    %cst_152 = arith.constant 1.280000e+02 : f32
    %409 = vector.broadcast %cst_152 : f32 to vector<64x1xf32>
    %410 = arith.divf %408, %409 : vector<64x1xf32>
    %411 = vector.broadcast %403 : vector<64x1xf32> to vector<64x128xf32>
    %412 = arith.subf %395, %411 : vector<64x128xf32>
    %cst_153 = arith.constant 9.99999974E-6 : f32
    %413 = vector.broadcast %cst_153 : f32 to vector<64x1xf32>
    %414 = arith.addf %410, %413 : vector<64x1xf32>
    %415 = math.rsqrt %414 : vector<64x1xf32>
    %416 = vector.broadcast %415 : vector<64x1xf32> to vector<64x128xf32>
    %417 = arith.mulf %412, %416 : vector<64x128xf32>
    %418 = vector.broadcast %397 : vector<1x128xf32> to vector<64x128xf32>
    %419 = arith.mulf %417, %418 : vector<64x128xf32>
    %420 = vector.broadcast %399 : vector<1x128xf32> to vector<64x128xf32>
    %421 = arith.addf %419, %420 : vector<64x128xf32>
    %c0_154 = arith.constant 0 : index
    %c0_155 = arith.constant 0 : index
    %422 = vector.load %arg25[%c0_154, %c0_155] : memref<64x128xf32, #tpu.memory_space<vmem>>, vector<64x128xf32>
    tpu.vector_store %arg25[%c0_154, %c0_155], %421 {strides = array<i32>} : memref<64x128xf32, #tpu.memory_space<vmem>>, vector<64x128xf32>,
    %c1_i32 = arith.constant 1 : i32
    %423 = arith.cmpi eq, %arg1, %c1_i32 : i32
    %424 = arith.extui %423 : i1 to i32
    %c0_i32_156 = arith.constant 0 : i32
    %425 = arith.cmpi ne, %424, %c0_i32_156 : i32
    scf.if %425 {
      %426 = arith.truncf %421 : vector<64x128xf32> to vector<64x128xbf16>
      %c0_157 = arith.constant 0 : index
      %c0_158 = arith.constant 0 : index
      %427 = vector.load %arg22[%c0_157, %c0_158] : memref<128x128xbf16, #tpu.memory_space<vmem>>, vector<128x128xbf16>
      %cst_159 = arith.constant dense<0.000000e+00> : vector<64x128xf32>
      %428 = tpu.matmul %426, %427, %cst_159 {dimension_numbers = #tpu.dot_dimension_numbers<[1], [0], [0], [1], [0, 0, 1, 1], [], []>} : vector<64x128xbf16>, vector<128x128xbf16>, vector<64x128xf32> -> vector<64x128xf32>
      %c0_160 = arith.constant 0 : index
      %c0_161 = arith.constant 0 : index
      %429 = vector.load %arg23[%c0_160, %c0_161] : memref<1x128xf32, #tpu.memory_space<vmem>>, vector<1x128xf32>
      %430 = vector.broadcast %429 : vector<1x128xf32> to vector<64x128xf32>
      %431 = arith.addf %428, %430 : vector<64x128xf32>
      %432 = vector.shape_cast %431 : vector<64x128xf32> to vector<2x32x128xf32>
      %c0_162 = arith.constant 0 : index
      %c0_163 = arith.constant 0 : index
      %c0_164 = arith.constant 0 : index
      %433 = vector.load %arg24[%c0_162, %c0_163, %c0_164] : memref<2x32x128xf32, #tpu.memory_space<vmem>>, vector<2x32x128xf32>
      tpu.vector_store %arg24[%c0_162, %c0_163, %c0_164], %432 {strides = array<i32>} : memref<2x32x128xf32, #tpu.memory_space<vmem>>, vector<2x32x128xf32>,
    } else {
    }
    return
  }
  func.func @transform_0(%arg0: i32, %arg1: i32) -> (i32, i32, i32) {
    %c0_i32 = arith.constant 0 : i32
    %c0_i32_0 = arith.constant 0 : i32
    %c0_i32_1 = arith.constant 0 : i32
    return %arg0, %c0_i32, %c0_i32_0 : i32, i32, i32
  }
  func.func @transform_1(%arg0: i32, %arg1: i32) -> (i32, i32, i32) {
    %c0_i32 = arith.constant 0 : i32
    %c0_i32_0 = arith.constant 0 : i32
    %c0_i32_1 = arith.constant 0 : i32
    return %arg0, %c0_i32, %c0_i32_0 : i32, i32, i32
  }
  func.func @transform_2(%arg0: i32, %arg1: i32) -> (i32, i32, i32) {
    %c0_i32 = arith.constant 0 : i32
    %c0_i32_0 = arith.constant 0 : i32
    %c0_i32_1 = arith.constant 0 : i32
    return %arg1, %c0_i32, %c0_i32_0 : i32, i32, i32
  }
  func.func @transform_3(%arg0: i32, %arg1: i32) -> (i32, i32, i32) {
    %c0_i32 = arith.constant 0 : i32
    %c0_i32_0 = arith.constant 0 : i32
    %c0_i32_1 = arith.constant 0 : i32
    return %arg1, %c0_i32, %c0_i32_0 : i32, i32, i32
  }
  func.func @transform_4(%arg0: i32, %arg1: i32) -> (i32, i32, i32) {
    %c0_i32 = arith.constant 0 : i32
    %c0_i32_0 = arith.constant 0 : i32
    %c0_i32_1 = arith.constant 0 : i32
    return %arg1, %c0_i32, %c0_i32_0 : i32, i32, i32
  }
  func.func @transform_5(%arg0: i32, %arg1: i32) -> (i32, i32, i32) {
    %c0_i32 = arith.constant 0 : i32
    %c0_i32_0 = arith.constant 0 : i32
    %c0_i32_1 = arith.constant 0 : i32
    return %arg1, %c0_i32, %c0_i32_0 : i32, i32, i32
  }
  func.func @transform_6(%arg0: i32, %arg1: i32) -> (i32, i32, i32) {
    %c0_i32 = arith.constant 0 : i32
    %c0_i32_0 = arith.constant 0 : i32
    %c0_i32_1 = arith.constant 0 : i32
    return %arg1, %c0_i32, %c0_i32_0 : i32, i32, i32
  }
  func.func @transform_7(%arg0: i32, %arg1: i32) -> (i32, i32, i32) {
    %c0_i32 = arith.constant 0 : i32
    %c0_i32_0 = arith.constant 0 : i32
    %c0_i32_1 = arith.constant 0 : i32
    return %arg1, %c0_i32, %c0_i32_0 : i32, i32, i32
  }
  func.func @transform_8(%arg0: i32, %arg1: i32) -> (i32, i32, i32) {
    %c0_i32 = arith.constant 0 : i32
    %c0_i32_0 = arith.constant 0 : i32
    %c0_i32_1 = arith.constant 0 : i32
    return %arg1, %c0_i32, %c0_i32_0 : i32, i32, i32
  }
  func.func @transform_9(%arg0: i32, %arg1: i32) -> (i32, i32, i32) {
    %c0_i32 = arith.constant 0 : i32
    %c0_i32_0 = arith.constant 0 : i32
    %c0_i32_1 = arith.constant 0 : i32
    return %arg1, %c0_i32, %c0_i32_0 : i32, i32, i32
  }
  func.func @transform_10(%arg0: i32, %arg1: i32) -> (i32, i32, i32) {
    %c0_i32 = arith.constant 0 : i32
    %c0_i32_0 = arith.constant 0 : i32
    %c0_i32_1 = arith.constant 0 : i32
    return %arg1, %c0_i32, %c0_i32_0 : i32, i32, i32
  }
  func.func @transform_11(%arg0: i32, %arg1: i32) -> (i32, i32, i32) {
    %c0_i32 = arith.constant 0 : i32
    %c0_i32_0 = arith.constant 0 : i32
    %c0_i32_1 = arith.constant 0 : i32
    return %arg1, %c0_i32, %c0_i32_0 : i32, i32, i32
  }
  func.func @transform_12(%arg0: i32, %arg1: i32) -> (i32, i32, i32) {
    %c0_i32 = arith.constant 0 : i32
    %c0_i32_0 = arith.constant 0 : i32
    %c0_i32_1 = arith.constant 0 : i32
    return %arg1, %c0_i32, %c0_i32_0 : i32, i32, i32
  }
  func.func @transform_13(%arg0: i32, %arg1: i32) -> (i32, i32, i32) {
    %c0_i32 = arith.constant 0 : i32
    %c0_i32_0 = arith.constant 0 : i32
    %c0_i32_1 = arith.constant 0 : i32
    return %arg1, %c0_i32, %c0_i32_0 : i32, i32, i32
  }
  func.func @transform_14(%arg0: i32, %arg1: i32) -> (i32, i32, i32) {
    %c0_i32 = arith.constant 0 : i32
    %c0_i32_0 = arith.constant 0 : i32
    %c0_i32_1 = arith.constant 0 : i32
    return %arg1, %c0_i32, %c0_i32_0 : i32, i32, i32
  }
  func.func @transform_15(%arg0: i32, %arg1: i32) -> (i32, i32, i32) {
    %c0_i32 = arith.constant 0 : i32
    %c0_i32_0 = arith.constant 0 : i32
    %c0_i32_1 = arith.constant 0 : i32
    return %arg1, %c0_i32, %c0_i32_0 : i32, i32, i32
  }
  func.func @transform_16(%arg0: i32, %arg1: i32) -> (i32, i32, i32) {
    %c0_i32 = arith.constant 0 : i32
    %c0_i32_0 = arith.constant 0 : i32
    %c0_i32_1 = arith.constant 0 : i32
    return %arg1, %c0_i32, %c0_i32_0 : i32, i32, i32
  }
  func.func @transform_17(%arg0: i32, %arg1: i32) -> (i32, i32, i32) {
    %c0_i32 = arith.constant 0 : i32
    %c0_i32_0 = arith.constant 0 : i32
    %c0_i32_1 = arith.constant 0 : i32
    return %arg1, %c0_i32, %c0_i32_0 : i32, i32, i32
  }
  func.func @transform_18(%arg0: i32, %arg1: i32) -> (i32, i32, i32) {
    %c0_i32 = arith.constant 0 : i32
    %c0_i32_0 = arith.constant 0 : i32
    %c0_i32_1 = arith.constant 0 : i32
    return %arg1, %c0_i32, %c0_i32_0 : i32, i32, i32
  }
  func.func @transform_19(%arg0: i32, %arg1: i32) -> (i32, i32, i32) {
    %c0_i32 = arith.constant 0 : i32
    %c0_i32_0 = arith.constant 0 : i32
    %c0_i32_1 = arith.constant 0 : i32
    return %arg1, %c0_i32, %c0_i32_0 : i32, i32, i32
  }
  func.func @transform_20(%arg0: i32, %arg1: i32) -> (i32, i32) {
    %c0_i32 = arith.constant 0 : i32
    %c0_i32_0 = arith.constant 0 : i32
    %c0_i32_1 = arith.constant 0 : i32
    return %c0_i32, %c0_i32_0 : i32, i32
  }
  func.func @transform_21(%arg0: i32, %arg1: i32) -> (i32, i32) {
    %c0_i32 = arith.constant 0 : i32
    %c0_i32_0 = arith.constant 0 : i32
    %c0_i32_1 = arith.constant 0 : i32
    return %c0_i32, %c0_i32_0 : i32, i32
  }
  func.func @transform_22(%arg0: i32, %arg1: i32) -> (i32, i32, i32) {
    %c0_i32 = arith.constant 0 : i32
    %c0_i32_0 = arith.constant 0 : i32
    %c0_i32_1 = arith.constant 0 : i32
    return %arg0, %c0_i32, %c0_i32_0 : i32, i32, i32
  }
}

</mosaic_0001>

<llo_original>
// kernel: decoder_forward.1
$region0: #{decoder_forward.1}
  #allocation0 [shape = 'u32[]', space=smem, size = 0x4, offset = 0x4, fixed_abs, tag = 'smem constant byte address 0x4 - core index']
  #allocation1 [shape = 'u32[144,128]{1,0:T(1,128)}', space=vmem, size = 0x12000, scoped, tag = 'internal scratch']
  #allocation2 [shape = 'f32[64,128]{1,0:T(8,128)}', space=vmem, size = 0x8000, scoped, tag = 'scratch operand']
  %s0 = inlined_call_operand.vmem [shape: f32[4,32,128], index: 0, kind: input, shape index: {}]
  %s1 = inlined_call_operand.vmem [shape: f32[4,32,128], index: 1, kind: input, shape index: {}]
  %s2 = inlined_call_operand.vmem [shape: bf16[2,128,128], index: 2, kind: input, shape index: {}]
  %s3 = inlined_call_operand.vmem [shape: bf16[2,128,128], index: 3, kind: input, shape index: {}]
  %s4 = inlined_call_operand.vmem [shape: bf16[2,128,128], index: 4, kind: input, shape index: {}]
  %s5 = inlined_call_operand.vmem [shape: bf16[2,128,128], index: 5, kind: input, shape index: {}]
  %s6 = inlined_call_operand.vmem [shape: f32[2,1,128], index: 6, kind: input, shape index: {}]
  %s7 = inlined_call_operand.vmem [shape: f32[2,1,128], index: 7, kind: input, shape index: {}]
  %s8 = inlined_call_operand.vmem [shape: f32[2,1,128], index: 8, kind: input, shape index: {}]
  %s9 = inlined_call_operand.vmem [shape: bf16[2,128,128], index: 9, kind: input, shape index: {}]
  %s10 = inlined_call_operand.vmem [shape: bf16[2,128,128], index: 10, kind: input, shape index: {}]
  %s11 = inlined_call_operand.vmem [shape: bf16[2,128,128], index: 11, kind: input, shape index: {}]
  %s12 = inlined_call_operand.vmem [shape: bf16[2,128,128], index: 12, kind: input, shape index: {}]
  %s13 = inlined_call_operand.vmem [shape: f32[2,1,128], index: 13, kind: input, shape index: {}]
  %s14 = inlined_call_operand.vmem [shape: f32[2,1,128], index: 14, kind: input, shape index: {}]
  %s15 = inlined_call_operand.vmem [shape: f32[2,1,128], index: 15, kind: input, shape index: {}]
  %s16 = inlined_call_operand.vmem [shape: bf16[2,128,512], index: 16, kind: input, shape index: {}]
  %s17 = inlined_call_operand.vmem [shape: f32[2,1,512], index: 17, kind: input, shape index: {}]
  %s18 = inlined_call_operand.vmem [shape: bf16[2,512,128], index: 18, kind: input, shape index: {}]
  %s19 = inlined_call_operand.vmem [shape: f32[2,1,128], index: 19, kind: input, shape index: {}]
  %s20 = inlined_call_operand.vmem [shape: bf16[128,128], index: 20, kind: input, shape index: {}]
  %s21 = inlined_call_operand.vmem [shape: f32[1,128], index: 21, kind: input, shape index: {}]
  %s22 = inlined_call_operand.hbm [shape: f32[4,32,128], index: 22, kind: output, shape index: {}]
  %s23 = sld [smem:[#allocation0]]
  $region129: #{decoder_forward.1} parent=0
    _
  %s25 = ssub.s32 1, %s23
  %s26 = scalar_select 0, %s25, %s23
  $region1: #{decoder_forward.1} parent=0
    #allocation3 [shape = 'u8[65536]{0}', space=vmem, size = 0x10000, scoped, tag = 'output window, operand 0']
    #allocation4 [shape = 's32[2]{0}', space=sflag, size = 0x8, scoped, tag = 'scoped memory for decoder_forward.1']
    %27 = vsyncpa [#allocation4], 0
    %s28 = scalar_lea.sflag [#allocation4], 1
    %29 = vsyncpa %s28, 0
    loop: start=0, step=1, limit=6
    $region2: #{decoder_forward.1} parent=1 // loop_pre_header
      _
    $region3: #{decoder_forward.1} parent=1 // loop_header
      %s31 = sphi 0, %s35
      %p32 = scmp.ge.s32.totalorder %s31, 6
      %s38 = sphi 0, %s50
      %s39 = sphi 0, %s46
      %s40 = sphi 0, %s38
      %s41 = sphi 0, %s39
      %s42 = sphi 0, %s40
      %s43 = sphi 0, %s41
      %s53 = sphi 0, %s55
      %s56 = sphi 0, %s53
      %s57 = sphi 0, %s56
      %s73 = sphi 0, %s57
      %s79 = sphi 0, %s81
      %s82 = sphi 0, %s79
      %s83 = sphi 0, %s82
      %s99 = sphi 0, %s83
      %s105 = sphi 0, %s107
      %s108 = sphi 0, %s105
      %s109 = sphi 0, %s108
      %s125 = sphi 0, %s109
      %s131 = sphi 0, %s133
      %s134 = sphi 0, %s131
      %s135 = sphi 0, %s134
      %s151 = sphi 0, %s135
      %s157 = sphi 0, %s159
      %s160 = sphi 0, %s157
      %s161 = sphi 0, %s160
      %s177 = sphi 0, %s161
      %s183 = sphi 0, %s185
      %s186 = sphi 0, %s183
      %s187 = sphi 0, %s186
      %s203 = sphi 0, %s187
      %s209 = sphi 0, %s211
      %s212 = sphi 0, %s209
      %s213 = sphi 0, %s212
      %s229 = sphi 0, %s213
      %s235 = sphi 0, %s237
      %s238 = sphi 0, %s235
      %s239 = sphi 0, %s238
      %s255 = sphi 0, %s239
      %s261 = sphi 0, %s263
      %s264 = sphi 0, %s261
      %s265 = sphi 0, %s264
      %s281 = sphi 0, %s265
      %s287 = sphi 0, %s289
      %s290 = sphi 0, %s287
      %s291 = sphi 0, %s290
      %s307 = sphi 0, %s291
      %s313 = sphi 0, %s315
      %s316 = sphi 0, %s313
      %s317 = sphi 0, %s316
      %s333 = sphi 0, %s317
      %s339 = sphi 0, %s341
      %s342 = sphi 0, %s339
      %s343 = sphi 0, %s342
      %s359 = sphi 0, %s343
      %s365 = sphi 0, %s367
      %s368 = sphi 0, %s365
      %s369 = sphi 0, %s368
      %s385 = sphi 0, %s369
      %s391 = sphi 0, %s393
      %s394 = sphi 0, %s391
      %s395 = sphi 0, %s394
      %s411 = sphi 0, %s395
      %s417 = sphi 0, %s419
      %s420 = sphi 0, %s417
      %s421 = sphi 0, %s420
      %s437 = sphi 0, %s421
      %s443 = sphi 0, %s445
      %s446 = sphi 0, %s443
      %s447 = sphi 0, %s446
      %s463 = sphi 0, %s447
      %s469 = sphi 0, %s471
      %s472 = sphi 0, %s469
      %s473 = sphi 0, %s472
      %s489 = sphi 0, %s473
      %s495 = sphi 0, %s497
      %s498 = sphi 0, %s495
      %s499 = sphi 0, %s498
      %s515 = sphi 0, %s499
      %s521 = sphi 0, %s523
      %s524 = sphi 0, %s521
      %s525 = sphi 0, %s524
      %s541 = sphi 0, %s525
      %s547 = sphi 0, %s549
      %s550 = sphi 0, %s547
      %s551 = sphi 0, %s550
      %s567 = sphi 0, %s551
      %s571 = sphi 0, %s571
      %s573 = sphi 0, %s571
      %s574 = sphi 0, %s573
      %s588 = sphi 0, %s574
      %s592 = sphi 0, %s592
      %s594 = sphi 0, %s592
      %s595 = sphi 0, %s594
      %s609 = sphi 0, %s595
      %s615 = sphi 0, %s617
      %s618 = sphi 0, %s615
      %s619 = sphi 0, %s618
      %s635 = sphi 0, %s619
    $region4: #{decoder_forward.1} parent=1 // loop_header_branch
      %34 = sbr.rel (%p32) target = $region8
    $region5: #{decoder_forward.1} parent=1 // loop_body
      %s36 = ssub.s32 %s31, 1
      %s37 = ssub.s32 %s31, 2
      %s44 = sadd.s32 1, %s39
      %p45 = scmp.ge.s32.totalorder %s44, 2
      %s46 = scalar_select %p45, 0, %s44
      %s47 = sadd.s32 1, %s38
      %s48 = scalar_select %p45, %s47, %s38
      %p49 = scmp.ge.s32.totalorder %s48, 2
      %s50 = scalar_select %p49, 0, %s48
      %s51 = ssub.s32 %s38, %s50
      %p52 = scmp.eq.s32.totalorder %s51, 0
      %s54 = sadd.s32 %s53, 1
      %s55 = scalar_select %p52, %s53, %s54
      %p58 = pneg %p52
      %p59 = scmp.eq.s32.totalorder %s31, 3
      %p60 = por %p58, %p59
      %p61 = scmp.ne.s32.totalorder %s53, %s56
      %p62 = scmp.eq.s32.totalorder %s31, 0
      %p63 = por %p61, %p62
      %p64 = scmp.ne.s32.totalorder %s53, %s56
      %p65 = scmp.eq.s32.totalorder %s36, 3
      %p66 = por %p64, %p65
      %p67 = scmp.ne.s32.totalorder %s56, %s57
      %p68 = scmp.eq.s32.totalorder %s36, 0
      %p69 = por %p67, %p68
      %p70 = scmp.ne.s32.totalorder %s56, %s57
      %p71 = scmp.eq.s32.totalorder %s37, 3
      %p72 = por %p70, %p71
      %p74 = scmp.ne.s32.totalorder %s57, %s73
      %p75 = scmp.eq.s32.totalorder %s37, 0
      %p76 = por %p74, %p75
      %s77 = ssub.s32 %s38, %s50
      %p78 = scmp.eq.s32.totalorder %s77, 0
      %s80 = sadd.s32 %s79, 1
      %s81 = scalar_select %p78, %s79, %s80
      %p84 = pneg %p78
      %p85 = scmp.eq.s32.totalorder %s31, 3
      %p86 = por %p84, %p85
      %p87 = scmp.ne.s32.totalorder %s79, %s82
      %p88 = scmp.eq.s32.totalorder %s31, 0
      %p89 = por %p87, %p88
      %p90 = scmp.ne.s32.totalorder %s79, %s82
      %p91 = scmp.eq.s32.totalorder %s36, 3
      %p92 = por %p90, %p91
      %p93 = scmp.ne.s32.totalorder %s82, %s83
      %p94 = scmp.eq.s32.totalorder %s36, 0
      %p95 = por %p93, %p94
      %p96 = scmp.ne.s32.totalorder %s82, %s83
      %p97 = scmp.eq.s32.totalorder %s37, 3
      %p98 = por %p96, %p97
      %p100 = scmp.ne.s32.totalorder %s83, %s99
      %p101 = scmp.eq.s32.totalorder %s37, 0
      %p102 = por %p100, %p101
      %s103 = ssub.s32 %s39, %s46
      %p104 = scmp.eq.s32.totalorder %s103, 0
      %s106 = sadd.s32 %s105, 1
      %s107 = scalar_select %p104, %s105, %s106
      %p110 = pneg %p104
      %p111 = scmp.eq.s32.totalorder %s31, 3
      %p112 = por %p110, %p111
      %p113 = scmp.ne.s32.totalorder %s105, %s108
      %p114 = scmp.eq.s32.totalorder %s31, 0
      %p115 = por %p113, %p114
      %p116 = scmp.ne.s32.totalorder %s105, %s108
      %p117 = scmp.eq.s32.totalorder %s36, 3
      %p118 = por %p116, %p117
      %p119 = scmp.ne.s32.totalorder %s108, %s109
      %p120 = scmp.eq.s32.totalorder %s36, 0
      %p121 = por %p119, %p120
      %p122 = scmp.ne.s32.totalorder %s108, %s109
      %p123 = scmp.eq.s32.totalorder %s37, 3
      %p124 = por %p122, %p123
      %p126 = scmp.ne.s32.totalorder %s109, %s125
      %p127 = scmp.eq.s32.totalorder %s37, 0
      %p128 = por %p126, %p127
      %s129 = ssub.s32 %s39, %s46
      %p130 = scmp.eq.s32.totalorder %s129, 0
      %s132 = sadd.s32 %s131, 1
      %s133 = scalar_select %p130, %s131, %s132
      %p136 = pneg %p130
      %p137 = scmp.eq.s32.totalorder %s31, 3
      %p138 = por %p136, %p137
      %p139 = scmp.ne.s32.totalorder %s131, %s134
      %p140 = scmp.eq.s32.totalorder %s31, 0
      %p141 = por %p139, %p140
      %p142 = scmp.ne.s32.totalorder %s131, %s134
      %p143 = scmp.eq.s32.totalorder %s36, 3
      %p144 = por %p142, %p143
      %p145 = scmp.ne.s32.totalorder %s134, %s135
      %p146 = scmp.eq.s32.totalorder %s36, 0
      %p147 = por %p145, %p146
      %p148 = scmp.ne.s32.totalorder %s134, %s135
      %p149 = scmp.eq.s32.totalorder %s37, 3
      %p150 = por %p148, %p149
      %p152 = scmp.ne.s32.totalorder %s135, %s151
      %p153 = scmp.eq.s32.totalorder %s37, 0
      %p154 = por %p152, %p153
      %s155 = ssub.s32 %s39, %s46
      %p156 = scmp.eq.s32.totalorder %s155, 0
      %s158 = sadd.s32 %s157, 1
      %s159 = scalar_select %p156, %s157, %s158
      %p162 = pneg %p156
      %p163 = scmp.eq.s32.totalorder %s31, 3
      %p164 = por %p162, %p163
      %p165 = scmp.ne.s32.totalorder %s157, %s160
      %p166 = scmp.eq.s32.totalorder %s31, 0
      %p167 = por %p165, %p166
      %p168 = scmp.ne.s32.totalorder %s157, %s160
      %p169 = scmp.eq.s32.totalorder %s36, 3
      %p170 = por %p168, %p169
      %p171 = scmp.ne.s32.totalorder %s160, %s161
      %p172 = scmp.eq.s32.totalorder %s36, 0
      %p173 = por %p171, %p172
      %p174 = scmp.ne.s32.totalorder %s160, %s161
      %p175 = scmp.eq.s32.totalorder %s37, 3
      %p176 = por %p174, %p175
      %p178 = scmp.ne.s32.totalorder %s161, %s177
      %p179 = scmp.eq.s32.totalorder %s37, 0
      %p180 = por %p178, %p179
      %s181 = ssub.s32 %s39, %s46
      %p182 = scmp.eq.s32.totalorder %s181, 0
      %s184 = sadd.s32 %s183, 1
      %s185 = scalar_select %p182, %s183, %s184
      %p188 = pneg %p182
      %p189 = scmp.eq.s32.totalorder %s31, 3
      %p190 = por %p188, %p189
      %p191 = scmp.ne.s32.totalorder %s183, %s186
      %p192 = scmp.eq.s32.totalorder %s31, 0
      %p193 = por %p191, %p192
      %p194 = scmp.ne.s32.totalorder %s183, %s186
      %p195 = scmp.eq.s32.totalorder %s36, 3
      %p196 = por %p194, %p195
      %p197 = scmp.ne.s32.totalorder %s186, %s187
      %p198 = scmp.eq.s32.totalorder %s36, 0
      %p199 = por %p197, %p198
      %p200 = scmp.ne.s32.totalorder %s186, %s187
      %p201 = scmp.eq.s32.totalorder %s37, 3
      %p202 = por %p200, %p201
      %p204 = scmp.ne.s32.totalorder %s187, %s203
      %p205 = scmp.eq.s32.totalorder %s37, 0
      %p206 = por %p204, %p205
      %s207 = ssub.s32 %s39, %s46
      %p208 = scmp.eq.s32.totalorder %s207, 0
      %s210 = sadd.s32 %s209, 1
      %s211 = scalar_select %p208, %s209, %s210
      %p214 = pneg %p208
      %p215 = scmp.eq.s32.totalorder %s31, 3
      %p216 = por %p214, %p215
      %p217 = scmp.ne.s32.totalorder %s209, %s212
      %p218 = scmp.eq.s32.totalorder %s31, 0
      %p219 = por %p217, %p218
      %p220 = scmp.ne.s32.totalorder %s209, %s212
      %p221 = scmp.eq.s32.totalorder %s36, 3
      %p222 = por %p220, %p221
      %p223 = scmp.ne.s32.totalorder %s212, %s213
      %p224 = scmp.eq.s32.totalorder %s36, 0
      %p225 = por %p223, %p224
      %p226 = scmp.ne.s32.totalorder %s212, %s213
      %p227 = scmp.eq.s32.totalorder %s37, 3
      %p228 = por %p226, %p227
      %p230 = scmp.ne.s32.totalorder %s213, %s229
      %p231 = scmp.eq.s32.totalorder %s37, 0
      %p232 = por %p230, %p231
      %s233 = ssub.s32 %s39, %s46
      %p234 = scmp.eq.s32.totalorder %s233, 0
      %s236 = sadd.s32 %s235, 1
      %s237 = scalar_select %p234, %s235, %s236
      %p240 = pneg %p234
      %p241 = scmp.eq.s32.totalorder %s31, 3
      %p242 = por %p240, %p241
      %p243 = scmp.ne.s32.totalorder %s235, %s238
      %p244 = scmp.eq.s32.totalorder %s31, 0
      %p245 = por %p243, %p244
      %p246 = scmp.ne.s32.totalorder %s235, %s238
      %p247 = scmp.eq.s32.totalorder %s36, 3
      %p248 = por %p246, %p247
      %p249 = scmp.ne.s32.totalorder %s238, %s239
      %p250 = scmp.eq.s32.totalorder %s36, 0
      %p251 = por %p249, %p250
      %p252 = scmp.ne.s32.totalorder %s238, %s239
      %p253 = scmp.eq.s32.totalorder %s37, 3
      %p254 = por %p252, %p253
      %p256 = scmp.ne.s32.totalorder %s239, %s255
      %p257 = scmp.eq.s32.totalorder %s37, 0
      %p258 = por %p256, %p257
      %s259 = ssub.s32 %s39, %s46
      %p260 = scmp.eq.s32.totalorder %s259, 0
      %s262 = sadd.s32 %s261, 1
      %s263 = scalar_select %p260, %s261, %s262
      %p266 = pneg %p260
      %p267 = scmp.eq.s32.totalorder %s31, 3
      %p268 = por %p266, %p267
      %p269 = scmp.ne.s32.totalorder %s261, %s264
      %p270 = scmp.eq.s32.totalorder %s31, 0
      %p271 = por %p269, %p270
      %p272 = scmp.ne.s32.totalorder %s261, %s264
      %p273 = scmp.eq.s32.totalorder %s36, 3
      %p274 = por %p272, %p273
      %p275 = scmp.ne.s32.totalorder %s264, %s265
      %p276 = scmp.eq.s32.totalorder %s36, 0
      %p277 = por %p275, %p276
      %p278 = scmp.ne.s32.totalorder %s264, %s265
      %p279 = scmp.eq.s32.totalorder %s37, 3
      %p280 = por %p278, %p279
      %p282 = scmp.ne.s32.totalorder %s265, %s281
      %p283 = scmp.eq.s32.totalorder %s37, 0
      %p284 = por %p282, %p283
      %s285 = ssub.s32 %s39, %s46
      %p286 = scmp.eq.s32.totalorder %s285, 0
      %s288 = sadd.s32 %s287, 1
      %s289 = scalar_select %p286, %s287, %s288
      %p292 = pneg %p286
      %p293 = scmp.eq.s32.totalorder %s31, 3
      %p294 = por %p292, %p293
      %p295 = scmp.ne.s32.totalorder %s287, %s290
      %p296 = scmp.eq.s32.totalorder %s31, 0
      %p297 = por %p295, %p296
      %p298 = scmp.ne.s32.totalorder %s287, %s290
      %p299 = scmp.eq.s32.totalorder %s36, 3
      %p300 = por %p298, %p299
      %p301 = scmp.ne.s32.totalorder %s290, %s291
      %p302 = scmp.eq.s32.totalorder %s36, 0
      %p303 = por %p301, %p302
      %p304 = scmp.ne.s32.totalorder %s290, %s291
      %p305 = scmp.eq.s32.totalorder %s37, 3
      %p306 = por %p304, %p305
      %p308 = scmp.ne.s32.totalorder %s291, %s307
      %p309 = scmp.eq.s32.totalorder %s37, 0
      %p310 = por %p308, %p309
      %s311 = ssub.s32 %s39, %s46
      %p312 = scmp.eq.s32.totalorder %s311, 0
      %s314 = sadd.s32 %s313, 1
      %s315 = scalar_select %p312, %s313, %s314
      %p318 = pneg %p312
      %p319 = scmp.eq.s32.totalorder %s31, 3
      %p320 = por %p318, %p319
      %p321 = scmp.ne.s32.totalorder %s313, %s316
      %p322 = scmp.eq.s32.totalorder %s31, 0
      %p323 = por %p321, %p322
      %p324 = scmp.ne.s32.totalorder %s313, %s316
      %p325 = scmp.eq.s32.totalorder %s36, 3
      %p326 = por %p324, %p325
      %p327 = scmp.ne.s32.totalorder %s316, %s317
      %p328 = scmp.eq.s32.totalorder %s36, 0
      %p329 = por %p327, %p328
      %p330 = scmp.ne.s32.totalorder %s316, %s317
      %p331 = scmp.eq.s32.totalorder %s37, 3
      %p332 = por %p330, %p331
      %p334 = scmp.ne.s32.totalorder %s317, %s333
      %p335 = scmp.eq.s32.totalorder %s37, 0
      %p336 = por %p334, %p335
      %s337 = ssub.s32 %s39, %s46
      %p338 = scmp.eq.s32.totalorder %s337, 0
      %s340 = sadd.s32 %s339, 1
      %s341 = scalar_select %p338, %s339, %s340
      %p344 = pneg %p338
      %p345 = scmp.eq.s32.totalorder %s31, 3
      %p346 = por %p344, %p345
      %p347 = scmp.ne.s32.totalorder %s339, %s342
      %p348 = scmp.eq.s32.totalorder %s31, 0
      %p349 = por %p347, %p348
      %p350 = scmp.ne.s32.totalorder %s339, %s342
      %p351 = scmp.eq.s32.totalorder %s36, 3
      %p352 = por %p350, %p351
      %p353 = scmp.ne.s32.totalorder %s342, %s343
      %p354 = scmp.eq.s32.totalorder %s36, 0
      %p355 = por %p353, %p354
      %p356 = scmp.ne.s32.totalorder %s342, %s343
      %p357 = scmp.eq.s32.totalorder %s37, 3
      %p358 = por %p356, %p357
      %p360 = scmp.ne.s32.totalorder %s343, %s359
      %p361 = scmp.eq.s32.totalorder %s37, 0
      %p362 = por %p360, %p361
      %s363 = ssub.s32 %s39, %s46
      %p364 = scmp.eq.s32.totalorder %s363, 0
      %s366 = sadd.s32 %s365, 1
      %s367 = scalar_select %p364, %s365, %s366
      %p370 = pneg %p364
      %p371 = scmp.eq.s32.totalorder %s31, 3
      %p372 = por %p370, %p371
      %p373 = scmp.ne.s32.totalorder %s365, %s368
      %p374 = scmp.eq.s32.totalorder %s31, 0
      %p375 = por %p373, %p374
      %p376 = scmp.ne.s32.totalorder %s365, %s368
      %p377 = scmp.eq.s32.totalorder %s36, 3
      %p378 = por %p376, %p377
      %p379 = scmp.ne.s32.totalorder %s368, %s369
      %p380 = scmp.eq.s32.totalorder %s36, 0
      %p381 = por %p379, %p380
      %p382 = scmp.ne.s32.totalorder %s368, %s369
      %p383 = scmp.eq.s32.totalorder %s37, 3
      %p384 = por %p382, %p383
      %p386 = scmp.ne.s32.totalorder %s369, %s385
      %p387 = scmp.eq.s32.totalorder %s37, 0
      %p388 = por %p386, %p387
      %s389 = ssub.s32 %s39, %s46
      %p390 = scmp.eq.s32.totalorder %s389, 0
      %s392 = sadd.s32 %s391, 1
      %s393 = scalar_select %p390, %s391, %s392
      %p396 = pneg %p390
      %p397 = scmp.eq.s32.totalorder %s31, 3
      %p398 = por %p396, %p397
      %p399 = scmp.ne.s32.totalorder %s391, %s394
      %p400 = scmp.eq.s32.totalorder %s31, 0
      %p401 = por %p399, %p400
      %p402 = scmp.ne.s32.totalorder %s391, %s394
      %p403 = scmp.eq.s32.totalorder %s36, 3
      %p404 = por %p402, %p403
      %p405 = scmp.ne.s32.totalorder %s394, %s395
      %p406 = scmp.eq.s32.totalorder %s36, 0
      %p407 = por %p405, %p406
      %p408 = scmp.ne.s32.totalorder %s394, %s395
      %p409 = scmp.eq.s32.totalorder %s37, 3
      %p410 = por %p408, %p409
      %p412 = scmp.ne.s32.totalorder %s395, %s411
      %p413 = scmp.eq.s32.totalorder %s37, 0
      %p414 = por %p412, %p413
      %s415 = ssub.s32 %s39, %s46
      %p416 = scmp.eq.s32.totalorder %s415, 0
      %s418 = sadd.s32 %s417, 1
      %s419 = scalar_select %p416, %s417, %s418
      %p422 = pneg %p416
      %p423 = scmp.eq.s32.totalorder %s31, 3
      %p424 = por %p422, %p423
      %p425 = scmp.ne.s32.totalorder %s417, %s420
      %p426 = scmp.eq.s32.totalorder %s31, 0
      %p427 = por %p425, %p426
      %p428 = scmp.ne.s32.totalorder %s417, %s420
      %p429 = scmp.eq.s32.totalorder %s36, 3
      %p430 = por %p428, %p429
      %p431 = scmp.ne.s32.totalorder %s420, %s421
      %p432 = scmp.eq.s32.totalorder %s36, 0
      %p433 = por %p431, %p432
      %p434 = scmp.ne.s32.totalorder %s420, %s421
      %p435 = scmp.eq.s32.totalorder %s37, 3
      %p436 = por %p434, %p435
      %p438 = scmp.ne.s32.totalorder %s421, %s437
      %p439 = scmp.eq.s32.totalorder %s37, 0
      %p440 = por %p438, %p439
      %s441 = ssub.s32 %s39, %s46
      %p442 = scmp.eq.s32.totalorder %s441, 0
      %s444 = sadd.s32 %s443, 1
      %s445 = scalar_select %p442, %s443, %s444
      %p448 = pneg %p442
      %p449 = scmp.eq.s32.totalorder %s31, 3
      %p450 = por %p448, %p449
      %p451 = scmp.ne.s32.totalorder %s443, %s446
      %p452 = scmp.eq.s32.totalorder %s31, 0
      %p453 = por %p451, %p452
      %p454 = scmp.ne.s32.totalorder %s443, %s446
      %p455 = scmp.eq.s32.totalorder %s36, 3
      %p456 = por %p454, %p455
      %p457 = scmp.ne.s32.totalorder %s446, %s447
      %p458 = scmp.eq.s32.totalorder %s36, 0
      %p459 = por %p457, %p458
      %p460 = scmp.ne.s32.totalorder %s446, %s447
      %p461 = scmp.eq.s32.totalorder %s37, 3
      %p462 = por %p460, %p461
      %p464 = scmp.ne.s32.totalorder %s447, %s463
      %p465 = scmp.eq.s32.totalorder %s37, 0
      %p466 = por %p464, %p465
      %s467 = ssub.s32 %s39, %s46
      %p468 = scmp.eq.s32.totalorder %s467, 0
      %s470 = sadd.s32 %s469, 1
      %s471 = scalar_select %p468, %s469, %s470
      %p474 = pneg %p468
      %p475 = scmp.eq.s32.totalorder %s31, 3
      %p476 = por %p474, %p475
      %p477 = scmp.ne.s32.totalorder %s469, %s472
      %p478 = scmp.eq.s32.totalorder %s31, 0
      %p479 = por %p477, %p478
      %p480 = scmp.ne.s32.totalorder %s469, %s472
      %p481 = scmp.eq.s32.totalorder %s36, 3
      %p482 = por %p480, %p481
      %p483 = scmp.ne.s32.totalorder %s472, %s473
      %p484 = scmp.eq.s32.totalorder %s36, 0
      %p485 = por %p483, %p484
      %p486 = scmp.ne.s32.totalorder %s472, %s473
      %p487 = scmp.eq.s32.totalorder %s37, 3
      %p488 = por %p486, %p487
      %p490 = scmp.ne.s32.totalorder %s473, %s489
      %p491 = scmp.eq.s32.totalorder %s37, 0
      %p492 = por %p490, %p491
      %s493 = ssub.s32 %s39, %s46
      %p494 = scmp.eq.s32.totalorder %s493, 0
      %s496 = sadd.s32 %s495, 1
      %s497 = scalar_select %p494, %s495, %s496
      %p500 = pneg %p494
      %p501 = scmp.eq.s32.totalorder %s31, 3
      %p502 = por %p500, %p501
      %p503 = scmp.ne.s32.totalorder %s495, %s498
      %p504 = scmp.eq.s32.totalorder %s31, 0
      %p505 = por %p503, %p504
      %p506 = scmp.ne.s32.totalorder %s495, %s498
      %p507 = scmp.eq.s32.totalorder %s36, 3
      %p508 = por %p506, %p507
      %p509 = scmp.ne.s32.totalorder %s498, %s499
      %p510 = scmp.eq.s32.totalorder %s36, 0
      %p511 = por %p509, %p510
      %p512 = scmp.ne.s32.totalorder %s498, %s499
      %p513 = scmp.eq.s32.totalorder %s37, 3
      %p514 = por %p512, %p513
      %p516 = scmp.ne.s32.totalorder %s499, %s515
      %p517 = scmp.eq.s32.totalorder %s37, 0
      %p518 = por %p516, %p517
      %s519 = ssub.s32 %s39, %s46
      %p520 = scmp.eq.s32.totalorder %s519, 0
      %s522 = sadd.s32 %s521, 1
      %s523 = scalar_select %p520, %s521, %s522
      %p526 = pneg %p520
      %p527 = scmp.eq.s32.totalorder %s31, 3
      %p528 = por %p526, %p527
      %p529 = scmp.ne.s32.totalorder %s521, %s524
      %p530 = scmp.eq.s32.totalorder %s31, 0
      %p531 = por %p529, %p530
      %p532 = scmp.ne.s32.totalorder %s521, %s524
      %p533 = scmp.eq.s32.totalorder %s36, 3
      %p534 = por %p532, %p533
      %p535 = scmp.ne.s32.totalorder %s524, %s525
      %p536 = scmp.eq.s32.totalorder %s36, 0
      %p537 = por %p535, %p536
      %p538 = scmp.ne.s32.totalorder %s524, %s525
      %p539 = scmp.eq.s32.totalorder %s37, 3
      %p540 = por %p538, %p539
      %p542 = scmp.ne.s32.totalorder %s525, %s541
      %p543 = scmp.eq.s32.totalorder %s37, 0
      %p544 = por %p542, %p543
      %s545 = ssub.s32 %s39, %s46
      %p546 = scmp.eq.s32.totalorder %s545, 0
      %s548 = sadd.s32 %s547, 1
      %s549 = scalar_select %p546, %s547, %s548
      %p552 = pneg %p546
      %p553 = scmp.eq.s32.totalorder %s31, 3
      %p554 = por %p552, %p553
      %p555 = scmp.ne.s32.totalorder %s547, %s550
      %p556 = scmp.eq.s32.totalorder %s31, 0
      %p557 = por %p555, %p556
      %p558 = scmp.ne.s32.totalorder %s547, %s550
      %p559 = scmp.eq.s32.totalorder %s36, 3
      %p560 = por %p558, %p559
      %p561 = scmp.ne.s32.totalorder %s550, %s551
      %p562 = scmp.eq.s32.totalorder %s36, 0
      %p563 = por %p561, %p562
      %p564 = scmp.ne.s32.totalorder %s550, %s551
      %p565 = scmp.eq.s32.totalorder %s37, 3
      %p566 = por %p564, %p565
      %p568 = scmp.ne.s32.totalorder %s551, %s567
      %p569 = scmp.eq.s32.totalorder %s37, 0
      %p570 = por %p568, %p569
      %s572 = sadd.s32 %s571, 1
      %p575 = scmp.eq.s32.totalorder %s31, 3
      %p576 = scmp.ne.s32.totalorder %s571, %s573
      %p577 = scmp.eq.s32.totalorder %s31, 0
      %p578 = por %p576, %p577
      %p579 = scmp.ne.s32.totalorder %s571, %s573
      %p580 = scmp.eq.s32.totalorder %s36, 3
      %p581 = por %p579, %p580
      %p582 = scmp.ne.s32.totalorder %s573, %s574
      %p583 = scmp.eq.s32.totalorder %s36, 0
      %p584 = por %p582, %p583
      %p585 = scmp.ne.s32.totalorder %s573, %s574
      %p586 = scmp.eq.s32.totalorder %s37, 3
      %p587 = por %p585, %p586
      %p589 = scmp.ne.s32.totalorder %s574, %s588
      %p590 = scmp.eq.s32.totalorder %s37, 0
      %p591 = por %p589, %p590
      %s593 = sadd.s32 %s592, 1
      %p596 = scmp.eq.s32.totalorder %s31, 3
      %p597 = scmp.ne.s32.totalorder %s592, %s594
      %p598 = scmp.eq.s32.totalorder %s31, 0
      %p599 = por %p597, %p598
      %p600 = scmp.ne.s32.totalorder %s592, %s594
      %p601 = scmp.eq.s32.totalorder %s36, 3
      %p602 = por %p600, %p601
      %p603 = scmp.ne.s32.totalorder %s594, %s595
      %p604 = scmp.eq.s32.totalorder %s36, 0
      %p605 = por %p603, %p604
      %p606 = scmp.ne.s32.totalorder %s594, %s595
      %p607 = scmp.eq.s32.totalorder %s37, 3
      %p608 = por %p606, %p607
      %p610 = scmp.ne.s32.totalorder %s595, %s609
      %p611 = scmp.eq.s32.totalorder %s37, 0
      %p612 = por %p610, %p611
      %s613 = ssub.s32 %s38, %s50
      %p614 = scmp.eq.s32.totalorder %s613, 0
      %s616 = sadd.s32 %s615, 1
      %s617 = scalar_select %p614, %s615, %s616
      %p620 = pneg %p614
      %p621 = scmp.eq.s32.totalorder %s31, 3
      %p622 = por %p620, %p621
      %p623 = scmp.ne.s32.totalorder %s615, %s618
      %p624 = scmp.eq.s32.totalorder %s31, 0
      %p625 = por %p623, %p624
      %p626 = scmp.ne.s32.totalorder %s615, %s618
      %p627 = scmp.eq.s32.totalorder %s36, 3
      %p628 = por %p626, %p627
      %p629 = scmp.ne.s32.totalorder %s618, %s619
      %p630 = scmp.eq.s32.totalorder %s36, 0
      %p631 = por %p629, %p630
      %p632 = scmp.ne.s32.totalorder %s618, %s619
      %p633 = scmp.eq.s32.totalorder %s37, 3
      %p634 = por %p632, %p633
      %p636 = scmp.ne.s32.totalorder %s619, %s635
      %p637 = scmp.eq.s32.totalorder %s37, 0
      %p638 = por %p636, %p637
      %p639 = scmp.le.s32.totalorder 1, %s31
      %p640 = scmp.lt.s32.totalorder %s31, 5
      %p641 = pnand %p639, %p640
      %p642 = pneg %p641
      // Predicated region
      $region9: #{decoder_forward.1} parent=5 // pred_check
        _
      $region10: #{decoder_forward.1} parent=5 // pred_check_branch
        %644 = sbr.rel (%p641) target = $region12
      $region11: #{decoder_forward.1} parent=5 // pred_region
        %s645 = ssub.s32 %s31, 1
        // Predicated region
        $region13: #{decoder_forward.1} parent=11 // pred_check
          %p646 = pneg %p584
        $region14: #{decoder_forward.1} parent=11 // pred_check_branch
          %648 = sbr.rel (%p646) target = $region16
        $region15: #{decoder_forward.1} parent=11 // pred_region
          _
        $region16: #{decoder_forward.1} parent=11 // pred_fallthru
          _
        // Predicated region
        $region17: #{decoder_forward.1} parent=11 // pred_check
          %p649 = pneg %p605
        $region18: #{decoder_forward.1} parent=11 // pred_check_branch
          %651 = sbr.rel (%p649) target = $region20
        $region19: #{decoder_forward.1} parent=11 // pred_region
          _
        $region20: #{decoder_forward.1} parent=11 // pred_fallthru
          _
      $region12: #{decoder_forward.1} parent=5 // pred_fallthru
        _
      %p652 = scmp.lt.s32.totalorder %s31, 4
      // Predicated region
      $region21: #{decoder_forward.1} parent=5 // pred_check
        %p653 = pneg %p652
      $region22: #{decoder_forward.1} parent=5 // pred_check_branch
        %655 = sbr.rel (%p653) target = $region24
      $region23: #{decoder_forward.1} parent=5 // pred_region
        // Predicated region
        $region25: #{decoder_forward.1} parent=23 // pred_check
          %p656 = pneg %p63
        $region26: #{decoder_forward.1} parent=23 // pred_check_branch
          %658 = sbr.rel (%p656) target = $region28
        $region27: #{decoder_forward.1} parent=23 // pred_region
          %s659 = smul.u32 2, %s38
          %p660 = scmp.lt.s32.totalorder %s659, 3
          %s661 = scalar_select %p660, %s659, 3
          %s662 = smul.addr %s661, 4
          %s663 = smul.addr %s662, 8
          %s664 = scalar_lea.vmem %s0, %s663
          %s665 = smul.u32 2, %s38
        $region28: #{decoder_forward.1} parent=23 // pred_fallthru
          _
        // Predicated region
        $region29: #{decoder_forward.1} parent=23 // pred_check
          %p666 = pneg %p89
        $region30: #{decoder_forward.1} parent=23 // pred_check_branch
          %668 = sbr.rel (%p666) target = $region32
        $region31: #{decoder_forward.1} parent=23 // pred_region
          %s669 = smul.u32 2, %s38
          %p670 = scmp.lt.s32.totalorder %s669, 3
          %s671 = scalar_select %p670, %s669, 3
          %s672 = smul.addr %s671, 4
          %s673 = smul.addr %s672, 8
          %s674 = scalar_lea.vmem %s1, %s673
          %s675 = smul.u32 2, %s38
        $region32: #{decoder_forward.1} parent=23 // pred_fallthru
          _
        // Predicated region
        $region33: #{decoder_forward.1} parent=23 // pred_check
          %p676 = pneg %p115
        $region34: #{decoder_forward.1} parent=23 // pred_check_branch
          %678 = sbr.rel (%p676) target = $region36
        $region35: #{decoder_forward.1} parent=23 // pred_region
          %p679 = scmp.lt.s32.totalorder %s39, 1
          %s680 = scalar_select %p679, %s39, 1
          %s681 = smul.addr %s680, 16
          %s682 = smul.addr %s681, 4
          %s683 = scalar_lea.vmem %s2, %s682
        $region36: #{decoder_forward.1} parent=23 // pred_fallthru
          _
        // Predicated region
        $region37: #{decoder_forward.1} parent=23 // pred_check
          %p684 = pneg %p141
        $region38: #{decoder_forward.1} parent=23 // pred_check_branch
          %686 = sbr.rel (%p684) target = $region40
        $region39: #{decoder_forward.1} parent=23 // pred_region
          %p687 = scmp.lt.s32.totalorder %s39, 1
          %s688 = scalar_select %p687, %s39, 1
          %s689 = smul.addr %s688, 16
          %s690 = smul.addr %s689, 4
          %s691 = scalar_lea.vmem %s3, %s690
        $region40: #{decoder_forward.1} parent=23 // pred_fallthru
          _
        // Predicated region
        $region41: #{decoder_forward.1} parent=23 // pred_check
          %p692 = pneg %p167
        $region42: #{decoder_forward.1} parent=23 // pred_check_branch
          %694 = sbr.rel (%p692) target = $region44
        $region43: #{decoder_forward.1} parent=23 // pred_region
          %p695 = scmp.lt.s32.totalorder %s39, 1
          %s696 = scalar_select %p695, %s39, 1
          %s697 = smul.addr %s696, 16
          %s698 = smul.addr %s697, 4
          %s699 = scalar_lea.vmem %s4, %s698
        $region44: #{decoder_forward.1} parent=23 // pred_fallthru
          _
        // Predicated region
        $region45: #{decoder_forward.1} parent=23 // pred_check
          %p700 = pneg %p193
        $region46: #{decoder_forward.1} parent=23 // pred_check_branch
          %702 = sbr.rel (%p700) target = $region48
        $region47: #{decoder_forward.1} parent=23 // pred_region
          %p703 = scmp.lt.s32.totalorder %s39, 1
          %s704 = scalar_select %p703, %s39, 1
          %s705 = smul.addr %s704, 16
          %s706 = smul.addr %s705, 4
          %s707 = scalar_lea.vmem %s5, %s706
        $region48: #{decoder_forward.1} parent=23 // pred_fallthru
          _
        // Predicated region
        $region49: #{decoder_forward.1} parent=23 // pred_check
          %p708 = pneg %p219
        $region50: #{decoder_forward.1} parent=23 // pred_check_branch
          %710 = sbr.rel (%p708) target = $region52
        $region51: #{decoder_forward.1} parent=23 // pred_region
          %p711 = scmp.lt.s32.totalorder %s39, 1
          %s712 = scalar_select %p711, %s39, 1
          %s713 = scalar_lea.vmem %s6, %s712
        $region52: #{decoder_forward.1} parent=23 // pred_fallthru
          _
        // Predicated region
        $region53: #{decoder_forward.1} parent=23 // pred_check
          %p714 = pneg %p245
        $region54: #{decoder_forward.1} parent=23 // pred_check_branch
          %716 = sbr.rel (%p714) target = $region56
        $region55: #{decoder_forward.1} parent=23 // pred_region
          %p717 = scmp.lt.s32.totalorder %s39, 1
          %s718 = scalar_select %p717, %s39, 1
          %s719 = scalar_lea.vmem %s7, %s718
        $region56: #{decoder_forward.1} parent=23 // pred_fallthru
          _
        // Predicated region
        $region57: #{decoder_forward.1} parent=23 // pred_check
          %p720 = pneg %p271
        $region58: #{decoder_forward.1} parent=23 // pred_check_branch
          %722 = sbr.rel (%p720) target = $region60
        $region59: #{decoder_forward.1} parent=23 // pred_region
          %p723 = scmp.lt.s32.totalorder %s39, 1
          %s724 = scalar_select %p723, %s39, 1
          %s725 = scalar_lea.vmem %s8, %s724
        $region60: #{decoder_forward.1} parent=23 // pred_fallthru
          _
        // Predicated region
        $region61: #{decoder_forward.1} parent=23 // pred_check
          %p726 = pneg %p297
        $region62: #{decoder_forward.1} parent=23 // pred_check_branch
          %728 = sbr.rel (%p726) target = $region64
        $region63: #{decoder_forward.1} parent=23 // pred_region
          %p729 = scmp.lt.s32.totalorder %s39, 1
          %s730 = scalar_select %p729, %s39, 1
          %s731 = smul.addr %s730, 16
          %s732 = smul.addr %s731, 4
          %s733 = scalar_lea.vmem %s9, %s732
        $region64: #{decoder_forward.1} parent=23 // pred_fallthru
          _
        // Predicated region
        $region65: #{decoder_forward.1} parent=23 // pred_check
          %p734 = pneg %p323
        $region66: #{decoder_forward.1} parent=23 // pred_check_branch
          %736 = sbr.rel (%p734) target = $region68
        $region67: #{decoder_forward.1} parent=23 // pred_region
          %p737 = scmp.lt.s32.totalorder %s39, 1
          %s738 = scalar_select %p737, %s39, 1
          %s739 = smul.addr %s738, 16
          %s740 = smul.addr %s739, 4
          %s741 = scalar_lea.vmem %s10, %s740
        $region68: #{decoder_forward.1} parent=23 // pred_fallthru
          _
        // Predicated region
        $region69: #{decoder_forward.1} parent=23 // pred_check
          %p742 = pneg %p349
        $region70: #{decoder_forward.1} parent=23 // pred_check_branch
          %744 = sbr.rel (%p742) target = $region72
        $region71: #{decoder_forward.1} parent=23 // pred_region
          %p745 = scmp.lt.s32.totalorder %s39, 1
          %s746 = scalar_select %p745, %s39, 1
          %s747 = smul.addr %s746, 16
          %s748 = smul.addr %s747, 4
          %s749 = scalar_lea.vmem %s11, %s748
        $region72: #{decoder_forward.1} parent=23 // pred_fallthru
          _
        // Predicated region
        $region73: #{decoder_forward.1} parent=23 // pred_check
          %p750 = pneg %p375
        $region74: #{decoder_forward.1} parent=23 // pred_check_branch
          %752 = sbr.rel (%p750) target = $region76
        $region75: #{decoder_forward.1} parent=23 // pred_region
          %p753 = scmp.lt.s32.totalorder %s39, 1
          %s754 = scalar_select %p753, %s39, 1
          %s755 = smul.addr %s754, 16
          %s756 = smul.addr %s755, 4
          %s757 = scalar_lea.vmem %s12, %s756
        $region76: #{decoder_forward.1} parent=23 // pred_fallthru
          _
        // Predicated region
        $region77: #{decoder_forward.1} parent=23 // pred_check
          %p758 = pneg %p401
        $region78: #{decoder_forward.1} parent=23 // pred_check_branch
          %760 = sbr.rel (%p758) target = $region80
        $region79: #{decoder_forward.1} parent=23 // pred_region
          %p761 = scmp.lt.s32.totalorder %s39, 1
          %s762 = scalar_select %p761, %s39, 1
          %s763 = scalar_lea.vmem %s13, %s762
        $region80: #{decoder_forward.1} parent=23 // pred_fallthru
          _
        // Predicated region
        $region81: #{decoder_forward.1} parent=23 // pred_check
          %p764 = pneg %p427
        $region82: #{decoder_forward.1} parent=23 // pred_check_branch
          %766 = sbr.rel (%p764) target = $region84
        $region83: #{decoder_forward.1} parent=23 // pred_region
          %p767 = scmp.lt.s32.totalorder %s39, 1
          %s768 = scalar_select %p767, %s39, 1
          %s769 = scalar_lea.vmem %s14, %s768
        $region84: #{decoder_forward.1} parent=23 // pred_fallthru
          _
        // Predicated region
        $region85: #{decoder_forward.1} parent=23 // pred_check
          %p770 = pneg %p453
        $region86: #{decoder_forward.1} parent=23 // pred_check_branch
          %772 = sbr.rel (%p770) target = $region88
        $region87: #{decoder_forward.1} parent=23 // pred_region
          %p773 = scmp.lt.s32.totalorder %s39, 1
          %s774 = scalar_select %p773, %s39, 1
          %s775 = scalar_lea.vmem %s15, %s774
        $region88: #{decoder_forward.1} parent=23 // pred_fallthru
          _
        // Predicated region
        $region89: #{decoder_forward.1} parent=23 // pred_check
          %p776 = pneg %p479
        $region90: #{decoder_forward.1} parent=23 // pred_check_branch
          %778 = sbr.rel (%p776) target = $region92
        $region91: #{decoder_forward.1} parent=23 // pred_region
          %p779 = scmp.lt.s32.totalorder %s39, 1
          %s780 = scalar_select %p779, %s39, 1
          %s781 = smul.addr %s780, 64
          %s782 = smul.addr %s781, 4
          %s783 = scalar_lea.vmem %s16, %s782
        $region92: #{decoder_forward.1} parent=23 // pred_fallthru
          _
        // Predicated region
        $region93: #{decoder_forward.1} parent=23 // pred_check
          %p784 = pneg %p505
        $region94: #{decoder_forward.1} parent=23 // pred_check_branch
          %786 = sbr.rel (%p784) target = $region96
        $region95: #{decoder_forward.1} parent=23 // pred_region
          %p787 = scmp.lt.s32.totalorder %s39, 1
          %s788 = scalar_select %p787, %s39, 1
          %s789 = smul.addr %s788, 4
          %s790 = scalar_lea.vmem %s17, %s789
        $region96: #{decoder_forward.1} parent=23 // pred_fallthru
          _
        // Predicated region
        $region97: #{decoder_forward.1} parent=23 // pred_check
          %p791 = pneg %p531
        $region98: #{decoder_forward.1} parent=23 // pred_check_branch
          %793 = sbr.rel (%p791) target = $region100
        $region99: #{decoder_forward.1} parent=23 // pred_region
          %p794 = scmp.lt.s32.totalorder %s39, 1
          %s795 = scalar_select %p794, %s39, 1
          %s796 = smul.addr %s795, 64
          %s797 = smul.addr %s796, 4
          %s798 = scalar_lea.vmem %s18, %s797
        $region100: #{decoder_forward.1} parent=23 // pred_fallthru
          _
        // Predicated region
        $region101: #{decoder_forward.1} parent=23 // pred_check
          %p799 = pneg %p557
        $region102: #{decoder_forward.1} parent=23 // pred_check_branch
          %801 = sbr.rel (%p799) target = $region104
        $region103: #{decoder_forward.1} parent=23 // pred_region
          %p802 = scmp.lt.s32.totalorder %s39, 1
          %s803 = scalar_select %p802, %s39, 1
          %s804 = scalar_lea.vmem %s19, %s803
        $region104: #{decoder_forward.1} parent=23 // pred_fallthru
          _
      $region24: #{decoder_forward.1} parent=5 // pred_fallthru
        _
      %p805 = scmp.le.s32.totalorder 1, %s31
      %p806 = scmp.lt.s32.totalorder %s31, 5
      %p807 = pnand %p805, %p806
      %p808 = pneg %p807
      // Predicated region
      $region105: #{decoder_forward.1} parent=5 // pred_check
        _
      $region106: #{decoder_forward.1} parent=5 // pred_check_branch
        %810 = sbr.rel (%p807) target = $region108
      $region107: #{decoder_forward.1} parent=5 // pred_region
        %s811 = ssub.s32 %s31, 1
        %s812 = smul.u32 2, %s40
        %p813 = scmp.lt.s32.totalorder %s812, 3
        %s814 = scalar_select %p813, %s812, 3
        %s815 = smul.addr %s814, 4
        %s816 = smul.addr %s815, 8
        %s817 = scalar_lea.vmem %s0, %s816
        %p818 = pneg %p69
        %p819 = pneg %p66
        %s820 = smul.u32 2, %s40
        %p821 = scmp.lt.s32.totalorder %s820, 3
        %s822 = scalar_select %p821, %s820, 3
        %s823 = smul.addr %s822, 4
        %s824 = smul.addr %s823, 8
        %s825 = scalar_lea.vmem %s1, %s824
        %p826 = pneg %p95
        %p827 = pneg %p92
        %p828 = scmp.lt.s32.totalorder %s41, 1
        %s829 = scalar_select %p828, %s41, 1
        %s830 = smul.addr %s829, 16
        %s831 = smul.addr %s830, 4
        %s832 = scalar_lea.vmem %s2, %s831
        %p833 = pneg %p121
        %p834 = pneg %p118
        %p835 = scmp.lt.s32.totalorder %s41, 1
        %s836 = scalar_select %p835, %s41, 1
        %s837 = smul.addr %s836, 16
        %s838 = smul.addr %s837, 4
        %s839 = scalar_lea.vmem %s3, %s838
        %p840 = pneg %p147
        %p841 = pneg %p144
        %p842 = scmp.lt.s32.totalorder %s41, 1
        %s843 = scalar_select %p842, %s41, 1
        %s844 = smul.addr %s843, 16
        %s845 = smul.addr %s844, 4
        %s846 = scalar_lea.vmem %s4, %s845
        %p847 = pneg %p173
        %p848 = pneg %p170
        %p849 = scmp.lt.s32.totalorder %s41, 1
        %s850 = scalar_select %p849, %s41, 1
        %s851 = smul.addr %s850, 16
        %s852 = smul.addr %s851, 4
        %s853 = scalar_lea.vmem %s5, %s852
        %p854 = pneg %p199
        %p855 = pneg %p196
        %p856 = scmp.lt.s32.totalorder %s41, 1
        %s857 = scalar_select %p856, %s41, 1
        %s858 = scalar_lea.vmem %s6, %s857
        %p859 = pneg %p225
        %p860 = pneg %p222
        %p861 = scmp.lt.s32.totalorder %s41, 1
        %s862 = scalar_select %p861, %s41, 1
        %s863 = scalar_lea.vmem %s7, %s862
        %p864 = pneg %p251
        %p865 = pneg %p248
        %p866 = scmp.lt.s32.totalorder %s41, 1
        %s867 = scalar_select %p866, %s41, 1
        %s868 = scalar_lea.vmem %s8, %s867
        %p869 = pneg %p277
        %p870 = pneg %p274
        %p871 = scmp.lt.s32.totalorder %s41, 1
        %s872 = scalar_select %p871, %s41, 1
        %s873 = smul.addr %s872, 16
        %s874 = smul.addr %s873, 4
        %s875 = scalar_lea.vmem %s9, %s874
        %p876 = pneg %p303
        %p877 = pneg %p300
        %p878 = scmp.lt.s32.totalorder %s41, 1
        %s879 = scalar_select %p878, %s41, 1
        %s880 = smul.addr %s879, 16
        %s881 = smul.addr %s880, 4
        %s882 = scalar_lea.vmem %s10, %s881
        %p883 = pneg %p329
        %p884 = pneg %p326
        %p885 = scmp.lt.s32.totalorder %s41, 1
        %s886 = scalar_select %p885, %s41, 1
        %s887 = smul.addr %s886, 16
        %s888 = smul.addr %s887, 4
        %s889 = scalar_lea.vmem %s11, %s888
        %p890 = pneg %p355
        %p891 = pneg %p352
        %p892 = scmp.lt.s32.totalorder %s41, 1
        %s893 = scalar_select %p892, %s41, 1
        %s894 = smul.addr %s893, 16
        %s895 = smul.addr %s894, 4
        %s896 = scalar_lea.vmem %s12, %s895
        %p897 = pneg %p381
        %p898 = pneg %p378
        %p899 = scmp.lt.s32.totalorder %s41, 1
        %s900 = scalar_select %p899, %s41, 1
        %s901 = scalar_lea.vmem %s13, %s900
        %p902 = pneg %p407
        %p903 = pneg %p404
        %p904 = scmp.lt.s32.totalorder %s41, 1
        %s905 = scalar_select %p904, %s41, 1
        %s906 = scalar_lea.vmem %s14, %s905
        %p907 = pneg %p433
        %p908 = pneg %p430
        %p909 = scmp.lt.s32.totalorder %s41, 1
        %s910 = scalar_select %p909, %s41, 1
        %s911 = scalar_lea.vmem %s15, %s910
        %p912 = pneg %p459
        %p913 = pneg %p456
        %p914 = scmp.lt.s32.totalorder %s41, 1
        %s915 = scalar_select %p914, %s41, 1
        %s916 = smul.addr %s915, 64
        %s917 = smul.addr %s916, 4
        %s918 = scalar_lea.vmem %s16, %s917
        %p919 = pneg %p485
        %p920 = pneg %p482
        %p921 = scmp.lt.s32.totalorder %s41, 1
        %s922 = scalar_select %p921, %s41, 1
        %s923 = smul.addr %s922, 4
        %s924 = scalar_lea.vmem %s17, %s923
        %p925 = pneg %p511
        %p926 = pneg %p508
        %p927 = scmp.lt.s32.totalorder %s41, 1
        %s928 = scalar_select %p927, %s41, 1
        %s929 = smul.addr %s928, 64
        %s930 = smul.addr %s929, 4
        %s931 = scalar_lea.vmem %s18, %s930
        %p932 = pneg %p537
        %p933 = pneg %p534
        %p934 = scmp.lt.s32.totalorder %s41, 1
        %s935 = scalar_select %p934, %s41, 1
        %s936 = scalar_lea.vmem %s19, %s935
        %p937 = pneg %p563
        %p938 = pneg %p560
        %p939 = pneg %p584
        %p940 = pneg %p581
        %p941 = pneg %p605
        %p942 = pneg %p602
        %p943 = pneg %p631
        %p944 = pneg %p628
        %s945 = sand.u32 %s618, 1
        %s946 = scalar_lea.sflag [#allocation4], %s945
        %s947 = sand.u32 %s618, 1
        %s948 = smul.addr %s947, 64
        %s949 = scalar_lea.vmem [#allocation3], %s948
        %s950 = smul.u32 2, %s40
        %p951 = scmp.lt.s32.totalorder %s950, 3
        %s952 = scalar_select %p951, %s950, 3
        %s953 = smul.addr %s952, 4
        %s954 = smul.addr %s953, 8
        %s955 = scalar_lea.vmem %s0, %s954
        %s956 = smul.u32 2, %s40
        %s957 = smul.u32 2, %s40
        %p958 = scmp.lt.s32.totalorder %s957, 3
        %s959 = scalar_select %p958, %s957, 3
        %s960 = smul.addr %s959, 4
        %s961 = smul.addr %s960, 8
        %s962 = scalar_lea.vmem %s1, %s961
        %s963 = smul.u32 2, %s40
        %p964 = scmp.lt.s32.totalorder %s41, 1
        %s965 = scalar_select %p964, %s41, 1
        %s966 = smul.addr %s965, 16
        %s967 = smul.addr %s966, 4
        %s968 = scalar_lea.vmem %s2, %s967
        %p969 = scmp.lt.s32.totalorder %s41, 1
        %s970 = scalar_select %p969, %s41, 1
        %s971 = smul.addr %s970, 16
        %s972 = smul.addr %s971, 4
        %s973 = scalar_lea.vmem %s3, %s972
        %p974 = scmp.lt.s32.totalorder %s41, 1
        %s975 = scalar_select %p974, %s41, 1
        %s976 = smul.addr %s975, 16
        %s977 = smul.addr %s976, 4
        %s978 = scalar_lea.vmem %s4, %s977
        %p979 = scmp.lt.s32.totalorder %s41, 1
        %s980 = scalar_select %p979, %s41, 1
        %s981 = smul.addr %s980, 16
        %s982 = smul.addr %s981, 4
        %s983 = scalar_lea.vmem %s5, %s982
        %p984 = scmp.lt.s32.totalorder %s41, 1
        %s985 = scalar_select %p984, %s41, 1
        %s986 = scalar_lea.vmem %s6, %s985
        %p987 = scmp.lt.s32.totalorder %s41, 1
        %s988 = scalar_select %p987, %s41, 1
        %s989 = scalar_lea.vmem %s7, %s988
        %p990 = scmp.lt.s32.totalorder %s41, 1
        %s991 = scalar_select %p990, %s41, 1
        %s992 = scalar_lea.vmem %s8, %s991
        %p993 = scmp.lt.s32.totalorder %s41, 1
        %s994 = scalar_select %p993, %s41, 1
        %s995 = smul.addr %s994, 16
        %s996 = smul.addr %s995, 4
        %s997 = scalar_lea.vmem %s9, %s996
        %p998 = scmp.lt.s32.totalorder %s41, 1
        %s999 = scalar_select %p998, %s41, 1
        %s1000 = smul.addr %s999, 16
        %s1001 = smul.addr %s1000, 4
        %s1002 = scalar_lea.vmem %s10, %s1001
        %p1003 = scmp.lt.s32.totalorder %s41, 1
        %s1004 = scalar_select %p1003, %s41, 1
        %s1005 = smul.addr %s1004, 16
        %s1006 = smul.addr %s1005, 4
        %s1007 = scalar_lea.vmem %s11, %s1006
        %p1008 = scmp.lt.s32.totalorder %s41, 1
        %s1009 = scalar_select %p1008, %s41, 1
        %s1010 = smul.addr %s1009, 16
        %s1011 = smul.addr %s1010, 4
        %s1012 = scalar_lea.vmem %s12, %s1011
        %p1013 = scmp.lt.s32.totalorder %s41, 1
        %s1014 = scalar_select %p1013, %s41, 1
        %s1015 = scalar_lea.vmem %s13, %s1014
        %p1016 = scmp.lt.s32.totalorder %s41, 1
        %s1017 = scalar_select %p1016, %s41, 1
        %s1018 = scalar_lea.vmem %s14, %s1017
        %p1019 = scmp.lt.s32.totalorder %s41, 1
        %s1020 = scalar_select %p1019, %s41, 1
        %s1021 = scalar_lea.vmem %s15, %s1020
        %p1022 = scmp.lt.s32.totalorder %s41, 1
        %s1023 = scalar_select %p1022, %s41, 1
        %s1024 = smul.addr %s1023, 64
        %s1025 = smul.addr %s1024, 4
        %s1026 = scalar_lea.vmem %s16, %s1025
        %p1027 = scmp.lt.s32.totalorder %s41, 1
        %s1028 = scalar_select %p1027, %s41, 1
        %s1029 = smul.addr %s1028, 4
        %s1030 = scalar_lea.vmem %s17, %s1029
        %p1031 = scmp.lt.s32.totalorder %s41, 1
        %s1032 = scalar_select %p1031, %s41, 1
        %s1033 = smul.addr %s1032, 64
        %s1034 = smul.addr %s1033, 4
        %s1035 = scalar_lea.vmem %s18, %s1034
        %p1036 = scmp.lt.s32.totalorder %s41, 1
        %s1037 = scalar_select %p1036, %s41, 1
        %s1038 = scalar_lea.vmem %s19, %s1037
        %s1039 = smul.u32 2, %s40
        %p1041 = scmp.eq.s32.totalorder %s41, 0
        // Predicated region
        $region109: #{decoder_forward.1} parent=107 // pred_check
          %p1042 = pneg %p1041
        $region110: #{decoder_forward.1} parent=107 // pred_check_branch
          %1044 = sbr.rel (%p1042) target = $region112
        $region111: #{decoder_forward.1} parent=107 // pred_region
          %v1045 = vld [vmem:[%s955] sm:$0xff]
          %v1046 = vld [vmem:[%s955 + $0x8] sm:$0xff]
          %v1047 = vld [vmem:[%s955 + $0x10] sm:$0xff]
          %v1048 = vld [vmem:[%s955 + $0x18] sm:$0xff]
          %v1049 = vld [vmem:[%s955 + $0x20] sm:$0xff]
          %v1050 = vld [vmem:[%s955 + $0x28] sm:$0xff]
          %v1051 = vld [vmem:[%s955 + $0x30] sm:$0xff]
          %v1052 = vld [vmem:[%s955 + $0x38] sm:$0xff]
          %1053 = vst [vmem:[#allocation2] sm:$0xff] %v1045
          %1054 = vst [vmem:[#allocation2 + $0x8] sm:$0xff] %v1046
          %1055 = vst [vmem:[#allocation2 + $0x10] sm:$0xff] %v1047
          %1056 = vst [vmem:[#allocation2 + $0x18] sm:$0xff] %v1048
          %1057 = vst [vmem:[#allocation2 + $0x20] sm:$0xff] %v1049
          %1058 = vst [vmem:[#allocation2 + $0x28] sm:$0xff] %v1050
          %1059 = vst [vmem:[#allocation2 + $0x30] sm:$0xff] %v1051
          %1060 = vst [vmem:[#allocation2 + $0x38] sm:$0xff] %v1052
        $region112: #{decoder_forward.1} parent=107 // pred_fallthru
          _
        %v1061 = vld [vmem:[#allocation2] sm:$0xff]
        %v1062 = vld [vmem:[#allocation2 + $0x8] sm:$0xff]
        %v1063 = vld [vmem:[#allocation2 + $0x10] sm:$0xff]
        %v1064 = vld [vmem:[#allocation2 + $0x18] sm:$0xff]
        %v1065 = vld [vmem:[#allocation2 + $0x20] sm:$0xff]
        %v1066 = vld [vmem:[#allocation2 + $0x28] sm:$0xff]
        %v1067 = vld [vmem:[#allocation2 + $0x30] sm:$0xff]
        %v1068 = vld [vmem:[#allocation2 + $0x38] sm:$0xff]
        %v1069 = vpack.c.bf16 %v1062, %v1061
        %v1070 = vpack.c.bf16 %v1064, %v1063
        %v1071 = vpack.c.bf16 %v1066, %v1065
        %v1072 = vpack.c.bf16 %v1068, %v1067
        %v1073 = vld [vmem:[%s962] sm:$0xff]
        %v1074 = vld [vmem:[%s962 + $0x8] sm:$0xff]
        %v1075 = vld [vmem:[%s962 + $0x10] sm:$0xff]
        %v1076 = vld [vmem:[%s962 + $0x18] sm:$0xff]
        %v1077 = vld [vmem:[%s962 + $0x20] sm:$0xff]
        %v1078 = vld [vmem:[%s962 + $0x28] sm:$0xff]
        %v1079 = vld [vmem:[%s962 + $0x30] sm:$0xff]
        %v1080 = vld [vmem:[%s962 + $0x38] sm:$0xff]
        %v1081 = vpack.c.bf16 %v1074, %v1073
        %v1082 = vpack.c.bf16 %v1076, %v1075
        %v1083 = vpack.c.bf16 %v1078, %v1077
        %v1084 = vpack.c.bf16 %v1080, %v1079
        %v1085 = vld [vmem:[%s968] sm:$0xf]
        %v1086 = vld [vmem:[%s968 + $0x4] sm:$0xf]
        %v1087 = vld [vmem:[%s968 + $0x8] sm:$0xf]
        %v1088 = vld [vmem:[%s968 + $0xc] sm:$0xf]
        %v1089 = vld [vmem:[%s968 + $0x10] sm:$0xf]
        %v1090 = vld [vmem:[%s968 + $0x14] sm:$0xf]
        %v1091 = vld [vmem:[%s968 + $0x18] sm:$0xf]
        %v1092 = vld [vmem:[%s968 + $0x1c] sm:$0xf]
        %v1093 = vld [vmem:[%s968 + $0x20] sm:$0xf]
        %v1094 = vld [vmem:[%s968 + $0x24] sm:$0xf]
        %v1095 = vld [vmem:[%s968 + $0x28] sm:$0xf]
        %v1096 = vld [vmem:[%s968 + $0x2c] sm:$0xf]
        %v1097 = vld [vmem:[%s968 + $0x30] sm:$0xf]
        %v1098 = vld [vmem:[%s968 + $0x34] sm:$0xf]
        %v1099 = vld [vmem:[%s968 + $0x38] sm:$0xf]
        %v1100 = vld [vmem:[%s968 + $0x3c] sm:$0xf]
        %v1117 = vunpack.c.l.b16 %v1085
        %v1118 = vunpack.c.l.b16 %v1086
        %v1119 = vunpack.c.l.b16 %v1087
        %v1120 = vunpack.c.l.b16 %v1088
        %v1121 = vunpack.c.l.b16 %v1089
        %v1122 = vunpack.c.l.b16 %v1090
        %v1123 = vunpack.c.l.b16 %v1091
        %v1124 = vunpack.c.l.b16 %v1092
        %v1125 = vunpack.c.l.b16 %v1093
        %v1126 = vunpack.c.l.b16 %v1094
        %v1127 = vunpack.c.l.b16 %v1095
        %v1128 = vunpack.c.l.b16 %v1096
        %v1129 = vunpack.c.l.b16 %v1097
        %v1130 = vunpack.c.l.b16 %v1098
        %v1131 = vunpack.c.l.b16 %v1099
        %v1132 = vunpack.c.l.b16 %v1100
        %v1133 = vpack.c.b16 %v1118, %v1117
        %v1134 = vpack.c.b16 %v1120, %v1119
        %v1135 = vpack.c.b16 %v1122, %v1121
        %v1136 = vpack.c.b16 %v1124, %v1123
        %v1137 = vpack.c.b16 %v1126, %v1125
        %v1138 = vpack.c.b16 %v1128, %v1127
        %v1139 = vpack.c.b16 %v1130, %v1129
        %v1140 = vpack.c.b16 %v1132, %v1131
        %1149 = vmatprep.subr.bf16.mxu0 0
        %1150 = vmatpush1.bf16.msra.mxu0 %v1133
        %1151 = vmatprep.subr.bf16.mxu0 0
        %1152 = vmatpush1.bf16.msra.mxu0 %v1134
        %1153 = vmatprep.subr.bf16.mxu0 0
        %1154 = vmatpush1.bf16.msra.mxu0 %v1135
        %1155 = vmatprep.subr.bf16.mxu0 0
        %1156 = vmatpush1.bf16.msra.mxu0 %v1136
        %1157 = vmatprep.subr.bf16.mxu0 0
        %1158 = vmatpush1.bf16.msra.mxu0 %v1137
        %1159 = vmatprep.subr.bf16.mxu0 0
        %1160 = vmatpush1.bf16.msra.mxu0 %v1138
        %1161 = vmatprep.subr.bf16.mxu0 0
        %1162 = vmatpush1.bf16.msra.mxu0 %v1139
        %1163 = vmatprep.subr.bf16.mxu0 0
        %1164 = vmatpush1.bf16.msra.mxu0 %v1140
        %1165 = vmatprep.subr.bf16.mxu0 0
        %1166 = vmatpush1.bf16.msra.mxu0 0
        %1167 = vmatprep.subr.bf16.mxu0 0
        %1168 = vmatpush1.bf16.msra.mxu0 0
        %1169 = vmatprep.subr.bf16.mxu0 0
        %1170 = vmatpush1.bf16.msra.mxu0 0
        %1171 = vmatprep.subr.bf16.mxu0 0
        %1172 = vmatpush1.bf16.msra.mxu0 0
        %1173 = vmatprep.subr.bf16.mxu0 0
        %1174 = vmatpush1.bf16.msra.mxu0 0
        %1175 = vmatprep.subr.bf16.mxu0 0
        %1176 = vmatpush1.bf16.msra.mxu0 0
        %1177 = vmatprep.subr.bf16.mxu0 0
        %1178 = vmatpush1.bf16.msra.mxu0 0
        %1179 = vmatprep.subr.bf16.mxu0 0
        %1180 = vmatpush1.bf16.msra.mxu0 0
        %1181 = vmatprep.mubr.bf16.mxu0 0
        %1182 = vmatmul.mubr.bf16.gmra.mrb[0].mxu0 %v1069
        %v1183 = vpop.f32.mrb[0].mxu0
        %v1184 = vadd.f32 0.0, %v1183
        %v1185 = vpop.f32.mrb[0].mxu0
        %v1186 = vpop.f32.mrb[0].mxu0
        %v1187 = vadd.f32 0.0, %v1186
        %v1188 = vpop.f32.mrb[0].mxu0
        %1189 = vmatprep.mubr.bf16.mxu0 0
        %1190 = vmatmul.mubr.bf16.gmra.mrb[0].mxu0 %v1070
        %v1191 = vpop.f32.mrb[0].mxu0
        %v1192 = vadd.f32 0.0, %v1191
        %v1193 = vpop.f32.mrb[0].mxu0
        %v1194 = vpop.f32.mrb[0].mxu0
        %v1195 = vadd.f32 0.0, %v1194
        %v1196 = vpop.f32.mrb[0].mxu0
        %1197 = vmatprep.mubr.bf16.mxu0 0
        %1198 = vmatmul.mubr.bf16.gmra.mrb[0].mxu0 %v1071
        %v1199 = vpop.f32.mrb[0].mxu0
        %v1200 = vadd.f32 0.0, %v1199
        %v1201 = vpop.f32.mrb[0].mxu0
        %v1202 = vpop.f32.mrb[0].mxu0
        %v1203 = vadd.f32 0.0, %v1202
        %v1204 = vpop.f32.mrb[0].mxu0
        %1205 = vmatprep.mubr.bf16.mxu0 0
        %1206 = vmatmul.mubr.bf16.gmra.mrb[0].mxu0 %v1072
        %v1207 = vpop.f32.mrb[0].mxu0
        %v1208 = vadd.f32 0.0, %v1207
        %v1209 = vpop.f32.mrb[0].mxu0
        %v1210 = vpop.f32.mrb[0].mxu0
        %v1211 = vadd.f32 0.0, %v1210
        %v1212 = vpop.f32.mrb[0].mxu0
        %1213 = vdwg.mxu0
        %v1214 = vpack.c.bf16 %v1187, %v1184
        %v1215 = vpack.c.bf16 %v1195, %v1192
        %v1216 = vpack.c.bf16 %v1203, %v1200
        %v1217 = vpack.c.bf16 %v1211, %v1208
        %v1218 = vld [vmem:[%s973] sm:$0xf]
        %v1219 = vld [vmem:[%s973 + $0x4] sm:$0xf]
        %v1220 = vld [vmem:[%s973 + $0x8] sm:$0xf]
        %v1221 = vld [vmem:[%s973 + $0xc] sm:$0xf]
        %v1222 = vld [vmem:[%s973 + $0x10] sm:$0xf]
        %v1223 = vld [vmem:[%s973 + $0x14] sm:$0xf]
        %v1224 = vld [vmem:[%s973 + $0x18] sm:$0xf]
        %v1225 = vld [vmem:[%s973 + $0x1c] sm:$0xf]
        %v1226 = vld [vmem:[%s973 + $0x20] sm:$0xf]
        %v1227 = vld [vmem:[%s973 + $0x24] sm:$0xf]
        %v1228 = vld [vmem:[%s973 + $0x28] sm:$0xf]
        %v1229 = vld [vmem:[%s973 + $0x2c] sm:$0xf]
        %v1230 = vld [vmem:[%s973 + $0x30] sm:$0xf]
        %v1231 = vld [vmem:[%s973 + $0x34] sm:$0xf]
        %v1232 = vld [vmem:[%s973 + $0x38] sm:$0xf]
        %v1233 = vld [vmem:[%s973 + $0x3c] sm:$0xf]
        %v1250 = vunpack.c.l.b16 %v1218
        %v1251 = vunpack.c.l.b16 %v1219
        %v1252 = vunpack.c.l.b16 %v1220
        %v1253 = vunpack.c.l.b16 %v1221
        %v1254 = vunpack.c.l.b16 %v1222
        %v1255 = vunpack.c.l.b16 %v1223
        %v1256 = vunpack.c.l.b16 %v1224
        %v1257 = vunpack.c.l.b16 %v1225
        %v1258 = vunpack.c.l.b16 %v1226
        %v1259 = vunpack.c.l.b16 %v1227
        %v1260 = vunpack.c.l.b16 %v1228
        %v1261 = vunpack.c.l.b16 %v1229
        %v1262 = vunpack.c.l.b16 %v1230
        %v1263 = vunpack.c.l.b16 %v1231
        %v1264 = vunpack.c.l.b16 %v1232
        %v1265 = vunpack.c.l.b16 %v1233
        %v1266 = vpack.c.b16 %v1251, %v1250
        %v1267 = vpack.c.b16 %v1253, %v1252
        %v1268 = vpack.c.b16 %v1255, %v1254
        %v1269 = vpack.c.b16 %v1257, %v1256
        %v1270 = vpack.c.b16 %v1259, %v1258
        %v1271 = vpack.c.b16 %v1261, %v1260
        %v1272 = vpack.c.b16 %v1263, %v1262
        %v1273 = vpack.c.b16 %v1265, %v1264
        %1282 = vmatprep.subr.bf16.mxu0 0
        %1283 = vmatpush1.bf16.msra.mxu0 %v1266
        %1284 = vmatprep.subr.bf16.mxu0 0
        %1285 = vmatpush1.bf16.msra.mxu0 %v1267
        %1286 = vmatprep.subr.bf16.mxu0 0
        %1287 = vmatpush1.bf16.msra.mxu0 %v1268
        %1288 = vmatprep.subr.bf16.mxu0 0
        %1289 = vmatpush1.bf16.msra.mxu0 %v1269
        %1290 = vmatprep.subr.bf16.mxu0 0
        %1291 = vmatpush1.bf16.msra.mxu0 %v1270
        %1292 = vmatprep.subr.bf16.mxu0 0
        %1293 = vmatpush1.bf16.msra.mxu0 %v1271
        %1294 = vmatprep.subr.bf16.mxu0 0
        %1295 = vmatpush1.bf16.msra.mxu0 %v1272
        %1296 = vmatprep.subr.bf16.mxu0 0
        %1297 = vmatpush1.bf16.msra.mxu0 %v1273
        %1298 = vmatprep.subr.bf16.mxu0 0
        %1299 = vmatpush1.bf16.msra.mxu0 0
        %1300 = vmatprep.subr.bf16.mxu0 0
        %1301 = vmatpush1.bf16.msra.mxu0 0
        %1302 = vmatprep.subr.bf16.mxu0 0
        %1303 = vmatpush1.bf16.msra.mxu0 0
        %1304 = vmatprep.subr.bf16.mxu0 0
        %1305 = vmatpush1.bf16.msra.mxu0 0
        %1306 = vmatprep.subr.bf16.mxu0 0
        %1307 = vmatpush1.bf16.msra.mxu0 0
        %1308 = vmatprep.subr.bf16.mxu0 0
        %1309 = vmatpush1.bf16.msra.mxu0 0
        %1310 = vmatprep.subr.bf16.mxu0 0
        %1311 = vmatpush1.bf16.msra.mxu0 0
        %1312 = vmatprep.subr.bf16.mxu0 0
        %1313 = vmatpush1.bf16.msra.mxu0 0
        %1314 = vmatprep.mubr.bf16.mxu0 0
        %1315 = vmatmul.mubr.bf16.gmra.mrb[0].mxu0 %v1069
        %v1316 = vpop.f32.mrb[0].mxu0
        %v1317 = vadd.f32 0.0, %v1316
        %v1318 = vpop.f32.mrb[0].mxu0
        %v1319 = vpop.f32.mrb[0].mxu0
        %v1320 = vadd.f32 0.0, %v1319
        %v1321 = vpop.f32.mrb[0].mxu0
        %1322 = vmatprep.mubr.bf16.mxu0 0
        %1323 = vmatmul.mubr.bf16.gmra.mrb[0].mxu0 %v1070
        %v1324 = vpop.f32.mrb[0].mxu0
        %v1325 = vadd.f32 0.0, %v1324
        %v1326 = vpop.f32.mrb[0].mxu0
        %v1327 = vpop.f32.mrb[0].mxu0
        %v1328 = vadd.f32 0.0, %v1327
        %v1329 = vpop.f32.mrb[0].mxu0
        %1330 = vmatprep.mubr.bf16.mxu0 0
        %1331 = vmatmul.mubr.bf16.gmra.mrb[0].mxu0 %v1071
        %v1332 = vpop.f32.mrb[0].mxu0
        %v1333 = vadd.f32 0.0, %v1332
        %v1334 = vpop.f32.mrb[0].mxu0
        %v1335 = vpop.f32.mrb[0].mxu0
        %v1336 = vadd.f32 0.0, %v1335
        %v1337 = vpop.f32.mrb[0].mxu0
        %1338 = vmatprep.mubr.bf16.mxu0 0
        %1339 = vmatmul.mubr.bf16.gmra.mrb[0].mxu0 %v1072
        %v1340 = vpop.f32.mrb[0].mxu0
        %v1341 = vadd.f32 0.0, %v1340
        %v1342 = vpop.f32.mrb[0].mxu0
        %v1343 = vpop.f32.mrb[0].mxu0
        %v1344 = vadd.f32 0.0, %v1343
        %v1345 = vpop.f32.mrb[0].mxu0
        %1346 = vdwg.mxu0
        %v1347 = vpack.c.bf16 %v1320, %v1317
        %v1348 = vpack.c.bf16 %v1328, %v1325
        %v1349 = vpack.c.bf16 %v1336, %v1333
        %v1350 = vpack.c.bf16 %v1344, %v1341
        %v1351 = vld [vmem:[%s978] sm:$0xf]
        %v1352 = vld [vmem:[%s978 + $0x4] sm:$0xf]
        %v1353 = vld [vmem:[%s978 + $0x8] sm:$0xf]
        %v1354 = vld [vmem:[%s978 + $0xc] sm:$0xf]
        %v1355 = vld [vmem:[%s978 + $0x10] sm:$0xf]
        %v1356 = vld [vmem:[%s978 + $0x14] sm:$0xf]
        %v1357 = vld [vmem:[%s978 + $0x18] sm:$0xf]
        %v1358 = vld [vmem:[%s978 + $0x1c] sm:$0xf]
        %v1359 = vld [vmem:[%s978 + $0x20] sm:$0xf]
        %v1360 = vld [vmem:[%s978 + $0x24] sm:$0xf]
        %v1361 = vld [vmem:[%s978 + $0x28] sm:$0xf]
        %v1362 = vld [vmem:[%s978 + $0x2c] sm:$0xf]
        %v1363 = vld [vmem:[%s978 + $0x30] sm:$0xf]
        %v1364 = vld [vmem:[%s978 + $0x34] sm:$0xf]
        %v1365 = vld [vmem:[%s978 + $0x38] sm:$0xf]
        %v1366 = vld [vmem:[%s978 + $0x3c] sm:$0xf]
        %v1383 = vunpack.c.l.b16 %v1351
        %v1384 = vunpack.c.l.b16 %v1352
        %v1385 = vunpack.c.l.b16 %v1353
        %v1386 = vunpack.c.l.b16 %v1354
        %v1387 = vunpack.c.l.b16 %v1355
        %v1388 = vunpack.c.l.b16 %v1356
        %v1389 = vunpack.c.l.b16 %v1357
        %v1390 = vunpack.c.l.b16 %v1358
        %v1391 = vunpack.c.l.b16 %v1359
        %v1392 = vunpack.c.l.b16 %v1360
        %v1393 = vunpack.c.l.b16 %v1361
        %v1394 = vunpack.c.l.b16 %v1362
        %v1395 = vunpack.c.l.b16 %v1363
        %v1396 = vunpack.c.l.b16 %v1364
        %v1397 = vunpack.c.l.b16 %v1365
        %v1398 = vunpack.c.l.b16 %v1366
        %v1399 = vpack.c.b16 %v1384, %v1383
        %v1400 = vpack.c.b16 %v1386, %v1385
        %v1401 = vpack.c.b16 %v1388, %v1387
        %v1402 = vpack.c.b16 %v1390, %v1389
        %v1403 = vpack.c.b16 %v1392, %v1391
        %v1404 = vpack.c.b16 %v1394, %v1393
        %v1405 = vpack.c.b16 %v1396, %v1395
        %v1406 = vpack.c.b16 %v1398, %v1397
        %1415 = vmatprep.subr.bf16.mxu0 0
        %1416 = vmatpush1.bf16.msra.mxu0 %v1399
        %1417 = vmatprep.subr.bf16.mxu0 0
        %1418 = vmatpush1.bf16.msra.mxu0 %v1400
        %1419 = vmatprep.subr.bf16.mxu0 0
        %1420 = vmatpush1.bf16.msra.mxu0 %v1401
        %1421 = vmatprep.subr.bf16.mxu0 0
        %1422 = vmatpush1.bf16.msra.mxu0 %v1402
        %1423 = vmatprep.subr.bf16.mxu0 0
        %1424 = vmatpush1.bf16.msra.mxu0 %v1403
        %1425 = vmatprep.subr.bf16.mxu0 0
        %1426 = vmatpush1.bf16.msra.mxu0 %v1404
        %1427 = vmatprep.subr.bf16.mxu0 0
        %1428 = vmatpush1.bf16.msra.mxu0 %v1405
        %1429 = vmatprep.subr.bf16.mxu0 0
        %1430 = vmatpush1.bf16.msra.mxu0 %v1406
        %1431 = vmatprep.subr.bf16.mxu0 0
        %1432 = vmatpush1.bf16.msra.mxu0 0
        %1433 = vmatprep.subr.bf16.mxu0 0
        %1434 = vmatpush1.bf16.msra.mxu0 0
        %1435 = vmatprep.subr.bf16.mxu0 0
        %1436 = vmatpush1.bf16.msra.mxu0 0
        %1437 = vmatprep.subr.bf16.mxu0 0
        %1438 = vmatpush1.bf16.msra.mxu0 0
        %1439 = vmatprep.subr.bf16.mxu0 0
        %1440 = vmatpush1.bf16.msra.mxu0 0
        %1441 = vmatprep.subr.bf16.mxu0 0
        %1442 = vmatpush1.bf16.msra.mxu0 0
        %1443 = vmatprep.subr.bf16.mxu0 0
        %1444 = vmatpush1.bf16.msra.mxu0 0
        %1445 = vmatprep.subr.bf16.mxu0 0
        %1446 = vmatpush1.bf16.msra.mxu0 0
        %1447 = vmatprep.mubr.bf16.mxu0 0
        %1448 = vmatmul.mubr.bf16.gmra.mrb[0].mxu0 %v1069
        %v1449 = vpop.f32.mrb[0].mxu0
        %v1450 = vadd.f32 0.0, %v1449
        %v1451 = vpop.f32.mrb[0].mxu0
        %v1452 = vpop.f32.mrb[0].mxu0
        %v1453 = vadd.f32 0.0, %v1452
        %v1454 = vpop.f32.mrb[0].mxu0
        %1455 = vmatprep.mubr.bf16.mxu0 0
        %1456 = vmatmul.mubr.bf16.gmra.mrb[0].mxu0 %v1070
        %v1457 = vpop.f32.mrb[0].mxu0
        %v1458 = vadd.f32 0.0, %v1457
        %v1459 = vpop.f32.mrb[0].mxu0
        %v1460 = vpop.f32.mrb[0].mxu0
        %v1461 = vadd.f32 0.0, %v1460
        %v1462 = vpop.f32.mrb[0].mxu0
        %1463 = vmatprep.mubr.bf16.mxu0 0
        %1464 = vmatmul.mubr.bf16.gmra.mrb[0].mxu0 %v1071
        %v1465 = vpop.f32.mrb[0].mxu0
        %v1466 = vadd.f32 0.0, %v1465
        %v1467 = vpop.f32.mrb[0].mxu0
        %v1468 = vpop.f32.mrb[0].mxu0
        %v1469 = vadd.f32 0.0, %v1468
        %v1470 = vpop.f32.mrb[0].mxu0
        %1471 = vmatprep.mubr.bf16.mxu0 0
        %1472 = vmatmul.mubr.bf16.gmra.mrb[0].mxu0 %v1072
        %v1473 = vpop.f32.mrb[0].mxu0
        %v1474 = vadd.f32 0.0, %v1473
        %v1475 = vpop.f32.mrb[0].mxu0
        %v1476 = vpop.f32.mrb[0].mxu0
        %v1477 = vadd.f32 0.0, %v1476
        %v1478 = vpop.f32.mrb[0].mxu0
        %1479 = vdwg.mxu0
        %v1480 = vpack.c.bf16 %v1453, %v1450
        %v1481 = vpack.c.bf16 %v1461, %v1458
        %v1482 = vpack.c.bf16 %v1469, %v1466
        %v1483 = vpack.c.bf16 %v1477, %v1474
        %vm1484 = vcmask 261120
        %v1486 = vsel %vm1484, %v1214, 0
        %v1489 = vsel %vm1484, %v1215, 0
        %v1492 = vsel %vm1484, %v1347, 0
        %v1495 = vsel %vm1484, %v1348, 0
        %1497 = vmatprep.subr.bf16.mxu0 0
        %1498 = vmatpush1.bf16.xpose.msra.mxu0 %v1492
        %1499 = vmatprep.subr.bf16.mxu0 0
        %1500 = vmatpush1.bf16.xpose.msra.mxu0 %v1495
        %1501 = vmatprep.subr.bf16.mxu0 0
        %1502 = vmatpush1.bf16.xpose.msra.mxu0 0
        %1503 = vmatprep.subr.bf16.mxu0 0
        %1504 = vmatpush1.bf16.xpose.msra.mxu0 0
        %1505 = vmatprep.subr.bf16.mxu0 0
        %1506 = vmatpush1.bf16.xpose.msra.mxu0 0
        %1507 = vmatprep.subr.bf16.mxu0 0
        %1508 = vmatpush1.bf16.xpose.msra.mxu0 0
        %1509 = vmatprep.subr.bf16.mxu0 0
        %1510 = vmatpush1.bf16.xpose.msra.mxu0 0
        %1511 = vmatprep.subr.bf16.mxu0 0
        %1512 = vmatpush1.bf16.xpose.msra.mxu0 0
        %1513 = vmatprep.subr.bf16.mxu0 0
        %1514 = vmatpush1.bf16.xpose.msra.mxu0 0
        %1515 = vmatprep.subr.bf16.mxu0 0
        %1516 = vmatpush1.bf16.xpose.msra.mxu0 0
        %1517 = vmatprep.subr.bf16.mxu0 0
        %1518 = vmatpush1.bf16.xpose.msra.mxu0 0
        %1519 = vmatprep.subr.bf16.mxu0 0
        %1520 = vmatpush1.bf16.xpose.msra.mxu0 0
        %1521 = vmatprep.subr.bf16.mxu0 0
        %1522 = vmatpush1.bf16.xpose.msra.mxu0 0
        %1523 = vmatprep.subr.bf16.mxu0 0
        %1524 = vmatpush1.bf16.xpose.msra.mxu0 0
        %1525 = vmatprep.subr.bf16.mxu0 0
        %1526 = vmatpush1.bf16.xpose.msra.mxu0 0
        %1527 = vmatprep.subr.bf16.mxu0 0
        %1528 = vmatpush1.bf16.xpose.msra.mxu0 0
        %1529 = vmatprep.mubr.bf16.mxu0 0
        %1530 = vmatmul.mubr.bf16.gmra.mrb[0].mxu0 %v1486
        %v1531 = vpop.f32.mrb[0].mxu0
        %v1532 = vadd.f32 0.0, %v1531
        %v1533 = vpop.f32.mrb[0].mxu0
        %v1534 = vpop.f32.mrb[0].mxu0
        %v1535 = vadd.f32 0.0, %v1534
        %v1536 = vpop.f32.mrb[0].mxu0
        %1537 = vmatprep.mubr.bf16.mxu0 0
        %1538 = vmatmul.mubr.bf16.gmra.mrb[0].mxu0 %v1489
        %v1539 = vpop.f32.mrb[0].mxu0
        %v1540 = vadd.f32 0.0, %v1539
        %v1541 = vpop.f32.mrb[0].mxu0
        %v1542 = vpop.f32.mrb[0].mxu0
        %v1543 = vadd.f32 0.0, %v1542
        %v1544 = vpop.f32.mrb[0].mxu0
        %1545 = vdwg.mxu0
        %v1546 = vsel %vm1484, %v1532, -inf
        %1547 = vmax.xlane.f32.xlu0 %v1546
        %v1548 = vpop.xlane.xlu0 %1547
        %v1549 = vsel %vm1484, %v1535, -inf
        %1550 = vmax.xlane.f32.xlu0 %v1549
        %v1551 = vpop.xlane.xlu0 %1550
        %v1552 = vsel %vm1484, %v1540, -inf
        %1553 = vmax.xlane.f32.xlu0 %v1552
        %v1554 = vpop.xlane.xlu0 %1553
        %v1555 = vsel %vm1484, %v1543, -inf
        %1556 = vmax.xlane.f32.xlu0 %v1555
        %v1557 = vpop.xlane.xlu0 %1556
        %v1558 = vsub.f32 %v1532, %v1548
        %v1559 = vsub.f32 %v1535, %v1551
        %v1560 = vsub.f32 %v1540, %v1554
        %v1561 = vsub.f32 %v1543, %v1557
        %v1562 = vmul.f32 %v1558, 1.442695
        %v1563 = vpow.pop %v1562
        %v1564 = vmul.f32 %v1559, 1.442695
        %v1565 = vpow.pop %v1564
        %v1566 = vmul.f32 %v1560, 1.442695
        %v1567 = vpow.pop %v1566
        %v1568 = vmul.f32 %v1561, 1.442695
        %v1569 = vpow.pop %v1568
        %v1570 = vsel %vm1484, %v1563, 0.0
        %1571 = vadd.xlane.f32.xlu0 %v1570
        %v1572 = vpop.xlane.xlu0 %1571
        %v1573 = vsel %vm1484, %v1565, 0.0
        %1574 = vadd.xlane.f32.xlu0 %v1573
        %v1575 = vpop.xlane.xlu0 %1574
        %v1576 = vsel %vm1484, %v1567, 0.0
        %1577 = vadd.xlane.f32.xlu0 %v1576
        %v1578 = vpop.xlane.xlu0 %1577
        %v1579 = vsel %vm1484, %v1569, 0.0
        %1580 = vadd.xlane.f32.xlu0 %v1579
        %v1581 = vpop.xlane.xlu0 %1580
        %v1582 = vrcp.pop %v1572
        %v1583 = vrcp.pop %v1575
        %v1584 = vrcp.pop %v1578
        %v1585 = vrcp.pop %v1581
        %v1586 = vmul.f32 %v1563, %v1582
        %v1587 = vmul.f32 %v1565, %v1583
        %v1588 = vmul.f32 %v1567, %v1584
        %v1589 = vmul.f32 %v1569, %v1585
        %v1590 = vpack.c.bf16 %v1587, %v1586
        %v1591 = vpack.c.bf16 %v1589, %v1588
        %v1593 = vsel %vm1484, %v1590, 0
        %v1596 = vsel %vm1484, %v1591, 0
        %1598 = vmatprep.subr.bf16.mxu0 0
        %1599 = vmatpush1.bf16.msra.mxu0 %v1480
        %1600 = vmatprep.subr.bf16.mxu0 0
        %1601 = vmatpush1.bf16.msra.mxu0 %v1481
        %1602 = vmatprep.subr.bf16.mxu0 0
        %1603 = vmatpush1.bf16.msra.mxu0 0
        %1604 = vmatprep.subr.bf16.mxu0 0
        %1605 = vmatpush1.bf16.msra.mxu0 0
        %1606 = vmatprep.subr.bf16.mxu0 0
        %1607 = vmatpush1.bf16.msra.mxu0 0
        %1608 = vmatprep.subr.bf16.mxu0 0
        %1609 = vmatpush1.bf16.msra.mxu0 0
        %1610 = vmatprep.subr.bf16.mxu0 0
        %1611 = vmatpush1.bf16.msra.mxu0 0
        %1612 = vmatprep.subr.bf16.mxu0 0
        %1613 = vmatpush1.bf16.msra.mxu0 0
        %1614 = vmatprep.subr.bf16.mxu0 0
        %1615 = vmatpush1.bf16.msra.mxu0 0
        %1616 = vmatprep.subr.bf16.mxu0 0
        %1617 = vmatpush1.bf16.msra.mxu0 0
        %1618 = vmatprep.subr.bf16.mxu0 0
        %1619 = vmatpush1.bf16.msra.mxu0 0
        %1620 = vmatprep.subr.bf16.mxu0 0
        %1621 = vmatpush1.bf16.msra.mxu0 0
        %1622 = vmatprep.subr.bf16.mxu0 0
        %1623 = vmatpush1.bf16.msra.mxu0 0
        %1624 = vmatprep.subr.bf16.mxu0 0
        %1625 = vmatpush1.bf16.msra.mxu0 0
        %1626 = vmatprep.subr.bf16.mxu0 0
        %1627 = vmatpush1.bf16.msra.mxu0 0
        %1628 = vmatprep.subr.bf16.mxu0 0
        %1629 = vmatpush1.bf16.msra.mxu0 0
        %1630 = vmatprep.mubr.bf16.mxu0 0
        %1631 = vmatmul.mubr.bf16.gmra.mrb[0].mxu0 %v1593
        %v1632 = vpop.f32.mrb[0].mxu0
        %v1633 = vadd.f32 0.0, %v1632
        %v1634 = vpop.f32.mrb[0].mxu0
        %v1635 = vpop.f32.mrb[0].mxu0
        %v1636 = vadd.f32 0.0, %v1635
        %v1637 = vpop.f32.mrb[0].mxu0
        %1638 = vmatprep.mubr.bf16.mxu0 0
        %1639 = vmatmul.mubr.bf16.gmra.mrb[0].mxu0 %v1596
        %v1640 = vpop.f32.mrb[0].mxu0
        %v1641 = vadd.f32 0.0, %v1640
        %v1642 = vpop.f32.mrb[0].mxu0
        %v1643 = vpop.f32.mrb[0].mxu0
        %v1644 = vadd.f32 0.0, %v1643
        %v1645 = vpop.f32.mrb[0].mxu0
        %1646 = vdwg.mxu0
        %1649 = vrot.lane.b32.xlu0 %v1214, 96
        %v1650 = vpop.permute.xlu0 %1649
        %1651 = vrot.lane.b32.xlu0 %v1215, 96
        %v1652 = vpop.permute.xlu0 %1651
        %1655 = vrot.lane.b32.xlu0 %v1347, 96
        %v1656 = vpop.permute.xlu0 %1655
        %1657 = vrot.lane.b32.xlu0 %v1348, 96
        %v1658 = vpop.permute.xlu0 %1657
        %v1660 = vsel %vm1484, %v1650, 0
        %v1663 = vsel %vm1484, %v1652, 0
        %v1666 = vsel %vm1484, %v1656, 0
        %v1669 = vsel %vm1484, %v1658, 0
        %1671 = vmatprep.subr.bf16.mxu0 0
        %1672 = vmatpush1.bf16.xpose.msra.mxu0 %v1666
        %1673 = vmatprep.subr.bf16.mxu0 0
        %1674 = vmatpush1.bf16.xpose.msra.mxu0 %v1669
        %1675 = vmatprep.subr.bf16.mxu0 0
        %1676 = vmatpush1.bf16.xpose.msra.mxu0 0
        %1677 = vmatprep.subr.bf16.mxu0 0
        %1678 = vmatpush1.bf16.xpose.msra.mxu0 0
        %1679 = vmatprep.subr.bf16.mxu0 0
        %1680 = vmatpush1.bf16.xpose.msra.mxu0 0
        %1681 = vmatprep.subr.bf16.mxu0 0
        %1682 = vmatpush1.bf16.xpose.msra.mxu0 0
        %1683 = vmatprep.subr.bf16.mxu0 0
        %1684 = vmatpush1.bf16.xpose.msra.mxu0 0
        %1685 = vmatprep.subr.bf16.mxu0 0
        %1686 = vmatpush1.bf16.xpose.msra.mxu0 0
        %1687 = vmatprep.subr.bf16.mxu0 0
        %1688 = vmatpush1.bf16.xpose.msra.mxu0 0
        %1689 = vmatprep.subr.bf16.mxu0 0
        %1690 = vmatpush1.bf16.xpose.msra.mxu0 0
        %1691 = vmatprep.subr.bf16.mxu0 0
        %1692 = vmatpush1.bf16.xpose.msra.mxu0 0
        %1693 = vmatprep.subr.bf16.mxu0 0
        %1694 = vmatpush1.bf16.xpose.msra.mxu0 0
        %1695 = vmatprep.subr.bf16.mxu0 0
        %1696 = vmatpush1.bf16.xpose.msra.mxu0 0
        %1697 = vmatprep.subr.bf16.mxu0 0
        %1698 = vmatpush1.bf16.xpose.msra.mxu0 0
        %1699 = vmatprep.subr.bf16.mxu0 0
        %1700 = vmatpush1.bf16.xpose.msra.mxu0 0
        %1701 = vmatprep.subr.bf16.mxu0 0
        %1702 = vmatpush1.bf16.xpose.msra.mxu0 0
        %1703 = vmatprep.mubr.bf16.mxu0 0
        %1704 = vmatmul.mubr.bf16.gmra.mrb[0].mxu0 %v1660
        %v1705 = vpop.f32.mrb[0].mxu0
        %v1706 = vadd.f32 0.0, %v1705
        %v1707 = vpop.f32.mrb[0].mxu0
        %v1708 = vpop.f32.mrb[0].mxu0
        %v1709 = vadd.f32 0.0, %v1708
        %v1710 = vpop.f32.mrb[0].mxu0
        %1711 = vmatprep.mubr.bf16.mxu0 0
        %1712 = vmatmul.mubr.bf16.gmra.mrb[0].mxu0 %v1663
        %v1713 = vpop.f32.mrb[0].mxu0
        %v1714 = vadd.f32 0.0, %v1713
        %v1715 = vpop.f32.mrb[0].mxu0
        %v1716 = vpop.f32.mrb[0].mxu0
        %v1717 = vadd.f32 0.0, %v1716
        %v1718 = vpop.f32.mrb[0].mxu0
        %1719 = vdwg.mxu0
        %v1720 = vsel %vm1484, %v1706, -inf
        %1721 = vmax.xlane.f32.xlu0 %v1720
        %v1722 = vpop.xlane.xlu0 %1721
        %v1723 = vsel %vm1484, %v1709, -inf
        %1724 = vmax.xlane.f32.xlu0 %v1723
        %v1725 = vpop.xlane.xlu0 %1724
        %v1726 = vsel %vm1484, %v1714, -inf
        %1727 = vmax.xlane.f32.xlu0 %v1726
        %v1728 = vpop.xlane.xlu0 %1727
        %v1729 = vsel %vm1484, %v1717, -inf
        %1730 = vmax.xlane.f32.xlu0 %v1729
        %v1731 = vpop.xlane.xlu0 %1730
        %v1732 = vsub.f32 %v1706, %v1722
        %v1733 = vsub.f32 %v1709, %v1725
        %v1734 = vsub.f32 %v1714, %v1728
        %v1735 = vsub.f32 %v1717, %v1731
        %v1736 = vmul.f32 %v1732, 1.442695
        %v1737 = vpow.pop %v1736
        %v1738 = vmul.f32 %v1733, 1.442695
        %v1739 = vpow.pop %v1738
        %v1740 = vmul.f32 %v1734, 1.442695
        %v1741 = vpow.pop %v1740
        %v1742 = vmul.f32 %v1735, 1.442695
        %v1743 = vpow.pop %v1742
        %v1744 = vsel %vm1484, %v1737, 0.0
        %1745 = vadd.xlane.f32.xlu0 %v1744
        %v1746 = vpop.xlane.xlu0 %1745
        %v1747 = vsel %vm1484, %v1739, 0.0
        %1748 = vadd.xlane.f32.xlu0 %v1747
        %v1749 = vpop.xlane.xlu0 %1748
        %v1750 = vsel %vm1484, %v1741, 0.0
        %1751 = vadd.xlane.f32.xlu0 %v1750
        %v1752 = vpop.xlane.xlu0 %1751
        %v1753 = vsel %vm1484, %v1743, 0.0
        %1754 = vadd.xlane.f32.xlu0 %v1753
        %v1755 = vpop.xlane.xlu0 %1754
        %v1756 = vrcp.pop %v1746
        %v1757 = vrcp.pop %v1749
        %v1758 = vrcp.pop %v1752
        %v1759 = vrcp.pop %v1755
        %v1760 = vmul.f32 %v1737, %v1756
        %v1761 = vmul.f32 %v1739, %v1757
        %v1762 = vmul.f32 %v1741, %v1758
        %v1763 = vmul.f32 %v1743, %v1759
        %v1764 = vpack.c.bf16 %v1761, %v1760
        %v1765 = vpack.c.bf16 %v1763, %v1762
        %1768 = vrot.lane.b32.xlu0 %v1480, 96
        %v1769 = vpop.permute.xlu0 %1768
        %1770 = vrot.lane.b32.xlu0 %v1481, 96
        %v1771 = vpop.permute.xlu0 %1770
        %v1775 = vsel %vm1484, %v1764, 0
        %v1778 = vsel %vm1484, %v1765, 0
        %1780 = vmatprep.subr.bf16.mxu0 0
        %1781 = vmatpush1.bf16.msra.mxu0 %v1769
        %1782 = vmatprep.subr.bf16.mxu0 0
        %1783 = vmatpush1.bf16.msra.mxu0 %v1771
        %1784 = vmatprep.subr.bf16.mxu0 0
        %1785 = vmatpush1.bf16.msra.mxu0 0
        %1786 = vmatprep.subr.bf16.mxu0 0
        %1787 = vmatpush1.bf16.msra.mxu0 0
        %1788 = vmatprep.subr.bf16.mxu0 0
        %1789 = vmatpush1.bf16.msra.mxu0 0
        %1790 = vmatprep.subr.bf16.mxu0 0
        %1791 = vmatpush1.bf16.msra.mxu0 0
        %1792 = vmatprep.subr.bf16.mxu0 0
        %1793 = vmatpush1.bf16.msra.mxu0 0
        %1794 = vmatprep.subr.bf16.mxu0 0
        %1795 = vmatpush1.bf16.msra.mxu0 0
        %1796 = vmatprep.subr.bf16.mxu0 0
        %1797 = vmatpush1.bf16.msra.mxu0 0
        %1798 = vmatprep.subr.bf16.mxu0 0
        %1799 = vmatpush1.bf16.msra.mxu0 0
        %1800 = vmatprep.subr.bf16.mxu0 0
        %1801 = vmatpush1.bf16.msra.mxu0 0
        %1802 = vmatprep.subr.bf16.mxu0 0
        %1803 = vmatpush1.bf16.msra.mxu0 0
        %1804 = vmatprep.subr.bf16.mxu0 0
        %1805 = vmatpush1.bf16.msra.mxu0 0
        %1806 = vmatprep.subr.bf16.mxu0 0
        %1807 = vmatpush1.bf16.msra.mxu0 0
        %1808 = vmatprep.subr.bf16.mxu0 0
        %1809 = vmatpush1.bf16.msra.mxu0 0
        %1810 = vmatprep.subr.bf16.mxu0 0
        %1811 = vmatpush1.bf16.msra.mxu0 0
        %1812 = vmatprep.mubr.bf16.mxu0 0
        %1813 = vmatmul.mubr.bf16.gmra.mrb[0].mxu0 %v1775
        %v1814 = vpop.f32.mrb[0].mxu0
        %v1815 = vadd.f32 0.0, %v1814
        %v1816 = vpop.f32.mrb[0].mxu0
        %v1817 = vpop.f32.mrb[0].mxu0
        %v1818 = vadd.f32 0.0, %v1817
        %v1819 = vpop.f32.mrb[0].mxu0
        %1820 = vmatprep.mubr.bf16.mxu0 0
        %1821 = vmatmul.mubr.bf16.gmra.mrb[0].mxu0 %v1778
        %v1822 = vpop.f32.mrb[0].mxu0
        %v1823 = vadd.f32 0.0, %v1822
        %v1824 = vpop.f32.mrb[0].mxu0
        %v1825 = vpop.f32.mrb[0].mxu0
        %v1826 = vadd.f32 0.0, %v1825
        %v1827 = vpop.f32.mrb[0].mxu0
        %1828 = vdwg.mxu0
        %1829 = vrot.lane.b32.xlu0 %v1214, 64
        %v1830 = vpop.permute.xlu0 %1829
        %1831 = vrot.lane.b32.xlu0 %v1215, 64
        %v1832 = vpop.permute.xlu0 %1831
        %1833 = vrot.lane.b32.xlu0 %v1347, 64
        %v1834 = vpop.permute.xlu0 %1833
        %1835 = vrot.lane.b32.xlu0 %v1348, 64
        %v1836 = vpop.permute.xlu0 %1835
        %v1838 = vsel %vm1484, %v1830, 0
        %v1841 = vsel %vm1484, %v1832, 0
        %v1844 = vsel %vm1484, %v1834, 0
        %v1847 = vsel %vm1484, %v1836, 0
        %1849 = vmatprep.subr.bf16.mxu0 0
        %1850 = vmatpush1.bf16.xpose.msra.mxu0 %v1844
        %1851 = vmatprep.subr.bf16.mxu0 0
        %1852 = vmatpush1.bf16.xpose.msra.mxu0 %v1847
        %1853 = vmatprep.subr.bf16.mxu0 0
        %1854 = vmatpush1.bf16.xpose.msra.mxu0 0
        %1855 = vmatprep.subr.bf16.mxu0 0
        %1856 = vmatpush1.bf16.xpose.msra.mxu0 0
        %1857 = vmatprep.subr.bf16.mxu0 0
        %1858 = vmatpush1.bf16.xpose.msra.mxu0 0
        %1859 = vmatprep.subr.bf16.mxu0 0
        %1860 = vmatpush1.bf16.xpose.msra.mxu0 0
        %1861 = vmatprep.subr.bf16.mxu0 0
        %1862 = vmatpush1.bf16.xpose.msra.mxu0 0
        %1863 = vmatprep.subr.bf16.mxu0 0
        %1864 = vmatpush1.bf16.xpose.msra.mxu0 0
        %1865 = vmatprep.subr.bf16.mxu0 0
        %1866 = vmatpush1.bf16.xpose.msra.mxu0 0
        %1867 = vmatprep.subr.bf16.mxu0 0
        %1868 = vmatpush1.bf16.xpose.msra.mxu0 0
        %1869 = vmatprep.subr.bf16.mxu0 0
        %1870 = vmatpush1.bf16.xpose.msra.mxu0 0
        %1871 = vmatprep.subr.bf16.mxu0 0
        %1872 = vmatpush1.bf16.xpose.msra.mxu0 0
        %1873 = vmatprep.subr.bf16.mxu0 0
        %1874 = vmatpush1.bf16.xpose.msra.mxu0 0
        %1875 = vmatprep.subr.bf16.mxu0 0
        %1876 = vmatpush1.bf16.xpose.msra.mxu0 0
        %1877 = vmatprep.subr.bf16.mxu0 0
        %1878 = vmatpush1.bf16.xpose.msra.mxu0 0
        %1879 = vmatprep.subr.bf16.mxu0 0
        %1880 = vmatpush1.bf16.xpose.msra.mxu0 0
        %1881 = vmatprep.mubr.bf16.mxu0 0
        %1882 = vmatmul.mubr.bf16.gmra.mrb[0].mxu0 %v1838
        %v1883 = vpop.f32.mrb[0].mxu0
        %v1884 = vadd.f32 0.0, %v1883
        %v1885 = vpop.f32.mrb[0].mxu0
        %v1886 = vpop.f32.mrb[0].mxu0
        %v1887 = vadd.f32 0.0, %v1886
        %v1888 = vpop.f32.mrb[0].mxu0
        %1889 = vmatprep.mubr.bf16.mxu0 0
        %1890 = vmatmul.mubr.bf16.gmra.mrb[0].mxu0 %v1841
        %v1891 = vpop.f32.mrb[0].mxu0
        %v1892 = vadd.f32 0.0, %v1891
        %v1893 = vpop.f32.mrb[0].mxu0
        %v1894 = vpop.f32.mrb[0].mxu0
        %v1895 = vadd.f32 0.0, %v1894
        %v1896 = vpop.f32.mrb[0].mxu0
        %1897 = vdwg.mxu0
        %v1898 = vsel %vm1484, %v1884, -inf
        %1899 = vmax.xlane.f32.xlu0 %v1898
        %v1900 = vpop.xlane.xlu0 %1899
        %v1901 = vsel %vm1484, %v1887, -inf
        %1902 = vmax.xlane.f32.xlu0 %v1901
        %v1903 = vpop.xlane.xlu0 %1902
        %v1904 = vsel %vm1484, %v1892, -inf
        %1905 = vmax.xlane.f32.xlu0 %v1904
        %v1906 = vpop.xlane.xlu0 %1905
        %v1907 = vsel %vm1484, %v1895, -inf
        %1908 = vmax.xlane.f32.xlu0 %v1907
        %v1909 = vpop.xlane.xlu0 %1908
        %v1910 = vsub.f32 %v1884, %v1900
        %v1911 = vsub.f32 %v1887, %v1903
        %v1912 = vsub.f32 %v1892, %v1906
        %v1913 = vsub.f32 %v1895, %v1909
        %v1914 = vmul.f32 %v1910, 1.442695
        %v1915 = vpow.pop %v1914
        %v1916 = vmul.f32 %v1911, 1.442695
        %v1917 = vpow.pop %v1916
        %v1918 = vmul.f32 %v1912, 1.442695
        %v1919 = vpow.pop %v1918
        %v1920 = vmul.f32 %v1913, 1.442695
        %v1921 = vpow.pop %v1920
        %v1922 = vsel %vm1484, %v1915, 0.0
        %1923 = vadd.xlane.f32.xlu0 %v1922
        %v1924 = vpop.xlane.xlu0 %1923
        %v1925 = vsel %vm1484, %v1917, 0.0
        %1926 = vadd.xlane.f32.xlu0 %v1925
        %v1927 = vpop.xlane.xlu0 %1926
        %v1928 = vsel %vm1484, %v1919, 0.0
        %1929 = vadd.xlane.f32.xlu0 %v1928
        %v1930 = vpop.xlane.xlu0 %1929
        %v1931 = vsel %vm1484, %v1921, 0.0
        %1932 = vadd.xlane.f32.xlu0 %v1931
        %v1933 = vpop.xlane.xlu0 %1932
        %v1934 = vrcp.pop %v1924
        %v1935 = vrcp.pop %v1927
        %v1936 = vrcp.pop %v1930
        %v1937 = vrcp.pop %v1933
        %v1938 = vmul.f32 %v1915, %v1934
        %v1939 = vmul.f32 %v1917, %v1935
        %v1940 = vmul.f32 %v1919, %v1936
        %v1941 = vmul.f32 %v1921, %v1937
        %v1942 = vpack.c.bf16 %v1939, %v1938
        %v1943 = vpack.c.bf16 %v1941, %v1940
        %1944 = vrot.lane.b32.xlu0 %v1480, 64
        %v1945 = vpop.permute.xlu0 %1944
        %1946 = vrot.lane.b32.xlu0 %v1481, 64
        %v1947 = vpop.permute.xlu0 %1946
        %v1951 = vsel %vm1484, %v1942, 0
        %v1954 = vsel %vm1484, %v1943, 0
        %1956 = vmatprep.subr.bf16.mxu0 0
        %1957 = vmatpush1.bf16.msra.mxu0 %v1945
        %1958 = vmatprep.subr.bf16.mxu0 0
        %1959 = vmatpush1.bf16.msra.mxu0 %v1947
        %1960 = vmatprep.subr.bf16.mxu0 0
        %1961 = vmatpush1.bf16.msra.mxu0 0
        %1962 = vmatprep.subr.bf16.mxu0 0
        %1963 = vmatpush1.bf16.msra.mxu0 0
        %1964 = vmatprep.subr.bf16.mxu0 0
        %1965 = vmatpush1.bf16.msra.mxu0 0
        %1966 = vmatprep.subr.bf16.mxu0 0
        %1967 = vmatpush1.bf16.msra.mxu0 0
        %1968 = vmatprep.subr.bf16.mxu0 0
        %1969 = vmatpush1.bf16.msra.mxu0 0
        %1970 = vmatprep.subr.bf16.mxu0 0
        %1971 = vmatpush1.bf16.msra.mxu0 0
        %1972 = vmatprep.subr.bf16.mxu0 0
        %1973 = vmatpush1.bf16.msra.mxu0 0
        %1974 = vmatprep.subr.bf16.mxu0 0
        %1975 = vmatpush1.bf16.msra.mxu0 0
        %1976 = vmatprep.subr.bf16.mxu0 0
        %1977 = vmatpush1.bf16.msra.mxu0 0
        %1978 = vmatprep.subr.bf16.mxu0 0
        %1979 = vmatpush1.bf16.msra.mxu0 0
        %1980 = vmatprep.subr.bf16.mxu0 0
        %1981 = vmatpush1.bf16.msra.mxu0 0
        %1982 = vmatprep.subr.bf16.mxu0 0
        %1983 = vmatpush1.bf16.msra.mxu0 0
        %1984 = vmatprep.subr.bf16.mxu0 0
        %1985 = vmatpush1.bf16.msra.mxu0 0
        %1986 = vmatprep.subr.bf16.mxu0 0
        %1987 = vmatpush1.bf16.msra.mxu0 0
        %1988 = vmatprep.mubr.bf16.mxu0 0
        %1989 = vmatmul.mubr.bf16.gmra.mrb[0].mxu0 %v1951
        %v1990 = vpop.f32.mrb[0].mxu0
        %v1991 = vadd.f32 0.0, %v1990
        %v1992 = vpop.f32.mrb[0].mxu0
        %v1993 = vpop.f32.mrb[0].mxu0
        %v1994 = vadd.f32 0.0, %v1993
        %v1995 = vpop.f32.mrb[0].mxu0
        %1996 = vmatprep.mubr.bf16.mxu0 0
        %1997 = vmatmul.mubr.bf16.gmra.mrb[0].mxu0 %v1954
        %v1998 = vpop.f32.mrb[0].mxu0
        %v1999 = vadd.f32 0.0, %v1998
        %v2000 = vpop.f32.mrb[0].mxu0
        %v2001 = vpop.f32.mrb[0].mxu0
        %v2002 = vadd.f32 0.0, %v2001
        %v2003 = vpop.f32.mrb[0].mxu0
        %2004 = vdwg.mxu0
        %2005 = vrot.lane.b32.xlu0 %v1214, 32
        %v2006 = vpop.permute.xlu0 %2005
        %2007 = vrot.lane.b32.xlu0 %v1215, 32
        %v2008 = vpop.permute.xlu0 %2007
        %2009 = vrot.lane.b32.xlu0 %v1347, 32
        %v2010 = vpop.permute.xlu0 %2009
        %2011 = vrot.lane.b32.xlu0 %v1348, 32
        %v2012 = vpop.permute.xlu0 %2011
        %v2014 = vsel %vm1484, %v2006, 0
        %v2017 = vsel %vm1484, %v2008, 0
        %v2020 = vsel %vm1484, %v2010, 0
        %v2023 = vsel %vm1484, %v2012, 0
        %2025 = vmatprep.subr.bf16.mxu0 0
        %2026 = vmatpush1.bf16.xpose.msra.mxu0 %v2020
        %2027 = vmatprep.subr.bf16.mxu0 0
        %2028 = vmatpush1.bf16.xpose.msra.mxu0 %v2023
        %2029 = vmatprep.subr.bf16.mxu0 0
        %2030 = vmatpush1.bf16.xpose.msra.mxu0 0
        %2031 = vmatprep.subr.bf16.mxu0 0
        %2032 = vmatpush1.bf16.xpose.msra.mxu0 0
        %2033 = vmatprep.subr.bf16.mxu0 0
        %2034 = vmatpush1.bf16.xpose.msra.mxu0 0
        %2035 = vmatprep.subr.bf16.mxu0 0
        %2036 = vmatpush1.bf16.xpose.msra.mxu0 0
        %2037 = vmatprep.subr.bf16.mxu0 0
        %2038 = vmatpush1.bf16.xpose.msra.mxu0 0
        %2039 = vmatprep.subr.bf16.mxu0 0
        %2040 = vmatpush1.bf16.xpose.msra.mxu0 0
        %2041 = vmatprep.subr.bf16.mxu0 0
        %2042 = vmatpush1.bf16.xpose.msra.mxu0 0
        %2043 = vmatprep.subr.bf16.mxu0 0
        %2044 = vmatpush1.bf16.xpose.msra.mxu0 0
        %2045 = vmatprep.subr.bf16.mxu0 0
        %2046 = vmatpush1.bf16.xpose.msra.mxu0 0
        %2047 = vmatprep.subr.bf16.mxu0 0
        %2048 = vmatpush1.bf16.xpose.msra.mxu0 0
        %2049 = vmatprep.subr.bf16.mxu0 0
        %2050 = vmatpush1.bf16.xpose.msra.mxu0 0
        %2051 = vmatprep.subr.bf16.mxu0 0
        %2052 = vmatpush1.bf16.xpose.msra.mxu0 0
        %2053 = vmatprep.subr.bf16.mxu0 0
        %2054 = vmatpush1.bf16.xpose.msra.mxu0 0
        %2055 = vmatprep.subr.bf16.mxu0 0
        %2056 = vmatpush1.bf16.xpose.msra.mxu0 0
        %2057 = vmatprep.mubr.bf16.mxu0 0
        %2058 = vmatmul.mubr.bf16.gmra.mrb[0].mxu0 %v2014
        %v2059 = vpop.f32.mrb[0].mxu0
        %v2060 = vadd.f32 0.0, %v2059
        %v2061 = vpop.f32.mrb[0].mxu0
        %v2062 = vpop.f32.mrb[0].mxu0
        %v2063 = vadd.f32 0.0, %v2062
        %v2064 = vpop.f32.mrb[0].mxu0
        %2065 = vmatprep.mubr.bf16.mxu0 0
        %2066 = vmatmul.mubr.bf16.gmra.mrb[0].mxu0 %v2017
        %v2067 = vpop.f32.mrb[0].mxu0
        %v2068 = vadd.f32 0.0, %v2067
        %v2069 = vpop.f32.mrb[0].mxu0
        %v2070 = vpop.f32.mrb[0].mxu0
        %v2071 = vadd.f32 0.0, %v2070
        %v2072 = vpop.f32.mrb[0].mxu0
        %2073 = vdwg.mxu0
        %v2074 = vsel %vm1484, %v2060, -inf
        %2075 = vmax.xlane.f32.xlu0 %v2074
        %v2076 = vpop.xlane.xlu0 %2075
        %v2077 = vsel %vm1484, %v2063, -inf
        %2078 = vmax.xlane.f32.xlu0 %v2077
        %v2079 = vpop.xlane.xlu0 %2078
        %v2080 = vsel %vm1484, %v2068, -inf
        %2081 = vmax.xlane.f32.xlu0 %v2080
        %v2082 = vpop.xlane.xlu0 %2081
        %v2083 = vsel %vm1484, %v2071, -inf
        %2084 = vmax.xlane.f32.xlu0 %v2083
        %v2085 = vpop.xlane.xlu0 %2084
        %v2086 = vsub.f32 %v2060, %v2076
        %v2087 = vsub.f32 %v2063, %v2079
        %v2088 = vsub.f32 %v2068, %v2082
        %v2089 = vsub.f32 %v2071, %v2085
        %v2090 = vmul.f32 %v2086, 1.442695
        %v2091 = vpow.pop %v2090
        %v2092 = vmul.f32 %v2087, 1.442695
        %v2093 = vpow.pop %v2092
        %v2094 = vmul.f32 %v2088, 1.442695
        %v2095 = vpow.pop %v2094
        %v2096 = vmul.f32 %v2089, 1.442695
        %v2097 = vpow.pop %v2096
        %v2098 = vsel %vm1484, %v2091, 0.0
        %2099 = vadd.xlane.f32.xlu0 %v2098
        %v2100 = vpop.xlane.xlu0 %2099
        %v2101 = vsel %vm1484, %v2093, 0.0
        %2102 = vadd.xlane.f32.xlu0 %v2101
        %v2103 = vpop.xlane.xlu0 %2102
        %v2104 = vsel %vm1484, %v2095, 0.0
        %2105 = vadd.xlane.f32.xlu0 %v2104
        %v2106 = vpop.xlane.xlu0 %2105
        %v2107 = vsel %vm1484, %v2097, 0.0
        %2108 = vadd.xlane.f32.xlu0 %v2107
        %v2109 = vpop.xlane.xlu0 %2108
        %v2110 = vrcp.pop %v2100
        %v2111 = vrcp.pop %v2103
        %v2112 = vrcp.pop %v2106
        %v2113 = vrcp.pop %v2109
        %v2114 = vmul.f32 %v2091, %v2110
        %v2115 = vmul.f32 %v2093, %v2111
        %v2116 = vmul.f32 %v2095, %v2112
        %v2117 = vmul.f32 %v2097, %v2113
        %v2118 = vpack.c.bf16 %v2115, %v2114
        %v2119 = vpack.c.bf16 %v2117, %v2116
        %2120 = vrot.lane.b32.xlu0 %v1480, 32
        %v2121 = vpop.permute.xlu0 %2120
        %2122 = vrot.lane.b32.xlu0 %v1481, 32
        %v2123 = vpop.permute.xlu0 %2122
        %v2127 = vsel %vm1484, %v2118, 0
        %v2130 = vsel %vm1484, %v2119, 0
        %2132 = vmatprep.subr.bf16.mxu0 0
        %2133 = vmatpush1.bf16.msra.mxu0 %v2121
        %2134 = vmatprep.subr.bf16.mxu0 0
        %2135 = vmatpush1.bf16.msra.mxu0 %v2123
        %2136 = vmatprep.subr.bf16.mxu0 0
        %2137 = vmatpush1.bf16.msra.mxu0 0
        %2138 = vmatprep.subr.bf16.mxu0 0
        %2139 = vmatpush1.bf16.msra.mxu0 0
        %2140 = vmatprep.subr.bf16.mxu0 0
        %2141 = vmatpush1.bf16.msra.mxu0 0
        %2142 = vmatprep.subr.bf16.mxu0 0
        %2143 = vmatpush1.bf16.msra.mxu0 0
        %2144 = vmatprep.subr.bf16.mxu0 0
        %2145 = vmatpush1.bf16.msra.mxu0 0
        %2146 = vmatprep.subr.bf16.mxu0 0
        %2147 = vmatpush1.bf16.msra.mxu0 0
        %2148 = vmatprep.subr.bf16.mxu0 0
        %2149 = vmatpush1.bf16.msra.mxu0 0
        %2150 = vmatprep.subr.bf16.mxu0 0
        %2151 = vmatpush1.bf16.msra.mxu0 0
        %2152 = vmatprep.subr.bf16.mxu0 0
        %2153 = vmatpush1.bf16.msra.mxu0 0
        %2154 = vmatprep.subr.bf16.mxu0 0
        %2155 = vmatpush1.bf16.msra.mxu0 0
        %2156 = vmatprep.subr.bf16.mxu0 0
        %2157 = vmatpush1.bf16.msra.mxu0 0
        %2158 = vmatprep.subr.bf16.mxu0 0
        %2159 = vmatpush1.bf16.msra.mxu0 0
        %2160 = vmatprep.subr.bf16.mxu0 0
        %2161 = vmatpush1.bf16.msra.mxu0 0
        %2162 = vmatprep.subr.bf16.mxu0 0
        %2163 = vmatpush1.bf16.msra.mxu0 0
        %2164 = vmatprep.mubr.bf16.mxu0 0
        %2165 = vmatmul.mubr.bf16.gmra.mrb[0].mxu0 %v2127
        %v2166 = vpop.f32.mrb[0].mxu0
        %v2167 = vadd.f32 0.0, %v2166
        %v2168 = vpop.f32.mrb[0].mxu0
        %v2169 = vpop.f32.mrb[0].mxu0
        %v2170 = vadd.f32 0.0, %v2169
        %v2171 = vpop.f32.mrb[0].mxu0
        %2172 = vmatprep.mubr.bf16.mxu0 0
        %2173 = vmatmul.mubr.bf16.gmra.mrb[0].mxu0 %v2130
        %v2174 = vpop.f32.mrb[0].mxu0
        %v2175 = vadd.f32 0.0, %v2174
        %v2176 = vpop.f32.mrb[0].mxu0
        %v2177 = vpop.f32.mrb[0].mxu0
        %v2178 = vadd.f32 0.0, %v2177
        %v2179 = vpop.f32.mrb[0].mxu0
        %2180 = vdwg.mxu0
        %2185 = vrot.lane.b32.xlu0 %v1815, 32
        %v2186 = vpop.permute.xlu0 %2185
        %2187 = vrot.lane.b32.xlu0 %v1818, 32
        %v2188 = vpop.permute.xlu0 %2187
        %2189 = vrot.lane.b32.xlu0 %v1823, 32
        %v2190 = vpop.permute.xlu0 %2189
        %2191 = vrot.lane.b32.xlu0 %v1826, 32
        %v2192 = vpop.permute.xlu0 %2191
        %2201 = vrot.lane.b32.xlu0 %v1991, 64
        %v2202 = vpop.permute.xlu0 %2201
        %2203 = vrot.lane.b32.xlu0 %v1994, 64
        %v2204 = vpop.permute.xlu0 %2203
        %2205 = vrot.lane.b32.xlu0 %v1999, 64
        %v2206 = vpop.permute.xlu0 %2205
        %2207 = vrot.lane.b32.xlu0 %v2002, 64
        %v2208 = vpop.permute.xlu0 %2207
        %2217 = vrot.lane.b32.xlu0 %v2167, 96
        %v2218 = vpop.permute.xlu0 %2217
        %2219 = vrot.lane.b32.xlu0 %v2170, 96
        %v2220 = vpop.permute.xlu0 %2219
        %2221 = vrot.lane.b32.xlu0 %v2175, 96
        %v2222 = vpop.permute.xlu0 %2221
        %2223 = vrot.lane.b32.xlu0 %v2178, 96
        %v2224 = vpop.permute.xlu0 %2223
        %v2229 = vsel %vm1484, %v1633, %v2186
        %v2230 = vsel %vm1484, %v1636, %v2188
        %v2231 = vsel %vm1484, %v1641, %v2190
        %v2232 = vsel %vm1484, %v1644, %v2192
        %vm2233 = vcmask 523264
        %v2234 = vsel %vm2233, %v2229, %v2202
        %v2235 = vsel %vm2233, %v2230, %v2204
        %v2236 = vsel %vm2233, %v2231, %v2206
        %v2237 = vsel %vm2233, %v2232, %v2208
        %vm2238 = vcmask 785408
        %v2239 = vsel %vm2238, %v2234, %v2218
        %v2240 = vsel %vm2238, %v2235, %v2220
        %v2241 = vsel %vm2238, %v2236, %v2222
        %v2242 = vsel %vm2238, %v2237, %v2224
        %v2244 = vsel %vm1484, %v1216, 0
        %v2247 = vsel %vm1484, %v1217, 0
        %v2250 = vsel %vm1484, %v1349, 0
        %v2253 = vsel %vm1484, %v1350, 0
        %2255 = vmatprep.subr.bf16.mxu0 0
        %2256 = vmatpush1.bf16.xpose.msra.mxu0 %v2250
        %2257 = vmatprep.subr.bf16.mxu0 0
        %2258 = vmatpush1.bf16.xpose.msra.mxu0 %v2253
        %2259 = vmatprep.subr.bf16.mxu0 0
        %2260 = vmatpush1.bf16.xpose.msra.mxu0 0
        %2261 = vmatprep.subr.bf16.mxu0 0
        %2262 = vmatpush1.bf16.xpose.msra.mxu0 0
        %2263 = vmatprep.subr.bf16.mxu0 0
        %2264 = vmatpush1.bf16.xpose.msra.mxu0 0
        %2265 = vmatprep.subr.bf16.mxu0 0
        %2266 = vmatpush1.bf16.xpose.msra.mxu0 0
        %2267 = vmatprep.subr.bf16.mxu0 0
        %2268 = vmatpush1.bf16.xpose.msra.mxu0 0
        %2269 = vmatprep.subr.bf16.mxu0 0
        %2270 = vmatpush1.bf16.xpose.msra.mxu0 0
        %2271 = vmatprep.subr.bf16.mxu0 0
        %2272 = vmatpush1.bf16.xpose.msra.mxu0 0
        %2273 = vmatprep.subr.bf16.mxu0 0
        %2274 = vmatpush1.bf16.xpose.msra.mxu0 0
        %2275 = vmatprep.subr.bf16.mxu0 0
        %2276 = vmatpush1.bf16.xpose.msra.mxu0 0
        %2277 = vmatprep.subr.bf16.mxu0 0
        %2278 = vmatpush1.bf16.xpose.msra.mxu0 0
        %2279 = vmatprep.subr.bf16.mxu0 0
        %2280 = vmatpush1.bf16.xpose.msra.mxu0 0
        %2281 = vmatprep.subr.bf16.mxu0 0
        %2282 = vmatpush1.bf16.xpose.msra.mxu0 0
        %2283 = vmatprep.subr.bf16.mxu0 0
        %2284 = vmatpush1.bf16.xpose.msra.mxu0 0
        %2285 = vmatprep.subr.bf16.mxu0 0
        %2286 = vmatpush1.bf16.xpose.msra.mxu0 0
        %2287 = vmatprep.mubr.bf16.mxu0 0
        %2288 = vmatmul.mubr.bf16.gmra.mrb[0].mxu0 %v2244
        %v2289 = vpop.f32.mrb[0].mxu0
        %v2290 = vadd.f32 0.0, %v2289
        %v2291 = vpop.f32.mrb[0].mxu0
        %v2292 = vpop.f32.mrb[0].mxu0
        %v2293 = vadd.f32 0.0, %v2292
        %v2294 = vpop.f32.mrb[0].mxu0
        %2295 = vmatprep.mubr.bf16.mxu0 0
        %2296 = vmatmul.mubr.bf16.gmra.mrb[0].mxu0 %v2247
        %v2297 = vpop.f32.mrb[0].mxu0
        %v2298 = vadd.f32 0.0, %v2297
        %v2299 = vpop.f32.mrb[0].mxu0
        %v2300 = vpop.f32.mrb[0].mxu0
        %v2301 = vadd.f32 0.0, %v2300
        %v2302 = vpop.f32.mrb[0].mxu0
        %2303 = vdwg.mxu0
        %v2304 = vsel %vm1484, %v2290, -inf
        %2305 = vmax.xlane.f32.xlu0 %v2304
        %v2306 = vpop.xlane.xlu0 %2305
        %v2307 = vsel %vm1484, %v2293, -inf
        %2308 = vmax.xlane.f32.xlu0 %v2307
        %v2309 = vpop.xlane.xlu0 %2308
        %v2310 = vsel %vm1484, %v2298, -inf
        %2311 = vmax.xlane.f32.xlu0 %v2310
        %v2312 = vpop.xlane.xlu0 %2311
        %v2313 = vsel %vm1484, %v2301, -inf
        %2314 = vmax.xlane.f32.xlu0 %v2313
        %v2315 = vpop.xlane.xlu0 %2314
        %v2316 = vsub.f32 %v2290, %v2306
        %v2317 = vsub.f32 %v2293, %v2309
        %v2318 = vsub.f32 %v2298, %v2312
        %v2319 = vsub.f32 %v2301, %v2315
        %v2320 = vmul.f32 %v2316, 1.442695
        %v2321 = vpow.pop %v2320
        %v2322 = vmul.f32 %v2317, 1.442695
        %v2323 = vpow.pop %v2322
        %v2324 = vmul.f32 %v2318, 1.442695
        %v2325 = vpow.pop %v2324
        %v2326 = vmul.f32 %v2319, 1.442695
        %v2327 = vpow.pop %v2326
        %v2328 = vsel %vm1484, %v2321, 0.0
        %2329 = vadd.xlane.f32.xlu0 %v2328
        %v2330 = vpop.xlane.xlu0 %2329
        %v2331 = vsel %vm1484, %v2323, 0.0
        %2332 = vadd.xlane.f32.xlu0 %v2331
        %v2333 = vpop.xlane.xlu0 %2332
        %v2334 = vsel %vm1484, %v2325, 0.0
        %2335 = vadd.xlane.f32.xlu0 %v2334
        %v2336 = vpop.xlane.xlu0 %2335
        %v2337 = vsel %vm1484, %v2327, 0.0
        %2338 = vadd.xlane.f32.xlu0 %v2337
        %v2339 = vpop.xlane.xlu0 %2338
        %v2340 = vrcp.pop %v2330
        %v2341 = vrcp.pop %v2333
        %v2342 = vrcp.pop %v2336
        %v2343 = vrcp.pop %v2339
        %v2344 = vmul.f32 %v2321, %v2340
        %v2345 = vmul.f32 %v2323, %v2341
        %v2346 = vmul.f32 %v2325, %v2342
        %v2347 = vmul.f32 %v2327, %v2343
        %v2348 = vpack.c.bf16 %v2345, %v2344
        %v2349 = vpack.c.bf16 %v2347, %v2346
        %v2351 = vsel %vm1484, %v2348, 0
        %v2354 = vsel %vm1484, %v2349, 0
        %2356 = vmatprep.subr.bf16.mxu0 0
        %2357 = vmatpush1.bf16.msra.mxu0 %v1482
        %2358 = vmatprep.subr.bf16.mxu0 0
        %2359 = vmatpush1.bf16.msra.mxu0 %v1483
        %2360 = vmatprep.subr.bf16.mxu0 0
        %2361 = vmatpush1.bf16.msra.mxu0 0
        %2362 = vmatprep.subr.bf16.mxu0 0
        %2363 = vmatpush1.bf16.msra.mxu0 0
        %2364 = vmatprep.subr.bf16.mxu0 0
        %2365 = vmatpush1.bf16.msra.mxu0 0
        %2366 = vmatprep.subr.bf16.mxu0 0
        %2367 = vmatpush1.bf16.msra.mxu0 0
        %2368 = vmatprep.subr.bf16.mxu0 0
        %2369 = vmatpush1.bf16.msra.mxu0 0
        %2370 = vmatprep.subr.bf16.mxu0 0
        %2371 = vmatpush1.bf16.msra.mxu0 0
        %2372 = vmatprep.subr.bf16.mxu0 0
        %2373 = vmatpush1.bf16.msra.mxu0 0
        %2374 = vmatprep.subr.bf16.mxu0 0
        %2375 = vmatpush1.bf16.msra.mxu0 0
        %2376 = vmatprep.subr.bf16.mxu0 0
        %2377 = vmatpush1.bf16.msra.mxu0 0
        %2378 = vmatprep.subr.bf16.mxu0 0
        %2379 = vmatpush1.bf16.msra.mxu0 0
        %2380 = vmatprep.subr.bf16.mxu0 0
        %2381 = vmatpush1.bf16.msra.mxu0 0
        %2382 = vmatprep.subr.bf16.mxu0 0
        %2383 = vmatpush1.bf16.msra.mxu0 0
        %2384 = vmatprep.subr.bf16.mxu0 0
        %2385 = vmatpush1.bf16.msra.mxu0 0
        %2386 = vmatprep.subr.bf16.mxu0 0
        %2387 = vmatpush1.bf16.msra.mxu0 0
        %2388 = vmatprep.mubr.bf16.mxu0 0
        %2389 = vmatmul.mubr.bf16.gmra.mrb[0].mxu0 %v2351
        %v2390 = vpop.f32.mrb[0].mxu0
        %v2391 = vadd.f32 0.0, %v2390
        %v2392 = vpop.f32.mrb[0].mxu0
        %v2393 = vpop.f32.mrb[0].mxu0
        %v2394 = vadd.f32 0.0, %v2393
        %v2395 = vpop.f32.mrb[0].mxu0
        %2396 = vmatprep.mubr.bf16.mxu0 0
        %2397 = vmatmul.mubr.bf16.gmra.mrb[0].mxu0 %v2354
        %v2398 = vpop.f32.mrb[0].mxu0
        %v2399 = vadd.f32 0.0, %v2398
        %v2400 = vpop.f32.mrb[0].mxu0
        %v2401 = vpop.f32.mrb[0].mxu0
        %v2402 = vadd.f32 0.0, %v2401
        %v2403 = vpop.f32.mrb[0].mxu0
        %2404 = vdwg.mxu0
        %2407 = vrot.lane.b32.xlu0 %v1216, 96
        %v2408 = vpop.permute.xlu0 %2407
        %2409 = vrot.lane.b32.xlu0 %v1217, 96
        %v2410 = vpop.permute.xlu0 %2409
        %2413 = vrot.lane.b32.xlu0 %v1349, 96
        %v2414 = vpop.permute.xlu0 %2413
        %2415 = vrot.lane.b32.xlu0 %v1350, 96
        %v2416 = vpop.permute.xlu0 %2415
        %v2418 = vsel %vm1484, %v2408, 0
        %v2421 = vsel %vm1484, %v2410, 0
        %v2424 = vsel %vm1484, %v2414, 0
        %v2427 = vsel %vm1484, %v2416, 0
        %2429 = vmatprep.subr.bf16.mxu0 0
        %2430 = vmatpush1.bf16.xpose.msra.mxu0 %v2424
        %2431 = vmatprep.subr.bf16.mxu0 0
        %2432 = vmatpush1.bf16.xpose.msra.mxu0 %v2427
        %2433 = vmatprep.subr.bf16.mxu0 0
        %2434 = vmatpush1.bf16.xpose.msra.mxu0 0
        %2435 = vmatprep.subr.bf16.mxu0 0
        %2436 = vmatpush1.bf16.xpose.msra.mxu0 0
        %2437 = vmatprep.subr.bf16.mxu0 0
        %2438 = vmatpush1.bf16.xpose.msra.mxu0 0
        %2439 = vmatprep.subr.bf16.mxu0 0
        %2440 = vmatpush1.bf16.xpose.msra.mxu0 0
        %2441 = vmatprep.subr.bf16.mxu0 0
        %2442 = vmatpush1.bf16.xpose.msra.mxu0 0
        %2443 = vmatprep.subr.bf16.mxu0 0
        %2444 = vmatpush1.bf16.xpose.msra.mxu0 0
        %2445 = vmatprep.subr.bf16.mxu0 0
        %2446 = vmatpush1.bf16.xpose.msra.mxu0 0
        %2447 = vmatprep.subr.bf16.mxu0 0
        %2448 = vmatpush1.bf16.xpose.msra.mxu0 0
        %2449 = vmatprep.subr.bf16.mxu0 0
        %2450 = vmatpush1.bf16.xpose.msra.mxu0 0
        %2451 = vmatprep.subr.bf16.mxu0 0
        %2452 = vmatpush1.bf16.xpose.msra.mxu0 0
        %2453 = vmatprep.subr.bf16.mxu0 0
        %2454 = vmatpush1.bf16.xpose.msra.mxu0 0
        %2455 = vmatprep.subr.bf16.mxu0 0
        %2456 = vmatpush1.bf16.xpose.msra.mxu0 0
        %2457 = vmatprep.subr.bf16.mxu0 0
        %2458 = vmatpush1.bf16.xpose.msra.mxu0 0
        %2459 = vmatprep.subr.bf16.mxu0 0
        %2460 = vmatpush1.bf16.xpose.msra.mxu0 0
        %2461 = vmatprep.mubr.bf16.mxu0 0
        %2462 = vmatmul.mubr.bf16.gmra.mrb[0].mxu0 %v2418
        %v2463 = vpop.f32.mrb[0].mxu0
        %v2464 = vadd.f32 0.0, %v2463
        %v2465 = vpop.f32.mrb[0].mxu0
        %v2466 = vpop.f32.mrb[0].mxu0
        %v2467 = vadd.f32 0.0, %v2466
        %v2468 = vpop.f32.mrb[0].mxu0
        %2469 = vmatprep.mubr.bf16.mxu0 0
        %2470 = vmatmul.mubr.bf16.gmra.mrb[0].mxu0 %v2421
        %v2471 = vpop.f32.mrb[0].mxu0
        %v2472 = vadd.f32 0.0, %v2471
        %v2473 = vpop.f32.mrb[0].mxu0
        %v2474 = vpop.f32.mrb[0].mxu0
        %v2475 = vadd.f32 0.0, %v2474
        %v2476 = vpop.f32.mrb[0].mxu0
        %2477 = vdwg.mxu0
        %v2478 = vsel %vm1484, %v2464, -inf
        %2479 = vmax.xlane.f32.xlu0 %v2478
        %v2480 = vpop.xlane.xlu0 %2479
        %v2481 = vsel %vm1484, %v2467, -inf
        %2482 = vmax.xlane.f32.xlu0 %v2481
        %v2483 = vpop.xlane.xlu0 %2482
        %v2484 = vsel %vm1484, %v2472, -inf
        %2485 = vmax.xlane.f32.xlu0 %v2484
        %v2486 = vpop.xlane.xlu0 %2485
        %v2487 = vsel %vm1484, %v2475, -inf
        %2488 = vmax.xlane.f32.xlu0 %v2487
        %v2489 = vpop.xlane.xlu0 %2488
        %v2490 = vsub.f32 %v2464, %v2480
        %v2491 = vsub.f32 %v2467, %v2483
        %v2492 = vsub.f32 %v2472, %v2486
        %v2493 = vsub.f32 %v2475, %v2489
        %v2494 = vmul.f32 %v2490, 1.442695
        %v2495 = vpow.pop %v2494
        %v2496 = vmul.f32 %v2491, 1.442695
        %v2497 = vpow.pop %v2496
        %v2498 = vmul.f32 %v2492, 1.442695
        %v2499 = vpow.pop %v2498
        %v2500 = vmul.f32 %v2493, 1.442695
        %v2501 = vpow.pop %v2500
        %v2502 = vsel %vm1484, %v2495, 0.0
        %2503 = vadd.xlane.f32.xlu0 %v2502
        %v2504 = vpop.xlane.xlu0 %2503
        %v2505 = vsel %vm1484, %v2497, 0.0
        %2506 = vadd.xlane.f32.xlu0 %v2505
        %v2507 = vpop.xlane.xlu0 %2506
        %v2508 = vsel %vm1484, %v2499, 0.0
        %2509 = vadd.xlane.f32.xlu0 %v2508
        %v2510 = vpop.xlane.xlu0 %2509
        %v2511 = vsel %vm1484, %v2501, 0.0
        %2512 = vadd.xlane.f32.xlu0 %v2511
        %v2513 = vpop.xlane.xlu0 %2512
        %v2514 = vrcp.pop %v2504
        %v2515 = vrcp.pop %v2507
        %v2516 = vrcp.pop %v2510
        %v2517 = vrcp.pop %v2513
        %v2518 = vmul.f32 %v2495, %v2514
        %v2519 = vmul.f32 %v2497, %v2515
        %v2520 = vmul.f32 %v2499, %v2516
        %v2521 = vmul.f32 %v2501, %v2517
        %v2522 = vpack.c.bf16 %v2519, %v2518
        %v2523 = vpack.c.bf16 %v2521, %v2520
        %2526 = vrot.lane.b32.xlu0 %v1482, 96
        %v2527 = vpop.permute.xlu0 %2526
        %2528 = vrot.lane.b32.xlu0 %v1483, 96
        %v2529 = vpop.permute.xlu0 %2528
        %v2533 = vsel %vm1484, %v2522, 0
        %v2536 = vsel %vm1484, %v2523, 0
        %2538 = vmatprep.subr.bf16.mxu0 0
        %2539 = vmatpush1.bf16.msra.mxu0 %v2527
        %2540 = vmatprep.subr.bf16.mxu0 0
        %2541 = vmatpush1.bf16.msra.mxu0 %v2529
        %2542 = vmatprep.subr.bf16.mxu0 0
        %2543 = vmatpush1.bf16.msra.mxu0 0
        %2544 = vmatprep.subr.bf16.mxu0 0
        %2545 = vmatpush1.bf16.msra.mxu0 0
        %2546 = vmatprep.subr.bf16.mxu0 0
        %2547 = vmatpush1.bf16.msra.mxu0 0
        %2548 = vmatprep.subr.bf16.mxu0 0
        %2549 = vmatpush1.bf16.msra.mxu0 0
        %2550 = vmatprep.subr.bf16.mxu0 0
        %2551 = vmatpush1.bf16.msra.mxu0 0
        %2552 = vmatprep.subr.bf16.mxu0 0
        %2553 = vmatpush1.bf16.msra.mxu0 0
        %2554 = vmatprep.subr.bf16.mxu0 0
        %2555 = vmatpush1.bf16.msra.mxu0 0
        %2556 = vmatprep.subr.bf16.mxu0 0
        %2557 = vmatpush1.bf16.msra.mxu0 0
        %2558 = vmatprep.subr.bf16.mxu0 0
        %2559 = vmatpush1.bf16.msra.mxu0 0
        %2560 = vmatprep.subr.bf16.mxu0 0
        %2561 = vmatpush1.bf16.msra.mxu0 0
        %2562 = vmatprep.subr.bf16.mxu0 0
        %2563 = vmatpush1.bf16.msra.mxu0 0
        %2564 = vmatprep.subr.bf16.mxu0 0
        %2565 = vmatpush1.bf16.msra.mxu0 0
        %2566 = vmatprep.subr.bf16.mxu0 0
        %2567 = vmatpush1.bf16.msra.mxu0 0
        %2568 = vmatprep.subr.bf16.mxu0 0
        %2569 = vmatpush1.bf16.msra.mxu0 0
        %2570 = vmatprep.mubr.bf16.mxu0 0
        %2571 = vmatmul.mubr.bf16.gmra.mrb[0].mxu0 %v2533
        %v2572 = vpop.f32.mrb[0].mxu0
        %v2573 = vadd.f32 0.0, %v2572
        %v2574 = vpop.f32.mrb[0].mxu0
        %v2575 = vpop.f32.mrb[0].mxu0
        %v2576 = vadd.f32 0.0, %v2575
        %v2577 = vpop.f32.mrb[0].mxu0
        %2578 = vmatprep.mubr.bf16.mxu0 0
        %2579 = vmatmul.mubr.bf16.gmra.mrb[0].mxu0 %v2536
        %v2580 = vpop.f32.mrb[0].mxu0
        %v2581 = vadd.f32 0.0, %v2580
        %v2582 = vpop.f32.mrb[0].mxu0
        %v2583 = vpop.f32.mrb[0].mxu0
        %v2584 = vadd.f32 0.0, %v2583
        %v2585 = vpop.f32.mrb[0].mxu0
        %2586 = vdwg.mxu0
        %2587 = vrot.lane.b32.xlu0 %v1216, 64
        %v2588 = vpop.permute.xlu0 %2587
        %2589 = vrot.lane.b32.xlu0 %v1217, 64
        %v2590 = vpop.permute.xlu0 %2589
        %2591 = vrot.lane.b32.xlu0 %v1349, 64
        %v2592 = vpop.permute.xlu0 %2591
        %2593 = vrot.lane.b32.xlu0 %v1350, 64
        %v2594 = vpop.permute.xlu0 %2593
        %v2596 = vsel %vm1484, %v2588, 0
        %v2599 = vsel %vm1484, %v2590, 0
        %v2602 = vsel %vm1484, %v2592, 0
        %v2605 = vsel %vm1484, %v2594, 0
        %2607 = vmatprep.subr.bf16.mxu0 0
        %2608 = vmatpush1.bf16.xpose.msra.mxu0 %v2602
        %2609 = vmatprep.subr.bf16.mxu0 0
        %2610 = vmatpush1.bf16.xpose.msra.mxu0 %v2605
        %2611 = vmatprep.subr.bf16.mxu0 0
        %2612 = vmatpush1.bf16.xpose.msra.mxu0 0
        %2613 = vmatprep.subr.bf16.mxu0 0
        %2614 = vmatpush1.bf16.xpose.msra.mxu0 0
        %2615 = vmatprep.subr.bf16.mxu0 0
        %2616 = vmatpush1.bf16.xpose.msra.mxu0 0
        %2617 = vmatprep.subr.bf16.mxu0 0
        %2618 = vmatpush1.bf16.xpose.msra.mxu0 0
        %2619 = vmatprep.subr.bf16.mxu0 0
        %2620 = vmatpush1.bf16.xpose.msra.mxu0 0
        %2621 = vmatprep.subr.bf16.mxu0 0
        %2622 = vmatpush1.bf16.xpose.msra.mxu0 0
        %2623 = vmatprep.subr.bf16.mxu0 0
        %2624 = vmatpush1.bf16.xpose.msra.mxu0 0
        %2625 = vmatprep.subr.bf16.mxu0 0
        %2626 = vmatpush1.bf16.xpose.msra.mxu0 0
        %2627 = vmatprep.subr.bf16.mxu0 0
        %2628 = vmatpush1.bf16.xpose.msra.mxu0 0
        %2629 = vmatprep.subr.bf16.mxu0 0
        %2630 = vmatpush1.bf16.xpose.msra.mxu0 0
        %2631 = vmatprep.subr.bf16.mxu0 0
        %2632 = vmatpush1.bf16.xpose.msra.mxu0 0
        %2633 = vmatprep.subr.bf16.mxu0 0
        %2634 = vmatpush1.bf16.xpose.msra.mxu0 0
        %2635 = vmatprep.subr.bf16.mxu0 0
        %2636 = vmatpush1.bf16.xpose.msra.mxu0 0
        %2637 = vmatprep.subr.bf16.mxu0 0
        %2638 = vmatpush1.bf16.xpose.msra.mxu0 0
        %2639 = vmatprep.mubr.bf16.mxu0 0
        %2640 = vmatmul.mubr.bf16.gmra.mrb[0].mxu0 %v2596
        %v2641 = vpop.f32.mrb[0].mxu0
        %v2642 = vadd.f32 0.0, %v2641
        %v2643 = vpop.f32.mrb[0].mxu0
        %v2644 = vpop.f32.mrb[0].mxu0
        %v2645 = vadd.f32 0.0, %v2644
        %v2646 = vpop.f32.mrb[0].mxu0
        %2647 = vmatprep.mubr.bf16.mxu0 0
        %2648 = vmatmul.mubr.bf16.gmra.mrb[0].mxu0 %v2599
        %v2649 = vpop.f32.mrb[0].mxu0
        %v2650 = vadd.f32 0.0, %v2649
        %v2651 = vpop.f32.mrb[0].mxu0
        %v2652 = vpop.f32.mrb[0].mxu0
        %v2653 = vadd.f32 0.0, %v2652
        %v2654 = vpop.f32.mrb[0].mxu0
        %2655 = vdwg.mxu0
        %v2656 = vsel %vm1484, %v2642, -inf
        %2657 = vmax.xlane.f32.xlu0 %v2656
        %v2658 = vpop.xlane.xlu0 %2657
        %v2659 = vsel %vm1484, %v2645, -inf
        %2660 = vmax.xlane.f32.xlu0 %v2659
        %v2661 = vpop.xlane.xlu0 %2660
        %v2662 = vsel %vm1484, %v2650, -inf
        %2663 = vmax.xlane.f32.xlu0 %v2662
        %v2664 = vpop.xlane.xlu0 %2663
        %v2665 = vsel %vm1484, %v2653, -inf
        %2666 = vmax.xlane.f32.xlu0 %v2665
        %v2667 = vpop.xlane.xlu0 %2666
        %v2668 = vsub.f32 %v2642, %v2658
        %v2669 = vsub.f32 %v2645, %v2661
        %v2670 = vsub.f32 %v2650, %v2664
        %v2671 = vsub.f32 %v2653, %v2667
        %v2672 = vmul.f32 %v2668, 1.442695
        %v2673 = vpow.pop %v2672
        %v2674 = vmul.f32 %v2669, 1.442695
        %v2675 = vpow.pop %v2674
        %v2676 = vmul.f32 %v2670, 1.442695
        %v2677 = vpow.pop %v2676
        %v2678 = vmul.f32 %v2671, 1.442695
        %v2679 = vpow.pop %v2678
        %v2680 = vsel %vm1484, %v2673, 0.0
        %2681 = vadd.xlane.f32.xlu0 %v2680
        %v2682 = vpop.xlane.xlu0 %2681
        %v2683 = vsel %vm1484, %v2675, 0.0
        %2684 = vadd.xlane.f32.xlu0 %v2683
        %v2685 = vpop.xlane.xlu0 %2684
        %v2686 = vsel %vm1484, %v2677, 0.0
        %2687 = vadd.xlane.f32.xlu0 %v2686
        %v2688 = vpop.xlane.xlu0 %2687
        %v2689 = vsel %vm1484, %v2679, 0.0
        %2690 = vadd.xlane.f32.xlu0 %v2689
        %v2691 = vpop.xlane.xlu0 %2690
        %v2692 = vrcp.pop %v2682
        %v2693 = vrcp.pop %v2685
        %v2694 = vrcp.pop %v2688
        %v2695 = vrcp.pop %v2691
        %v2696 = vmul.f32 %v2673, %v2692
        %v2697 = vmul.f32 %v2675, %v2693
        %v2698 = vmul.f32 %v2677, %v2694
        %v2699 = vmul.f32 %v2679, %v2695
        %v2700 = vpack.c.bf16 %v2697, %v2696
        %v2701 = vpack.c.bf16 %v2699, %v2698
        %2702 = vrot.lane.b32.xlu0 %v1482, 64
        %v2703 = vpop.permute.xlu0 %2702
        %2704 = vrot.lane.b32.xlu0 %v1483, 64
        %v2705 = vpop.permute.xlu0 %2704
        %v2709 = vsel %vm1484, %v2700, 0
        %v2712 = vsel %vm1484, %v2701, 0
        %2714 = vmatprep.subr.bf16.mxu0 0
        %2715 = vmatpush1.bf16.msra.mxu0 %v2703
        %2716 = vmatprep.subr.bf16.mxu0 0
        %2717 = vmatpush1.bf16.msra.mxu0 %v2705
        %2718 = vmatprep.subr.bf16.mxu0 0
        %2719 = vmatpush1.bf16.msra.mxu0 0
        %2720 = vmatprep.subr.bf16.mxu0 0
        %2721 = vmatpush1.bf16.msra.mxu0 0
        %2722 = vmatprep.subr.bf16.mxu0 0
        %2723 = vmatpush1.bf16.msra.mxu0 0
        %2724 = vmatprep.subr.bf16.mxu0 0
        %2725 = vmatpush1.bf16.msra.mxu0 0
        %2726 = vmatprep.subr.bf16.mxu0 0
        %2727 = vmatpush1.bf16.msra.mxu0 0
        %2728 = vmatprep.subr.bf16.mxu0 0
        %2729 = vmatpush1.bf16.msra.mxu0 0
        %2730 = vmatprep.subr.bf16.mxu0 0
        %2731 = vmatpush1.bf16.msra.mxu0 0
        %2732 = vmatprep.subr.bf16.mxu0 0
        %2733 = vmatpush1.bf16.msra.mxu0 0
        %2734 = vmatprep.subr.bf16.mxu0 0
        %2735 = vmatpush1.bf16.msra.mxu0 0
        %2736 = vmatprep.subr.bf16.mxu0 0
        %2737 = vmatpush1.bf16.msra.mxu0 0
        %2738 = vmatprep.subr.bf16.mxu0 0
        %2739 = vmatpush1.bf16.msra.mxu0 0
        %2740 = vmatprep.subr.bf16.mxu0 0
        %2741 = vmatpush1.bf16.msra.mxu0 0
        %2742 = vmatprep.subr.bf16.mxu0 0
        %2743 = vmatpush1.bf16.msra.mxu0 0
        %2744 = vmatprep.subr.bf16.mxu0 0
        %2745 = vmatpush1.bf16.msra.mxu0 0
        %2746 = vmatprep.mubr.bf16.mxu0 0
        %2747 = vmatmul.mubr.bf16.gmra.mrb[0].mxu0 %v2709
        %v2748 = vpop.f32.mrb[0].mxu0
        %v2749 = vadd.f32 0.0, %v2748
        %v2750 = vpop.f32.mrb[0].mxu0
        %v2751 = vpop.f32.mrb[0].mxu0
        %v2752 = vadd.f32 0.0, %v2751
        %v2753 = vpop.f32.mrb[0].mxu0
        %2754 = vmatprep.mubr.bf16.mxu0 0
        %2755 = vmatmul.mubr.bf16.gmra.mrb[0].mxu0 %v2712
        %v2756 = vpop.f32.mrb[0].mxu0
        %v2757 = vadd.f32 0.0, %v2756
        %v2758 = vpop.f32.mrb[0].mxu0
        %v2759 = vpop.f32.mrb[0].mxu0
        %v2760 = vadd.f32 0.0, %v2759
        %v2761 = vpop.f32.mrb[0].mxu0
        %2762 = vdwg.mxu0
        %2763 = vrot.lane.b32.xlu0 %v1216, 32
        %v2764 = vpop.permute.xlu0 %2763
        %2765 = vrot.lane.b32.xlu0 %v1217, 32
        %v2766 = vpop.permute.xlu0 %2765
        %2767 = vrot.lane.b32.xlu0 %v1349, 32
        %v2768 = vpop.permute.xlu0 %2767
        %2769 = vrot.lane.b32.xlu0 %v1350, 32
        %v2770 = vpop.permute.xlu0 %2769
        %v2772 = vsel %vm1484, %v2764, 0
        %v2775 = vsel %vm1484, %v2766, 0
        %v2778 = vsel %vm1484, %v2768, 0
        %v2781 = vsel %vm1484, %v2770, 0
        %2783 = vmatprep.subr.bf16.mxu0 0
        %2784 = vmatpush1.bf16.xpose.msra.mxu0 %v2778
        %2785 = vmatprep.subr.bf16.mxu0 0
        %2786 = vmatpush1.bf16.xpose.msra.mxu0 %v2781
        %2787 = vmatprep.subr.bf16.mxu0 0
        %2788 = vmatpush1.bf16.xpose.msra.mxu0 0
        %2789 = vmatprep.subr.bf16.mxu0 0
        %2790 = vmatpush1.bf16.xpose.msra.mxu0 0
        %2791 = vmatprep.subr.bf16.mxu0 0
        %2792 = vmatpush1.bf16.xpose.msra.mxu0 0
        %2793 = vmatprep.subr.bf16.mxu0 0
        %2794 = vmatpush1.bf16.xpose.msra.mxu0 0
        %2795 = vmatprep.subr.bf16.mxu0 0
        %2796 = vmatpush1.bf16.xpose.msra.mxu0 0
        %2797 = vmatprep.subr.bf16.mxu0 0
        %2798 = vmatpush1.bf16.xpose.msra.mxu0 0
        %2799 = vmatprep.subr.bf16.mxu0 0
        %2800 = vmatpush1.bf16.xpose.msra.mxu0 0
        %2801 = vmatprep.subr.bf16.mxu0 0
        %2802 = vmatpush1.bf16.xpose.msra.mxu0 0
        %2803 = vmatprep.subr.bf16.mxu0 0
        %2804 = vmatpush1.bf16.xpose.msra.mxu0 0
        %2805 = vmatprep.subr.bf16.mxu0 0
        %2806 = vmatpush1.bf16.xpose.msra.mxu0 0
        %2807 = vmatprep.subr.bf16.mxu0 0
        %2808 = vmatpush1.bf16.xpose.msra.mxu0 0
        %2809 = vmatprep.subr.bf16.mxu0 0
        %2810 = vmatpush1.bf16.xpose.msra.mxu0 0
        %2811 = vmatprep.subr.bf16.mxu0 0
        %2812 = vmatpush1.bf16.xpose.msra.mxu0 0
        %2813 = vmatprep.subr.bf16.mxu0 0
        %2814 = vmatpush1.bf16.xpose.msra.mxu0 0
        %2815 = vmatprep.mubr.bf16.mxu0 0
        %2816 = vmatmul.mubr.bf16.gmra.mrb[0].mxu0 %v2772
        %v2817 = vpop.f32.mrb[0].mxu0
        %v2818 = vadd.f32 0.0, %v2817
        %v2819 = vpop.f32.mrb[0].mxu0
        %v2820 = vpop.f32.mrb[0].mxu0
        %v2821 = vadd.f32 0.0, %v2820
        %v2822 = vpop.f32.mrb[0].mxu0
        %2823 = vmatprep.mubr.bf16.mxu0 0
        %2824 = vmatmul.mubr.bf16.gmra.mrb[0].mxu0 %v2775
        %v2825 = vpop.f32.mrb[0].mxu0
        %v2826 = vadd.f32 0.0, %v2825
        %v2827 = vpop.f32.mrb[0].mxu0
        %v2828 = vpop.f32.mrb[0].mxu0
        %v2829 = vadd.f32 0.0, %v2828
        %v2830 = vpop.f32.mrb[0].mxu0
        %2831 = vdwg.mxu0
        %v2832 = vsel %vm1484, %v2818, -inf
        %2833 = vmax.xlane.f32.xlu0 %v2832
        %v2834 = vpop.xlane.xlu0 %2833
        %v2835 = vsel %vm1484, %v2821, -inf
        %2836 = vmax.xlane.f32.xlu0 %v2835
        %v2837 = vpop.xlane.xlu0 %2836
        %v2838 = vsel %vm1484, %v2826, -inf
        %2839 = vmax.xlane.f32.xlu0 %v2838
        %v2840 = vpop.xlane.xlu0 %2839
        %v2841 = vsel %vm1484, %v2829, -inf
        %2842 = vmax.xlane.f32.xlu0 %v2841
        %v2843 = vpop.xlane.xlu0 %2842
        %v2844 = vsub.f32 %v2818, %v2834
        %v2845 = vsub.f32 %v2821, %v2837
        %v2846 = vsub.f32 %v2826, %v2840
        %v2847 = vsub.f32 %v2829, %v2843
        %v2848 = vmul.f32 %v2844, 1.442695
        %v2849 = vpow.pop %v2848
        %v2850 = vmul.f32 %v2845, 1.442695
        %v2851 = vpow.pop %v2850
        %v2852 = vmul.f32 %v2846, 1.442695
        %v2853 = vpow.pop %v2852
        %v2854 = vmul.f32 %v2847, 1.442695
        %v2855 = vpow.pop %v2854
        %v2856 = vsel %vm1484, %v2849, 0.0
        %2857 = vadd.xlane.f32.xlu0 %v2856
        %v2858 = vpop.xlane.xlu0 %2857
        %v2859 = vsel %vm1484, %v2851, 0.0
        %2860 = vadd.xlane.f32.xlu0 %v2859
        %v2861 = vpop.xlane.xlu0 %2860
        %v2862 = vsel %vm1484, %v2853, 0.0
        %2863 = vadd.xlane.f32.xlu0 %v2862
        %v2864 = vpop.xlane.xlu0 %2863
        %v2865 = vsel %vm1484, %v2855, 0.0
        %2866 = vadd.xlane.f32.xlu0 %v2865
        %v2867 = vpop.xlane.xlu0 %2866
        %v2868 = vrcp.pop %v2858
        %v2869 = vrcp.pop %v2861
        %v2870 = vrcp.pop %v2864
        %v2871 = vrcp.pop %v2867
        %v2872 = vmul.f32 %v2849, %v2868
        %v2873 = vmul.f32 %v2851, %v2869
        %v2874 = vmul.f32 %v2853, %v2870
        %v2875 = vmul.f32 %v2855, %v2871
        %v2876 = vpack.c.bf16 %v2873, %v2872
        %v2877 = vpack.c.bf16 %v2875, %v2874
        %2878 = vrot.lane.b32.xlu0 %v1482, 32
        %v2879 = vpop.permute.xlu0 %2878
        %2880 = vrot.lane.b32.xlu0 %v1483, 32
        %v2881 = vpop.permute.xlu0 %2880
        %v2885 = vsel %vm1484, %v2876, 0
        %v2888 = vsel %vm1484, %v2877, 0
        %2890 = vmatprep.subr.bf16.mxu0 0
        %2891 = vmatpush1.bf16.msra.mxu0 %v2879
        %2892 = vmatprep.subr.bf16.mxu0 0
        %2893 = vmatpush1.bf16.msra.mxu0 %v2881
        %2894 = vmatprep.subr.bf16.mxu0 0
        %2895 = vmatpush1.bf16.msra.mxu0 0
        %2896 = vmatprep.subr.bf16.mxu0 0
        %2897 = vmatpush1.bf16.msra.mxu0 0
        %2898 = vmatprep.subr.bf16.mxu0 0
        %2899 = vmatpush1.bf16.msra.mxu0 0
        %2900 = vmatprep.subr.bf16.mxu0 0
        %2901 = vmatpush1.bf16.msra.mxu0 0
        %2902 = vmatprep.subr.bf16.mxu0 0
        %2903 = vmatpush1.bf16.msra.mxu0 0
        %2904 = vmatprep.subr.bf16.mxu0 0
        %2905 = vmatpush1.bf16.msra.mxu0 0
        %2906 = vmatprep.subr.bf16.mxu0 0
        %2907 = vmatpush1.bf16.msra.mxu0 0
        %2908 = vmatprep.subr.bf16.mxu0 0
        %2909 = vmatpush1.bf16.msra.mxu0 0
        %2910 = vmatprep.subr.bf16.mxu0 0
        %2911 = vmatpush1.bf16.msra.mxu0 0
        %2912 = vmatprep.subr.bf16.mxu0 0
        %2913 = vmatpush1.bf16.msra.mxu0 0
        %2914 = vmatprep.subr.bf16.mxu0 0
        %2915 = vmatpush1.bf16.msra.mxu0 0
        %2916 = vmatprep.subr.bf16.mxu0 0
        %2917 = vmatpush1.bf16.msra.mxu0 0
        %2918 = vmatprep.subr.bf16.mxu0 0
        %2919 = vmatpush1.bf16.msra.mxu0 0
        %2920 = vmatprep.subr.bf16.mxu0 0
        %2921 = vmatpush1.bf16.msra.mxu0 0
        %2922 = vmatprep.mubr.bf16.mxu0 0
        %2923 = vmatmul.mubr.bf16.gmra.mrb[0].mxu0 %v2885
        %v2924 = vpop.f32.mrb[0].mxu0
        %v2925 = vadd.f32 0.0, %v2924
        %v2926 = vpop.f32.mrb[0].mxu0
        %v2927 = vpop.f32.mrb[0].mxu0
        %v2928 = vadd.f32 0.0, %v2927
        %v2929 = vpop.f32.mrb[0].mxu0
        %2930 = vmatprep.mubr.bf16.mxu0 0
        %2931 = vmatmul.mubr.bf16.gmra.mrb[0].mxu0 %v2888
        %v2932 = vpop.f32.mrb[0].mxu0
        %v2933 = vadd.f32 0.0, %v2932
        %v2934 = vpop.f32.mrb[0].mxu0
        %v2935 = vpop.f32.mrb[0].mxu0
        %v2936 = vadd.f32 0.0, %v2935
        %v2937 = vpop.f32.mrb[0].mxu0
        %2938 = vdwg.mxu0
        %2943 = vrot.lane.b32.xlu0 %v2573, 32
        %v2944 = vpop.permute.xlu0 %2943
        %2945 = vrot.lane.b32.xlu0 %v2576, 32
        %v2946 = vpop.permute.xlu0 %2945
        %2947 = vrot.lane.b32.xlu0 %v2581, 32
        %v2948 = vpop.permute.xlu0 %2947
        %2949 = vrot.lane.b32.xlu0 %v2584, 32
        %v2950 = vpop.permute.xlu0 %2949
        %2959 = vrot.lane.b32.xlu0 %v2749, 64
        %v2960 = vpop.permute.xlu0 %2959
        %2961 = vrot.lane.b32.xlu0 %v2752, 64
        %v2962 = vpop.permute.xlu0 %2961
        %2963 = vrot.lane.b32.xlu0 %v2757, 64
        %v2964 = vpop.permute.xlu0 %2963
        %2965 = vrot.lane.b32.xlu0 %v2760, 64
        %v2966 = vpop.permute.xlu0 %2965
        %2975 = vrot.lane.b32.xlu0 %v2925, 96
        %v2976 = vpop.permute.xlu0 %2975
        %2977 = vrot.lane.b32.xlu0 %v2928, 96
        %v2978 = vpop.permute.xlu0 %2977
        %2979 = vrot.lane.b32.xlu0 %v2933, 96
        %v2980 = vpop.permute.xlu0 %2979
        %2981 = vrot.lane.b32.xlu0 %v2936, 96
        %v2982 = vpop.permute.xlu0 %2981
        %v2987 = vsel %vm1484, %v2391, %v2944
        %v2988 = vsel %vm1484, %v2394, %v2946
        %v2989 = vsel %vm1484, %v2399, %v2948
        %v2990 = vsel %vm1484, %v2402, %v2950
        %v2991 = vsel %vm2233, %v2987, %v2960
        %v2992 = vsel %vm2233, %v2988, %v2962
        %v2993 = vsel %vm2233, %v2989, %v2964
        %v2994 = vsel %vm2233, %v2990, %v2966
        %v2995 = vsel %vm2238, %v2991, %v2976
        %v2996 = vsel %vm2238, %v2992, %v2978
        %v2997 = vsel %vm2238, %v2993, %v2980
        %v2998 = vsel %vm2238, %v2994, %v2982
        %v2999 = vpack.c.bf16 %v2240, %v2239
        %v3000 = vpack.c.bf16 %v2242, %v2241
        %v3001 = vpack.c.bf16 %v2996, %v2995
        %v3002 = vpack.c.bf16 %v2998, %v2997
        %v3003 = vld [vmem:[%s983] sm:$0xf]
        %v3004 = vld [vmem:[%s983 + $0x4] sm:$0xf]
        %v3005 = vld [vmem:[%s983 + $0x8] sm:$0xf]
        %v3006 = vld [vmem:[%s983 + $0xc] sm:$0xf]
        %v3007 = vld [vmem:[%s983 + $0x10] sm:$0xf]
        %v3008 = vld [vmem:[%s983 + $0x14] sm:$0xf]
        %v3009 = vld [vmem:[%s983 + $0x18] sm:$0xf]
        %v3010 = vld [vmem:[%s983 + $0x1c] sm:$0xf]
        %v3011 = vld [vmem:[%s983 + $0x20] sm:$0xf]
        %v3012 = vld [vmem:[%s983 + $0x24] sm:$0xf]
        %v3013 = vld [vmem:[%s983 + $0x28] sm:$0xf]
        %v3014 = vld [vmem:[%s983 + $0x2c] sm:$0xf]
        %v3015 = vld [vmem:[%s983 + $0x30] sm:$0xf]
        %v3016 = vld [vmem:[%s983 + $0x34] sm:$0xf]
        %v3017 = vld [vmem:[%s983 + $0x38] sm:$0xf]
        %v3018 = vld [vmem:[%s983 + $0x3c] sm:$0xf]
        %v3019 = vld [vmem:[%s986] sm:$0x1]
        %v3021 = vlaneseq
        %v3022 = vshrl.u32 %v3021, 7
        %v3023 = vsub.s32 0, %v3022
        %v3024 = vrot.slane %v3019, %v3023
        %v3042 = vunpack.c.l.b16 %v3003
        %v3043 = vunpack.c.l.b16 %v3004
        %v3044 = vunpack.c.l.b16 %v3005
        %v3045 = vunpack.c.l.b16 %v3006
        %v3046 = vunpack.c.l.b16 %v3007
        %v3047 = vunpack.c.l.b16 %v3008
        %v3048 = vunpack.c.l.b16 %v3009
        %v3049 = vunpack.c.l.b16 %v3010
        %v3050 = vunpack.c.l.b16 %v3011
        %v3051 = vunpack.c.l.b16 %v3012
        %v3052 = vunpack.c.l.b16 %v3013
        %v3053 = vunpack.c.l.b16 %v3014
        %v3054 = vunpack.c.l.b16 %v3015
        %v3055 = vunpack.c.l.b16 %v3016
        %v3056 = vunpack.c.l.b16 %v3017
        %v3057 = vunpack.c.l.b16 %v3018
        %v3058 = vpack.c.b16 %v3043, %v3042
        %v3059 = vpack.c.b16 %v3045, %v3044
        %v3060 = vpack.c.b16 %v3047, %v3046
        %v3061 = vpack.c.b16 %v3049, %v3048
        %v3062 = vpack.c.b16 %v3051, %v3050
        %v3063 = vpack.c.b16 %v3053, %v3052
        %v3064 = vpack.c.b16 %v3055, %v3054
        %v3065 = vpack.c.b16 %v3057, %v3056
        %3074 = vmatprep.subr.bf16.mxu0 0
        %3075 = vmatpush1.bf16.msra.mxu0 %v3058
        %3076 = vmatprep.subr.bf16.mxu0 0
        %3077 = vmatpush1.bf16.msra.mxu0 %v3059
        %3078 = vmatprep.subr.bf16.mxu0 0
        %3079 = vmatpush1.bf16.msra.mxu0 %v3060
        %3080 = vmatprep.subr.bf16.mxu0 0
        %3081 = vmatpush1.bf16.msra.mxu0 %v3061
        %3082 = vmatprep.subr.bf16.mxu0 0
        %3083 = vmatpush1.bf16.msra.mxu0 %v3062
        %3084 = vmatprep.subr.bf16.mxu0 0
        %3085 = vmatpush1.bf16.msra.mxu0 %v3063
        %3086 = vmatprep.subr.bf16.mxu0 0
        %3087 = vmatpush1.bf16.msra.mxu0 %v3064
        %3088 = vmatprep.subr.bf16.mxu0 0
        %3089 = vmatpush1.bf16.msra.mxu0 %v3065
        %3090 = vmatprep.subr.bf16.mxu0 0
        %3091 = vmatpush1.bf16.msra.mxu0 0
        %3092 = vmatprep.subr.bf16.mxu0 0
        %3093 = vmatpush1.bf16.msra.mxu0 0
        %3094 = vmatprep.subr.bf16.mxu0 0
        %3095 = vmatpush1.bf16.msra.mxu0 0
        %3096 = vmatprep.subr.bf16.mxu0 0
        %3097 = vmatpush1.bf16.msra.mxu0 0
        %3098 = vmatprep.subr.bf16.mxu0 0
        %3099 = vmatpush1.bf16.msra.mxu0 0
        %3100 = vmatprep.subr.bf16.mxu0 0
        %3101 = vmatpush1.bf16.msra.mxu0 0
        %3102 = vmatprep.subr.bf16.mxu0 0
        %3103 = vmatpush1.bf16.msra.mxu0 0
        %3104 = vmatprep.subr.bf16.mxu0 0
        %3105 = vmatpush1.bf16.msra.mxu0 0
        %3106 = vmatprep.mubr.bf16.mxu0 0
        %3107 = vmatmul.mubr.bf16.gmra.mrb[0].mxu0 %v2999
        %v3108 = vpop.f32.mrb[0].mxu0
        %v3109 = vadd.f32 %v3024, %v3108
        %v3110 = vpop.f32.mrb[0].mxu0
        %v3111 = vpop.f32.mrb[0].mxu0
        %v3112 = vadd.f32 %v3024, %v3111
        %v3113 = vpop.f32.mrb[0].mxu0
        %3114 = vmatprep.mubr.bf16.mxu0 0
        %3115 = vmatmul.mubr.bf16.gmra.mrb[0].mxu0 %v3000
        %v3116 = vpop.f32.mrb[0].mxu0
        %v3117 = vadd.f32 %v3024, %v3116
        %v3118 = vpop.f32.mrb[0].mxu0
        %v3119 = vpop.f32.mrb[0].mxu0
        %v3120 = vadd.f32 %v3024, %v3119
        %v3121 = vpop.f32.mrb[0].mxu0
        %3122 = vmatprep.mubr.bf16.mxu0 0
        %3123 = vmatmul.mubr.bf16.gmra.mrb[0].mxu0 %v3001
        %v3124 = vpop.f32.mrb[0].mxu0
        %v3125 = vadd.f32 %v3024, %v3124
        %v3126 = vpop.f32.mrb[0].mxu0
        %v3127 = vpop.f32.mrb[0].mxu0
        %v3128 = vadd.f32 %v3024, %v3127
        %v3129 = vpop.f32.mrb[0].mxu0
        %3130 = vmatprep.mubr.bf16.mxu0 0
        %3131 = vmatmul.mubr.bf16.gmra.mrb[0].mxu0 %v3002
        %v3132 = vpop.f32.mrb[0].mxu0
        %v3133 = vadd.f32 %v3024, %v3132
        %v3134 = vpop.f32.mrb[0].mxu0
        %v3135 = vpop.f32.mrb[0].mxu0
        %v3136 = vadd.f32 %v3024, %v3135
        %v3137 = vpop.f32.mrb[0].mxu0
        %3138 = vdwg.mxu0
        %v3139 = vadd.f32 %v3109, %v1061
        %v3140 = vadd.f32 %v3112, %v1062
        %v3141 = vadd.f32 %v3117, %v1063
        %v3142 = vadd.f32 %v3120, %v1064
        %v3143 = vadd.f32 %v3125, %v1065
        %v3144 = vadd.f32 %v3128, %v1066
        %v3145 = vadd.f32 %v3133, %v1067
        %v3146 = vadd.f32 %v3136, %v1068
        %v3147 = vld [vmem:[%s989] sm:$0x1]
        %v3148 = vld [vmem:[%s992] sm:$0x1]
        %3149 = vadd.xlane.f32.xlu0 %v3139
        %v3150 = vpop.xlane.xlu0 %3149
        %3151 = vadd.xlane.f32.xlu0 %v3140
        %v3152 = vpop.xlane.xlu0 %3151
        %3153 = vadd.xlane.f32.xlu0 %v3141
        %v3154 = vpop.xlane.xlu0 %3153
        %3155 = vadd.xlane.f32.xlu0 %v3142
        %v3156 = vpop.xlane.xlu0 %3155
        %3157 = vadd.xlane.f32.xlu0 %v3143
        %v3158 = vpop.xlane.xlu0 %3157
        %3159 = vadd.xlane.f32.xlu0 %v3144
        %v3160 = vpop.xlane.xlu0 %3159
        %3161 = vadd.xlane.f32.xlu0 %v3145
        %v3162 = vpop.xlane.xlu0 %3161
        %3163 = vadd.xlane.f32.xlu0 %v3146
        %v3164 = vpop.xlane.xlu0 %3163
        %v3165 = vrcp.pop 128.0
        %v3166 = vmul.f32 %v3150, %v3165
        %v3167 = vmul.f32 %v3152, %v3165
        %v3168 = vmul.f32 %v3154, %v3165
        %v3169 = vmul.f32 %v3156, %v3165
        %v3170 = vmul.f32 %v3158, %v3165
        %v3171 = vmul.f32 %v3160, %v3165
        %v3172 = vmul.f32 %v3162, %v3165
        %v3173 = vmul.f32 %v3164, %v3165
        %v3174 = vsub.f32 %v3139, %v3166
        %v3175 = vsub.f32 %v3140, %v3167
        %v3176 = vsub.f32 %v3141, %v3168
        %v3177 = vsub.f32 %v3142, %v3169
        %v3178 = vsub.f32 %v3143, %v3170
        %v3179 = vsub.f32 %v3144, %v3171
        %v3180 = vsub.f32 %v3145, %v3172
        %v3181 = vsub.f32 %v3146, %v3173
        %v3182 = vmul.f32 %v3174, %v3174
        %v3183 = vmul.f32 %v3175, %v3175
        %v3184 = vmul.f32 %v3176, %v3176
        %v3185 = vmul.f32 %v3177, %v3177
        %v3186 = vmul.f32 %v3178, %v3178
        %v3187 = vmul.f32 %v3179, %v3179
        %v3188 = vmul.f32 %v3180, %v3180
        %v3189 = vmul.f32 %v3181, %v3181
        %3190 = vadd.xlane.f32.xlu0 %v3182
        %v3191 = vpop.xlane.xlu0 %3190
        %3192 = vadd.xlane.f32.xlu0 %v3183
        %v3193 = vpop.xlane.xlu0 %3192
        %3194 = vadd.xlane.f32.xlu0 %v3184
        %v3195 = vpop.xlane.xlu0 %3194
        %3196 = vadd.xlane.f32.xlu0 %v3185
        %v3197 = vpop.xlane.xlu0 %3196
        %3198 = vadd.xlane.f32.xlu0 %v3186
        %v3199 = vpop.xlane.xlu0 %3198
        %3200 = vadd.xlane.f32.xlu0 %v3187
        %v3201 = vpop.xlane.xlu0 %3200
        %3202 = vadd.xlane.f32.xlu0 %v3188
        %v3203 = vpop.xlane.xlu0 %3202
        %3204 = vadd.xlane.f32.xlu0 %v3189
        %v3205 = vpop.xlane.xlu0 %3204
        %v3206 = vmul.f32 %v3191, %v3165
        %v3207 = vmul.f32 %v3193, %v3165
        %v3208 = vmul.f32 %v3195, %v3165
        %v3209 = vmul.f32 %v3197, %v3165
        %v3210 = vmul.f32 %v3199, %v3165
        %v3211 = vmul.f32 %v3201, %v3165
        %v3212 = vmul.f32 %v3203, %v3165
        %v3213 = vmul.f32 %v3205, %v3165
        %v3214 = vadd.f32 %v3206, 1e-05
        %v3215 = vadd.f32 %v3207, 1e-05
        %v3216 = vadd.f32 %v3208, 1e-05
        %v3217 = vadd.f32 %v3209, 1e-05
        %v3218 = vadd.f32 %v3210, 1e-05
        %v3219 = vadd.f32 %v3211, 1e-05
        %v3220 = vadd.f32 %v3212, 1e-05
        %v3221 = vadd.f32 %v3213, 1e-05
        %v3222 = vrsqrt.pop %v3214
        %v3223 = vrsqrt.pop %v3215
        %v3224 = vrsqrt.pop %v3216
        %v3225 = vrsqrt.pop %v3217
        %v3226 = vrsqrt.pop %v3218
        %v3227 = vrsqrt.pop %v3219
        %v3228 = vrsqrt.pop %v3220
        %v3229 = vrsqrt.pop %v3221
        %v3230 = vmul.f32 %v3174, %v3222
        %v3231 = vmul.f32 %v3175, %v3223
        %v3232 = vmul.f32 %v3176, %v3224
        %v3233 = vmul.f32 %v3177, %v3225
        %v3234 = vmul.f32 %v3178, %v3226
        %v3235 = vmul.f32 %v3179, %v3227
        %v3236 = vmul.f32 %v3180, %v3228
        %v3237 = vmul.f32 %v3181, %v3229
        %v3239 = vlaneseq
        %v3240 = vshrl.u32 %v3239, 7
        %v3241 = vsub.s32 0, %v3240
        %v3242 = vrot.slane %v3147, %v3241
        %v3244 = vmul.f32 %v3230, %v3242
        %v3245 = vmul.f32 %v3231, %v3242
        %v3246 = vmul.f32 %v3232, %v3242
        %v3247 = vmul.f32 %v3233, %v3242
        %v3248 = vmul.f32 %v3234, %v3242
        %v3249 = vmul.f32 %v3235, %v3242
        %v3250 = vmul.f32 %v3236, %v3242
        %v3251 = vmul.f32 %v3237, %v3242
        %v3253 = vlaneseq
        %v3254 = vshrl.u32 %v3253, 7
        %v3255 = vsub.s32 0, %v3254
        %v3256 = vrot.slane %v3148, %v3255
        %v3258 = vadd.f32 %v3244, %v3256
        %v3259 = vadd.f32 %v3245, %v3256
        %v3260 = vadd.f32 %v3246, %v3256
        %v3261 = vadd.f32 %v3247, %v3256
        %v3262 = vadd.f32 %v3248, %v3256
        %v3263 = vadd.f32 %v3249, %v3256
        %v3264 = vadd.f32 %v3250, %v3256
        %v3265 = vadd.f32 %v3251, %v3256
        %v3266 = vpack.c.bf16 %v3259, %v3258
        %v3267 = vpack.c.bf16 %v3261, %v3260
        %v3268 = vpack.c.bf16 %v3263, %v3262
        %v3269 = vpack.c.bf16 %v3265, %v3264
        %v3270 = vld [vmem:[%s997] sm:$0xf]
        %v3271 = vld [vmem:[%s997 + $0x4] sm:$0xf]
        %v3272 = vld [vmem:[%s997 + $0x8] sm:$0xf]
        %v3273 = vld [vmem:[%s997 + $0xc] sm:$0xf]
        %v3274 = vld [vmem:[%s997 + $0x10] sm:$0xf]
        %v3275 = vld [vmem:[%s997 + $0x14] sm:$0xf]
        %v3276 = vld [vmem:[%s997 + $0x18] sm:$0xf]
        %v3277 = vld [vmem:[%s997 + $0x1c] sm:$0xf]
        %v3278 = vld [vmem:[%s997 + $0x20] sm:$0xf]
        %v3279 = vld [vmem:[%s997 + $0x24] sm:$0xf]
        %v3280 = vld [vmem:[%s997 + $0x28] sm:$0xf]
        %v3281 = vld [vmem:[%s997 + $0x2c] sm:$0xf]
        %v3282 = vld [vmem:[%s997 + $0x30] sm:$0xf]
        %v3283 = vld [vmem:[%s997 + $0x34] sm:$0xf]
        %v3284 = vld [vmem:[%s997 + $0x38] sm:$0xf]
        %v3285 = vld [vmem:[%s997 + $0x3c] sm:$0xf]
        %v3302 = vunpack.c.l.b16 %v3270
        %v3303 = vunpack.c.l.b16 %v3271
        %v3304 = vunpack.c.l.b16 %v3272
        %v3305 = vunpack.c.l.b16 %v3273
        %v3306 = vunpack.c.l.b16 %v3274
        %v3307 = vunpack.c.l.b16 %v3275
        %v3308 = vunpack.c.l.b16 %v3276
        %v3309 = vunpack.c.l.b16 %v3277
        %v3310 = vunpack.c.l.b16 %v3278
        %v3311 = vunpack.c.l.b16 %v3279
        %v3312 = vunpack.c.l.b16 %v3280
        %v3313 = vunpack.c.l.b16 %v3281
        %v3314 = vunpack.c.l.b16 %v3282
        %v3315 = vunpack.c.l.b16 %v3283
        %v3316 = vunpack.c.l.b16 %v3284
        %v3317 = vunpack.c.l.b16 %v3285
        %v3318 = vpack.c.b16 %v3303, %v3302
        %v3319 = vpack.c.b16 %v3305, %v3304
        %v3320 = vpack.c.b16 %v3307, %v3306
        %v3321 = vpack.c.b16 %v3309, %v3308
        %v3322 = vpack.c.b16 %v3311, %v3310
        %v3323 = vpack.c.b16 %v3313, %v3312
        %v3324 = vpack.c.b16 %v3315, %v3314
        %v3325 = vpack.c.b16 %v3317, %v3316
        %3334 = vmatprep.subr.bf16.mxu0 0
        %3335 = vmatpush1.bf16.msra.mxu0 %v3318
        %3336 = vmatprep.subr.bf16.mxu0 0
        %3337 = vmatpush1.bf16.msra.mxu0 %v3319
        %3338 = vmatprep.subr.bf16.mxu0 0
        %3339 = vmatpush1.bf16.msra.mxu0 %v3320
        %3340 = vmatprep.subr.bf16.mxu0 0
        %3341 = vmatpush1.bf16.msra.mxu0 %v3321
        %3342 = vmatprep.subr.bf16.mxu0 0
        %3343 = vmatpush1.bf16.msra.mxu0 %v3322
        %3344 = vmatprep.subr.bf16.mxu0 0
        %3345 = vmatpush1.bf16.msra.mxu0 %v3323
        %3346 = vmatprep.subr.bf16.mxu0 0
        %3347 = vmatpush1.bf16.msra.mxu0 %v3324
        %3348 = vmatprep.subr.bf16.mxu0 0
        %3349 = vmatpush1.bf16.msra.mxu0 %v3325
        %3350 = vmatprep.subr.bf16.mxu0 0
        %3351 = vmatpush1.bf16.msra.mxu0 0
        %3352 = vmatprep.subr.bf16.mxu0 0
        %3353 = vmatpush1.bf16.msra.mxu0 0
        %3354 = vmatprep.subr.bf16.mxu0 0
        %3355 = vmatpush1.bf16.msra.mxu0 0
        %3356 = vmatprep.subr.bf16.mxu0 0
        %3357 = vmatpush1.bf16.msra.mxu0 0
        %3358 = vmatprep.subr.bf16.mxu0 0
        %3359 = vmatpush1.bf16.msra.mxu0 0
        %3360 = vmatprep.subr.bf16.mxu0 0
        %3361 = vmatpush1.bf16.msra.mxu0 0
        %3362 = vmatprep.subr.bf16.mxu0 0
        %3363 = vmatpush1.bf16.msra.mxu0 0
        %3364 = vmatprep.subr.bf16.mxu0 0
        %3365 = vmatpush1.bf16.msra.mxu0 0
        %3366 = vmatprep.mubr.bf16.mxu0 0
        %3367 = vmatmul.mubr.bf16.gmra.mrb[0].mxu0 %v3266
        %v3368 = vpop.f32.mrb[0].mxu0
        %v3369 = vadd.f32 0.0, %v3368
        %v3370 = vpop.f32.mrb[0].mxu0
        %v3371 = vpop.f32.mrb[0].mxu0
        %v3372 = vadd.f32 0.0, %v3371
        %v3373 = vpop.f32.mrb[0].mxu0
        %3374 = vmatprep.mubr.bf16.mxu0 0
        %3375 = vmatmul.mubr.bf16.gmra.mrb[0].mxu0 %v3267
        %v3376 = vpop.f32.mrb[0].mxu0
        %v3377 = vadd.f32 0.0, %v3376
        %v3378 = vpop.f32.mrb[0].mxu0
        %v3379 = vpop.f32.mrb[0].mxu0
        %v3380 = vadd.f32 0.0, %v3379
        %v3381 = vpop.f32.mrb[0].mxu0
        %3382 = vmatprep.mubr.bf16.mxu0 0
        %3383 = vmatmul.mubr.bf16.gmra.mrb[0].mxu0 %v3268
        %v3384 = vpop.f32.mrb[0].mxu0
        %v3385 = vadd.f32 0.0, %v3384
        %v3386 = vpop.f32.mrb[0].mxu0
        %v3387 = vpop.f32.mrb[0].mxu0
        %v3388 = vadd.f32 0.0, %v3387
        %v3389 = vpop.f32.mrb[0].mxu0
        %3390 = vmatprep.mubr.bf16.mxu0 0
        %3391 = vmatmul.mubr.bf16.gmra.mrb[0].mxu0 %v3269
        %v3392 = vpop.f32.mrb[0].mxu0
        %v3393 = vadd.f32 0.0, %v3392
        %v3394 = vpop.f32.mrb[0].mxu0
        %v3395 = vpop.f32.mrb[0].mxu0
        %v3396 = vadd.f32 0.0, %v3395
        %v3397 = vpop.f32.mrb[0].mxu0
        %3398 = vdwg.mxu0
        %v3399 = vpack.c.bf16 %v3372, %v3369
        %v3400 = vpack.c.bf16 %v3380, %v3377
        %v3401 = vpack.c.bf16 %v3388, %v3385
        %v3402 = vpack.c.bf16 %v3396, %v3393
        %v3403 = vld [vmem:[%s1002] sm:$0xf]
        %v3404 = vld [vmem:[%s1002 + $0x4] sm:$0xf]
        %v3405 = vld [vmem:[%s1002 + $0x8] sm:$0xf]
        %v3406 = vld [vmem:[%s1002 + $0xc] sm:$0xf]
        %v3407 = vld [vmem:[%s1002 + $0x10] sm:$0xf]
        %v3408 = vld [vmem:[%s1002 + $0x14] sm:$0xf]
        %v3409 = vld [vmem:[%s1002 + $0x18] sm:$0xf]
        %v3410 = vld [vmem:[%s1002 + $0x1c] sm:$0xf]
        %v3411 = vld [vmem:[%s1002 + $0x20] sm:$0xf]
        %v3412 = vld [vmem:[%s1002 + $0x24] sm:$0xf]
        %v3413 = vld [vmem:[%s1002 + $0x28] sm:$0xf]
        %v3414 = vld [vmem:[%s1002 + $0x2c] sm:$0xf]
        %v3415 = vld [vmem:[%s1002 + $0x30] sm:$0xf]
        %v3416 = vld [vmem:[%s1002 + $0x34] sm:$0xf]
        %v3417 = vld [vmem:[%s1002 + $0x38] sm:$0xf]
        %v3418 = vld [vmem:[%s1002 + $0x3c] sm:$0xf]
        %v3435 = vunpack.c.l.b16 %v3403
        %v3436 = vunpack.c.l.b16 %v3404
        %v3437 = vunpack.c.l.b16 %v3405
        %v3438 = vunpack.c.l.b16 %v3406
        %v3439 = vunpack.c.l.b16 %v3407
        %v3440 = vunpack.c.l.b16 %v3408
        %v3441 = vunpack.c.l.b16 %v3409
        %v3442 = vunpack.c.l.b16 %v3410
        %v3443 = vunpack.c.l.b16 %v3411
        %v3444 = vunpack.c.l.b16 %v3412
        %v3445 = vunpack.c.l.b16 %v3413
        %v3446 = vunpack.c.l.b16 %v3414
        %v3447 = vunpack.c.l.b16 %v3415
        %v3448 = vunpack.c.l.b16 %v3416
        %v3449 = vunpack.c.l.b16 %v3417
        %v3450 = vunpack.c.l.b16 %v3418
        %v3451 = vpack.c.b16 %v3436, %v3435
        %v3452 = vpack.c.b16 %v3438, %v3437
        %v3453 = vpack.c.b16 %v3440, %v3439
        %v3454 = vpack.c.b16 %v3442, %v3441
        %v3455 = vpack.c.b16 %v3444, %v3443
        %v3456 = vpack.c.b16 %v3446, %v3445
        %v3457 = vpack.c.b16 %v3448, %v3447
        %v3458 = vpack.c.b16 %v3450, %v3449
        %3467 = vmatprep.subr.bf16.mxu0 0
        %3468 = vmatpush1.bf16.msra.mxu0 %v3451
        %3469 = vmatprep.subr.bf16.mxu0 0
        %3470 = vmatpush1.bf16.msra.mxu0 %v3452
        %3471 = vmatprep.subr.bf16.mxu0 0
        %3472 = vmatpush1.bf16.msra.mxu0 %v3453
        %3473 = vmatprep.subr.bf16.mxu0 0
        %3474 = vmatpush1.bf16.msra.mxu0 %v3454
        %3475 = vmatprep.subr.bf16.mxu0 0
        %3476 = vmatpush1.bf16.msra.mxu0 %v3455
        %3477 = vmatprep.subr.bf16.mxu0 0
        %3478 = vmatpush1.bf16.msra.mxu0 %v3456
        %3479 = vmatprep.subr.bf16.mxu0 0
        %3480 = vmatpush1.bf16.msra.mxu0 %v3457
        %3481 = vmatprep.subr.bf16.mxu0 0
        %3482 = vmatpush1.bf16.msra.mxu0 %v3458
        %3483 = vmatprep.subr.bf16.mxu0 0
        %3484 = vmatpush1.bf16.msra.mxu0 0
        %3485 = vmatprep.subr.bf16.mxu0 0
        %3486 = vmatpush1.bf16.msra.mxu0 0
        %3487 = vmatprep.subr.bf16.mxu0 0
        %3488 = vmatpush1.bf16.msra.mxu0 0
        %3489 = vmatprep.subr.bf16.mxu0 0
        %3490 = vmatpush1.bf16.msra.mxu0 0
        %3491 = vmatprep.subr.bf16.mxu0 0
        %3492 = vmatpush1.bf16.msra.mxu0 0
        %3493 = vmatprep.subr.bf16.mxu0 0
        %3494 = vmatpush1.bf16.msra.mxu0 0
        %3495 = vmatprep.subr.bf16.mxu0 0
        %3496 = vmatpush1.bf16.msra.mxu0 0
        %3497 = vmatprep.subr.bf16.mxu0 0
        %3498 = vmatpush1.bf16.msra.mxu0 0
        %3499 = vmatprep.mubr.bf16.mxu0 0
        %3500 = vmatmul.mubr.bf16.gmra.mrb[0].mxu0 %v1081
        %v3501 = vpop.f32.mrb[0].mxu0
        %v3502 = vadd.f32 0.0, %v3501
        %v3503 = vpop.f32.mrb[0].mxu0
        %v3504 = vpop.f32.mrb[0].mxu0
        %v3505 = vadd.f32 0.0, %v3504
        %v3506 = vpop.f32.mrb[0].mxu0
        %3507 = vmatprep.mubr.bf16.mxu0 0
        %3508 = vmatmul.mubr.bf16.gmra.mrb[0].mxu0 %v1082
        %v3509 = vpop.f32.mrb[0].mxu0
        %v3510 = vadd.f32 0.0, %v3509
        %v3511 = vpop.f32.mrb[0].mxu0
        %v3512 = vpop.f32.mrb[0].mxu0
        %v3513 = vadd.f32 0.0, %v3512
        %v3514 = vpop.f32.mrb[0].mxu0
        %3515 = vmatprep.mubr.bf16.mxu0 0
        %3516 = vmatmul.mubr.bf16.gmra.mrb[0].mxu0 %v1083
        %v3517 = vpop.f32.mrb[0].mxu0
        %v3518 = vadd.f32 0.0, %v3517
        %v3519 = vpop.f32.mrb[0].mxu0
        %v3520 = vpop.f32.mrb[0].mxu0
        %v3521 = vadd.f32 0.0, %v3520
        %v3522 = vpop.f32.mrb[0].mxu0
        %3523 = vmatprep.mubr.bf16.mxu0 0
        %3524 = vmatmul.mubr.bf16.gmra.mrb[0].mxu0 %v1084
        %v3525 = vpop.f32.mrb[0].mxu0
        %v3526 = vadd.f32 0.0, %v3525
        %v3527 = vpop.f32.mrb[0].mxu0
        %v3528 = vpop.f32.mrb[0].mxu0
        %v3529 = vadd.f32 0.0, %v3528
        %v3530 = vpop.f32.mrb[0].mxu0
        %3531 = vdwg.mxu0
        %v3532 = vpack.c.bf16 %v3505, %v3502
        %v3533 = vpack.c.bf16 %v3513, %v3510
        %v3534 = vpack.c.bf16 %v3521, %v3518
        %v3535 = vpack.c.bf16 %v3529, %v3526
        %v3536 = vld [vmem:[%s1007] sm:$0xf]
        %v3537 = vld [vmem:[%s1007 + $0x4] sm:$0xf]
        %v3538 = vld [vmem:[%s1007 + $0x8] sm:$0xf]
        %v3539 = vld [vmem:[%s1007 + $0xc] sm:$0xf]
        %v3540 = vld [vmem:[%s1007 + $0x10] sm:$0xf]
        %v3541 = vld [vmem:[%s1007 + $0x14] sm:$0xf]
        %v3542 = vld [vmem:[%s1007 + $0x18] sm:$0xf]
        %v3543 = vld [vmem:[%s1007 + $0x1c] sm:$0xf]
        %v3544 = vld [vmem:[%s1007 + $0x20] sm:$0xf]
        %v3545 = vld [vmem:[%s1007 + $0x24] sm:$0xf]
        %v3546 = vld [vmem:[%s1007 + $0x28] sm:$0xf]
        %v3547 = vld [vmem:[%s1007 + $0x2c] sm:$0xf]
        %v3548 = vld [vmem:[%s1007 + $0x30] sm:$0xf]
        %v3549 = vld [vmem:[%s1007 + $0x34] sm:$0xf]
        %v3550 = vld [vmem:[%s1007 + $0x38] sm:$0xf]
        %v3551 = vld [vmem:[%s1007 + $0x3c] sm:$0xf]
        %v3568 = vunpack.c.l.b16 %v3536
        %v3569 = vunpack.c.l.b16 %v3537
        %v3570 = vunpack.c.l.b16 %v3538
        %v3571 = vunpack.c.l.b16 %v3539
        %v3572 = vunpack.c.l.b16 %v3540
        %v3573 = vunpack.c.l.b16 %v3541
        %v3574 = vunpack.c.l.b16 %v3542
        %v3575 = vunpack.c.l.b16 %v3543
        %v3576 = vunpack.c.l.b16 %v3544
        %v3577 = vunpack.c.l.b16 %v3545
        %v3578 = vunpack.c.l.b16 %v3546
        %v3579 = vunpack.c.l.b16 %v3547
        %v3580 = vunpack.c.l.b16 %v3548
        %v3581 = vunpack.c.l.b16 %v3549
        %v3582 = vunpack.c.l.b16 %v3550
        %v3583 = vunpack.c.l.b16 %v3551
        %v3584 = vpack.c.b16 %v3569, %v3568
        %v3585 = vpack.c.b16 %v3571, %v3570
        %v3586 = vpack.c.b16 %v3573, %v3572
        %v3587 = vpack.c.b16 %v3575, %v3574
        %v3588 = vpack.c.b16 %v3577, %v3576
        %v3589 = vpack.c.b16 %v3579, %v3578
        %v3590 = vpack.c.b16 %v3581, %v3580
        %v3591 = vpack.c.b16 %v3583, %v3582
        %3600 = vmatprep.subr.bf16.mxu0 0
        %3601 = vmatpush1.bf16.msra.mxu0 %v3584
        %3602 = vmatprep.subr.bf16.mxu0 0
        %3603 = vmatpush1.bf16.msra.mxu0 %v3585
        %3604 = vmatprep.subr.bf16.mxu0 0
        %3605 = vmatpush1.bf16.msra.mxu0 %v3586
        %3606 = vmatprep.subr.bf16.mxu0 0
        %3607 = vmatpush1.bf16.msra.mxu0 %v3587
        %3608 = vmatprep.subr.bf16.mxu0 0
        %3609 = vmatpush1.bf16.msra.mxu0 %v3588
        %3610 = vmatprep.subr.bf16.mxu0 0
        %3611 = vmatpush1.bf16.msra.mxu0 %v3589
        %3612 = vmatprep.subr.bf16.mxu0 0
        %3613 = vmatpush1.bf16.msra.mxu0 %v3590
        %3614 = vmatprep.subr.bf16.mxu0 0
        %3615 = vmatpush1.bf16.msra.mxu0 %v3591
        %3616 = vmatprep.subr.bf16.mxu0 0
        %3617 = vmatpush1.bf16.msra.mxu0 0
        %3618 = vmatprep.subr.bf16.mxu0 0
        %3619 = vmatpush1.bf16.msra.mxu0 0
        %3620 = vmatprep.subr.bf16.mxu0 0
        %3621 = vmatpush1.bf16.msra.mxu0 0
        %3622 = vmatprep.subr.bf16.mxu0 0
        %3623 = vmatpush1.bf16.msra.mxu0 0
        %3624 = vmatprep.subr.bf16.mxu0 0
        %3625 = vmatpush1.bf16.msra.mxu0 0
        %3626 = vmatprep.subr.bf16.mxu0 0
        %3627 = vmatpush1.bf16.msra.mxu0 0
        %3628 = vmatprep.subr.bf16.mxu0 0
        %3629 = vmatpush1.bf16.msra.mxu0 0
        %3630 = vmatprep.subr.bf16.mxu0 0
        %3631 = vmatpush1.bf16.msra.mxu0 0
        %3632 = vmatprep.mubr.bf16.mxu0 0
        %3633 = vmatmul.mubr.bf16.gmra.mrb[0].mxu0 %v1081
        %v3634 = vpop.f32.mrb[0].mxu0
        %v3635 = vadd.f32 0.0, %v3634
        %v3636 = vpop.f32.mrb[0].mxu0
        %v3637 = vpop.f32.mrb[0].mxu0
        %v3638 = vadd.f32 0.0, %v3637
        %v3639 = vpop.f32.mrb[0].mxu0
        %3640 = vmatprep.mubr.bf16.mxu0 0
        %3641 = vmatmul.mubr.bf16.gmra.mrb[0].mxu0 %v1082
        %v3642 = vpop.f32.mrb[0].mxu0
        %v3643 = vadd.f32 0.0, %v3642
        %v3644 = vpop.f32.mrb[0].mxu0
        %v3645 = vpop.f32.mrb[0].mxu0
        %v3646 = vadd.f32 0.0, %v3645
        %v3647 = vpop.f32.mrb[0].mxu0
        %3648 = vmatprep.mubr.bf16.mxu0 0
        %3649 = vmatmul.mubr.bf16.gmra.mrb[0].mxu0 %v1083
        %v3650 = vpop.f32.mrb[0].mxu0
        %v3651 = vadd.f32 0.0, %v3650
        %v3652 = vpop.f32.mrb[0].mxu0
        %v3653 = vpop.f32.mrb[0].mxu0
        %v3654 = vadd.f32 0.0, %v3653
        %v3655 = vpop.f32.mrb[0].mxu0
        %3656 = vmatprep.mubr.bf16.mxu0 0
        %3657 = vmatmul.mubr.bf16.gmra.mrb[0].mxu0 %v1084
        %v3658 = vpop.f32.mrb[0].mxu0
        %v3659 = vadd.f32 0.0, %v3658
        %v3660 = vpop.f32.mrb[0].mxu0
        %v3661 = vpop.f32.mrb[0].mxu0
        %v3662 = vadd.f32 0.0, %v3661
        %v3663 = vpop.f32.mrb[0].mxu0
        %3664 = vdwg.mxu0
        %v3665 = vpack.c.bf16 %v3638, %v3635
        %v3666 = vpack.c.bf16 %v3646, %v3643
        %v3667 = vpack.c.bf16 %v3654, %v3651
        %v3668 = vpack.c.bf16 %v3662, %v3659
        %v3670 = vsel %vm1484, %v3399, 0
        %v3673 = vsel %vm1484, %v3400, 0
        %v3676 = vsel %vm1484, %v3532, 0
        %v3679 = vsel %vm1484, %v3533, 0
        %3681 = vmatprep.subr.bf16.mxu0 0
        %3682 = vmatpush1.bf16.xpose.msra.mxu0 %v3676
        %3683 = vmatprep.subr.bf16.mxu0 0
        %3684 = vmatpush1.bf16.xpose.msra.mxu0 %v3679
        %3685 = vmatprep.subr.bf16.mxu0 0
        %3686 = vmatpush1.bf16.xpose.msra.mxu0 0
        %3687 = vmatprep.subr.bf16.mxu0 0
        %3688 = vmatpush1.bf16.xpose.msra.mxu0 0
        %3689 = vmatprep.subr.bf16.mxu0 0
        %3690 = vmatpush1.bf16.xpose.msra.mxu0 0
        %3691 = vmatprep.subr.bf16.mxu0 0
        %3692 = vmatpush1.bf16.xpose.msra.mxu0 0
        %3693 = vmatprep.subr.bf16.mxu0 0
        %3694 = vmatpush1.bf16.xpose.msra.mxu0 0
        %3695 = vmatprep.subr.bf16.mxu0 0
        %3696 = vmatpush1.bf16.xpose.msra.mxu0 0
        %3697 = vmatprep.subr.bf16.mxu0 0
        %3698 = vmatpush1.bf16.xpose.msra.mxu0 0
        %3699 = vmatprep.subr.bf16.mxu0 0
        %3700 = vmatpush1.bf16.xpose.msra.mxu0 0
        %3701 = vmatprep.subr.bf16.mxu0 0
        %3702 = vmatpush1.bf16.xpose.msra.mxu0 0
        %3703 = vmatprep.subr.bf16.mxu0 0
        %3704 = vmatpush1.bf16.xpose.msra.mxu0 0
        %3705 = vmatprep.subr.bf16.mxu0 0
        %3706 = vmatpush1.bf16.xpose.msra.mxu0 0
        %3707 = vmatprep.subr.bf16.mxu0 0
        %3708 = vmatpush1.bf16.xpose.msra.mxu0 0
        %3709 = vmatprep.subr.bf16.mxu0 0
        %3710 = vmatpush1.bf16.xpose.msra.mxu0 0
        %3711 = vmatprep.subr.bf16.mxu0 0
        %3712 = vmatpush1.bf16.xpose.msra.mxu0 0
        %3713 = vmatprep.mubr.bf16.mxu0 0
        %3714 = vmatmul.mubr.bf16.gmra.mrb[0].mxu0 %v3670
        %v3715 = vpop.f32.mrb[0].mxu0
        %v3716 = vadd.f32 0.0, %v3715
        %v3717 = vpop.f32.mrb[0].mxu0
        %v3718 = vpop.f32.mrb[0].mxu0
        %v3719 = vadd.f32 0.0, %v3718
        %v3720 = vpop.f32.mrb[0].mxu0
        %3721 = vmatprep.mubr.bf16.mxu0 0
        %3722 = vmatmul.mubr.bf16.gmra.mrb[0].mxu0 %v3673
        %v3723 = vpop.f32.mrb[0].mxu0
        %v3724 = vadd.f32 0.0, %v3723
        %v3725 = vpop.f32.mrb[0].mxu0
        %v3726 = vpop.f32.mrb[0].mxu0
        %v3727 = vadd.f32 0.0, %v3726
        %v3728 = vpop.f32.mrb[0].mxu0
        %3729 = vdwg.mxu0
        %v3730 = vsel %vm1484, %v3716, -inf
        %3731 = vmax.xlane.f32.xlu0 %v3730
        %v3732 = vpop.xlane.xlu0 %3731
        %v3733 = vsel %vm1484, %v3719, -inf
        %3734 = vmax.xlane.f32.xlu0 %v3733
        %v3735 = vpop.xlane.xlu0 %3734
        %v3736 = vsel %vm1484, %v3724, -inf
        %3737 = vmax.xlane.f32.xlu0 %v3736
        %v3738 = vpop.xlane.xlu0 %3737
        %v3739 = vsel %vm1484, %v3727, -inf
        %3740 = vmax.xlane.f32.xlu0 %v3739
        %v3741 = vpop.xlane.xlu0 %3740
        %v3742 = vsub.f32 %v3716, %v3732
        %v3743 = vsub.f32 %v3719, %v3735
        %v3744 = vsub.f32 %v3724, %v3738
        %v3745 = vsub.f32 %v3727, %v3741
        %v3746 = vmul.f32 %v3742, 1.442695
        %v3747 = vpow.pop %v3746
        %v3748 = vmul.f32 %v3743, 1.442695
        %v3749 = vpow.pop %v3748
        %v3750 = vmul.f32 %v3744, 1.442695
        %v3751 = vpow.pop %v3750
        %v3752 = vmul.f32 %v3745, 1.442695
        %v3753 = vpow.pop %v3752
        %v3754 = vsel %vm1484, %v3747, 0.0
        %3755 = vadd.xlane.f32.xlu0 %v3754
        %v3756 = vpop.xlane.xlu0 %3755
        %v3757 = vsel %vm1484, %v3749, 0.0
        %3758 = vadd.xlane.f32.xlu0 %v3757
        %v3759 = vpop.xlane.xlu0 %3758
        %v3760 = vsel %vm1484, %v3751, 0.0
        %3761 = vadd.xlane.f32.xlu0 %v3760
        %v3762 = vpop.xlane.xlu0 %3761
        %v3763 = vsel %vm1484, %v3753, 0.0
        %3764 = vadd.xlane.f32.xlu0 %v3763
        %v3765 = vpop.xlane.xlu0 %3764
        %v3766 = vrcp.pop %v3756
        %v3767 = vrcp.pop %v3759
        %v3768 = vrcp.pop %v3762
        %v3769 = vrcp.pop %v3765
        %v3770 = vmul.f32 %v3747, %v3766
        %v3771 = vmul.f32 %v3749, %v3767
        %v3772 = vmul.f32 %v3751, %v3768
        %v3773 = vmul.f32 %v3753, %v3769
        %v3774 = vpack.c.bf16 %v3771, %v3770
        %v3775 = vpack.c.bf16 %v3773, %v3772
        %v3777 = vsel %vm1484, %v3774, 0
        %v3780 = vsel %vm1484, %v3775, 0
        %3782 = vmatprep.subr.bf16.mxu0 0
        %3783 = vmatpush1.bf16.msra.mxu0 %v3665
        %3784 = vmatprep.subr.bf16.mxu0 0
        %3785 = vmatpush1.bf16.msra.mxu0 %v3666
        %3786 = vmatprep.subr.bf16.mxu0 0
        %3787 = vmatpush1.bf16.msra.mxu0 0
        %3788 = vmatprep.subr.bf16.mxu0 0
        %3789 = vmatpush1.bf16.msra.mxu0 0
        %3790 = vmatprep.subr.bf16.mxu0 0
        %3791 = vmatpush1.bf16.msra.mxu0 0
        %3792 = vmatprep.subr.bf16.mxu0 0
        %3793 = vmatpush1.bf16.msra.mxu0 0
        %3794 = vmatprep.subr.bf16.mxu0 0
        %3795 = vmatpush1.bf16.msra.mxu0 0
        %3796 = vmatprep.subr.bf16.mxu0 0
        %3797 = vmatpush1.bf16.msra.mxu0 0
        %3798 = vmatprep.subr.bf16.mxu0 0
        %3799 = vmatpush1.bf16.msra.mxu0 0
        %3800 = vmatprep.subr.bf16.mxu0 0
        %3801 = vmatpush1.bf16.msra.mxu0 0
        %3802 = vmatprep.subr.bf16.mxu0 0
        %3803 = vmatpush1.bf16.msra.mxu0 0
        %3804 = vmatprep.subr.bf16.mxu0 0
        %3805 = vmatpush1.bf16.msra.mxu0 0
        %3806 = vmatprep.subr.bf16.mxu0 0
        %3807 = vmatpush1.bf16.msra.mxu0 0
        %3808 = vmatprep.subr.bf16.mxu0 0
        %3809 = vmatpush1.bf16.msra.mxu0 0
        %3810 = vmatprep.subr.bf16.mxu0 0
        %3811 = vmatpush1.bf16.msra.mxu0 0
        %3812 = vmatprep.subr.bf16.mxu0 0
        %3813 = vmatpush1.bf16.msra.mxu0 0
        %3814 = vmatprep.mubr.bf16.mxu0 0
        %3815 = vmatmul.mubr.bf16.gmra.mrb[0].mxu0 %v3777
        %v3816 = vpop.f32.mrb[0].mxu0
        %v3817 = vadd.f32 0.0, %v3816
        %v3818 = vpop.f32.mrb[0].mxu0
        %v3819 = vpop.f32.mrb[0].mxu0
        %v3820 = vadd.f32 0.0, %v3819
        %v3821 = vpop.f32.mrb[0].mxu0
        %3822 = vmatprep.mubr.bf16.mxu0 0
        %3823 = vmatmul.mubr.bf16.gmra.mrb[0].mxu0 %v3780
        %v3824 = vpop.f32.mrb[0].mxu0
        %v3825 = vadd.f32 0.0, %v3824
        %v3826 = vpop.f32.mrb[0].mxu0
        %v3827 = vpop.f32.mrb[0].mxu0
        %v3828 = vadd.f32 0.0, %v3827
        %v3829 = vpop.f32.mrb[0].mxu0
        %3830 = vdwg.mxu0
        %3833 = vrot.lane.b32.xlu0 %v3399, 96
        %v3834 = vpop.permute.xlu0 %3833
        %3835 = vrot.lane.b32.xlu0 %v3400, 96
        %v3836 = vpop.permute.xlu0 %3835
        %3839 = vrot.lane.b32.xlu0 %v3532, 96
        %v3840 = vpop.permute.xlu0 %3839
        %3841 = vrot.lane.b32.xlu0 %v3533, 96
        %v3842 = vpop.permute.xlu0 %3841
        %v3844 = vsel %vm1484, %v3834, 0
        %v3847 = vsel %vm1484, %v3836, 0
        %v3850 = vsel %vm1484, %v3840, 0
        %v3853 = vsel %vm1484, %v3842, 0
        %3855 = vmatprep.subr.bf16.mxu0 0
        %3856 = vmatpush1.bf16.xpose.msra.mxu0 %v3850
        %3857 = vmatprep.subr.bf16.mxu0 0
        %3858 = vmatpush1.bf16.xpose.msra.mxu0 %v3853
        %3859 = vmatprep.subr.bf16.mxu0 0
        %3860 = vmatpush1.bf16.xpose.msra.mxu0 0
        %3861 = vmatprep.subr.bf16.mxu0 0
        %3862 = vmatpush1.bf16.xpose.msra.mxu0 0
        %3863 = vmatprep.subr.bf16.mxu0 0
        %3864 = vmatpush1.bf16.xpose.msra.mxu0 0
        %3865 = vmatprep.subr.bf16.mxu0 0
        %3866 = vmatpush1.bf16.xpose.msra.mxu0 0
        %3867 = vmatprep.subr.bf16.mxu0 0
        %3868 = vmatpush1.bf16.xpose.msra.mxu0 0
        %3869 = vmatprep.subr.bf16.mxu0 0
        %3870 = vmatpush1.bf16.xpose.msra.mxu0 0
        %3871 = vmatprep.subr.bf16.mxu0 0
        %3872 = vmatpush1.bf16.xpose.msra.mxu0 0
        %3873 = vmatprep.subr.bf16.mxu0 0
        %3874 = vmatpush1.bf16.xpose.msra.mxu0 0
        %3875 = vmatprep.subr.bf16.mxu0 0
        %3876 = vmatpush1.bf16.xpose.msra.mxu0 0
        %3877 = vmatprep.subr.bf16.mxu0 0
        %3878 = vmatpush1.bf16.xpose.msra.mxu0 0
        %3879 = vmatprep.subr.bf16.mxu0 0
        %3880 = vmatpush1.bf16.xpose.msra.mxu0 0
        %3881 = vmatprep.subr.bf16.mxu0 0
        %3882 = vmatpush1.bf16.xpose.msra.mxu0 0
        %3883 = vmatprep.subr.bf16.mxu0 0
        %3884 = vmatpush1.bf16.xpose.msra.mxu0 0
        %3885 = vmatprep.subr.bf16.mxu0 0
        %3886 = vmatpush1.bf16.xpose.msra.mxu0 0
        %3887 = vmatprep.mubr.bf16.mxu0 0
        %3888 = vmatmul.mubr.bf16.gmra.mrb[0].mxu0 %v3844
        %v3889 = vpop.f32.mrb[0].mxu0
        %v3890 = vadd.f32 0.0, %v3889
        %v3891 = vpop.f32.mrb[0].mxu0
        %v3892 = vpop.f32.mrb[0].mxu0
        %v3893 = vadd.f32 0.0, %v3892
        %v3894 = vpop.f32.mrb[0].mxu0
        %3895 = vmatprep.mubr.bf16.mxu0 0
        %3896 = vmatmul.mubr.bf16.gmra.mrb[0].mxu0 %v3847
        %v3897 = vpop.f32.mrb[0].mxu0
        %v3898 = vadd.f32 0.0, %v3897
        %v3899 = vpop.f32.mrb[0].mxu0
        %v3900 = vpop.f32.mrb[0].mxu0
        %v3901 = vadd.f32 0.0, %v3900
        %v3902 = vpop.f32.mrb[0].mxu0
        %3903 = vdwg.mxu0
        %v3904 = vsel %vm1484, %v3890, -inf
        %3905 = vmax.xlane.f32.xlu0 %v3904
        %v3906 = vpop.xlane.xlu0 %3905
        %v3907 = vsel %vm1484, %v3893, -inf
        %3908 = vmax.xlane.f32.xlu0 %v3907
        %v3909 = vpop.xlane.xlu0 %3908
        %v3910 = vsel %vm1484, %v3898, -inf
        %3911 = vmax.xlane.f32.xlu0 %v3910
        %v3912 = vpop.xlane.xlu0 %3911
        %v3913 = vsel %vm1484, %v3901, -inf
        %3914 = vmax.xlane.f32.xlu0 %v3913
        %v3915 = vpop.xlane.xlu0 %3914
        %v3916 = vsub.f32 %v3890, %v3906
        %v3917 = vsub.f32 %v3893, %v3909
        %v3918 = vsub.f32 %v3898, %v3912
        %v3919 = vsub.f32 %v3901, %v3915
        %v3920 = vmul.f32 %v3916, 1.442695
        %v3921 = vpow.pop %v3920
        %v3922 = vmul.f32 %v3917, 1.442695
        %v3923 = vpow.pop %v3922
        %v3924 = vmul.f32 %v3918, 1.442695
        %v3925 = vpow.pop %v3924
        %v3926 = vmul.f32 %v3919, 1.442695
        %v3927 = vpow.pop %v3926
        %v3928 = vsel %vm1484, %v3921, 0.0
        %3929 = vadd.xlane.f32.xlu0 %v3928
        %v3930 = vpop.xlane.xlu0 %3929
        %v3931 = vsel %vm1484, %v3923, 0.0
        %3932 = vadd.xlane.f32.xlu0 %v3931
        %v3933 = vpop.xlane.xlu0 %3932
        %v3934 = vsel %vm1484, %v3925, 0.0
        %3935 = vadd.xlane.f32.xlu0 %v3934
        %v3936 = vpop.xlane.xlu0 %3935
        %v3937 = vsel %vm1484, %v3927, 0.0
        %3938 = vadd.xlane.f32.xlu0 %v3937
        %v3939 = vpop.xlane.xlu0 %3938
        %v3940 = vrcp.pop %v3930
        %v3941 = vrcp.pop %v3933
        %v3942 = vrcp.pop %v3936
        %v3943 = vrcp.pop %v3939
        %v3944 = vmul.f32 %v3921, %v3940
        %v3945 = vmul.f32 %v3923, %v3941
        %v3946 = vmul.f32 %v3925, %v3942
        %v3947 = vmul.f32 %v3927, %v3943
        %v3948 = vpack.c.bf16 %v3945, %v3944
        %v3949 = vpack.c.bf16 %v3947, %v3946
        %3952 = vrot.lane.b32.xlu0 %v3665, 96
        %v3953 = vpop.permute.xlu0 %3952
        %3954 = vrot.lane.b32.xlu0 %v3666, 96
        %v3955 = vpop.permute.xlu0 %3954
        %v3959 = vsel %vm1484, %v3948, 0
        %v3962 = vsel %vm1484, %v3949, 0
        %3964 = vmatprep.subr.bf16.mxu0 0
        %3965 = vmatpush1.bf16.msra.mxu0 %v3953
        %3966 = vmatprep.subr.bf16.mxu0 0
        %3967 = vmatpush1.bf16.msra.mxu0 %v3955
        %3968 = vmatprep.subr.bf16.mxu0 0
        %3969 = vmatpush1.bf16.msra.mxu0 0
        %3970 = vmatprep.subr.bf16.mxu0 0
        %3971 = vmatpush1.bf16.msra.mxu0 0
        %3972 = vmatprep.subr.bf16.mxu0 0
        %3973 = vmatpush1.bf16.msra.mxu0 0
        %3974 = vmatprep.subr.bf16.mxu0 0
        %3975 = vmatpush1.bf16.msra.mxu0 0
        %3976 = vmatprep.subr.bf16.mxu0 0
        %3977 = vmatpush1.bf16.msra.mxu0 0
        %3978 = vmatprep.subr.bf16.mxu0 0
        %3979 = vmatpush1.bf16.msra.mxu0 0
        %3980 = vmatprep.subr.bf16.mxu0 0
        %3981 = vmatpush1.bf16.msra.mxu0 0
        %3982 = vmatprep.subr.bf16.mxu0 0
        %3983 = vmatpush1.bf16.msra.mxu0 0
        %3984 = vmatprep.subr.bf16.mxu0 0
        %3985 = vmatpush1.bf16.msra.mxu0 0
        %3986 = vmatprep.subr.bf16.mxu0 0
        %3987 = vmatpush1.bf16.msra.mxu0 0
        %3988 = vmatprep.subr.bf16.mxu0 0
        %3989 = vmatpush1.bf16.msra.mxu0 0
        %3990 = vmatprep.subr.bf16.mxu0 0
        %3991 = vmatpush1.bf16.msra.mxu0 0
        %3992 = vmatprep.subr.bf16.mxu0 0
        %3993 = vmatpush1.bf16.msra.mxu0 0
        %3994 = vmatprep.subr.bf16.mxu0 0
        %3995 = vmatpush1.bf16.msra.mxu0 0
        %3996 = vmatprep.mubr.bf16.mxu0 0
        %3997 = vmatmul.mubr.bf16.gmra.mrb[0].mxu0 %v3959
        %v3998 = vpop.f32.mrb[0].mxu0
        %v3999 = vadd.f32 0.0, %v3998
        %v4000 = vpop.f32.mrb[0].mxu0
        %v4001 = vpop.f32.mrb[0].mxu0
        %v4002 = vadd.f32 0.0, %v4001
        %v4003 = vpop.f32.mrb[0].mxu0
        %4004 = vmatprep.mubr.bf16.mxu0 0
        %4005 = vmatmul.mubr.bf16.gmra.mrb[0].mxu0 %v3962
        %v4006 = vpop.f32.mrb[0].mxu0
        %v4007 = vadd.f32 0.0, %v4006
        %v4008 = vpop.f32.mrb[0].mxu0
        %v4009 = vpop.f32.mrb[0].mxu0
        %v4010 = vadd.f32 0.0, %v4009
        %v4011 = vpop.f32.mrb[0].mxu0
        %4012 = vdwg.mxu0
        %4013 = vrot.lane.b32.xlu0 %v3399, 64
        %v4014 = vpop.permute.xlu0 %4013
        %4015 = vrot.lane.b32.xlu0 %v3400, 64
        %v4016 = vpop.permute.xlu0 %4015
        %4017 = vrot.lane.b32.xlu0 %v3532, 64
        %v4018 = vpop.permute.xlu0 %4017
        %4019 = vrot.lane.b32.xlu0 %v3533, 64
        %v4020 = vpop.permute.xlu0 %4019
        %v4022 = vsel %vm1484, %v4014, 0
        %v4025 = vsel %vm1484, %v4016, 0
        %v4028 = vsel %vm1484, %v4018, 0
        %v4031 = vsel %vm1484, %v4020, 0
        %4033 = vmatprep.subr.bf16.mxu0 0
        %4034 = vmatpush1.bf16.xpose.msra.mxu0 %v4028
        %4035 = vmatprep.subr.bf16.mxu0 0
        %4036 = vmatpush1.bf16.xpose.msra.mxu0 %v4031
        %4037 = vmatprep.subr.bf16.mxu0 0
        %4038 = vmatpush1.bf16.xpose.msra.mxu0 0
        %4039 = vmatprep.subr.bf16.mxu0 0
        %4040 = vmatpush1.bf16.xpose.msra.mxu0 0
        %4041 = vmatprep.subr.bf16.mxu0 0
        %4042 = vmatpush1.bf16.xpose.msra.mxu0 0
        %4043 = vmatprep.subr.bf16.mxu0 0
        %4044 = vmatpush1.bf16.xpose.msra.mxu0 0
        %4045 = vmatprep.subr.bf16.mxu0 0
        %4046 = vmatpush1.bf16.xpose.msra.mxu0 0
        %4047 = vmatprep.subr.bf16.mxu0 0
        %4048 = vmatpush1.bf16.xpose.msra.mxu0 0
        %4049 = vmatprep.subr.bf16.mxu0 0
        %4050 = vmatpush1.bf16.xpose.msra.mxu0 0
        %4051 = vmatprep.subr.bf16.mxu0 0
        %4052 = vmatpush1.bf16.xpose.msra.mxu0 0
        %4053 = vmatprep.subr.bf16.mxu0 0
        %4054 = vmatpush1.bf16.xpose.msra.mxu0 0
        %4055 = vmatprep.subr.bf16.mxu0 0
        %4056 = vmatpush1.bf16.xpose.msra.mxu0 0
        %4057 = vmatprep.subr.bf16.mxu0 0
        %4058 = vmatpush1.bf16.xpose.msra.mxu0 0
        %4059 = vmatprep.subr.bf16.mxu0 0
        %4060 = vmatpush1.bf16.xpose.msra.mxu0 0
        %4061 = vmatprep.subr.bf16.mxu0 0
        %4062 = vmatpush1.bf16.xpose.msra.mxu0 0
        %4063 = vmatprep.subr.bf16.mxu0 0
        %4064 = vmatpush1.bf16.xpose.msra.mxu0 0
        %4065 = vmatprep.mubr.bf16.mxu0 0
        %4066 = vmatmul.mubr.bf16.gmra.mrb[0].mxu0 %v4022
        %v4067 = vpop.f32.mrb[0].mxu0
        %v4068 = vadd.f32 0.0, %v4067
        %v4069 = vpop.f32.mrb[0].mxu0
        %v4070 = vpop.f32.mrb[0].mxu0
        %v4071 = vadd.f32 0.0, %v4070
        %v4072 = vpop.f32.mrb[0].mxu0
        %4073 = vmatprep.mubr.bf16.mxu0 0
        %4074 = vmatmul.mubr.bf16.gmra.mrb[0].mxu0 %v4025
        %v4075 = vpop.f32.mrb[0].mxu0
        %v4076 = vadd.f32 0.0, %v4075
        %v4077 = vpop.f32.mrb[0].mxu0
        %v4078 = vpop.f32.mrb[0].mxu0
        %v4079 = vadd.f32 0.0, %v4078
        %v4080 = vpop.f32.mrb[0].mxu0
        %4081 = vdwg.mxu0
        %v4082 = vsel %vm1484, %v4068, -inf
        %4083 = vmax.xlane.f32.xlu0 %v4082
        %v4084 = vpop.xlane.xlu0 %4083
        %v4085 = vsel %vm1484, %v4071, -inf
        %4086 = vmax.xlane.f32.xlu0 %v4085
        %v4087 = vpop.xlane.xlu0 %4086
        %v4088 = vsel %vm1484, %v4076, -inf
        %4089 = vmax.xlane.f32.xlu0 %v4088
        %v4090 = vpop.xlane.xlu0 %4089
        %v4091 = vsel %vm1484, %v4079, -inf
        %4092 = vmax.xlane.f32.xlu0 %v4091
        %v4093 = vpop.xlane.xlu0 %4092
        %v4094 = vsub.f32 %v4068, %v4084
        %v4095 = vsub.f32 %v4071, %v4087
        %v4096 = vsub.f32 %v4076, %v4090
        %v4097 = vsub.f32 %v4079, %v4093
        %v4098 = vmul.f32 %v4094, 1.442695
        %v4099 = vpow.pop %v4098
        %v4100 = vmul.f32 %v4095, 1.442695
        %v4101 = vpow.pop %v4100
        %v4102 = vmul.f32 %v4096, 1.442695
        %v4103 = vpow.pop %v4102
        %v4104 = vmul.f32 %v4097, 1.442695
        %v4105 = vpow.pop %v4104
        %v4106 = vsel %vm1484, %v4099, 0.0
        %4107 = vadd.xlane.f32.xlu0 %v4106
        %v4108 = vpop.xlane.xlu0 %4107
        %v4109 = vsel %vm1484, %v4101, 0.0
        %4110 = vadd.xlane.f32.xlu0 %v4109
        %v4111 = vpop.xlane.xlu0 %4110
        %v4112 = vsel %vm1484, %v4103, 0.0
        %4113 = vadd.xlane.f32.xlu0 %v4112
        %v4114 = vpop.xlane.xlu0 %4113
        %v4115 = vsel %vm1484, %v4105, 0.0
        %4116 = vadd.xlane.f32.xlu0 %v4115
        %v4117 = vpop.xlane.xlu0 %4116
        %v4118 = vrcp.pop %v4108
        %v4119 = vrcp.pop %v4111
        %v4120 = vrcp.pop %v4114
        %v4121 = vrcp.pop %v4117
        %v4122 = vmul.f32 %v4099, %v4118
        %v4123 = vmul.f32 %v4101, %v4119
        %v4124 = vmul.f32 %v4103, %v4120
        %v4125 = vmul.f32 %v4105, %v4121
        %v4126 = vpack.c.bf16 %v4123, %v4122
        %v4127 = vpack.c.bf16 %v4125, %v4124
        %4128 = vrot.lane.b32.xlu0 %v3665, 64
        %v4129 = vpop.permute.xlu0 %4128
        %4130 = vrot.lane.b32.xlu0 %v3666, 64
        %v4131 = vpop.permute.xlu0 %4130
        %v4135 = vsel %vm1484, %v4126, 0
        %v4138 = vsel %vm1484, %v4127, 0
        %4140 = vmatprep.subr.bf16.mxu0 0
        %4141 = vmatpush1.bf16.msra.mxu0 %v4129
        %4142 = vmatprep.subr.bf16.mxu0 0
        %4143 = vmatpush1.bf16.msra.mxu0 %v4131
        %4144 = vmatprep.subr.bf16.mxu0 0
        %4145 = vmatpush1.bf16.msra.mxu0 0
        %4146 = vmatprep.subr.bf16.mxu0 0
        %4147 = vmatpush1.bf16.msra.mxu0 0
        %4148 = vmatprep.subr.bf16.mxu0 0
        %4149 = vmatpush1.bf16.msra.mxu0 0
        %4150 = vmatprep.subr.bf16.mxu0 0
        %4151 = vmatpush1.bf16.msra.mxu0 0
        %4152 = vmatprep.subr.bf16.mxu0 0
        %4153 = vmatpush1.bf16.msra.mxu0 0
        %4154 = vmatprep.subr.bf16.mxu0 0
        %4155 = vmatpush1.bf16.msra.mxu0 0
        %4156 = vmatprep.subr.bf16.mxu0 0
        %4157 = vmatpush1.bf16.msra.mxu0 0
        %4158 = vmatprep.subr.bf16.mxu0 0
        %4159 = vmatpush1.bf16.msra.mxu0 0
        %4160 = vmatprep.subr.bf16.mxu0 0
        %4161 = vmatpush1.bf16.msra.mxu0 0
        %4162 = vmatprep.subr.bf16.mxu0 0
        %4163 = vmatpush1.bf16.msra.mxu0 0
        %4164 = vmatprep.subr.bf16.mxu0 0
        %4165 = vmatpush1.bf16.msra.mxu0 0
        %4166 = vmatprep.subr.bf16.mxu0 0
        %4167 = vmatpush1.bf16.msra.mxu0 0
        %4168 = vmatprep.subr.bf16.mxu0 0
        %4169 = vmatpush1.bf16.msra.mxu0 0
        %4170 = vmatprep.subr.bf16.mxu0 0
        %4171 = vmatpush1.bf16.msra.mxu0 0
        %4172 = vmatprep.mubr.bf16.mxu0 0
        %4173 = vmatmul.mubr.bf16.gmra.mrb[0].mxu0 %v4135
        %v4174 = vpop.f32.mrb[0].mxu0
        %v4175 = vadd.f32 0.0, %v4174
        %v4176 = vpop.f32.mrb[0].mxu0
        %v4177 = vpop.f32.mrb[0].mxu0
        %v4178 = vadd.f32 0.0, %v4177
        %v4179 = vpop.f32.mrb[0].mxu0
        %4180 = vmatprep.mubr.bf16.mxu0 0
        %4181 = vmatmul.mubr.bf16.gmra.mrb[0].mxu0 %v4138
        %v4182 = vpop.f32.mrb[0].mxu0
        %v4183 = vadd.f32 0.0, %v4182
        %v4184 = vpop.f32.mrb[0].mxu0
        %v4185 = vpop.f32.mrb[0].mxu0
        %v4186 = vadd.f32 0.0, %v4185
        %v4187 = vpop.f32.mrb[0].mxu0
        %4188 = vdwg.mxu0
        %4189 = vrot.lane.b32.xlu0 %v3399, 32
        %v4190 = vpop.permute.xlu0 %4189
        %4191 = vrot.lane.b32.xlu0 %v3400, 32
        %v4192 = vpop.permute.xlu0 %4191
        %4193 = vrot.lane.b32.xlu0 %v3532, 32
        %v4194 = vpop.permute.xlu0 %4193
        %4195 = vrot.lane.b32.xlu0 %v3533, 32
        %v4196 = vpop.permute.xlu0 %4195
        %v4198 = vsel %vm1484, %v4190, 0
        %v4201 = vsel %vm1484, %v4192, 0
        %v4204 = vsel %vm1484, %v4194, 0
        %v4207 = vsel %vm1484, %v4196, 0
        %4209 = vmatprep.subr.bf16.mxu0 0
        %4210 = vmatpush1.bf16.xpose.msra.mxu0 %v4204
        %4211 = vmatprep.subr.bf16.mxu0 0
        %4212 = vmatpush1.bf16.xpose.msra.mxu0 %v4207
        %4213 = vmatprep.subr.bf16.mxu0 0
        %4214 = vmatpush1.bf16.xpose.msra.mxu0 0
        %4215 = vmatprep.subr.bf16.mxu0 0
        %4216 = vmatpush1.bf16.xpose.msra.mxu0 0
        %4217 = vmatprep.subr.bf16.mxu0 0
        %4218 = vmatpush1.bf16.xpose.msra.mxu0 0
        %4219 = vmatprep.subr.bf16.mxu0 0
        %4220 = vmatpush1.bf16.xpose.msra.mxu0 0
        %4221 = vmatprep.subr.bf16.mxu0 0
        %4222 = vmatpush1.bf16.xpose.msra.mxu0 0
        %4223 = vmatprep.subr.bf16.mxu0 0
        %4224 = vmatpush1.bf16.xpose.msra.mxu0 0
        %4225 = vmatprep.subr.bf16.mxu0 0
        %4226 = vmatpush1.bf16.xpose.msra.mxu0 0
        %4227 = vmatprep.subr.bf16.mxu0 0
        %4228 = vmatpush1.bf16.xpose.msra.mxu0 0
        %4229 = vmatprep.subr.bf16.mxu0 0
        %4230 = vmatpush1.bf16.xpose.msra.mxu0 0
        %4231 = vmatprep.subr.bf16.mxu0 0
        %4232 = vmatpush1.bf16.xpose.msra.mxu0 0
        %4233 = vmatprep.subr.bf16.mxu0 0
        %4234 = vmatpush1.bf16.xpose.msra.mxu0 0
        %4235 = vmatprep.subr.bf16.mxu0 0
        %4236 = vmatpush1.bf16.xpose.msra.mxu0 0
        %4237 = vmatprep.subr.bf16.mxu0 0
        %4238 = vmatpush1.bf16.xpose.msra.mxu0 0
        %4239 = vmatprep.subr.bf16.mxu0 0
        %4240 = vmatpush1.bf16.xpose.msra.mxu0 0
        %4241 = vmatprep.mubr.bf16.mxu0 0
        %4242 = vmatmul.mubr.bf16.gmra.mrb[0].mxu0 %v4198
        %v4243 = vpop.f32.mrb[0].mxu0
        %v4244 = vadd.f32 0.0, %v4243
        %v4245 = vpop.f32.mrb[0].mxu0
        %v4246 = vpop.f32.mrb[0].mxu0
        %v4247 = vadd.f32 0.0, %v4246
        %v4248 = vpop.f32.mrb[0].mxu0
        %4249 = vmatprep.mubr.bf16.mxu0 0
        %4250 = vmatmul.mubr.bf16.gmra.mrb[0].mxu0 %v4201
        %v4251 = vpop.f32.mrb[0].mxu0
        %v4252 = vadd.f32 0.0, %v4251
        %v4253 = vpop.f32.mrb[0].mxu0
        %v4254 = vpop.f32.mrb[0].mxu0
        %v4255 = vadd.f32 0.0, %v4254
        %v4256 = vpop.f32.mrb[0].mxu0
        %4257 = vdwg.mxu0
        %v4258 = vsel %vm1484, %v4244, -inf
        %4259 = vmax.xlane.f32.xlu0 %v4258
        %v4260 = vpop.xlane.xlu0 %4259
        %v4261 = vsel %vm1484, %v4247, -inf
        %4262 = vmax.xlane.f32.xlu0 %v4261
        %v4263 = vpop.xlane.xlu0 %4262
        %v4264 = vsel %vm1484, %v4252, -inf
        %4265 = vmax.xlane.f32.xlu0 %v4264
        %v4266 = vpop.xlane.xlu0 %4265
        %v4267 = vsel %vm1484, %v4255, -inf
        %4268 = vmax.xlane.f32.xlu0 %v4267
        %v4269 = vpop.xlane.xlu0 %4268
        %v4270 = vsub.f32 %v4244, %v4260
        %v4271 = vsub.f32 %v4247, %v4263
        %v4272 = vsub.f32 %v4252, %v4266
        %v4273 = vsub.f32 %v4255, %v4269
        %v4274 = vmul.f32 %v4270, 1.442695
        %v4275 = vpow.pop %v4274
        %v4276 = vmul.f32 %v4271, 1.442695
        %v4277 = vpow.pop %v4276
        %v4278 = vmul.f32 %v4272, 1.442695
        %v4279 = vpow.pop %v4278
        %v4280 = vmul.f32 %v4273, 1.442695
        %v4281 = vpow.pop %v4280
        %v4282 = vsel %vm1484, %v4275, 0.0
        %4283 = vadd.xlane.f32.xlu0 %v4282
        %v4284 = vpop.xlane.xlu0 %4283
        %v4285 = vsel %vm1484, %v4277, 0.0
        %4286 = vadd.xlane.f32.xlu0 %v4285
        %v4287 = vpop.xlane.xlu0 %4286
        %v4288 = vsel %vm1484, %v4279, 0.0
        %4289 = vadd.xlane.f32.xlu0 %v4288
        %v4290 = vpop.xlane.xlu0 %4289
        %v4291 = vsel %vm1484, %v4281, 0.0
        %4292 = vadd.xlane.f32.xlu0 %v4291
        %v4293 = vpop.xlane.xlu0 %4292
        %v4294 = vrcp.pop %v4284
        %v4295 = vrcp.pop %v4287
        %v4296 = vrcp.pop %v4290
        %v4297 = vrcp.pop %v4293
        %v4298 = vmul.f32 %v4275, %v4294
        %v4299 = vmul.f32 %v4277, %v4295
        %v4300 = vmul.f32 %v4279, %v4296
        %v4301 = vmul.f32 %v4281, %v4297
        %v4302 = vpack.c.bf16 %v4299, %v4298
        %v4303 = vpack.c.bf16 %v4301, %v4300
        %4304 = vrot.lane.b32.xlu0 %v3665, 32
        %v4305 = vpop.permute.xlu0 %4304
        %4306 = vrot.lane.b32.xlu0 %v3666, 32
        %v4307 = vpop.permute.xlu0 %4306
        %v4311 = vsel %vm1484, %v4302, 0
        %v4314 = vsel %vm1484, %v4303, 0
        %4316 = vmatprep.subr.bf16.mxu0 0
        %4317 = vmatpush1.bf16.msra.mxu0 %v4305
        %4318 = vmatprep.subr.bf16.mxu0 0
        %4319 = vmatpush1.bf16.msra.mxu0 %v4307
        %4320 = vmatprep.subr.bf16.mxu0 0
        %4321 = vmatpush1.bf16.msra.mxu0 0
        %4322 = vmatprep.subr.bf16.mxu0 0
        %4323 = vmatpush1.bf16.msra.mxu0 0
        %4324 = vmatprep.subr.bf16.mxu0 0
        %4325 = vmatpush1.bf16.msra.mxu0 0
        %4326 = vmatprep.subr.bf16.mxu0 0
        %4327 = vmatpush1.bf16.msra.mxu0 0
        %4328 = vmatprep.subr.bf16.mxu0 0
        %4329 = vmatpush1.bf16.msra.mxu0 0
        %4330 = vmatprep.subr.bf16.mxu0 0
        %4331 = vmatpush1.bf16.msra.mxu0 0
        %4332 = vmatprep.subr.bf16.mxu0 0
        %4333 = vmatpush1.bf16.msra.mxu0 0
        %4334 = vmatprep.subr.bf16.mxu0 0
        %4335 = vmatpush1.bf16.msra.mxu0 0
        %4336 = vmatprep.subr.bf16.mxu0 0
        %4337 = vmatpush1.bf16.msra.mxu0 0
        %4338 = vmatprep.subr.bf16.mxu0 0
        %4339 = vmatpush1.bf16.msra.mxu0 0
        %4340 = vmatprep.subr.bf16.mxu0 0
        %4341 = vmatpush1.bf16.msra.mxu0 0
        %4342 = vmatprep.subr.bf16.mxu0 0
        %4343 = vmatpush1.bf16.msra.mxu0 0
        %4344 = vmatprep.subr.bf16.mxu0 0
        %4345 = vmatpush1.bf16.msra.mxu0 0
        %4346 = vmatprep.subr.bf16.mxu0 0
        %4347 = vmatpush1.bf16.msra.mxu0 0
        %4348 = vmatprep.mubr.bf16.mxu0 0
        %4349 = vmatmul.mubr.bf16.gmra.mrb[0].mxu0 %v4311
        %v4350 = vpop.f32.mrb[0].mxu0
        %v4351 = vadd.f32 0.0, %v4350
        %v4352 = vpop.f32.mrb[0].mxu0
        %v4353 = vpop.f32.mrb[0].mxu0
        %v4354 = vadd.f32 0.0, %v4353
        %v4355 = vpop.f32.mrb[0].mxu0
        %4356 = vmatprep.mubr.bf16.mxu0 0
        %4357 = vmatmul.mubr.bf16.gmra.mrb[0].mxu0 %v4314
        %v4358 = vpop.f32.mrb[0].mxu0
        %v4359 = vadd.f32 0.0, %v4358
        %v4360 = vpop.f32.mrb[0].mxu0
        %v4361 = vpop.f32.mrb[0].mxu0
        %v4362 = vadd.f32 0.0, %v4361
        %v4363 = vpop.f32.mrb[0].mxu0
        %4364 = vdwg.mxu0
        %4369 = vrot.lane.b32.xlu0 %v3999, 32
        %v4370 = vpop.permute.xlu0 %4369
        %4371 = vrot.lane.b32.xlu0 %v4002, 32
        %v4372 = vpop.permute.xlu0 %4371
        %4373 = vrot.lane.b32.xlu0 %v4007, 32
        %v4374 = vpop.permute.xlu0 %4373
        %4375 = vrot.lane.b32.xlu0 %v4010, 32
        %v4376 = vpop.permute.xlu0 %4375
        %4385 = vrot.lane.b32.xlu0 %v4175, 64
        %v4386 = vpop.permute.xlu0 %4385
        %4387 = vrot.lane.b32.xlu0 %v4178, 64
        %v4388 = vpop.permute.xlu0 %4387
        %4389 = vrot.lane.b32.xlu0 %v4183, 64
        %v4390 = vpop.permute.xlu0 %4389
        %4391 = vrot.lane.b32.xlu0 %v4186, 64
        %v4392 = vpop.permute.xlu0 %4391
        %4401 = vrot.lane.b32.xlu0 %v4351, 96
        %v4402 = vpop.permute.xlu0 %4401
        %4403 = vrot.lane.b32.xlu0 %v4354, 96
        %v4404 = vpop.permute.xlu0 %4403
        %4405 = vrot.lane.b32.xlu0 %v4359, 96
        %v4406 = vpop.permute.xlu0 %4405
        %4407 = vrot.lane.b32.xlu0 %v4362, 96
        %v4408 = vpop.permute.xlu0 %4407
        %v4413 = vsel %vm1484, %v3817, %v4370
        %v4414 = vsel %vm1484, %v3820, %v4372
        %v4415 = vsel %vm1484, %v3825, %v4374
        %v4416 = vsel %vm1484, %v3828, %v4376
        %v4417 = vsel %vm2233, %v4413, %v4386
        %v4418 = vsel %vm2233, %v4414, %v4388
        %v4419 = vsel %vm2233, %v4415, %v4390
        %v4420 = vsel %vm2233, %v4416, %v4392
        %v4421 = vsel %vm2238, %v4417, %v4402
        %v4422 = vsel %vm2238, %v4418, %v4404
        %v4423 = vsel %vm2238, %v4419, %v4406
        %v4424 = vsel %vm2238, %v4420, %v4408
        %v4426 = vsel %vm1484, %v3401, 0
        %v4429 = vsel %vm1484, %v3402, 0
        %v4432 = vsel %vm1484, %v3534, 0
        %v4435 = vsel %vm1484, %v3535, 0
        %4437 = vmatprep.subr.bf16.mxu0 0
        %4438 = vmatpush1.bf16.xpose.msra.mxu0 %v4432
        %4439 = vmatprep.subr.bf16.mxu0 0
        %4440 = vmatpush1.bf16.xpose.msra.mxu0 %v4435
        %4441 = vmatprep.subr.bf16.mxu0 0
        %4442 = vmatpush1.bf16.xpose.msra.mxu0 0
        %4443 = vmatprep.subr.bf16.mxu0 0
        %4444 = vmatpush1.bf16.xpose.msra.mxu0 0
        %4445 = vmatprep.subr.bf16.mxu0 0
        %4446 = vmatpush1.bf16.xpose.msra.mxu0 0
        %4447 = vmatprep.subr.bf16.mxu0 0
        %4448 = vmatpush1.bf16.xpose.msra.mxu0 0
        %4449 = vmatprep.subr.bf16.mxu0 0
        %4450 = vmatpush1.bf16.xpose.msra.mxu0 0
        %4451 = vmatprep.subr.bf16.mxu0 0
        %4452 = vmatpush1.bf16.xpose.msra.mxu0 0
        %4453 = vmatprep.subr.bf16.mxu0 0
        %4454 = vmatpush1.bf16.xpose.msra.mxu0 0
        %4455 = vmatprep.subr.bf16.mxu0 0
        %4456 = vmatpush1.bf16.xpose.msra.mxu0 0
        %4457 = vmatprep.subr.bf16.mxu0 0
        %4458 = vmatpush1.bf16.xpose.msra.mxu0 0
        %4459 = vmatprep.subr.bf16.mxu0 0
        %4460 = vmatpush1.bf16.xpose.msra.mxu0 0
        %4461 = vmatprep.subr.bf16.mxu0 0
        %4462 = vmatpush1.bf16.xpose.msra.mxu0 0
        %4463 = vmatprep.subr.bf16.mxu0 0
        %4464 = vmatpush1.bf16.xpose.msra.mxu0 0
        %4465 = vmatprep.subr.bf16.mxu0 0
        %4466 = vmatpush1.bf16.xpose.msra.mxu0 0
        %4467 = vmatprep.subr.bf16.mxu0 0
        %4468 = vmatpush1.bf16.xpose.msra.mxu0 0
        %4469 = vmatprep.mubr.bf16.mxu0 0
        %4470 = vmatmul.mubr.bf16.gmra.mrb[0].mxu0 %v4426
        %v4471 = vpop.f32.mrb[0].mxu0
        %v4472 = vadd.f32 0.0, %v4471
        %v4473 = vpop.f32.mrb[0].mxu0
        %v4474 = vpop.f32.mrb[0].mxu0
        %v4475 = vadd.f32 0.0, %v4474
        %v4476 = vpop.f32.mrb[0].mxu0
        %4477 = vmatprep.mubr.bf16.mxu0 0
        %4478 = vmatmul.mubr.bf16.gmra.mrb[0].mxu0 %v4429
        %v4479 = vpop.f32.mrb[0].mxu0
        %v4480 = vadd.f32 0.0, %v4479
        %v4481 = vpop.f32.mrb[0].mxu0
        %v4482 = vpop.f32.mrb[0].mxu0
        %v4483 = vadd.f32 0.0, %v4482
        %v4484 = vpop.f32.mrb[0].mxu0
        %4485 = vdwg.mxu0
        %v4486 = vsel %vm1484, %v4472, -inf
        %4487 = vmax.xlane.f32.xlu0 %v4486
        %v4488 = vpop.xlane.xlu0 %4487
        %v4489 = vsel %vm1484, %v4475, -inf
        %4490 = vmax.xlane.f32.xlu0 %v4489
        %v4491 = vpop.xlane.xlu0 %4490
        %v4492 = vsel %vm1484, %v4480, -inf
        %4493 = vmax.xlane.f32.xlu0 %v4492
        %v4494 = vpop.xlane.xlu0 %4493
        %v4495 = vsel %vm1484, %v4483, -inf
        %4496 = vmax.xlane.f32.xlu0 %v4495
        %v4497 = vpop.xlane.xlu0 %4496
        %v4498 = vsub.f32 %v4472, %v4488
        %v4499 = vsub.f32 %v4475, %v4491
        %v4500 = vsub.f32 %v4480, %v4494
        %v4501 = vsub.f32 %v4483, %v4497
        %v4502 = vmul.f32 %v4498, 1.442695
        %v4503 = vpow.pop %v4502
        %v4504 = vmul.f32 %v4499, 1.442695
        %v4505 = vpow.pop %v4504
        %v4506 = vmul.f32 %v4500, 1.442695
        %v4507 = vpow.pop %v4506
        %v4508 = vmul.f32 %v4501, 1.442695
        %v4509 = vpow.pop %v4508
        %v4510 = vsel %vm1484, %v4503, 0.0
        %4511 = vadd.xlane.f32.xlu0 %v4510
        %v4512 = vpop.xlane.xlu0 %4511
        %v4513 = vsel %vm1484, %v4505, 0.0
        %4514 = vadd.xlane.f32.xlu0 %v4513
        %v4515 = vpop.xlane.xlu0 %4514
        %v4516 = vsel %vm1484, %v4507, 0.0
        %4517 = vadd.xlane.f32.xlu0 %v4516
        %v4518 = vpop.xlane.xlu0 %4517
        %v4519 = vsel %vm1484, %v4509, 0.0
        %4520 = vadd.xlane.f32.xlu0 %v4519
        %v4521 = vpop.xlane.xlu0 %4520
        %v4522 = vrcp.pop %v4512
        %v4523 = vrcp.pop %v4515
        %v4524 = vrcp.pop %v4518
        %v4525 = vrcp.pop %v4521
        %v4526 = vmul.f32 %v4503, %v4522
        %v4527 = vmul.f32 %v4505, %v4523
        %v4528 = vmul.f32 %v4507, %v4524
        %v4529 = vmul.f32 %v4509, %v4525
        %v4530 = vpack.c.bf16 %v4527, %v4526
        %v4531 = vpack.c.bf16 %v4529, %v4528
        %v4533 = vsel %vm1484, %v4530, 0
        %v4536 = vsel %vm1484, %v4531, 0
        %4538 = vmatprep.subr.bf16.mxu0 0
        %4539 = vmatpush1.bf16.msra.mxu0 %v3667
        %4540 = vmatprep.subr.bf16.mxu0 0
        %4541 = vmatpush1.bf16.msra.mxu0 %v3668
        %4542 = vmatprep.subr.bf16.mxu0 0
        %4543 = vmatpush1.bf16.msra.mxu0 0
        %4544 = vmatprep.subr.bf16.mxu0 0
        %4545 = vmatpush1.bf16.msra.mxu0 0
        %4546 = vmatprep.subr.bf16.mxu0 0
        %4547 = vmatpush1.bf16.msra.mxu0 0
        %4548 = vmatprep.subr.bf16.mxu0 0
        %4549 = vmatpush1.bf16.msra.mxu0 0
        %4550 = vmatprep.subr.bf16.mxu0 0
        %4551 = vmatpush1.bf16.msra.mxu0 0
        %4552 = vmatprep.subr.bf16.mxu0 0
        %4553 = vmatpush1.bf16.msra.mxu0 0
        %4554 = vmatprep.subr.bf16.mxu0 0
        %4555 = vmatpush1.bf16.msra.mxu0 0
        %4556 = vmatprep.subr.bf16.mxu0 0
        %4557 = vmatpush1.bf16.msra.mxu0 0
        %4558 = vmatprep.subr.bf16.mxu0 0
        %4559 = vmatpush1.bf16.msra.mxu0 0
        %4560 = vmatprep.subr.bf16.mxu0 0
        %4561 = vmatpush1.bf16.msra.mxu0 0
        %4562 = vmatprep.subr.bf16.mxu0 0
        %4563 = vmatpush1.bf16.msra.mxu0 0
        %4564 = vmatprep.subr.bf16.mxu0 0
        %4565 = vmatpush1.bf16.msra.mxu0 0
        %4566 = vmatprep.subr.bf16.mxu0 0
        %4567 = vmatpush1.bf16.msra.mxu0 0
        %4568 = vmatprep.subr.bf16.mxu0 0
        %4569 = vmatpush1.bf16.msra.mxu0 0
        %4570 = vmatprep.mubr.bf16.mxu0 0
        %4571 = vmatmul.mubr.bf16.gmra.mrb[0].mxu0 %v4533
        %v4572 = vpop.f32.mrb[0].mxu0
        %v4573 = vadd.f32 0.0, %v4572
        %v4574 = vpop.f32.mrb[0].mxu0
        %v4575 = vpop.f32.mrb[0].mxu0
        %v4576 = vadd.f32 0.0, %v4575
        %v4577 = vpop.f32.mrb[0].mxu0
        %4578 = vmatprep.mubr.bf16.mxu0 0
        %4579 = vmatmul.mubr.bf16.gmra.mrb[0].mxu0 %v4536
        %v4580 = vpop.f32.mrb[0].mxu0
        %v4581 = vadd.f32 0.0, %v4580
        %v4582 = vpop.f32.mrb[0].mxu0
        %v4583 = vpop.f32.mrb[0].mxu0
        %v4584 = vadd.f32 0.0, %v4583
        %v4585 = vpop.f32.mrb[0].mxu0
        %4586 = vdwg.mxu0
        %4589 = vrot.lane.b32.xlu0 %v3401, 96
        %v4590 = vpop.permute.xlu0 %4589
        %4591 = vrot.lane.b32.xlu0 %v3402, 96
        %v4592 = vpop.permute.xlu0 %4591
        %4595 = vrot.lane.b32.xlu0 %v3534, 96
        %v4596 = vpop.permute.xlu0 %4595
        %4597 = vrot.lane.b32.xlu0 %v3535, 96
        %v4598 = vpop.permute.xlu0 %4597
        %v4600 = vsel %vm1484, %v4590, 0
        %v4603 = vsel %vm1484, %v4592, 0
        %v4606 = vsel %vm1484, %v4596, 0
        %v4609 = vsel %vm1484, %v4598, 0
        %4611 = vmatprep.subr.bf16.mxu0 0
        %4612 = vmatpush1.bf16.xpose.msra.mxu0 %v4606
        %4613 = vmatprep.subr.bf16.mxu0 0
        %4614 = vmatpush1.bf16.xpose.msra.mxu0 %v4609
        %4615 = vmatprep.subr.bf16.mxu0 0
        %4616 = vmatpush1.bf16.xpose.msra.mxu0 0
        %4617 = vmatprep.subr.bf16.mxu0 0
        %4618 = vmatpush1.bf16.xpose.msra.mxu0 0
        %4619 = vmatprep.subr.bf16.mxu0 0
        %4620 = vmatpush1.bf16.xpose.msra.mxu0 0
        %4621 = vmatprep.subr.bf16.mxu0 0
        %4622 = vmatpush1.bf16.xpose.msra.mxu0 0
        %4623 = vmatprep.subr.bf16.mxu0 0
        %4624 = vmatpush1.bf16.xpose.msra.mxu0 0
        %4625 = vmatprep.subr.bf16.mxu0 0
        %4626 = vmatpush1.bf16.xpose.msra.mxu0 0
        %4627 = vmatprep.subr.bf16.mxu0 0
        %4628 = vmatpush1.bf16.xpose.msra.mxu0 0
        %4629 = vmatprep.subr.bf16.mxu0 0
        %4630 = vmatpush1.bf16.xpose.msra.mxu0 0
        %4631 = vmatprep.subr.bf16.mxu0 0
        %4632 = vmatpush1.bf16.xpose.msra.mxu0 0
        %4633 = vmatprep.subr.bf16.mxu0 0
        %4634 = vmatpush1.bf16.xpose.msra.mxu0 0
        %4635 = vmatprep.subr.bf16.mxu0 0
        %4636 = vmatpush1.bf16.xpose.msra.mxu0 0
        %4637 = vmatprep.subr.bf16.mxu0 0
        %4638 = vmatpush1.bf16.xpose.msra.mxu0 0
        %4639 = vmatprep.subr.bf16.mxu0 0
        %4640 = vmatpush1.bf16.xpose.msra.mxu0 0
        %4641 = vmatprep.subr.bf16.mxu0 0
        %4642 = vmatpush1.bf16.xpose.msra.mxu0 0
        %4643 = vmatprep.mubr.bf16.mxu0 0
        %4644 = vmatmul.mubr.bf16.gmra.mrb[0].mxu0 %v4600
        %v4645 = vpop.f32.mrb[0].mxu0
        %v4646 = vadd.f32 0.0, %v4645
        %v4647 = vpop.f32.mrb[0].mxu0
        %v4648 = vpop.f32.mrb[0].mxu0
        %v4649 = vadd.f32 0.0, %v4648
        %v4650 = vpop.f32.mrb[0].mxu0
        %4651 = vmatprep.mubr.bf16.mxu0 0
        %4652 = vmatmul.mubr.bf16.gmra.mrb[0].mxu0 %v4603
        %v4653 = vpop.f32.mrb[0].mxu0
        %v4654 = vadd.f32 0.0, %v4653
        %v4655 = vpop.f32.mrb[0].mxu0
        %v4656 = vpop.f32.mrb[0].mxu0
        %v4657 = vadd.f32 0.0, %v4656
        %v4658 = vpop.f32.mrb[0].mxu0
        %4659 = vdwg.mxu0
        %v4660 = vsel %vm1484, %v4646, -inf
        %4661 = vmax.xlane.f32.xlu0 %v4660
        %v4662 = vpop.xlane.xlu0 %4661
        %v4663 = vsel %vm1484, %v4649, -inf
        %4664 = vmax.xlane.f32.xlu0 %v4663
        %v4665 = vpop.xlane.xlu0 %4664
        %v4666 = vsel %vm1484, %v4654, -inf
        %4667 = vmax.xlane.f32.xlu0 %v4666
        %v4668 = vpop.xlane.xlu0 %4667
        %v4669 = vsel %vm1484, %v4657, -inf
        %4670 = vmax.xlane.f32.xlu0 %v4669
        %v4671 = vpop.xlane.xlu0 %4670
        %v4672 = vsub.f32 %v4646, %v4662
        %v4673 = vsub.f32 %v4649, %v4665
        %v4674 = vsub.f32 %v4654, %v4668
        %v4675 = vsub.f32 %v4657, %v4671
        %v4676 = vmul.f32 %v4672, 1.442695
        %v4677 = vpow.pop %v4676
        %v4678 = vmul.f32 %v4673, 1.442695
        %v4679 = vpow.pop %v4678
        %v4680 = vmul.f32 %v4674, 1.442695
        %v4681 = vpow.pop %v4680
        %v4682 = vmul.f32 %v4675, 1.442695
        %v4683 = vpow.pop %v4682
        %v4684 = vsel %vm1484, %v4677, 0.0
        %4685 = vadd.xlane.f32.xlu0 %v4684
        %v4686 = vpop.xlane.xlu0 %4685
        %v4687 = vsel %vm1484, %v4679, 0.0
        %4688 = vadd.xlane.f32.xlu0 %v4687
        %v4689 = vpop.xlane.xlu0 %4688
        %v4690 = vsel %vm1484, %v4681, 0.0
        %4691 = vadd.xlane.f32.xlu0 %v4690
        %v4692 = vpop.xlane.xlu0 %4691
        %v4693 = vsel %vm1484, %v4683, 0.0
        %4694 = vadd.xlane.f32.xlu0 %v4693
        %v4695 = vpop.xlane.xlu0 %4694
        %v4696 = vrcp.pop %v4686
        %v4697 = vrcp.pop %v4689
        %v4698 = vrcp.pop %v4692
        %v4699 = vrcp.pop %v4695
        %v4700 = vmul.f32 %v4677, %v4696
        %v4701 = vmul.f32 %v4679, %v4697
        %v4702 = vmul.f32 %v4681, %v4698
        %v4703 = vmul.f32 %v4683, %v4699
        %v4704 = vpack.c.bf16 %v4701, %v4700
        %v4705 = vpack.c.bf16 %v4703, %v4702
        %4708 = vrot.lane.b32.xlu0 %v3667, 96
        %v4709 = vpop.permute.xlu0 %4708
        %4710 = vrot.lane.b32.xlu0 %v3668, 96
        %v4711 = vpop.permute.xlu0 %4710
        %v4715 = vsel %vm1484, %v4704, 0
        %v4718 = vsel %vm1484, %v4705, 0
        %4720 = vmatprep.subr.bf16.mxu0 0
        %4721 = vmatpush1.bf16.msra.mxu0 %v4709
        %4722 = vmatprep.subr.bf16.mxu0 0
        %4723 = vmatpush1.bf16.msra.mxu0 %v4711
        %4724 = vmatprep.subr.bf16.mxu0 0
        %4725 = vmatpush1.bf16.msra.mxu0 0
        %4726 = vmatprep.subr.bf16.mxu0 0
        %4727 = vmatpush1.bf16.msra.mxu0 0
        %4728 = vmatprep.subr.bf16.mxu0 0
        %4729 = vmatpush1.bf16.msra.mxu0 0
        %4730 = vmatprep.subr.bf16.mxu0 0
        %4731 = vmatpush1.bf16.msra.mxu0 0
        %4732 = vmatprep.subr.bf16.mxu0 0
        %4733 = vmatpush1.bf16.msra.mxu0 0
        %4734 = vmatprep.subr.bf16.mxu0 0
        %4735 = vmatpush1.bf16.msra.mxu0 0
        %4736 = vmatprep.subr.bf16.mxu0 0
        %4737 = vmatpush1.bf16.msra.mxu0 0
        %4738 = vmatprep.subr.bf16.mxu0 0
        %4739 = vmatpush1.bf16.msra.mxu0 0
        %4740 = vmatprep.subr.bf16.mxu0 0
        %4741 = vmatpush1.bf16.msra.mxu0 0
        %4742 = vmatprep.subr.bf16.mxu0 0
        %4743 = vmatpush1.bf16.msra.mxu0 0
        %4744 = vmatprep.subr.bf16.mxu0 0
        %4745 = vmatpush1.bf16.msra.mxu0 0
        %4746 = vmatprep.subr.bf16.mxu0 0
        %4747 = vmatpush1.bf16.msra.mxu0 0
        %4748 = vmatprep.subr.bf16.mxu0 0
        %4749 = vmatpush1.bf16.msra.mxu0 0
        %4750 = vmatprep.subr.bf16.mxu0 0
        %4751 = vmatpush1.bf16.msra.mxu0 0
        %4752 = vmatprep.mubr.bf16.mxu0 0
        %4753 = vmatmul.mubr.bf16.gmra.mrb[0].mxu0 %v4715
        %v4754 = vpop.f32.mrb[0].mxu0
        %v4755 = vadd.f32 0.0, %v4754
        %v4756 = vpop.f32.mrb[0].mxu0
        %v4757 = vpop.f32.mrb[0].mxu0
        %v4758 = vadd.f32 0.0, %v4757
        %v4759 = vpop.f32.mrb[0].mxu0
        %4760 = vmatprep.mubr.bf16.mxu0 0
        %4761 = vmatmul.mubr.bf16.gmra.mrb[0].mxu0 %v4718
        %v4762 = vpop.f32.mrb[0].mxu0
        %v4763 = vadd.f32 0.0, %v4762
        %v4764 = vpop.f32.mrb[0].mxu0
        %v4765 = vpop.f32.mrb[0].mxu0
        %v4766 = vadd.f32 0.0, %v4765
        %v4767 = vpop.f32.mrb[0].mxu0
        %4768 = vdwg.mxu0
        %4769 = vrot.lane.b32.xlu0 %v3401, 64
        %v4770 = vpop.permute.xlu0 %4769
        %4771 = vrot.lane.b32.xlu0 %v3402, 64
        %v4772 = vpop.permute.xlu0 %4771
        %4773 = vrot.lane.b32.xlu0 %v3534, 64
        %v4774 = vpop.permute.xlu0 %4773
        %4775 = vrot.lane.b32.xlu0 %v3535, 64
        %v4776 = vpop.permute.xlu0 %4775
        %v4778 = vsel %vm1484, %v4770, 0
        %v4781 = vsel %vm1484, %v4772, 0
        %v4784 = vsel %vm1484, %v4774, 0
        %v4787 = vsel %vm1484, %v4776, 0
        %4789 = vmatprep.subr.bf16.mxu0 0
        %4790 = vmatpush1.bf16.xpose.msra.mxu0 %v4784
        %4791 = vmatprep.subr.bf16.mxu0 0
        %4792 = vmatpush1.bf16.xpose.msra.mxu0 %v4787
        %4793 = vmatprep.subr.bf16.mxu0 0
        %4794 = vmatpush1.bf16.xpose.msra.mxu0 0
        %4795 = vmatprep.subr.bf16.mxu0 0
        %4796 = vmatpush1.bf16.xpose.msra.mxu0 0
        %4797 = vmatprep.subr.bf16.mxu0 0
        %4798 = vmatpush1.bf16.xpose.msra.mxu0 0
        %4799 = vmatprep.subr.bf16.mxu0 0
        %4800 = vmatpush1.bf16.xpose.msra.mxu0 0
        %4801 = vmatprep.subr.bf16.mxu0 0
        %4802 = vmatpush1.bf16.xpose.msra.mxu0 0
        %4803 = vmatprep.subr.bf16.mxu0 0
        %4804 = vmatpush1.bf16.xpose.msra.mxu0 0
        %4805 = vmatprep.subr.bf16.mxu0 0
        %4806 = vmatpush1.bf16.xpose.msra.mxu0 0
        %4807 = vmatprep.subr.bf16.mxu0 0
        %4808 = vmatpush1.bf16.xpose.msra.mxu0 0
        %4809 = vmatprep.subr.bf16.mxu0 0
        %4810 = vmatpush1.bf16.xpose.msra.mxu0 0
        %4811 = vmatprep.subr.bf16.mxu0 0
        %4812 = vmatpush1.bf16.xpose.msra.mxu0 0
        %4813 = vmatprep.subr.bf16.mxu0 0
        %4814 = vmatpush1.bf16.xpose.msra.mxu0 0
        %4815 = vmatprep.subr.bf16.mxu0 0
        %4816 = vmatpush1.bf16.xpose.msra.mxu0 0
        %4817 = vmatprep.subr.bf16.mxu0 0
        %4818 = vmatpush1.bf16.xpose.msra.mxu0 0
        %4819 = vmatprep.subr.bf16.mxu0 0
        %4820 = vmatpush1.bf16.xpose.msra.mxu0 0
        %4821 = vmatprep.mubr.bf16.mxu0 0
        %4822 = vmatmul.mubr.bf16.gmra.mrb[0].mxu0 %v4778
        %v4823 = vpop.f32.mrb[0].mxu0
        %v4824 = vadd.f32 0.0, %v4823
        %v4825 = vpop.f32.mrb[0].mxu0
        %v4826 = vpop.f32.mrb[0].mxu0
        %v4827 = vadd.f32 0.0, %v4826
        %v4828 = vpop.f32.mrb[0].mxu0
        %4829 = vmatprep.mubr.bf16.mxu0 0
        %4830 = vmatmul.mubr.bf16.gmra.mrb[0].mxu0 %v4781
        %v4831 = vpop.f32.mrb[0].mxu0
        %v4832 = vadd.f32 0.0, %v4831
        %v4833 = vpop.f32.mrb[0].mxu0
        %v4834 = vpop.f32.mrb[0].mxu0
        %v4835 = vadd.f32 0.0, %v4834
        %v4836 = vpop.f32.mrb[0].mxu0
        %4837 = vdwg.mxu0
        %v4838 = vsel %vm1484, %v4824, -inf
        %4839 = vmax.xlane.f32.xlu0 %v4838
        %v4840 = vpop.xlane.xlu0 %4839
        %v4841 = vsel %vm1484, %v4827, -inf
        %4842 = vmax.xlane.f32.xlu0 %v4841
        %v4843 = vpop.xlane.xlu0 %4842
        %v4844 = vsel %vm1484, %v4832, -inf
        %4845 = vmax.xlane.f32.xlu0 %v4844
        %v4846 = vpop.xlane.xlu0 %4845
        %v4847 = vsel %vm1484, %v4835, -inf
        %4848 = vmax.xlane.f32.xlu0 %v4847
        %v4849 = vpop.xlane.xlu0 %4848
        %v4850 = vsub.f32 %v4824, %v4840
        %v4851 = vsub.f32 %v4827, %v4843
        %v4852 = vsub.f32 %v4832, %v4846
        %v4853 = vsub.f32 %v4835, %v4849
        %v4854 = vmul.f32 %v4850, 1.442695
        %v4855 = vpow.pop %v4854
        %v4856 = vmul.f32 %v4851, 1.442695
        %v4857 = vpow.pop %v4856
        %v4858 = vmul.f32 %v4852, 1.442695
        %v4859 = vpow.pop %v4858
        %v4860 = vmul.f32 %v4853, 1.442695
        %v4861 = vpow.pop %v4860
        %v4862 = vsel %vm1484, %v4855, 0.0
        %4863 = vadd.xlane.f32.xlu0 %v4862
        %v4864 = vpop.xlane.xlu0 %4863
        %v4865 = vsel %vm1484, %v4857, 0.0
        %4866 = vadd.xlane.f32.xlu0 %v4865
        %v4867 = vpop.xlane.xlu0 %4866
        %v4868 = vsel %vm1484, %v4859, 0.0
        %4869 = vadd.xlane.f32.xlu0 %v4868
        %v4870 = vpop.xlane.xlu0 %4869
        %v4871 = vsel %vm1484, %v4861, 0.0
        %4872 = vadd.xlane.f32.xlu0 %v4871
        %v4873 = vpop.xlane.xlu0 %4872
        %v4874 = vrcp.pop %v4864
        %v4875 = vrcp.pop %v4867
        %v4876 = vrcp.pop %v4870
        %v4877 = vrcp.pop %v4873
        %v4878 = vmul.f32 %v4855, %v4874
        %v4879 = vmul.f32 %v4857, %v4875
        %v4880 = vmul.f32 %v4859, %v4876
        %v4881 = vmul.f32 %v4861, %v4877
        %v4882 = vpack.c.bf16 %v4879, %v4878
        %v4883 = vpack.c.bf16 %v4881, %v4880
        %4884 = vrot.lane.b32.xlu0 %v3667, 64
        %v4885 = vpop.permute.xlu0 %4884
        %4886 = vrot.lane.b32.xlu0 %v3668, 64
        %v4887 = vpop.permute.xlu0 %4886
        %v4891 = vsel %vm1484, %v4882, 0
        %v4894 = vsel %vm1484, %v4883, 0
        %4896 = vmatprep.subr.bf16.mxu0 0
        %4897 = vmatpush1.bf16.msra.mxu0 %v4885
        %4898 = vmatprep.subr.bf16.mxu0 0
        %4899 = vmatpush1.bf16.msra.mxu0 %v4887
        %4900 = vmatprep.subr.bf16.mxu0 0
        %4901 = vmatpush1.bf16.msra.mxu0 0
        %4902 = vmatprep.subr.bf16.mxu0 0
        %4903 = vmatpush1.bf16.msra.mxu0 0
        %4904 = vmatprep.subr.bf16.mxu0 0
        %4905 = vmatpush1.bf16.msra.mxu0 0
        %4906 = vmatprep.subr.bf16.mxu0 0
        %4907 = vmatpush1.bf16.msra.mxu0 0
        %4908 = vmatprep.subr.bf16.mxu0 0
        %4909 = vmatpush1.bf16.msra.mxu0 0
        %4910 = vmatprep.subr.bf16.mxu0 0
        %4911 = vmatpush1.bf16.msra.mxu0 0
        %4912 = vmatprep.subr.bf16.mxu0 0
        %4913 = vmatpush1.bf16.msra.mxu0 0
        %4914 = vmatprep.subr.bf16.mxu0 0
        %4915 = vmatpush1.bf16.msra.mxu0 0
        %4916 = vmatprep.subr.bf16.mxu0 0
        %4917 = vmatpush1.bf16.msra.mxu0 0
        %4918 = vmatprep.subr.bf16.mxu0 0
        %4919 = vmatpush1.bf16.msra.mxu0 0
        %4920 = vmatprep.subr.bf16.mxu0 0
        %4921 = vmatpush1.bf16.msra.mxu0 0
        %4922 = vmatprep.subr.bf16.mxu0 0
        %4923 = vmatpush1.bf16.msra.mxu0 0
        %4924 = vmatprep.subr.bf16.mxu0 0
        %4925 = vmatpush1.bf16.msra.mxu0 0
        %4926 = vmatprep.subr.bf16.mxu0 0
        %4927 = vmatpush1.bf16.msra.mxu0 0
        %4928 = vmatprep.mubr.bf16.mxu0 0
        %4929 = vmatmul.mubr.bf16.gmra.mrb[0].mxu0 %v4891
        %v4930 = vpop.f32.mrb[0].mxu0
        %v4931 = vadd.f32 0.0, %v4930
        %v4932 = vpop.f32.mrb[0].mxu0
        %v4933 = vpop.f32.mrb[0].mxu0
        %v4934 = vadd.f32 0.0, %v4933
        %v4935 = vpop.f32.mrb[0].mxu0
        %4936 = vmatprep.mubr.bf16.mxu0 0
        %4937 = vmatmul.mubr.bf16.gmra.mrb[0].mxu0 %v4894
        %v4938 = vpop.f32.mrb[0].mxu0
        %v4939 = vadd.f32 0.0, %v4938
        %v4940 = vpop.f32.mrb[0].mxu0
        %v4941 = vpop.f32.mrb[0].mxu0
        %v4942 = vadd.f32 0.0, %v4941
        %v4943 = vpop.f32.mrb[0].mxu0
        %4944 = vdwg.mxu0
        %4945 = vrot.lane.b32.xlu0 %v3401, 32
        %v4946 = vpop.permute.xlu0 %4945
        %4947 = vrot.lane.b32.xlu0 %v3402, 32
        %v4948 = vpop.permute.xlu0 %4947
        %4949 = vrot.lane.b32.xlu0 %v3534, 32
        %v4950 = vpop.permute.xlu0 %4949
        %4951 = vrot.lane.b32.xlu0 %v3535, 32
        %v4952 = vpop.permute.xlu0 %4951
        %v4954 = vsel %vm1484, %v4946, 0
        %v4957 = vsel %vm1484, %v4948, 0
        %v4960 = vsel %vm1484, %v4950, 0
        %v4963 = vsel %vm1484, %v4952, 0
        %4965 = vmatprep.subr.bf16.mxu0 0
        %4966 = vmatpush1.bf16.xpose.msra.mxu0 %v4960
        %4967 = vmatprep.subr.bf16.mxu0 0
        %4968 = vmatpush1.bf16.xpose.msra.mxu0 %v4963
        %4969 = vmatprep.subr.bf16.mxu0 0
        %4970 = vmatpush1.bf16.xpose.msra.mxu0 0
        %4971 = vmatprep.subr.bf16.mxu0 0
        %4972 = vmatpush1.bf16.xpose.msra.mxu0 0
        %4973 = vmatprep.subr.bf16.mxu0 0
        %4974 = vmatpush1.bf16.xpose.msra.mxu0 0
        %4975 = vmatprep.subr.bf16.mxu0 0
        %4976 = vmatpush1.bf16.xpose.msra.mxu0 0
        %4977 = vmatprep.subr.bf16.mxu0 0
        %4978 = vmatpush1.bf16.xpose.msra.mxu0 0
        %4979 = vmatprep.subr.bf16.mxu0 0
        %4980 = vmatpush1.bf16.xpose.msra.mxu0 0
        %4981 = vmatprep.subr.bf16.mxu0 0
        %4982 = vmatpush1.bf16.xpose.msra.mxu0 0
        %4983 = vmatprep.subr.bf16.mxu0 0
        %4984 = vmatpush1.bf16.xpose.msra.mxu0 0
        %4985 = vmatprep.subr.bf16.mxu0 0
        %4986 = vmatpush1.bf16.xpose.msra.mxu0 0
        %4987 = vmatprep.subr.bf16.mxu0 0
        %4988 = vmatpush1.bf16.xpose.msra.mxu0 0
        %4989 = vmatprep.subr.bf16.mxu0 0
        %4990 = vmatpush1.bf16.xpose.msra.mxu0 0
        %4991 = vmatprep.subr.bf16.mxu0 0
        %4992 = vmatpush1.bf16.xpose.msra.mxu0 0
        %4993 = vmatprep.subr.bf16.mxu0 0
        %4994 = vmatpush1.bf16.xpose.msra.mxu0 0
        %4995 = vmatprep.subr.bf16.mxu0 0
        %4996 = vmatpush1.bf16.xpose.msra.mxu0 0
        %4997 = vmatprep.mubr.bf16.mxu0 0
        %4998 = vmatmul.mubr.bf16.gmra.mrb[0].mxu0 %v4954
        %v4999 = vpop.f32.mrb[0].mxu0
        %v5000 = vadd.f32 0.0, %v4999
        %v5001 = vpop.f32.mrb[0].mxu0
        %v5002 = vpop.f32.mrb[0].mxu0
        %v5003 = vadd.f32 0.0, %v5002
        %v5004 = vpop.f32.mrb[0].mxu0
        %5005 = vmatprep.mubr.bf16.mxu0 0
        %5006 = vmatmul.mubr.bf16.gmra.mrb[0].mxu0 %v4957
        %v5007 = vpop.f32.mrb[0].mxu0
        %v5008 = vadd.f32 0.0, %v5007
        %v5009 = vpop.f32.mrb[0].mxu0
        %v5010 = vpop.f32.mrb[0].mxu0
        %v5011 = vadd.f32 0.0, %v5010
        %v5012 = vpop.f32.mrb[0].mxu0
        %5013 = vdwg.mxu0
        %v5014 = vsel %vm1484, %v5000, -inf
        %5015 = vmax.xlane.f32.xlu0 %v5014
        %v5016 = vpop.xlane.xlu0 %5015
        %v5017 = vsel %vm1484, %v5003, -inf
        %5018 = vmax.xlane.f32.xlu0 %v5017
        %v5019 = vpop.xlane.xlu0 %5018
        %v5020 = vsel %vm1484, %v5008, -inf
        %5021 = vmax.xlane.f32.xlu0 %v5020
        %v5022 = vpop.xlane.xlu0 %5021
        %v5023 = vsel %vm1484, %v5011, -inf
        %5024 = vmax.xlane.f32.xlu0 %v5023
        %v5025 = vpop.xlane.xlu0 %5024
        %v5026 = vsub.f32 %v5000, %v5016
        %v5027 = vsub.f32 %v5003, %v5019
        %v5028 = vsub.f32 %v5008, %v5022
        %v5029 = vsub.f32 %v5011, %v5025
        %v5030 = vmul.f32 %v5026, 1.442695
        %v5031 = vpow.pop %v5030
        %v5032 = vmul.f32 %v5027, 1.442695
        %v5033 = vpow.pop %v5032
        %v5034 = vmul.f32 %v5028, 1.442695
        %v5035 = vpow.pop %v5034
        %v5036 = vmul.f32 %v5029, 1.442695
        %v5037 = vpow.pop %v5036
        %v5038 = vsel %vm1484, %v5031, 0.0
        %5039 = vadd.xlane.f32.xlu0 %v5038
        %v5040 = vpop.xlane.xlu0 %5039
        %v5041 = vsel %vm1484, %v5033, 0.0
        %5042 = vadd.xlane.f32.xlu0 %v5041
        %v5043 = vpop.xlane.xlu0 %5042
        %v5044 = vsel %vm1484, %v5035, 0.0
        %5045 = vadd.xlane.f32.xlu0 %v5044
        %v5046 = vpop.xlane.xlu0 %5045
        %v5047 = vsel %vm1484, %v5037, 0.0
        %5048 = vadd.xlane.f32.xlu0 %v5047
        %v5049 = vpop.xlane.xlu0 %5048
        %v5050 = vrcp.pop %v5040
        %v5051 = vrcp.pop %v5043
        %v5052 = vrcp.pop %v5046
        %v5053 = vrcp.pop %v5049
        %v5054 = vmul.f32 %v5031, %v5050
        %v5055 = vmul.f32 %v5033, %v5051
        %v5056 = vmul.f32 %v5035, %v5052
        %v5057 = vmul.f32 %v5037, %v5053
        %v5058 = vpack.c.bf16 %v5055, %v5054
        %v5059 = vpack.c.bf16 %v5057, %v5056
        %5060 = vrot.lane.b32.xlu0 %v3667, 32
        %v5061 = vpop.permute.xlu0 %5060
        %5062 = vrot.lane.b32.xlu0 %v3668, 32
        %v5063 = vpop.permute.xlu0 %5062
        %v5067 = vsel %vm1484, %v5058, 0
        %v5070 = vsel %vm1484, %v5059, 0
        %5072 = vmatprep.subr.bf16.mxu0 0
        %5073 = vmatpush1.bf16.msra.mxu0 %v5061
        %5074 = vmatprep.subr.bf16.mxu0 0
        %5075 = vmatpush1.bf16.msra.mxu0 %v5063
        %5076 = vmatprep.subr.bf16.mxu0 0
        %5077 = vmatpush1.bf16.msra.mxu0 0
        %5078 = vmatprep.subr.bf16.mxu0 0
        %5079 = vmatpush1.bf16.msra.mxu0 0
        %5080 = vmatprep.subr.bf16.mxu0 0
        %5081 = vmatpush1.bf16.msra.mxu0 0
        %5082 = vmatprep.subr.bf16.mxu0 0
        %5083 = vmatpush1.bf16.msra.mxu0 0
        %5084 = vmatprep.subr.bf16.mxu0 0
        %5085 = vmatpush1.bf16.msra.mxu0 0
        %5086 = vmatprep.subr.bf16.mxu0 0
        %5087 = vmatpush1.bf16.msra.mxu0 0
        %5088 = vmatprep.subr.bf16.mxu0 0
        %5089 = vmatpush1.bf16.msra.mxu0 0
        %5090 = vmatprep.subr.bf16.mxu0 0
        %5091 = vmatpush1.bf16.msra.mxu0 0
        %5092 = vmatprep.subr.bf16.mxu0 0
        %5093 = vmatpush1.bf16.msra.mxu0 0
        %5094 = vmatprep.subr.bf16.mxu0 0
        %5095 = vmatpush1.bf16.msra.mxu0 0
        %5096 = vmatprep.subr.bf16.mxu0 0
        %5097 = vmatpush1.bf16.msra.mxu0 0
        %5098 = vmatprep.subr.bf16.mxu0 0
        %5099 = vmatpush1.bf16.msra.mxu0 0
        %5100 = vmatprep.subr.bf16.mxu0 0
        %5101 = vmatpush1.bf16.msra.mxu0 0
        %5102 = vmatprep.subr.bf16.mxu0 0
        %5103 = vmatpush1.bf16.msra.mxu0 0
        %5104 = vmatprep.mubr.bf16.mxu0 0
        %5105 = vmatmul.mubr.bf16.gmra.mrb[0].mxu0 %v5067
        %v5106 = vpop.f32.mrb[0].mxu0
        %v5107 = vadd.f32 0.0, %v5106
        %v5108 = vpop.f32.mrb[0].mxu0
        %v5109 = vpop.f32.mrb[0].mxu0
        %v5110 = vadd.f32 0.0, %v5109
        %v5111 = vpop.f32.mrb[0].mxu0
        %5112 = vmatprep.mubr.bf16.mxu0 0
        %5113 = vmatmul.mubr.bf16.gmra.mrb[0].mxu0 %v5070
        %v5114 = vpop.f32.mrb[0].mxu0
        %v5115 = vadd.f32 0.0, %v5114
        %v5116 = vpop.f32.mrb[0].mxu0
        %v5117 = vpop.f32.mrb[0].mxu0
        %v5118 = vadd.f32 0.0, %v5117
        %v5119 = vpop.f32.mrb[0].mxu0
        %5120 = vdwg.mxu0
        %5125 = vrot.lane.b32.xlu0 %v4755, 32
        %v5126 = vpop.permute.xlu0 %5125
        %5127 = vrot.lane.b32.xlu0 %v4758, 32
        %v5128 = vpop.permute.xlu0 %5127
        %5129 = vrot.lane.b32.xlu0 %v4763, 32
        %v5130 = vpop.permute.xlu0 %5129
        %5131 = vrot.lane.b32.xlu0 %v4766, 32
        %v5132 = vpop.permute.xlu0 %5131
        %5141 = vrot.lane.b32.xlu0 %v4931, 64
        %v5142 = vpop.permute.xlu0 %5141
        %5143 = vrot.lane.b32.xlu0 %v4934, 64
        %v5144 = vpop.permute.xlu0 %5143
        %5145 = vrot.lane.b32.xlu0 %v4939, 64
        %v5146 = vpop.permute.xlu0 %5145
        %5147 = vrot.lane.b32.xlu0 %v4942, 64
        %v5148 = vpop.permute.xlu0 %5147
        %5157 = vrot.lane.b32.xlu0 %v5107, 96
        %v5158 = vpop.permute.xlu0 %5157
        %5159 = vrot.lane.b32.xlu0 %v5110, 96
        %v5160 = vpop.permute.xlu0 %5159
        %5161 = vrot.lane.b32.xlu0 %v5115, 96
        %v5162 = vpop.permute.xlu0 %5161
        %5163 = vrot.lane.b32.xlu0 %v5118, 96
        %v5164 = vpop.permute.xlu0 %5163
        %v5169 = vsel %vm1484, %v4573, %v5126
        %v5170 = vsel %vm1484, %v4576, %v5128
        %v5171 = vsel %vm1484, %v4581, %v5130
        %v5172 = vsel %vm1484, %v4584, %v5132
        %v5173 = vsel %vm2233, %v5169, %v5142
        %v5174 = vsel %vm2233, %v5170, %v5144
        %v5175 = vsel %vm2233, %v5171, %v5146
        %v5176 = vsel %vm2233, %v5172, %v5148
        %v5177 = vsel %vm2238, %v5173, %v5158
        %v5178 = vsel %vm2238, %v5174, %v5160
        %v5179 = vsel %vm2238, %v5175, %v5162
        %v5180 = vsel %vm2238, %v5176, %v5164
        %v5181 = vpack.c.bf16 %v4422, %v4421
        %v5182 = vpack.c.bf16 %v4424, %v4423
        %v5183 = vpack.c.bf16 %v5178, %v5177
        %v5184 = vpack.c.bf16 %v5180, %v5179
        %v5185 = vld [vmem:[%s1012] sm:$0xf]
        %v5186 = vld [vmem:[%s1012 + $0x4] sm:$0xf]
        %v5187 = vld [vmem:[%s1012 + $0x8] sm:$0xf]
        %v5188 = vld [vmem:[%s1012 + $0xc] sm:$0xf]
        %v5189 = vld [vmem:[%s1012 + $0x10] sm:$0xf]
        %v5190 = vld [vmem:[%s1012 + $0x14] sm:$0xf]
        %v5191 = vld [vmem:[%s1012 + $0x18] sm:$0xf]
        %v5192 = vld [vmem:[%s1012 + $0x1c] sm:$0xf]
        %v5193 = vld [vmem:[%s1012 + $0x20] sm:$0xf]
        %v5194 = vld [vmem:[%s1012 + $0x24] sm:$0xf]
        %v5195 = vld [vmem:[%s1012 + $0x28] sm:$0xf]
        %v5196 = vld [vmem:[%s1012 + $0x2c] sm:$0xf]
        %v5197 = vld [vmem:[%s1012 + $0x30] sm:$0xf]
        %v5198 = vld [vmem:[%s1012 + $0x34] sm:$0xf]
        %v5199 = vld [vmem:[%s1012 + $0x38] sm:$0xf]
        %v5200 = vld [vmem:[%s1012 + $0x3c] sm:$0xf]
        %v5201 = vld [vmem:[%s1015] sm:$0x1]
        %v5203 = vlaneseq
        %v5204 = vshrl.u32 %v5203, 7
        %v5205 = vsub.s32 0, %v5204
        %v5206 = vrot.slane %v5201, %v5205
        %v5224 = vunpack.c.l.b16 %v5185
        %v5225 = vunpack.c.l.b16 %v5186
        %v5226 = vunpack.c.l.b16 %v5187
        %v5227 = vunpack.c.l.b16 %v5188
        %v5228 = vunpack.c.l.b16 %v5189
        %v5229 = vunpack.c.l.b16 %v5190
        %v5230 = vunpack.c.l.b16 %v5191
        %v5231 = vunpack.c.l.b16 %v5192
        %v5232 = vunpack.c.l.b16 %v5193
        %v5233 = vunpack.c.l.b16 %v5194
        %v5234 = vunpack.c.l.b16 %v5195
        %v5235 = vunpack.c.l.b16 %v5196
        %v5236 = vunpack.c.l.b16 %v5197
        %v5237 = vunpack.c.l.b16 %v5198
        %v5238 = vunpack.c.l.b16 %v5199
        %v5239 = vunpack.c.l.b16 %v5200
        %v5240 = vpack.c.b16 %v5225, %v5224
        %v5241 = vpack.c.b16 %v5227, %v5226
        %v5242 = vpack.c.b16 %v5229, %v5228
        %v5243 = vpack.c.b16 %v5231, %v5230
        %v5244 = vpack.c.b16 %v5233, %v5232
        %v5245 = vpack.c.b16 %v5235, %v5234
        %v5246 = vpack.c.b16 %v5237, %v5236
        %v5247 = vpack.c.b16 %v5239, %v5238
        %5256 = vmatprep.subr.bf16.mxu0 0
        %5257 = vmatpush1.bf16.msra.mxu0 %v5240
        %5258 = vmatprep.subr.bf16.mxu0 0
        %5259 = vmatpush1.bf16.msra.mxu0 %v5241
        %5260 = vmatprep.subr.bf16.mxu0 0
        %5261 = vmatpush1.bf16.msra.mxu0 %v5242
        %5262 = vmatprep.subr.bf16.mxu0 0
        %5263 = vmatpush1.bf16.msra.mxu0 %v5243
        %5264 = vmatprep.subr.bf16.mxu0 0
        %5265 = vmatpush1.bf16.msra.mxu0 %v5244
        %5266 = vmatprep.subr.bf16.mxu0 0
        %5267 = vmatpush1.bf16.msra.mxu0 %v5245
        %5268 = vmatprep.subr.bf16.mxu0 0
        %5269 = vmatpush1.bf16.msra.mxu0 %v5246
        %5270 = vmatprep.subr.bf16.mxu0 0
        %5271 = vmatpush1.bf16.msra.mxu0 %v5247
        %5272 = vmatprep.subr.bf16.mxu0 0
        %5273 = vmatpush1.bf16.msra.mxu0 0
        %5274 = vmatprep.subr.bf16.mxu0 0
        %5275 = vmatpush1.bf16.msra.mxu0 0
        %5276 = vmatprep.subr.bf16.mxu0 0
        %5277 = vmatpush1.bf16.msra.mxu0 0
        %5278 = vmatprep.subr.bf16.mxu0 0
        %5279 = vmatpush1.bf16.msra.mxu0 0
        %5280 = vmatprep.subr.bf16.mxu0 0
        %5281 = vmatpush1.bf16.msra.mxu0 0
        %5282 = vmatprep.subr.bf16.mxu0 0
        %5283 = vmatpush1.bf16.msra.mxu0 0
        %5284 = vmatprep.subr.bf16.mxu0 0
        %5285 = vmatpush1.bf16.msra.mxu0 0
        %5286 = vmatprep.subr.bf16.mxu0 0
        %5287 = vmatpush1.bf16.msra.mxu0 0
        %5288 = vmatprep.mubr.bf16.mxu0 0
        %5289 = vmatmul.mubr.bf16.gmra.mrb[0].mxu0 %v5181
        %v5290 = vpop.f32.mrb[0].mxu0
        %v5291 = vadd.f32 %v5206, %v5290
        %v5292 = vpop.f32.mrb[0].mxu0
        %v5293 = vpop.f32.mrb[0].mxu0
        %v5294 = vadd.f32 %v5206, %v5293
        %v5295 = vpop.f32.mrb[0].mxu0
        %5296 = vmatprep.mubr.bf16.mxu0 0
        %5297 = vmatmul.mubr.bf16.gmra.mrb[0].mxu0 %v5182
        %v5298 = vpop.f32.mrb[0].mxu0
        %v5299 = vadd.f32 %v5206, %v5298
        %v5300 = vpop.f32.mrb[0].mxu0
        %v5301 = vpop.f32.mrb[0].mxu0
        %v5302 = vadd.f32 %v5206, %v5301
        %v5303 = vpop.f32.mrb[0].mxu0
        %5304 = vmatprep.mubr.bf16.mxu0 0
        %5305 = vmatmul.mubr.bf16.gmra.mrb[0].mxu0 %v5183
        %v5306 = vpop.f32.mrb[0].mxu0
        %v5307 = vadd.f32 %v5206, %v5306
        %v5308 = vpop.f32.mrb[0].mxu0
        %v5309 = vpop.f32.mrb[0].mxu0
        %v5310 = vadd.f32 %v5206, %v5309
        %v5311 = vpop.f32.mrb[0].mxu0
        %5312 = vmatprep.mubr.bf16.mxu0 0
        %5313 = vmatmul.mubr.bf16.gmra.mrb[0].mxu0 %v5184
        %v5314 = vpop.f32.mrb[0].mxu0
        %v5315 = vadd.f32 %v5206, %v5314
        %v5316 = vpop.f32.mrb[0].mxu0
        %v5317 = vpop.f32.mrb[0].mxu0
        %v5318 = vadd.f32 %v5206, %v5317
        %v5319 = vpop.f32.mrb[0].mxu0
        %5320 = vdwg.mxu0
        %v5321 = vadd.f32 %v5291, %v3258
        %v5322 = vadd.f32 %v5294, %v3259
        %v5323 = vadd.f32 %v5299, %v3260
        %v5324 = vadd.f32 %v5302, %v3261
        %v5325 = vadd.f32 %v5307, %v3262
        %v5326 = vadd.f32 %v5310, %v3263
        %v5327 = vadd.f32 %v5315, %v3264
        %v5328 = vadd.f32 %v5318, %v3265
        %v5329 = vld [vmem:[%s1018] sm:$0x1]
        %v5330 = vld [vmem:[%s1021] sm:$0x1]
        %5331 = vadd.xlane.f32.xlu0 %v5321
        %v5332 = vpop.xlane.xlu0 %5331
        %5333 = vadd.xlane.f32.xlu0 %v5322
        %v5334 = vpop.xlane.xlu0 %5333
        %5335 = vadd.xlane.f32.xlu0 %v5323
        %v5336 = vpop.xlane.xlu0 %5335
        %5337 = vadd.xlane.f32.xlu0 %v5324
        %v5338 = vpop.xlane.xlu0 %5337
        %5339 = vadd.xlane.f32.xlu0 %v5325
        %v5340 = vpop.xlane.xlu0 %5339
        %5341 = vadd.xlane.f32.xlu0 %v5326
        %v5342 = vpop.xlane.xlu0 %5341
        %5343 = vadd.xlane.f32.xlu0 %v5327
        %v5344 = vpop.xlane.xlu0 %5343
        %5345 = vadd.xlane.f32.xlu0 %v5328
        %v5346 = vpop.xlane.xlu0 %5345
        %v5347 = vmul.f32 %v5332, %v3165
        %v5348 = vmul.f32 %v5334, %v3165
        %v5349 = vmul.f32 %v5336, %v3165
        %v5350 = vmul.f32 %v5338, %v3165
        %v5351 = vmul.f32 %v5340, %v3165
        %v5352 = vmul.f32 %v5342, %v3165
        %v5353 = vmul.f32 %v5344, %v3165
        %v5354 = vmul.f32 %v5346, %v3165
        %v5355 = vsub.f32 %v5321, %v5347
        %v5356 = vsub.f32 %v5322, %v5348
        %v5357 = vsub.f32 %v5323, %v5349
        %v5358 = vsub.f32 %v5324, %v5350
        %v5359 = vsub.f32 %v5325, %v5351
        %v5360 = vsub.f32 %v5326, %v5352
        %v5361 = vsub.f32 %v5327, %v5353
        %v5362 = vsub.f32 %v5328, %v5354
        %v5363 = vmul.f32 %v5355, %v5355
        %v5364 = vmul.f32 %v5356, %v5356
        %v5365 = vmul.f32 %v5357, %v5357
        %v5366 = vmul.f32 %v5358, %v5358
        %v5367 = vmul.f32 %v5359, %v5359
        %v5368 = vmul.f32 %v5360, %v5360
        %v5369 = vmul.f32 %v5361, %v5361
        %v5370 = vmul.f32 %v5362, %v5362
        %5371 = vadd.xlane.f32.xlu0 %v5363
        %v5372 = vpop.xlane.xlu0 %5371
        %5373 = vadd.xlane.f32.xlu0 %v5364
        %v5374 = vpop.xlane.xlu0 %5373
        %5375 = vadd.xlane.f32.xlu0 %v5365
        %v5376 = vpop.xlane.xlu0 %5375
        %5377 = vadd.xlane.f32.xlu0 %v5366
        %v5378 = vpop.xlane.xlu0 %5377
        %5379 = vadd.xlane.f32.xlu0 %v5367
        %v5380 = vpop.xlane.xlu0 %5379
        %5381 = vadd.xlane.f32.xlu0 %v5368
        %v5382 = vpop.xlane.xlu0 %5381
        %5383 = vadd.xlane.f32.xlu0 %v5369
        %v5384 = vpop.xlane.xlu0 %5383
        %5385 = vadd.xlane.f32.xlu0 %v5370
        %v5386 = vpop.xlane.xlu0 %5385
        %v5387 = vmul.f32 %v5372, %v3165
        %v5388 = vmul.f32 %v5374, %v3165
        %v5389 = vmul.f32 %v5376, %v3165
        %v5390 = vmul.f32 %v5378, %v3165
        %v5391 = vmul.f32 %v5380, %v3165
        %v5392 = vmul.f32 %v5382, %v3165
        %v5393 = vmul.f32 %v5384, %v3165
        %v5394 = vmul.f32 %v5386, %v3165
        %v5395 = vadd.f32 %v5387, 1e-05
        %v5396 = vadd.f32 %v5388, 1e-05
        %v5397 = vadd.f32 %v5389, 1e-05
        %v5398 = vadd.f32 %v5390, 1e-05
        %v5399 = vadd.f32 %v5391, 1e-05
        %v5400 = vadd.f32 %v5392, 1e-05
        %v5401 = vadd.f32 %v5393, 1e-05
        %v5402 = vadd.f32 %v5394, 1e-05
        %v5403 = vrsqrt.pop %v5395
        %v5404 = vrsqrt.pop %v5396
        %v5405 = vrsqrt.pop %v5397
        %v5406 = vrsqrt.pop %v5398
        %v5407 = vrsqrt.pop %v5399
        %v5408 = vrsqrt.pop %v5400
        %v5409 = vrsqrt.pop %v5401
        %v5410 = vrsqrt.pop %v5402
        %v5411 = vmul.f32 %v5355, %v5403
        %v5412 = vmul.f32 %v5356, %v5404
        %v5413 = vmul.f32 %v5357, %v5405
        %v5414 = vmul.f32 %v5358, %v5406
        %v5415 = vmul.f32 %v5359, %v5407
        %v5416 = vmul.f32 %v5360, %v5408
        %v5417 = vmul.f32 %v5361, %v5409
        %v5418 = vmul.f32 %v5362, %v5410
        %v5420 = vlaneseq
        %v5421 = vshrl.u32 %v5420, 7
        %v5422 = vsub.s32 0, %v5421
        %v5423 = vrot.slane %v5329, %v5422
        %v5425 = vmul.f32 %v5411, %v5423
        %v5426 = vmul.f32 %v5412, %v5423
        %v5427 = vmul.f32 %v5413, %v5423
        %v5428 = vmul.f32 %v5414, %v5423
        %v5429 = vmul.f32 %v5415, %v5423
        %v5430 = vmul.f32 %v5416, %v5423
        %v5431 = vmul.f32 %v5417, %v5423
        %v5432 = vmul.f32 %v5418, %v5423
        %v5434 = vlaneseq
        %v5435 = vshrl.u32 %v5434, 7
        %v5436 = vsub.s32 0, %v5435
        %v5437 = vrot.slane %v5330, %v5436
        %v5439 = vadd.f32 %v5425, %v5437
        %v5440 = vadd.f32 %v5426, %v5437
        %v5441 = vadd.f32 %v5427, %v5437
        %v5442 = vadd.f32 %v5428, %v5437
        %v5443 = vadd.f32 %v5429, %v5437
        %v5444 = vadd.f32 %v5430, %v5437
        %v5445 = vadd.f32 %v5431, %v5437
        %v5446 = vadd.f32 %v5432, %v5437
        %v5447 = vpack.c.bf16 %v5440, %v5439
        %v5448 = vpack.c.bf16 %v5442, %v5441
        %v5449 = vpack.c.bf16 %v5444, %v5443
        %v5450 = vpack.c.bf16 %v5446, %v5445
        %v5451 = vld [vmem:[%s1026] sm:$0xff]
        %v5452 = vld [vmem:[%s1026 + $0x8] sm:$0xff]
        %v5453 = vld [vmem:[%s1026 + $0x10] sm:$0xff]
        %v5454 = vld [vmem:[%s1026 + $0x18] sm:$0xff]
        %v5455 = vld [vmem:[%s1026 + $0x20] sm:$0xff]
        %v5456 = vld [vmem:[%s1026 + $0x28] sm:$0xff]
        %v5457 = vld [vmem:[%s1026 + $0x30] sm:$0xff]
        %v5458 = vld [vmem:[%s1026 + $0x38] sm:$0xff]
        %v5459 = vld [vmem:[%s1026 + $0x40] sm:$0xff]
        %v5460 = vld [vmem:[%s1026 + $0x48] sm:$0xff]
        %v5461 = vld [vmem:[%s1026 + $0x50] sm:$0xff]
        %v5462 = vld [vmem:[%s1026 + $0x58] sm:$0xff]
        %v5463 = vld [vmem:[%s1026 + $0x60] sm:$0xff]
        %v5464 = vld [vmem:[%s1026 + $0x68] sm:$0xff]
        %v5465 = vld [vmem:[%s1026 + $0x70] sm:$0xff]
        %v5466 = vld [vmem:[%s1026 + $0x78] sm:$0xff]
        %v5467 = vld [vmem:[%s1026 + $0x80] sm:$0xff]
        %v5468 = vld [vmem:[%s1026 + $0x88] sm:$0xff]
        %v5469 = vld [vmem:[%s1026 + $0x90] sm:$0xff]
        %v5470 = vld [vmem:[%s1026 + $0x98] sm:$0xff]
        %v5471 = vld [vmem:[%s1026 + $0xa0] sm:$0xff]
        %v5472 = vld [vmem:[%s1026 + $0xa8] sm:$0xff]
        %v5473 = vld [vmem:[%s1026 + $0xb0] sm:$0xff]
        %v5474 = vld [vmem:[%s1026 + $0xb8] sm:$0xff]
        %v5475 = vld [vmem:[%s1026 + $0xc0] sm:$0xff]
        %v5476 = vld [vmem:[%s1026 + $0xc8] sm:$0xff]
        %v5477 = vld [vmem:[%s1026 + $0xd0] sm:$0xff]
        %v5478 = vld [vmem:[%s1026 + $0xd8] sm:$0xff]
        %v5479 = vld [vmem:[%s1026 + $0xe0] sm:$0xff]
        %v5480 = vld [vmem:[%s1026 + $0xe8] sm:$0xff]
        %v5481 = vld [vmem:[%s1026 + $0xf0] sm:$0xff]
        %v5482 = vld [vmem:[%s1026 + $0xf8] sm:$0xff]
        %v5483 = vld [vmem:[%s1030] sm:$0xf]
        %v5485 = vlaneseq
        %v5486 = vshrl.u32 %v5485, 7
        %v5487 = vsub.s32 0, %v5486
        %v5488 = vrot.slane %v5483, %v5487
        %v5489 = vlaneseq
        %v5490 = vshrl.u32 %v5489, 7
        %v5491 = vsub.s32 1, %v5490
        %v5492 = vrot.slane %v5483, %v5491
        %v5493 = vlaneseq
        %v5494 = vshrl.u32 %v5493, 7
        %v5495 = vsub.s32 2, %v5494
        %v5496 = vrot.slane %v5483, %v5495
        %v5497 = vlaneseq
        %v5498 = vshrl.u32 %v5497, 7
        %v5499 = vsub.s32 3, %v5498
        %v5500 = vrot.slane %v5483, %v5499
        %v5537 = vunpack.c.l.b16 %v5451
        %v5538 = vunpack.c.h.b16 %v5451
        %v5539 = vunpack.c.l.b16 %v5452
        %v5540 = vunpack.c.h.b16 %v5452
        %v5541 = vunpack.c.l.b16 %v5453
        %v5542 = vunpack.c.h.b16 %v5453
        %v5543 = vunpack.c.l.b16 %v5454
        %v5544 = vunpack.c.h.b16 %v5454
        %v5545 = vunpack.c.l.b16 %v5455
        %v5546 = vunpack.c.h.b16 %v5455
        %v5547 = vunpack.c.l.b16 %v5456
        %v5548 = vunpack.c.h.b16 %v5456
        %v5549 = vunpack.c.l.b16 %v5457
        %v5550 = vunpack.c.h.b16 %v5457
        %v5551 = vunpack.c.l.b16 %v5458
        %v5552 = vunpack.c.h.b16 %v5458
        %v5553 = vunpack.c.l.b16 %v5459
        %v5554 = vunpack.c.h.b16 %v5459
        %v5555 = vunpack.c.l.b16 %v5460
        %v5556 = vunpack.c.h.b16 %v5460
        %v5557 = vunpack.c.l.b16 %v5461
        %v5558 = vunpack.c.h.b16 %v5461
        %v5559 = vunpack.c.l.b16 %v5462
        %v5560 = vunpack.c.h.b16 %v5462
        %v5561 = vunpack.c.l.b16 %v5463
        %v5562 = vunpack.c.h.b16 %v5463
        %v5563 = vunpack.c.l.b16 %v5464
        %v5564 = vunpack.c.h.b16 %v5464
        %v5565 = vunpack.c.l.b16 %v5465
        %v5566 = vunpack.c.h.b16 %v5465
        %v5567 = vunpack.c.l.b16 %v5466
        %v5568 = vunpack.c.h.b16 %v5466
        %v5569 = vunpack.c.l.b16 %v5467
        %v5570 = vunpack.c.h.b16 %v5467
        %v5571 = vunpack.c.l.b16 %v5468
        %v5572 = vunpack.c.h.b16 %v5468
        %v5573 = vunpack.c.l.b16 %v5469
        %v5574 = vunpack.c.h.b16 %v5469
        %v5575 = vunpack.c.l.b16 %v5470
        %v5576 = vunpack.c.h.b16 %v5470
        %v5577 = vunpack.c.l.b16 %v5471
        %v5578 = vunpack.c.h.b16 %v5471
        %v5579 = vunpack.c.l.b16 %v5472
        %v5580 = vunpack.c.h.b16 %v5472
        %v5581 = vunpack.c.l.b16 %v5473
        %v5582 = vunpack.c.h.b16 %v5473
        %v5583 = vunpack.c.l.b16 %v5474
        %v5584 = vunpack.c.h.b16 %v5474
        %v5585 = vunpack.c.l.b16 %v5475
        %v5586 = vunpack.c.h.b16 %v5475
        %v5587 = vunpack.c.l.b16 %v5476
        %v5588 = vunpack.c.h.b16 %v5476
        %v5589 = vunpack.c.l.b16 %v5477
        %v5590 = vunpack.c.h.b16 %v5477
        %v5591 = vunpack.c.l.b16 %v5478
        %v5592 = vunpack.c.h.b16 %v5478
        %v5593 = vunpack.c.l.b16 %v5479
        %v5594 = vunpack.c.h.b16 %v5479
        %v5595 = vunpack.c.l.b16 %v5480
        %v5596 = vunpack.c.h.b16 %v5480
        %v5597 = vunpack.c.l.b16 %v5481
        %v5598 = vunpack.c.h.b16 %v5481
        %v5599 = vunpack.c.l.b16 %v5482
        %v5600 = vunpack.c.h.b16 %v5482
        %v5601 = vpack.c.b16 %v5541, %v5537
        %v5602 = vpack.c.b16 %v5542, %v5538
        %v5603 = vpack.c.b16 %v5543, %v5539
        %v5604 = vpack.c.b16 %v5544, %v5540
        %v5605 = vpack.c.b16 %v5549, %v5545
        %v5606 = vpack.c.b16 %v5550, %v5546
        %v5607 = vpack.c.b16 %v5551, %v5547
        %v5608 = vpack.c.b16 %v5552, %v5548
        %v5609 = vpack.c.b16 %v5557, %v5553
        %v5610 = vpack.c.b16 %v5558, %v5554
        %v5611 = vpack.c.b16 %v5559, %v5555
        %v5612 = vpack.c.b16 %v5560, %v5556
        %v5613 = vpack.c.b16 %v5565, %v5561
        %v5614 = vpack.c.b16 %v5566, %v5562
        %v5615 = vpack.c.b16 %v5567, %v5563
        %v5616 = vpack.c.b16 %v5568, %v5564
        %v5617 = vpack.c.b16 %v5573, %v5569
        %v5618 = vpack.c.b16 %v5574, %v5570
        %v5619 = vpack.c.b16 %v5575, %v5571
        %v5620 = vpack.c.b16 %v5576, %v5572
        %v5621 = vpack.c.b16 %v5581, %v5577
        %v5622 = vpack.c.b16 %v5582, %v5578
        %v5623 = vpack.c.b16 %v5583, %v5579
        %v5624 = vpack.c.b16 %v5584, %v5580
        %v5625 = vpack.c.b16 %v5589, %v5585
        %v5626 = vpack.c.b16 %v5590, %v5586
        %v5627 = vpack.c.b16 %v5591, %v5587
        %v5628 = vpack.c.b16 %v5592, %v5588
        %v5629 = vpack.c.b16 %v5597, %v5593
        %v5630 = vpack.c.b16 %v5598, %v5594
        %v5631 = vpack.c.b16 %v5599, %v5595
        %v5632 = vpack.c.b16 %v5600, %v5596
        %5665 = vmatprep.subr.bf16.mxu0 %v5602
        %5666 = vmatpush1.bf16.msra.mxu0 %v5601
        %5667 = vmatprep.subr.bf16.mxu0 %v5606
        %5668 = vmatpush1.bf16.msra.mxu0 %v5605
        %5669 = vmatprep.subr.bf16.mxu0 %v5610
        %5670 = vmatpush1.bf16.msra.mxu0 %v5609
        %5671 = vmatprep.subr.bf16.mxu0 %v5614
        %5672 = vmatpush1.bf16.msra.mxu0 %v5613
        %5673 = vmatprep.subr.bf16.mxu0 %v5618
        %5674 = vmatpush1.bf16.msra.mxu0 %v5617
        %5675 = vmatprep.subr.bf16.mxu0 %v5622
        %5676 = vmatpush1.bf16.msra.mxu0 %v5621
        %5677 = vmatprep.subr.bf16.mxu0 %v5626
        %5678 = vmatpush1.bf16.msra.mxu0 %v5625
        %5679 = vmatprep.subr.bf16.mxu0 %v5630
        %5680 = vmatpush1.bf16.msra.mxu0 %v5629
        %5681 = vmatprep.subr.bf16.mxu0 0
        %5682 = vmatpush1.bf16.msra.mxu0 0
        %5683 = vmatprep.subr.bf16.mxu0 0
        %5684 = vmatpush1.bf16.msra.mxu0 0
        %5685 = vmatprep.subr.bf16.mxu0 0
        %5686 = vmatpush1.bf16.msra.mxu0 0
        %5687 = vmatprep.subr.bf16.mxu0 0
        %5688 = vmatpush1.bf16.msra.mxu0 0
        %5689 = vmatprep.subr.bf16.mxu0 0
        %5690 = vmatpush1.bf16.msra.mxu0 0
        %5691 = vmatprep.subr.bf16.mxu0 0
        %5692 = vmatpush1.bf16.msra.mxu0 0
        %5693 = vmatprep.subr.bf16.mxu0 0
        %5694 = vmatpush1.bf16.msra.mxu0 0
        %5695 = vmatprep.subr.bf16.mxu0 0
        %5696 = vmatpush1.bf16.msra.mxu0 0
        %5697 = vmatprep.mubr.bf16.mxu0 0
        %5698 = vmatmul.mubr.bf16.gmra.mrb[0].mxu0 %v5447
        %v5699 = vpop.f32.mrb[0].mxu0
        %v5700 = vadd.f32 %v5488, %v5699
        %v5701 = vpop.f32.mrb[0].mxu0
        %v5702 = vadd.f32 %v5492, %v5701
        %v5703 = vpop.f32.mrb[0].mxu0
        %v5704 = vadd.f32 %v5488, %v5703
        %v5705 = vpop.f32.mrb[0].mxu0
        %v5706 = vadd.f32 %v5492, %v5705
        %5707 = vmatprep.mubr.bf16.mxu0 0
        %5708 = vmatmul.mubr.bf16.gmra.mrb[0].mxu0 %v5448
        %v5709 = vpop.f32.mrb[0].mxu0
        %v5710 = vadd.f32 %v5488, %v5709
        %v5711 = vpop.f32.mrb[0].mxu0
        %v5712 = vadd.f32 %v5492, %v5711
        %v5713 = vpop.f32.mrb[0].mxu0
        %v5714 = vadd.f32 %v5488, %v5713
        %v5715 = vpop.f32.mrb[0].mxu0
        %v5716 = vadd.f32 %v5492, %v5715
        %5717 = vmatprep.mubr.bf16.mxu0 0
        %5718 = vmatmul.mubr.bf16.gmra.mrb[0].mxu0 %v5449
        %v5719 = vpop.f32.mrb[0].mxu0
        %v5720 = vadd.f32 %v5488, %v5719
        %v5721 = vpop.f32.mrb[0].mxu0
        %v5722 = vadd.f32 %v5492, %v5721
        %v5723 = vpop.f32.mrb[0].mxu0
        %v5724 = vadd.f32 %v5488, %v5723
        %v5725 = vpop.f32.mrb[0].mxu0
        %v5726 = vadd.f32 %v5492, %v5725
        %5727 = vmatprep.mubr.bf16.mxu0 0
        %5728 = vmatmul.mubr.bf16.gmra.mrb[0].mxu0 %v5450
        %v5729 = vpop.f32.mrb[0].mxu0
        %v5730 = vadd.f32 %v5488, %v5729
        %v5731 = vpop.f32.mrb[0].mxu0
        %v5732 = vadd.f32 %v5492, %v5731
        %v5733 = vpop.f32.mrb[0].mxu0
        %v5734 = vadd.f32 %v5488, %v5733
        %v5735 = vpop.f32.mrb[0].mxu0
        %v5736 = vadd.f32 %v5492, %v5735
        %5737 = vdwg.mxu0
        %5738 = vmatprep.subr.bf16.mxu0 %v5604
        %5739 = vmatpush1.bf16.msra.mxu0 %v5603
        %5740 = vmatprep.subr.bf16.mxu0 %v5608
        %5741 = vmatpush1.bf16.msra.mxu0 %v5607
        %5742 = vmatprep.subr.bf16.mxu0 %v5612
        %5743 = vmatpush1.bf16.msra.mxu0 %v5611
        %5744 = vmatprep.subr.bf16.mxu0 %v5616
        %5745 = vmatpush1.bf16.msra.mxu0 %v5615
        %5746 = vmatprep.subr.bf16.mxu0 %v5620
        %5747 = vmatpush1.bf16.msra.mxu0 %v5619
        %5748 = vmatprep.subr.bf16.mxu0 %v5624
        %5749 = vmatpush1.bf16.msra.mxu0 %v5623
        %5750 = vmatprep.subr.bf16.mxu0 %v5628
        %5751 = vmatpush1.bf16.msra.mxu0 %v5627
        %5752 = vmatprep.subr.bf16.mxu0 %v5632
        %5753 = vmatpush1.bf16.msra.mxu0 %v5631
        %5754 = vmatprep.subr.bf16.mxu0 0
        %5755 = vmatpush1.bf16.msra.mxu0 0
        %5756 = vmatprep.subr.bf16.mxu0 0
        %5757 = vmatpush1.bf16.msra.mxu0 0
        %5758 = vmatprep.subr.bf16.mxu0 0
        %5759 = vmatpush1.bf16.msra.mxu0 0
        %5760 = vmatprep.subr.bf16.mxu0 0
        %5761 = vmatpush1.bf16.msra.mxu0 0
        %5762 = vmatprep.subr.bf16.mxu0 0
        %5763 = vmatpush1.bf16.msra.mxu0 0
        %5764 = vmatprep.subr.bf16.mxu0 0
        %5765 = vmatpush1.bf16.msra.mxu0 0
        %5766 = vmatprep.subr.bf16.mxu0 0
        %5767 = vmatpush1.bf16.msra.mxu0 0
        %5768 = vmatprep.subr.bf16.mxu0 0
        %5769 = vmatpush1.bf16.msra.mxu0 0
        %5770 = vmatprep.mubr.bf16.mxu0 0
        %5771 = vmatmul.mubr.bf16.gmra.mrb[0].mxu0 %v5447
        %v5772 = vpop.f32.mrb[0].mxu0
        %v5773 = vadd.f32 %v5496, %v5772
        %v5774 = vpop.f32.mrb[0].mxu0
        %v5775 = vadd.f32 %v5500, %v5774
        %v5776 = vpop.f32.mrb[0].mxu0
        %v5777 = vadd.f32 %v5496, %v5776
        %v5778 = vpop.f32.mrb[0].mxu0
        %v5779 = vadd.f32 %v5500, %v5778
        %5780 = vmatprep.mubr.bf16.mxu0 0
        %5781 = vmatmul.mubr.bf16.gmra.mrb[0].mxu0 %v5448
        %v5782 = vpop.f32.mrb[0].mxu0
        %v5783 = vadd.f32 %v5496, %v5782
        %v5784 = vpop.f32.mrb[0].mxu0
        %v5785 = vadd.f32 %v5500, %v5784
        %v5786 = vpop.f32.mrb[0].mxu0
        %v5787 = vadd.f32 %v5496, %v5786
        %v5788 = vpop.f32.mrb[0].mxu0
        %v5789 = vadd.f32 %v5500, %v5788
        %5790 = vmatprep.mubr.bf16.mxu0 0
        %5791 = vmatmul.mubr.bf16.gmra.mrb[0].mxu0 %v5449
        %v5792 = vpop.f32.mrb[0].mxu0
        %v5793 = vadd.f32 %v5496, %v5792
        %v5794 = vpop.f32.mrb[0].mxu0
        %v5795 = vadd.f32 %v5500, %v5794
        %v5796 = vpop.f32.mrb[0].mxu0
        %v5797 = vadd.f32 %v5496, %v5796
        %v5798 = vpop.f32.mrb[0].mxu0
        %v5799 = vadd.f32 %v5500, %v5798
        %5800 = vmatprep.mubr.bf16.mxu0 0
        %5801 = vmatmul.mubr.bf16.gmra.mrb[0].mxu0 %v5450
        %v5802 = vpop.f32.mrb[0].mxu0
        %v5803 = vadd.f32 %v5496, %v5802
        %v5804 = vpop.f32.mrb[0].mxu0
        %v5805 = vadd.f32 %v5500, %v5804
        %v5806 = vpop.f32.mrb[0].mxu0
        %v5807 = vadd.f32 %v5496, %v5806
        %v5808 = vpop.f32.mrb[0].mxu0
        %v5809 = vadd.f32 %v5500, %v5808
        %5810 = vdwg.mxu0
        %v5811 = vmax.f32 %v5700, 0.0
        %v5812 = vmax.f32 %v5702, 0.0
        %v5813 = vmax.f32 %v5773, 0.0
        %v5814 = vmax.f32 %v5775, 0.0
        %v5815 = vmax.f32 %v5704, 0.0
        %v5816 = vmax.f32 %v5706, 0.0
        %v5817 = vmax.f32 %v5777, 0.0
        %v5818 = vmax.f32 %v5779, 0.0
        %v5819 = vmax.f32 %v5710, 0.0
        %v5820 = vmax.f32 %v5712, 0.0
        %v5821 = vmax.f32 %v5783, 0.0
        %v5822 = vmax.f32 %v5785, 0.0
        %v5823 = vmax.f32 %v5714, 0.0
        %v5824 = vmax.f32 %v5716, 0.0
        %v5825 = vmax.f32 %v5787, 0.0
        %v5826 = vmax.f32 %v5789, 0.0
        %v5827 = vmax.f32 %v5720, 0.0
        %v5828 = vmax.f32 %v5722, 0.0
        %v5829 = vmax.f32 %v5793, 0.0
        %v5830 = vmax.f32 %v5795, 0.0
        %v5831 = vmax.f32 %v5724, 0.0
        %v5832 = vmax.f32 %v5726, 0.0
        %v5833 = vmax.f32 %v5797, 0.0
        %v5834 = vmax.f32 %v5799, 0.0
        %v5835 = vmax.f32 %v5730, 0.0
        %v5836 = vmax.f32 %v5732, 0.0
        %v5837 = vmax.f32 %v5803, 0.0
        %v5838 = vmax.f32 %v5805, 0.0
        %v5839 = vmax.f32 %v5734, 0.0
        %v5840 = vmax.f32 %v5736, 0.0
        %v5841 = vmax.f32 %v5807, 0.0
        %v5842 = vmax.f32 %v5809, 0.0
        %v5843 = vpack.c.bf16 %v5815, %v5811
        %v5844 = vpack.c.bf16 %v5816, %v5812
        %v5845 = vpack.c.bf16 %v5817, %v5813
        %v5846 = vpack.c.bf16 %v5818, %v5814
        %v5847 = vpack.c.bf16 %v5823, %v5819
        %v5848 = vpack.c.bf16 %v5824, %v5820
        %v5849 = vpack.c.bf16 %v5825, %v5821
        %v5850 = vpack.c.bf16 %v5826, %v5822
        %v5851 = vpack.c.bf16 %v5831, %v5827
        %v5852 = vpack.c.bf16 %v5832, %v5828
        %v5853 = vpack.c.bf16 %v5833, %v5829
        %v5854 = vpack.c.bf16 %v5834, %v5830
        %v5855 = vpack.c.bf16 %v5839, %v5835
        %v5856 = vpack.c.bf16 %v5840, %v5836
        %v5857 = vpack.c.bf16 %v5841, %v5837
        %v5858 = vpack.c.bf16 %v5842, %v5838
        %v5859 = vld [vmem:[%s1035] sm:$0xf]
        %v5860 = vld [vmem:[%s1035 + $0x4] sm:$0xf]
        %v5861 = vld [vmem:[%s1035 + $0x8] sm:$0xf]
        %v5862 = vld [vmem:[%s1035 + $0xc] sm:$0xf]
        %v5863 = vld [vmem:[%s1035 + $0x10] sm:$0xf]
        %v5864 = vld [vmem:[%s1035 + $0x14] sm:$0xf]
        %v5865 = vld [vmem:[%s1035 + $0x18] sm:$0xf]
        %v5866 = vld [vmem:[%s1035 + $0x1c] sm:$0xf]
        %v5867 = vld [vmem:[%s1035 + $0x20] sm:$0xf]
        %v5868 = vld [vmem:[%s1035 + $0x24] sm:$0xf]
        %v5869 = vld [vmem:[%s1035 + $0x28] sm:$0xf]
        %v5870 = vld [vmem:[%s1035 + $0x2c] sm:$0xf]
        %v5871 = vld [vmem:[%s1035 + $0x30] sm:$0xf]
        %v5872 = vld [vmem:[%s1035 + $0x34] sm:$0xf]
        %v5873 = vld [vmem:[%s1035 + $0x38] sm:$0xf]
        %v5874 = vld [vmem:[%s1035 + $0x3c] sm:$0xf]
        %v5875 = vld [vmem:[%s1035 + $0x40] sm:$0xf]
        %v5876 = vld [vmem:[%s1035 + $0x44] sm:$0xf]
        %v5877 = vld [vmem:[%s1035 + $0x48] sm:$0xf]
        %v5878 = vld [vmem:[%s1035 + $0x4c] sm:$0xf]
        %v5879 = vld [vmem:[%s1035 + $0x50] sm:$0xf]
        %v5880 = vld [vmem:[%s1035 + $0x54] sm:$0xf]
        %v5881 = vld [vmem:[%s1035 + $0x58] sm:$0xf]
        %v5882 = vld [vmem:[%s1035 + $0x5c] sm:$0xf]
        %v5883 = vld [vmem:[%s1035 + $0x60] sm:$0xf]
        %v5884 = vld [vmem:[%s1035 + $0x64] sm:$0xf]
        %v5885 = vld [vmem:[%s1035 + $0x68] sm:$0xf]
        %v5886 = vld [vmem:[%s1035 + $0x6c] sm:$0xf]
        %v5887 = vld [vmem:[%s1035 + $0x70] sm:$0xf]
        %v5888 = vld [vmem:[%s1035 + $0x74] sm:$0xf]
        %v5889 = vld [vmem:[%s1035 + $0x78] sm:$0xf]
        %v5890 = vld [vmem:[%s1035 + $0x7c] sm:$0xf]
        %v5891 = vld [vmem:[%s1035 + $0x80] sm:$0xf]
        %v5892 = vld [vmem:[%s1035 + $0x84] sm:$0xf]
        %v5893 = vld [vmem:[%s1035 + $0x88] sm:$0xf]
        %v5894 = vld [vmem:[%s1035 + $0x8c] sm:$0xf]
        %v5895 = vld [vmem:[%s1035 + $0x90] sm:$0xf]
        %v5896 = vld [vmem:[%s1035 + $0x94] sm:$0xf]
        %v5897 = vld [vmem:[%s1035 + $0x98] sm:$0xf]
        %v5898 = vld [vmem:[%s1035 + $0x9c] sm:$0xf]
        %v5899 = vld [vmem:[%s1035 + $0xa0] sm:$0xf]
        %v5900 = vld [vmem:[%s1035 + $0xa4] sm:$0xf]
        %v5901 = vld [vmem:[%s1035 + $0xa8] sm:$0xf]
        %v5902 = vld [vmem:[%s1035 + $0xac] sm:$0xf]
        %v5903 = vld [vmem:[%s1035 + $0xb0] sm:$0xf]
        %v5904 = vld [vmem:[%s1035 + $0xb4] sm:$0xf]
        %v5905 = vld [vmem:[%s1035 + $0xb8] sm:$0xf]
        %v5906 = vld [vmem:[%s1035 + $0xbc] sm:$0xf]
        %v5907 = vld [vmem:[%s1035 + $0xc0] sm:$0xf]
        %v5908 = vld [vmem:[%s1035 + $0xc4] sm:$0xf]
        %v5909 = vld [vmem:[%s1035 + $0xc8] sm:$0xf]
        %v5910 = vld [vmem:[%s1035 + $0xcc] sm:$0xf]
        %v5911 = vld [vmem:[%s1035 + $0xd0] sm:$0xf]
        %v5912 = vld [vmem:[%s1035 + $0xd4] sm:$0xf]
        %v5913 = vld [vmem:[%s1035 + $0xd8] sm:$0xf]
        %v5914 = vld [vmem:[%s1035 + $0xdc] sm:$0xf]
        %v5915 = vld [vmem:[%s1035 + $0xe0] sm:$0xf]
        %v5916 = vld [vmem:[%s1035 + $0xe4] sm:$0xf]
        %v5917 = vld [vmem:[%s1035 + $0xe8] sm:$0xf]
        %v5918 = vld [vmem:[%s1035 + $0xec] sm:$0xf]
        %v5919 = vld [vmem:[%s1035 + $0xf0] sm:$0xf]
        %v5920 = vld [vmem:[%s1035 + $0xf4] sm:$0xf]
        %v5921 = vld [vmem:[%s1035 + $0xf8] sm:$0xf]
        %v5922 = vld [vmem:[%s1035 + $0xfc] sm:$0xf]
        %v5923 = vld [vmem:[%s1038] sm:$0x1]
        %v5925 = vlaneseq
        %v5926 = vshrl.u32 %v5925, 7
        %v5927 = vsub.s32 0, %v5926
        %v5928 = vrot.slane %v5923, %v5927
        %v5994 = vunpack.c.l.b16 %v5859
        %v5995 = vunpack.c.l.b16 %v5860
        %v5996 = vunpack.c.l.b16 %v5861
        %v5997 = vunpack.c.l.b16 %v5862
        %v5998 = vunpack.c.l.b16 %v5863
        %v5999 = vunpack.c.l.b16 %v5864
        %v6000 = vunpack.c.l.b16 %v5865
        %v6001 = vunpack.c.l.b16 %v5866
        %v6002 = vunpack.c.l.b16 %v5867
        %v6003 = vunpack.c.l.b16 %v5868
        %v6004 = vunpack.c.l.b16 %v5869
        %v6005 = vunpack.c.l.b16 %v5870
        %v6006 = vunpack.c.l.b16 %v5871
        %v6007 = vunpack.c.l.b16 %v5872
        %v6008 = vunpack.c.l.b16 %v5873
        %v6009 = vunpack.c.l.b16 %v5874
        %v6010 = vunpack.c.l.b16 %v5875
        %v6011 = vunpack.c.l.b16 %v5876
        %v6012 = vunpack.c.l.b16 %v5877
        %v6013 = vunpack.c.l.b16 %v5878
        %v6014 = vunpack.c.l.b16 %v5879
        %v6015 = vunpack.c.l.b16 %v5880
        %v6016 = vunpack.c.l.b16 %v5881
        %v6017 = vunpack.c.l.b16 %v5882
        %v6018 = vunpack.c.l.b16 %v5883
        %v6019 = vunpack.c.l.b16 %v5884
        %v6020 = vunpack.c.l.b16 %v5885
        %v6021 = vunpack.c.l.b16 %v5886
        %v6022 = vunpack.c.l.b16 %v5887
        %v6023 = vunpack.c.l.b16 %v5888
        %v6024 = vunpack.c.l.b16 %v5889
        %v6025 = vunpack.c.l.b16 %v5890
        %v6026 = vunpack.c.l.b16 %v5891
        %v6027 = vunpack.c.l.b16 %v5892
        %v6028 = vunpack.c.l.b16 %v5893
        %v6029 = vunpack.c.l.b16 %v5894
        %v6030 = vunpack.c.l.b16 %v5895
        %v6031 = vunpack.c.l.b16 %v5896
        %v6032 = vunpack.c.l.b16 %v5897
        %v6033 = vunpack.c.l.b16 %v5898
        %v6034 = vunpack.c.l.b16 %v5899
        %v6035 = vunpack.c.l.b16 %v5900
        %v6036 = vunpack.c.l.b16 %v5901
        %v6037 = vunpack.c.l.b16 %v5902
        %v6038 = vunpack.c.l.b16 %v5903
        %v6039 = vunpack.c.l.b16 %v5904
        %v6040 = vunpack.c.l.b16 %v5905
        %v6041 = vunpack.c.l.b16 %v5906
        %v6042 = vunpack.c.l.b16 %v5907
        %v6043 = vunpack.c.l.b16 %v5908
        %v6044 = vunpack.c.l.b16 %v5909
        %v6045 = vunpack.c.l.b16 %v5910
        %v6046 = vunpack.c.l.b16 %v5911
        %v6047 = vunpack.c.l.b16 %v5912
        %v6048 = vunpack.c.l.b16 %v5913
        %v6049 = vunpack.c.l.b16 %v5914
        %v6050 = vunpack.c.l.b16 %v5915
        %v6051 = vunpack.c.l.b16 %v5916
        %v6052 = vunpack.c.l.b16 %v5917
        %v6053 = vunpack.c.l.b16 %v5918
        %v6054 = vunpack.c.l.b16 %v5919
        %v6055 = vunpack.c.l.b16 %v5920
        %v6056 = vunpack.c.l.b16 %v5921
        %v6057 = vunpack.c.l.b16 %v5922
        %v6058 = vpack.c.b16 %v5995, %v5994
        %v6059 = vpack.c.b16 %v5997, %v5996
        %v6060 = vpack.c.b16 %v5999, %v5998
        %v6061 = vpack.c.b16 %v6001, %v6000
        %v6062 = vpack.c.b16 %v6003, %v6002
        %v6063 = vpack.c.b16 %v6005, %v6004
        %v6064 = vpack.c.b16 %v6007, %v6006
        %v6065 = vpack.c.b16 %v6009, %v6008
        %v6066 = vpack.c.b16 %v6011, %v6010
        %v6067 = vpack.c.b16 %v6013, %v6012
        %v6068 = vpack.c.b16 %v6015, %v6014
        %v6069 = vpack.c.b16 %v6017, %v6016
        %v6070 = vpack.c.b16 %v6019, %v6018
        %v6071 = vpack.c.b16 %v6021, %v6020
        %v6072 = vpack.c.b16 %v6023, %v6022
        %v6073 = vpack.c.b16 %v6025, %v6024
        %v6074 = vpack.c.b16 %v6027, %v6026
        %v6075 = vpack.c.b16 %v6029, %v6028
        %v6076 = vpack.c.b16 %v6031, %v6030
        %v6077 = vpack.c.b16 %v6033, %v6032
        %v6078 = vpack.c.b16 %v6035, %v6034
        %v6079 = vpack.c.b16 %v6037, %v6036
        %v6080 = vpack.c.b16 %v6039, %v6038
        %v6081 = vpack.c.b16 %v6041, %v6040
        %v6082 = vpack.c.b16 %v6043, %v6042
        %v6083 = vpack.c.b16 %v6045, %v6044
        %v6084 = vpack.c.b16 %v6047, %v6046
        %v6085 = vpack.c.b16 %v6049, %v6048
        %v6086 = vpack.c.b16 %v6051, %v6050
        %v6087 = vpack.c.b16 %v6053, %v6052
        %v6088 = vpack.c.b16 %v6055, %v6054
        %v6089 = vpack.c.b16 %v6057, %v6056
        %6122 = vmatprep.subr.bf16.mxu0 0
        %6123 = vmatpush1.bf16.msra.mxu0 %v6058
        %6124 = vmatprep.subr.bf16.mxu0 0
        %6125 = vmatpush1.bf16.msra.mxu0 %v6059
        %6126 = vmatprep.subr.bf16.mxu0 0
        %6127 = vmatpush1.bf16.msra.mxu0 %v6060
        %6128 = vmatprep.subr.bf16.mxu0 0
        %6129 = vmatpush1.bf16.msra.mxu0 %v6061
        %6130 = vmatprep.subr.bf16.mxu0 0
        %6131 = vmatpush1.bf16.msra.mxu0 %v6062
        %6132 = vmatprep.subr.bf16.mxu0 0
        %6133 = vmatpush1.bf16.msra.mxu0 %v6063
        %6134 = vmatprep.subr.bf16.mxu0 0
        %6135 = vmatpush1.bf16.msra.mxu0 %v6064
        %6136 = vmatprep.subr.bf16.mxu0 0
        %6137 = vmatpush1.bf16.msra.mxu0 %v6065
        %6138 = vmatprep.subr.bf16.mxu0 0
        %6139 = vmatpush1.bf16.msra.mxu0 %v6066
        %6140 = vmatprep.subr.bf16.mxu0 0
        %6141 = vmatpush1.bf16.msra.mxu0 %v6067
        %6142 = vmatprep.subr.bf16.mxu0 0
        %6143 = vmatpush1.bf16.msra.mxu0 %v6068
        %6144 = vmatprep.subr.bf16.mxu0 0
        %6145 = vmatpush1.bf16.msra.mxu0 %v6069
        %6146 = vmatprep.subr.bf16.mxu0 0
        %6147 = vmatpush1.bf16.msra.mxu0 %v6070
        %6148 = vmatprep.subr.bf16.mxu0 0
        %6149 = vmatpush1.bf16.msra.mxu0 %v6071
        %6150 = vmatprep.subr.bf16.mxu0 0
        %6151 = vmatpush1.bf16.msra.mxu0 %v6072
        %6152 = vmatprep.subr.bf16.mxu0 0
        %6153 = vmatpush1.bf16.msra.mxu0 %v6073
        %6154 = vmatprep.mubr.bf16.mxu0 %v5844
        %6155 = vmatmul.mubr.bf16.gmra.mrb[0].mxu0 %v5843
        %v6156 = vpop.f32.mrb[0].mxu0
        %v6157 = vadd.f32 %v5928, %v6156
        %v6158 = vpop.f32.mrb[0].mxu0
        %v6159 = vpop.f32.mrb[0].mxu0
        %v6160 = vadd.f32 %v5928, %v6159
        %v6161 = vpop.f32.mrb[0].mxu0
        %6162 = vmatprep.mubr.bf16.mxu0 %v5848
        %6163 = vmatmul.mubr.bf16.gmra.mrb[0].mxu0 %v5847
        %v6164 = vpop.f32.mrb[0].mxu0
        %v6165 = vadd.f32 %v5928, %v6164
        %v6166 = vpop.f32.mrb[0].mxu0
        %v6167 = vpop.f32.mrb[0].mxu0
        %v6168 = vadd.f32 %v5928, %v6167
        %v6169 = vpop.f32.mrb[0].mxu0
        %6170 = vmatprep.mubr.bf16.mxu0 %v5852
        %6171 = vmatmul.mubr.bf16.gmra.mrb[0].mxu0 %v5851
        %v6172 = vpop.f32.mrb[0].mxu0
        %v6173 = vadd.f32 %v5928, %v6172
        %v6174 = vpop.f32.mrb[0].mxu0
        %v6175 = vpop.f32.mrb[0].mxu0
        %v6176 = vadd.f32 %v5928, %v6175
        %v6177 = vpop.f32.mrb[0].mxu0
        %6178 = vmatprep.mubr.bf16.mxu0 %v5856
        %6179 = vmatmul.mubr.bf16.gmra.mrb[0].mxu0 %v5855
        %v6180 = vpop.f32.mrb[0].mxu0
        %v6181 = vadd.f32 %v5928, %v6180
        %v6182 = vpop.f32.mrb[0].mxu0
        %v6183 = vpop.f32.mrb[0].mxu0
        %v6184 = vadd.f32 %v5928, %v6183
        %v6185 = vpop.f32.mrb[0].mxu0
        %6186 = vdwg.mxu0
        %6187 = vmatprep.subr.bf16.mxu0 0
        %6188 = vmatpush1.bf16.msra.mxu0 %v6074
        %6189 = vmatprep.subr.bf16.mxu0 0
        %6190 = vmatpush1.bf16.msra.mxu0 %v6075
        %6191 = vmatprep.subr.bf16.mxu0 0
        %6192 = vmatpush1.bf16.msra.mxu0 %v6076
        %6193 = vmatprep.subr.bf16.mxu0 0
        %6194 = vmatpush1.bf16.msra.mxu0 %v6077
        %6195 = vmatprep.subr.bf16.mxu0 0
        %6196 = vmatpush1.bf16.msra.mxu0 %v6078
        %6197 = vmatprep.subr.bf16.mxu0 0
        %6198 = vmatpush1.bf16.msra.mxu0 %v6079
        %6199 = vmatprep.subr.bf16.mxu0 0
        %6200 = vmatpush1.bf16.msra.mxu0 %v6080
        %6201 = vmatprep.subr.bf16.mxu0 0
        %6202 = vmatpush1.bf16.msra.mxu0 %v6081
        %6203 = vmatprep.subr.bf16.mxu0 0
        %6204 = vmatpush1.bf16.msra.mxu0 %v6082
        %6205 = vmatprep.subr.bf16.mxu0 0
        %6206 = vmatpush1.bf16.msra.mxu0 %v6083
        %6207 = vmatprep.subr.bf16.mxu0 0
        %6208 = vmatpush1.bf16.msra.mxu0 %v6084
        %6209 = vmatprep.subr.bf16.mxu0 0
        %6210 = vmatpush1.bf16.msra.mxu0 %v6085
        %6211 = vmatprep.subr.bf16.mxu0 0
        %6212 = vmatpush1.bf16.msra.mxu0 %v6086
        %6213 = vmatprep.subr.bf16.mxu0 0
        %6214 = vmatpush1.bf16.msra.mxu0 %v6087
        %6215 = vmatprep.subr.bf16.mxu0 0
        %6216 = vmatpush1.bf16.msra.mxu0 %v6088
        %6217 = vmatprep.subr.bf16.mxu0 0
        %6218 = vmatpush1.bf16.msra.mxu0 %v6089
        %6219 = vmatprep.mubr.bf16.mxu0 %v5846
        %6220 = vmatmul.mubr.bf16.gmra.mrb[0].mxu0 %v5845
        %v6221 = vpop.f32.mrb[0].mxu0
        %v6222 = vadd.f32 %v6157, %v6221
        %v6223 = vpop.f32.mrb[0].mxu0
        %v6224 = vpop.f32.mrb[0].mxu0
        %v6225 = vadd.f32 %v6160, %v6224
        %v6226 = vpop.f32.mrb[0].mxu0
        %6227 = vmatprep.mubr.bf16.mxu0 %v5850
        %6228 = vmatmul.mubr.bf16.gmra.mrb[0].mxu0 %v5849
        %v6229 = vpop.f32.mrb[0].mxu0
        %v6230 = vadd.f32 %v6165, %v6229
        %v6231 = vpop.f32.mrb[0].mxu0
        %v6232 = vpop.f32.mrb[0].mxu0
        %v6233 = vadd.f32 %v6168, %v6232
        %v6234 = vpop.f32.mrb[0].mxu0
        %6235 = vmatprep.mubr.bf16.mxu0 %v5854
        %6236 = vmatmul.mubr.bf16.gmra.mrb[0].mxu0 %v5853
        %v6237 = vpop.f32.mrb[0].mxu0
        %v6238 = vadd.f32 %v6173, %v6237
        %v6239 = vpop.f32.mrb[0].mxu0
        %v6240 = vpop.f32.mrb[0].mxu0
        %v6241 = vadd.f32 %v6176, %v6240
        %v6242 = vpop.f32.mrb[0].mxu0
        %6243 = vmatprep.mubr.bf16.mxu0 %v5858
        %6244 = vmatmul.mubr.bf16.gmra.mrb[0].mxu0 %v5857
        %v6245 = vpop.f32.mrb[0].mxu0
        %v6246 = vadd.f32 %v6181, %v6245
        %v6247 = vpop.f32.mrb[0].mxu0
        %v6248 = vpop.f32.mrb[0].mxu0
        %v6249 = vadd.f32 %v6184, %v6248
        %v6250 = vpop.f32.mrb[0].mxu0
        %6251 = vdwg.mxu0
        %v6252 = vadd.f32 %v6222, %v5439
        %v6253 = vadd.f32 %v6225, %v5440
        %v6254 = vadd.f32 %v6230, %v5441
        %v6255 = vadd.f32 %v6233, %v5442
        %v6256 = vadd.f32 %v6238, %v5443
        %v6257 = vadd.f32 %v6241, %v5444
        %v6258 = vadd.f32 %v6246, %v5445
        %v6259 = vadd.f32 %v6249, %v5446
        %6260 = vadd.xlane.f32.xlu0 %v6252
        %v6261 = vpop.xlane.xlu0 %6260
        %6262 = vadd.xlane.f32.xlu0 %v6253
        %v6263 = vpop.xlane.xlu0 %6262
        %6264 = vadd.xlane.f32.xlu0 %v6254
        %v6265 = vpop.xlane.xlu0 %6264
        %6266 = vadd.xlane.f32.xlu0 %v6255
        %v6267 = vpop.xlane.xlu0 %6266
        %6268 = vadd.xlane.f32.xlu0 %v6256
        %v6269 = vpop.xlane.xlu0 %6268
        %6270 = vadd.xlane.f32.xlu0 %v6257
        %v6271 = vpop.xlane.xlu0 %6270
        %6272 = vadd.xlane.f32.xlu0 %v6258
        %v6273 = vpop.xlane.xlu0 %6272
        %6274 = vadd.xlane.f32.xlu0 %v6259
        %v6275 = vpop.xlane.xlu0 %6274
        %v6276 = vmul.f32 %v6261, %v3165
        %v6277 = vmul.f32 %v6263, %v3165
        %v6278 = vmul.f32 %v6265, %v3165
        %v6279 = vmul.f32 %v6267, %v3165
        %v6280 = vmul.f32 %v6269, %v3165
        %v6281 = vmul.f32 %v6271, %v3165
        %v6282 = vmul.f32 %v6273, %v3165
        %v6283 = vmul.f32 %v6275, %v3165
        %v6284 = vsub.f32 %v6252, %v6276
        %v6285 = vsub.f32 %v6253, %v6277
        %v6286 = vsub.f32 %v6254, %v6278
        %v6287 = vsub.f32 %v6255, %v6279
        %v6288 = vsub.f32 %v6256, %v6280
        %v6289 = vsub.f32 %v6257, %v6281
        %v6290 = vsub.f32 %v6258, %v6282
        %v6291 = vsub.f32 %v6259, %v6283
        %v6292 = vmul.f32 %v6284, %v6284
        %v6293 = vmul.f32 %v6285, %v6285
        %v6294 = vmul.f32 %v6286, %v6286
        %v6295 = vmul.f32 %v6287, %v6287
        %v6296 = vmul.f32 %v6288, %v6288
        %v6297 = vmul.f32 %v6289, %v6289
        %v6298 = vmul.f32 %v6290, %v6290
        %v6299 = vmul.f32 %v6291, %v6291
        %6300 = vadd.xlane.f32.xlu0 %v6292
        %v6301 = vpop.xlane.xlu0 %6300
        %6302 = vadd.xlane.f32.xlu0 %v6293
        %v6303 = vpop.xlane.xlu0 %6302
        %6304 = vadd.xlane.f32.xlu0 %v6294
        %v6305 = vpop.xlane.xlu0 %6304
        %6306 = vadd.xlane.f32.xlu0 %v6295
        %v6307 = vpop.xlane.xlu0 %6306
        %6308 = vadd.xlane.f32.xlu0 %v6296
        %v6309 = vpop.xlane.xlu0 %6308
        %6310 = vadd.xlane.f32.xlu0 %v6297
        %v6311 = vpop.xlane.xlu0 %6310
        %6312 = vadd.xlane.f32.xlu0 %v6298
        %v6313 = vpop.xlane.xlu0 %6312
        %6314 = vadd.xlane.f32.xlu0 %v6299
        %v6315 = vpop.xlane.xlu0 %6314
        %v6316 = vmul.f32 %v6301, %v3165
        %v6317 = vmul.f32 %v6303, %v3165
        %v6318 = vmul.f32 %v6305, %v3165
        %v6319 = vmul.f32 %v6307, %v3165
        %v6320 = vmul.f32 %v6309, %v3165
        %v6321 = vmul.f32 %v6311, %v3165
        %v6322 = vmul.f32 %v6313, %v3165
        %v6323 = vmul.f32 %v6315, %v3165
        %v6324 = vadd.f32 %v6316, 1e-05
        %v6325 = vadd.f32 %v6317, 1e-05
        %v6326 = vadd.f32 %v6318, 1e-05
        %v6327 = vadd.f32 %v6319, 1e-05
        %v6328 = vadd.f32 %v6320, 1e-05
        %v6329 = vadd.f32 %v6321, 1e-05
        %v6330 = vadd.f32 %v6322, 1e-05
        %v6331 = vadd.f32 %v6323, 1e-05
        %v6332 = vrsqrt.pop %v6324
        %v6333 = vrsqrt.pop %v6325
        %v6334 = vrsqrt.pop %v6326
        %v6335 = vrsqrt.pop %v6327
        %v6336 = vrsqrt.pop %v6328
        %v6337 = vrsqrt.pop %v6329
        %v6338 = vrsqrt.pop %v6330
        %v6339 = vrsqrt.pop %v6331
        %v6340 = vmul.f32 %v6284, %v6332
        %v6341 = vmul.f32 %v6285, %v6333
        %v6342 = vmul.f32 %v6286, %v6334
        %v6343 = vmul.f32 %v6287, %v6335
        %v6344 = vmul.f32 %v6288, %v6336
        %v6345 = vmul.f32 %v6289, %v6337
        %v6346 = vmul.f32 %v6290, %v6338
        %v6347 = vmul.f32 %v6291, %v6339
        %v6348 = vmul.f32 %v6340, %v5423
        %v6349 = vmul.f32 %v6341, %v5423
        %v6350 = vmul.f32 %v6342, %v5423
        %v6351 = vmul.f32 %v6343, %v5423
        %v6352 = vmul.f32 %v6344, %v5423
        %v6353 = vmul.f32 %v6345, %v5423
        %v6354 = vmul.f32 %v6346, %v5423
        %v6355 = vmul.f32 %v6347, %v5423
        %v6356 = vadd.f32 %v6348, %v5437
        %v6357 = vadd.f32 %v6349, %v5437
        %v6358 = vadd.f32 %v6350, %v5437
        %v6359 = vadd.f32 %v6351, %v5437
        %v6360 = vadd.f32 %v6352, %v5437
        %v6361 = vadd.f32 %v6353, %v5437
        %v6362 = vadd.f32 %v6354, %v5437
        %v6363 = vadd.f32 %v6355, %v5437
        %6364 = vst [vmem:[#allocation2] sm:$0xff] %v6356
        %6365 = vst [vmem:[#allocation2 + $0x8] sm:$0xff] %v6357
        %6366 = vst [vmem:[#allocation2 + $0x10] sm:$0xff] %v6358
        %6367 = vst [vmem:[#allocation2 + $0x18] sm:$0xff] %v6359
        %6368 = vst [vmem:[#allocation2 + $0x20] sm:$0xff] %v6360
        %6369 = vst [vmem:[#allocation2 + $0x28] sm:$0xff] %v6361
        %6370 = vst [vmem:[#allocation2 + $0x30] sm:$0xff] %v6362
        %6371 = vst [vmem:[#allocation2 + $0x38] sm:$0xff] %v6363
        %p6372 = scmp.eq.s32.totalorder %s41, 1
        // Predicated region
        $region113: #{decoder_forward.1} parent=107 // pred_check
          %p6373 = pneg %p6372
        $region114: #{decoder_forward.1} parent=107 // pred_check_branch
          %6375 = sbr.rel (%p6373) target = $region116
        $region115: #{decoder_forward.1} parent=107 // pred_region
          %v6376 = vpack.c.bf16 %v6357, %v6356
          %v6377 = vpack.c.bf16 %v6359, %v6358
          %v6378 = vpack.c.bf16 %v6361, %v6360
          %v6379 = vpack.c.bf16 %v6363, %v6362
          %v6380 = vld [vmem:[%s20] sm:$0xf]
          %v6381 = vld [vmem:[%s20 + $0x4] sm:$0xf]
          %v6382 = vld [vmem:[%s20 + $0x8] sm:$0xf]
          %v6383 = vld [vmem:[%s20 + $0xc] sm:$0xf]
          %v6384 = vld [vmem:[%s20 + $0x10] sm:$0xf]
          %v6385 = vld [vmem:[%s20 + $0x14] sm:$0xf]
          %v6386 = vld [vmem:[%s20 + $0x18] sm:$0xf]
          %v6387 = vld [vmem:[%s20 + $0x1c] sm:$0xf]
          %v6388 = vld [vmem:[%s20 + $0x20] sm:$0xf]
          %v6389 = vld [vmem:[%s20 + $0x24] sm:$0xf]
          %v6390 = vld [vmem:[%s20 + $0x28] sm:$0xf]
          %v6391 = vld [vmem:[%s20 + $0x2c] sm:$0xf]
          %v6392 = vld [vmem:[%s20 + $0x30] sm:$0xf]
          %v6393 = vld [vmem:[%s20 + $0x34] sm:$0xf]
          %v6394 = vld [vmem:[%s20 + $0x38] sm:$0xf]
          %v6395 = vld [vmem:[%s20 + $0x3c] sm:$0xf]
          %v6396 = vld [vmem:[%s21] sm:$0x1]
          %v6398 = vlaneseq
          %v6399 = vshrl.u32 %v6398, 7
          %v6400 = vsub.s32 0, %v6399
          %v6401 = vrot.slane %v6396, %v6400
          %v6419 = vunpack.c.l.b16 %v6380
          %v6420 = vunpack.c.l.b16 %v6381
          %v6421 = vunpack.c.l.b16 %v6382
          %v6422 = vunpack.c.l.b16 %v6383
          %v6423 = vunpack.c.l.b16 %v6384
          %v6424 = vunpack.c.l.b16 %v6385
          %v6425 = vunpack.c.l.b16 %v6386
          %v6426 = vunpack.c.l.b16 %v6387
          %v6427 = vunpack.c.l.b16 %v6388
          %v6428 = vunpack.c.l.b16 %v6389
          %v6429 = vunpack.c.l.b16 %v6390
          %v6430 = vunpack.c.l.b16 %v6391
          %v6431 = vunpack.c.l.b16 %v6392
          %v6432 = vunpack.c.l.b16 %v6393
          %v6433 = vunpack.c.l.b16 %v6394
          %v6434 = vunpack.c.l.b16 %v6395
          %v6435 = vpack.c.b16 %v6420, %v6419
          %v6436 = vpack.c.b16 %v6422, %v6421
          %v6437 = vpack.c.b16 %v6424, %v6423
          %v6438 = vpack.c.b16 %v6426, %v6425
          %v6439 = vpack.c.b16 %v6428, %v6427
          %v6440 = vpack.c.b16 %v6430, %v6429
          %v6441 = vpack.c.b16 %v6432, %v6431
          %v6442 = vpack.c.b16 %v6434, %v6433
          %6451 = vmatprep.subr.bf16.mxu0 0
          %6452 = vmatpush1.bf16.msra.mxu0 %v6435
          %6453 = vmatprep.subr.bf16.mxu0 0
          %6454 = vmatpush1.bf16.msra.mxu0 %v6436
          %6455 = vmatprep.subr.bf16.mxu0 0
          %6456 = vmatpush1.bf16.msra.mxu0 %v6437
          %6457 = vmatprep.subr.bf16.mxu0 0
          %6458 = vmatpush1.bf16.msra.mxu0 %v6438
          %6459 = vmatprep.subr.bf16.mxu0 0
          %6460 = vmatpush1.bf16.msra.mxu0 %v6439
          %6461 = vmatprep.subr.bf16.mxu0 0
          %6462 = vmatpush1.bf16.msra.mxu0 %v6440
          %6463 = vmatprep.subr.bf16.mxu0 0
          %6464 = vmatpush1.bf16.msra.mxu0 %v6441
          %6465 = vmatprep.subr.bf16.mxu0 0
          %6466 = vmatpush1.bf16.msra.mxu0 %v6442
          %6467 = vmatprep.subr.bf16.mxu0 0
          %6468 = vmatpush1.bf16.msra.mxu0 0
          %6469 = vmatprep.subr.bf16.mxu0 0
          %6470 = vmatpush1.bf16.msra.mxu0 0
          %6471 = vmatprep.subr.bf16.mxu0 0
          %6472 = vmatpush1.bf16.msra.mxu0 0
          %6473 = vmatprep.subr.bf16.mxu0 0
          %6474 = vmatpush1.bf16.msra.mxu0 0
          %6475 = vmatprep.subr.bf16.mxu0 0
          %6476 = vmatpush1.bf16.msra.mxu0 0
          %6477 = vmatprep.subr.bf16.mxu0 0
          %6478 = vmatpush1.bf16.msra.mxu0 0
          %6479 = vmatprep.subr.bf16.mxu0 0
          %6480 = vmatpush1.bf16.msra.mxu0 0
          %6481 = vmatprep.subr.bf16.mxu0 0
          %6482 = vmatpush1.bf16.msra.mxu0 0
          %6483 = vmatprep.mubr.bf16.mxu0 0
          %6484 = vmatmul.mubr.bf16.gmra.mrb[0].mxu0 %v6376
          %v6485 = vpop.f32.mrb[0].mxu0
          %v6486 = vadd.f32 %v6401, %v6485
          %v6487 = vpop.f32.mrb[0].mxu0
          %v6488 = vpop.f32.mrb[0].mxu0
          %v6489 = vadd.f32 %v6401, %v6488
          %v6490 = vpop.f32.mrb[0].mxu0
          %6491 = vmatprep.mubr.bf16.mxu0 0
          %6492 = vmatmul.mubr.bf16.gmra.mrb[0].mxu0 %v6377
          %v6493 = vpop.f32.mrb[0].mxu0
          %v6494 = vadd.f32 %v6401, %v6493
          %v6495 = vpop.f32.mrb[0].mxu0
          %v6496 = vpop.f32.mrb[0].mxu0
          %v6497 = vadd.f32 %v6401, %v6496
          %v6498 = vpop.f32.mrb[0].mxu0
          %6499 = vmatprep.mubr.bf16.mxu0 0
          %6500 = vmatmul.mubr.bf16.gmra.mrb[0].mxu0 %v6378
          %v6501 = vpop.f32.mrb[0].mxu0
          %v6502 = vadd.f32 %v6401, %v6501
          %v6503 = vpop.f32.mrb[0].mxu0
          %v6504 = vpop.f32.mrb[0].mxu0
          %v6505 = vadd.f32 %v6401, %v6504
          %v6506 = vpop.f32.mrb[0].mxu0
          %6507 = vmatprep.mubr.bf16.mxu0 0
          %6508 = vmatmul.mubr.bf16.gmra.mrb[0].mxu0 %v6379
          %v6509 = vpop.f32.mrb[0].mxu0
          %v6510 = vadd.f32 %v6401, %v6509
          %v6511 = vpop.f32.mrb[0].mxu0
          %v6512 = vpop.f32.mrb[0].mxu0
          %v6513 = vadd.f32 %v6401, %v6512
          %v6514 = vpop.f32.mrb[0].mxu0
          %6515 = vdwg.mxu0
          %6516 = vst [vmem:[%s949] sm:$0xff] %v6486
          %6517 = vst [vmem:[%s949 + $0x8] sm:$0xff] %v6489
          %6518 = vst [vmem:[%s949 + $0x10] sm:$0xff] %v6494
          %6519 = vst [vmem:[%s949 + $0x18] sm:$0xff] %v6497
          %6520 = vst [vmem:[%s949 + $0x20] sm:$0xff] %v6502
          %6521 = vst [vmem:[%s949 + $0x28] sm:$0xff] %v6505
          %6522 = vst [vmem:[%s949 + $0x30] sm:$0xff] %v6510
          %6523 = vst [vmem:[%s949 + $0x38] sm:$0xff] %v6513
        $region116: #{decoder_forward.1} parent=107 // pred_fallthru
          _
        %s6524 = sand.u32 %s618, 1
        %s6525 = scalar_lea.sflag [#allocation4], %s6524
        %s6526 = sand.u32 %s618, 1
        %s6527 = smul.addr %s6526, 64
        %s6528 = scalar_lea.vmem [#allocation3], %s6527
        // Predicated region
        $region117: #{decoder_forward.1} parent=107 // pred_check
          %p6529 = pneg %p628
        $region118: #{decoder_forward.1} parent=107 // pred_check_branch
          %6531 = sbr.rel (%p6529) target = $region120
        $region119: #{decoder_forward.1} parent=107 // pred_region
          %s6532 = smul.u32 2, %s40
          %s6534 = ssub.s32 1024, 1024
          %6535 = vsyncadd %s6525, %s6534
          %s6536 = smul.addr %s6532, 4
          %s6537 = smul.addr %s6536, 128
          %s6538 = scalar_lea.hbm %s22, %s6537
          %s6539 = sshll.u32 %s6528, 4
          %s6540 = int_to_ptr.vmem [resolvable:$true] %s6539
          %6545 = dma.vmem_to_hbm [thread:$0]  %s6540, 1024, %s6538, %s6525, 128, 128, 8
        $region120: #{decoder_forward.1} parent=107 // pred_fallthru
          _
      $region108: #{decoder_forward.1} parent=5 // pred_fallthru
        _
      %p6546 = scmp.le.s32.totalorder 2, %s31
      // Predicated region
      $region121: #{decoder_forward.1} parent=5 // pred_check
        %p6547 = pneg %p6546
      $region122: #{decoder_forward.1} parent=5 // pred_check_branch
        %6549 = sbr.rel (%p6547) target = $region124
      $region123: #{decoder_forward.1} parent=5 // pred_region
        %s6550 = ssub.s32 %s31, 2
        // Predicated region
        $region125: #{decoder_forward.1} parent=123 // pred_check
          %p6551 = pneg %p634
        $region126: #{decoder_forward.1} parent=123 // pred_check_branch
          %6553 = sbr.rel (%p6551) target = $region128
        $region127: #{decoder_forward.1} parent=123 // pred_region
          %s6554 = sand.u32 %s619, 1
          %s6555 = scalar_lea.sflag [#allocation4], %s6554
          %s6556 = sand.u32 %s619, 1
          %s6557 = smul.addr %s6556, 64
          %s6558 = scalar_lea.vmem [#allocation3], %s6557
          %6559 = dma.done %s6555, 1024
        $region128: #{decoder_forward.1} parent=123 // pred_fallthru
          _
      $region124: #{decoder_forward.1} parent=5 // pred_fallthru
        _
    $region6: #{decoder_forward.1} parent=1 // loop_footer
      %s35 = sadd.s32 1, %s31
    $region7: #{decoder_forward.1} parent=1 // loop_footer_branch
      %30 = sbr.rel target = $region3
    $region8: #{decoder_forward.1} parent=1 // loop_exit
      _
    %6560 = vsyncpa [#allocation4], 1
    %s6561 = scalar_lea.sflag [#allocation4], 1
    %6562 = vsyncpa %s6561, 1

</llo_original>
